<compile_context>
chip_gen: v5e
topology: v5e:2x2
jax: 0.10.0
libtpu: 0.0.40
codegen_flags: <defaults>
</compile_context>

<pallas_src>
import numpy as np
import jax
import jax.numpy as jnp
from jax.experimental import pallas as pl
from jax.experimental.pallas import tpu as pltpu

DEPTH = 8
WIDTH = 256
IN_DIM = 3
SDF_DIM = 128
SKIPS = (4,)
MULTIRES = 6
PE_DIM = MULTIRES * IN_DIM * 2 + IN_DIM   # 39
PE_PAD = 128                              # lane-padded PE width
OUT_PAD = 128                             # packed output width (rgb|sdf in lanes 0..3)


# ------------------------------------------------------------------ kernel ---
def decoder_kernel(x_ref, f0_ref, f1_ref, f2_ref, phase_ref, mask_ref,
                   w0, b0, w1, b1, w2, b2, w3, b3, w4, b4,
                   w5pe, w5h, b5, w6, b6, w7, b7,
                   wsf, bsf, wc1f, wc1pe, bc1, wrgb, brgb,
                   out_ref):
    # x lanes 0..2 hold xyz; lanes >= 3 are ZERO.  This zero-pad (done in the
    # wrapper) is load-bearing: the identity part of the positional embedding
    # is taken directly from x, with no identity matmul.
    x = x_ref[...]                                        # (TN, 128) f32

    # NeRF positional embedding with a single EUP sin:
    #   pe = x + mask * sin(x_c * freq_layout_c + phase)     (cos == sin(.+pi/2))
    # Kept in f32: frequencies reach 2^5, bf16 arguments would degrade sin/cos.
    xb = (x[:, 0:1] * f0_ref[...]
          + x[:, 1:2] * f1_ref[...]
          + x[:, 2:3] * f2_ref[...]
          + phase_ref[...])
    pe = x + mask_ref[...] * jnp.sin(xb)                  # (TN,128), lanes 0..38 valid
    pe_bf = pe.astype(jnp.bfloat16)

    def dot(a_bf, w):
        return jnp.dot(a_bf, w[...], preferred_element_type=jnp.float32)

    def lin_relu(a_bf, w, b):
        return jnp.maximum(dot(a_bf, w) + b[...], 0.0)

    h = lin_relu(pe_bf, w0, b0)
    h = lin_relu(h.astype(jnp.bfloat16), w1, b1)
    h = lin_relu(h.astype(jnp.bfloat16), w2, b2)
    h = lin_relu(h.astype(jnp.bfloat16), w3, b3)
    h = lin_relu(h.astype(jnp.bfloat16), w4, b4)
    # skip layer: relu(cat([pe, h]) @ W5 + b5) == relu(pe @ W5_pe + h @ W5_h + b5)
    h = jnp.maximum(dot(pe_bf, w5pe) + dot(h.astype(jnp.bfloat16), w5h) + b5[...],
                    0.0)
    h = lin_relu(h.astype(jnp.bfloat16), w6, b6)
    h = lin_relu(h.astype(jnp.bfloat16), w7, b7)

    # fused sdf/feat head: one 256-wide matmul; lanes 0..127 = feat,
    # lane 128+3 = sdf value (so the output ends up packed as rgb|sdf).
    sf = dot(h.astype(jnp.bfloat16), wsf) + bsf[...]      # (TN, 256) f32
    feat = sf[:, :SDF_DIM]
    sdf_blk = sf[:, SDF_DIM:]                             # sdf at lane 3, rest 0

    # color head: relu(cat([feat, pe]) @ Wc1 + bc1) == relu(feat@Wc1f + pe@Wc1pe + bc1)
    h2 = jnp.maximum(dot(feat.astype(jnp.bfloat16), wc1f)
                     + dot(pe_bf, wc1pe) + bc1[...], 0.0)
    pre_rgb = dot(h2.astype(jnp.bfloat16), wrgb) + brgb[...]

    col = jax.lax.broadcasted_iota(jnp.int32, pre_rgb.shape, 1)
    # lanes 0..2 = sigmoid(rgb), lane 3 = sdf, lanes >= 4 = don't-care (sliced off)
    out_ref[...] = jnp.where(col < 3, jax.nn.sigmoid(pre_rgb), sdf_blk)


# ------------------------------------------------------------- parameters ----
def init_params(key):
    """Deterministic init (PyTorch-Linear-like uniform), math layout W:(in,out)."""
    def linear(k, fan_in, fan_out):
        k1, k2 = jax.random.split(k)
        bound = 1.0 / np.sqrt(fan_in)
        W = jax.random.uniform(k1, (fan_in, fan_out), jnp.float32, -bound, bound)
        b = jax.random.uniform(k2, (fan_out,), jnp.float32, -bound, bound)
        return W, b

    keys = jax.random.split(key, DEPTH + 3)
    lin_in = [PE_DIM] + [WIDTH + PE_DIM if i in SKIPS else WIDTH
                         for i in range(DEPTH - 1)]
    lins = [linear(keys[i], lin_in[i], WIDTH) for i in range(DEPTH)]
    sdf_p = linear(keys[DEPTH + 0], WIDTH, 1 + SDF_DIM)
    c1_p = linear(keys[DEPTH + 1], SDF_DIM + PE_DIM, WIDTH)
    c2_p = linear(keys[DEPTH + 2], WIDTH, 3)
    return lins, sdf_p, c1_p, c2_p


def pe_constants():
    """Per-channel frequency layouts + phase (pi/2 on cos lanes) + valid mask."""
    freqs = 2.0 ** np.arange(MULTIRES, dtype=np.float32)   # == 2**linspace(0,5,6)
    f = np.zeros((IN_DIM, 1, PE_PAD), np.float32)
    phase = np.zeros((1, PE_PAD), np.float32)
    mask = np.zeros((1, PE_PAD), np.float32)
    for k, fr in enumerate(freqs):
        base = IN_DIM + 2 * IN_DIM * k
        for c in range(IN_DIM):
            f[c, 0, base + c] = fr                   # sin lane
            f[c, 0, base + IN_DIM + c] = fr          # cos lane
            mask[0, base + c] = 1.0
            mask[0, base + IN_DIM + c] = 1.0
            phase[0, base + IN_DIM + c] = np.pi / 2.0
    return f[0], f[1], f[2], phase, mask


def pack_params(lins, sdf_p, c1_p, c2_p):
    """Zero-pad / split / fuse weights; weights in bf16, biases in f32."""
    f32 = lambda t: np.asarray(t, np.float32)
    wbf = lambda w: jnp.asarray(np.asarray(w, np.float32)).astype(jnp.bfloat16)
    bf32 = lambda b: jnp.asarray(np.asarray(b, np.float32)[None, :])
    packed = []

    W0, b0 = lins[0]
    W0p = np.zeros((PE_PAD, WIDTH), np.float32)
    W0p[:PE_DIM] = f32(W0)
    packed += [wbf(W0p), bf32(b0)]

    for m in range(1, DEPTH):
        W, b = lins[m]
        W = f32(W)
        if (m - 1) in SKIPS:                          # skip layer: split pe / h parts
            Wpe = np.zeros((PE_PAD, WIDTH), np.float32)
            Wpe[:PE_DIM] = W[:PE_DIM]
            Wh = W[PE_DIM:]
            packed += [wbf(Wpe), wbf(Wh), bf32(b)]
        else:
            packed += [wbf(W), bf32(b)]

    Wsdf, bsdf = f32(sdf_p[0]), f32(sdf_p[1])         # (256, 129), (129,)
    Wsf = np.zeros((WIDTH, 2 * SDF_DIM), np.float32)
    Wsf[:, :SDF_DIM] = Wsdf[:, 1:1 + SDF_DIM]         # feat part
    Wsf[:, SDF_DIM + 3] = Wsdf[:, 0]                  # sdf routed to lane 128+3
    bsf = np.zeros((1, 2 * SDF_DIM), np.float32)
    bsf[0, :SDF_DIM] = bsdf[1:1 + SDF_DIM]
    bsf[0, SDF_DIM + 3] = bsdf[0]
    packed += [wbf(Wsf), jnp.asarray(bsf)]

    Wc1, bc1 = f32(c1_p[0]), f32(c1_p[1])             # (167, 256), (256,)
    Wc1f = Wc1[:SDF_DIM]                              # feat rows
    Wc1pe = np.zeros((PE_PAD, WIDTH), np.float32)
    Wc1pe[:PE_DIM] = Wc1[SDF_DIM:]                    # pe rows
    packed += [wbf(Wc1f), wbf(Wc1pe), bf32(bc1)]

    Wc2, bc2 = f32(c2_p[0]), f32(c2_p[1])             # (256, 3), (3,)
    Wrgb = np.zeros((WIDTH, OUT_PAD), np.float32)
    Wrgb[:, :3] = Wc2
    brgb = np.zeros((1, OUT_PAD), np.float32)
    brgb[0, :3] = bc2
    packed += [wbf(Wrgb), jnp.asarray(brgb)]
    return packed


# --------------------------------------------------------------- wrapper -----
def _pick_tile(n):
    # Larger tiles amortize per-step overhead / MXU fill-drain, but keep at
    # least 2 grid blocks so the "parallel" axis can shard across v7x's 2 TCs.
    for tn in (512, 256):
        if n >= 2 * tn:
            return tn
    return 128


def decoder_forward(x, consts, tn=None):
    """x: (N, 3) float32.  Returns {'color': (N,3), 'sdf': (N,)}."""
    N = x.shape[0]
    if tn is None:
        tn = _pick_tile(N)
    Np = ((N + tn - 1) // tn) * tn
    # Lanes >= 3 MUST be zero: the kernel uses x directly as the identity part
    # of the positional embedding.
    xp = jnp.zeros((Np, PE_PAD), jnp.float32).at[:N, :IN_DIM].set(
        x.astype(jnp.float32))

    n_blocks = Np // tn
    const_specs = [pl.BlockSpec(c.shape, lambda i: (0, 0)) for c in consts]

    out = pl.pallas_call(
        decoder_kernel,
        out_shape=jax.ShapeDtypeStruct((Np, OUT_PAD), jnp.float32),
        grid_spec=pltpu.PrefetchScalarGridSpec(
            num_scalar_prefetch=0,
            grid=(n_blocks,),
            in_specs=[pl.BlockSpec((tn, PE_PAD), lambda i: (i, 0))] + const_specs,
            out_specs=pl.BlockSpec((tn, OUT_PAD), lambda i: (i, 0)),
        ),
        compiler_params=pltpu.CompilerParams(dimension_semantics=("parallel",)),
    )(xp, *consts)

    # TODO(synk): downstream consumers could read the packed (Np,128) slab
    # directly to avoid this post-kernel re-slice at large N.
    out = out[:N]
    return {'color': out[:, :3], 'sdf': out[:, 3]}


# --------------------------------------------------------- pure-JAX check ----
def reference_forward(x, lins, sdf_p, c1_p, c2_p):
    freqs = 2.0 ** jnp.arange(MULTIRES, dtype=jnp.float32)
    feats = [x]
    for f in freqs:
        feats += [jnp.sin(x * f), jnp.cos(x * f)]
    pe = jnp.concatenate(feats, -1)
    h = pe
    for i in range(DEPTH):
        W, b = lins[i]
        h = jax.nn.relu(h @ W + b)
        if i in SKIPS:
            h = jnp.concatenate([pe, h], -1)
    so = h @ sdf_p[0] + sdf_p[1]
    sdf, feat = so[:, :1], so[:, 1:]
    h2 = jnp.concatenate([feat, pe], -1)
    rgb = jax.nn.sigmoid(jax.nn.relu(h2 @ c1_p[0] + c1_p[1]) @ c2_p[0] + c2_p[1])
    return {'color': rgb, 'sdf': sdf[:, 0]}


# ------------------------------------------------------------------- main ----
if __name__ == "__main__":
    key = jax.random.PRNGKey(0)
    k_param, k_x = jax.random.split(key)

    lins, sdf_p, c1_p, c2_p = init_params(k_param)
    f0, f1, f2, phase, mask = pe_constants()
    consts = ([jnp.asarray(f0), jnp.asarray(f1), jnp.asarray(f2),
               jnp.asarray(phase), jnp.asarray(mask)]
              + pack_params(lins, sdf_p, c1_p, c2_p))

    N = 256
    x = jax.random.uniform(k_x, (N, IN_DIM), jnp.float32, minval=-1.0, maxval=1.0)

    out = decoder_forward(x, consts)
    jax.block_until_ready(out)

    ref = reference_forward(x, lins, sdf_p, c1_p, c2_p)
    np.testing.assert_allclose(np.asarray(out['color']), np.asarray(ref['color']),
                               rtol=5e-2, atol=5e-2)
    np.testing.assert_allclose(np.asarray(out['sdf']), np.asarray(ref['sdf']),
                               rtol=5e-2, atol=5e-2)

    print("KERNEL_OK")
</pallas_src>

<mosaic_0001>
module attributes {stable_mosaic.version = 11 : i64} {
  func.func @decoder_kernel(%arg0: i32, %arg1: memref<128x128xf32, #tpu.memory_space<vmem>>, %arg2: memref<1x128xf32, #tpu.memory_space<vmem>>, %arg3: memref<1x128xf32, #tpu.memory_space<vmem>>, %arg4: memref<1x128xf32, #tpu.memory_space<vmem>>, %arg5: memref<1x128xf32, #tpu.memory_space<vmem>>, %arg6: memref<1x128xf32, #tpu.memory_space<vmem>>, %arg7: memref<128x256xbf16, #tpu.memory_space<vmem>>, %arg8: memref<1x256xf32, #tpu.memory_space<vmem>>, %arg9: memref<256x256xbf16, #tpu.memory_space<vmem>>, %arg10: memref<1x256xf32, #tpu.memory_space<vmem>>, %arg11: memref<256x256xbf16, #tpu.memory_space<vmem>>, %arg12: memref<1x256xf32, #tpu.memory_space<vmem>>, %arg13: memref<256x256xbf16, #tpu.memory_space<vmem>>, %arg14: memref<1x256xf32, #tpu.memory_space<vmem>>, %arg15: memref<256x256xbf16, #tpu.memory_space<vmem>>, %arg16: memref<1x256xf32, #tpu.memory_space<vmem>>, %arg17: memref<128x256xbf16, #tpu.memory_space<vmem>>, %arg18: memref<256x256xbf16, #tpu.memory_space<vmem>>, %arg19: memref<1x256xf32, #tpu.memory_space<vmem>>, %arg20: memref<256x256xbf16, #tpu.memory_space<vmem>>, %arg21: memref<1x256xf32, #tpu.memory_space<vmem>>, %arg22: memref<256x256xbf16, #tpu.memory_space<vmem>>, %arg23: memref<1x256xf32, #tpu.memory_space<vmem>>, %arg24: memref<256x256xbf16, #tpu.memory_space<vmem>>, %arg25: memref<1x256xf32, #tpu.memory_space<vmem>>, %arg26: memref<128x256xbf16, #tpu.memory_space<vmem>>, %arg27: memref<128x256xbf16, #tpu.memory_space<vmem>>, %arg28: memref<1x256xf32, #tpu.memory_space<vmem>>, %arg29: memref<256x128xbf16, #tpu.memory_space<vmem>>, %arg30: memref<1x128xf32, #tpu.memory_space<vmem>>, %arg31: memref<128x128xf32, #tpu.memory_space<vmem>>) attributes {dimension_semantics = [#tpu.dimension_semantics<parallel>], iteration_bounds = array<i64: 2>, scalar_prefetch = 0 : i64, scratch_operands = 0 : i64, tpu.core_type = #tpu.core_type<tc>, window_params = [{transform_indices = @transform_0, window_bounds = array<i64: 128, 128>}, {pipeline_mode = #tpu.pipeline_mode<synchronous>, transform_indices = @transform_1, window_bounds = array<i64: 1, 128>}, {pipeline_mode = #tpu.pipeline_mode<synchronous>, transform_indices = @transform_2, window_bounds = array<i64: 1, 128>}, {pipeline_mode = #tpu.pipeline_mode<synchronous>, transform_indices = @transform_3, window_bounds = array<i64: 1, 128>}, {pipeline_mode = #tpu.pipeline_mode<synchronous>, transform_indices = @transform_4, window_bounds = array<i64: 1, 128>}, {pipeline_mode = #tpu.pipeline_mode<synchronous>, transform_indices = @transform_5, window_bounds = array<i64: 1, 128>}, {pipeline_mode = #tpu.pipeline_mode<synchronous>, transform_indices = @transform_6, window_bounds = array<i64: 128, 256>}, {pipeline_mode = #tpu.pipeline_mode<synchronous>, transform_indices = @transform_7, window_bounds = array<i64: 1, 256>}, {pipeline_mode = #tpu.pipeline_mode<synchronous>, transform_indices = @transform_8, window_bounds = array<i64: 256, 256>}, {pipeline_mode = #tpu.pipeline_mode<synchronous>, transform_indices = @transform_9, window_bounds = array<i64: 1, 256>}, {pipeline_mode = #tpu.pipeline_mode<synchronous>, transform_indices = @transform_10, window_bounds = array<i64: 256, 256>}, {pipeline_mode = #tpu.pipeline_mode<synchronous>, transform_indices = @transform_11, window_bounds = array<i64: 1, 256>}, {pipeline_mode = #tpu.pipeline_mode<synchronous>, transform_indices = @transform_12, window_bounds = array<i64: 256, 256>}, {pipeline_mode = #tpu.pipeline_mode<synchronous>, transform_indices = @transform_13, window_bounds = array<i64: 1, 256>}, {pipeline_mode = #tpu.pipeline_mode<synchronous>, transform_indices = @transform_14, window_bounds = array<i64: 256, 256>}, {pipeline_mode = #tpu.pipeline_mode<synchronous>, transform_indices = @transform_15, window_bounds = array<i64: 1, 256>}, {pipeline_mode = #tpu.pipeline_mode<synchronous>, transform_indices = @transform_16, window_bounds = array<i64: 128, 256>}, {pipeline_mode = #tpu.pipeline_mode<synchronous>, transform_indices = @transform_17, window_bounds = array<i64: 256, 256>}, {pipeline_mode = #tpu.pipeline_mode<synchronous>, transform_indices = @transform_18, window_bounds = array<i64: 1, 256>}, {pipeline_mode = #tpu.pipeline_mode<synchronous>, transform_indices = @transform_19, window_bounds = array<i64: 256, 256>}, {pipeline_mode = #tpu.pipeline_mode<synchronous>, transform_indices = @transform_20, window_bounds = array<i64: 1, 256>}, {pipeline_mode = #tpu.pipeline_mode<synchronous>, transform_indices = @transform_21, window_bounds = array<i64: 256, 256>}, {pipeline_mode = #tpu.pipeline_mode<synchronous>, transform_indices = @transform_22, window_bounds = array<i64: 1, 256>}, {pipeline_mode = #tpu.pipeline_mode<synchronous>, transform_indices = @transform_23, window_bounds = array<i64: 256, 256>}, {pipeline_mode = #tpu.pipeline_mode<synchronous>, transform_indices = @transform_24, window_bounds = array<i64: 1, 256>}, {pipeline_mode = #tpu.pipeline_mode<synchronous>, transform_indices = @transform_25, window_bounds = array<i64: 128, 256>}, {pipeline_mode = #tpu.pipeline_mode<synchronous>, transform_indices = @transform_26, window_bounds = array<i64: 128, 256>}, {pipeline_mode = #tpu.pipeline_mode<synchronous>, transform_indices = @transform_27, window_bounds = array<i64: 1, 256>}, {pipeline_mode = #tpu.pipeline_mode<synchronous>, transform_indices = @transform_28, window_bounds = array<i64: 256, 128>}, {pipeline_mode = #tpu.pipeline_mode<synchronous>, transform_indices = @transform_29, window_bounds = array<i64: 1, 128>}, {transform_indices = @transform_30, window_bounds = array<i64: 128, 128>}]} {
    %c0 = arith.constant 0 : index
    %c0_0 = arith.constant 0 : index
    %0 = vector.load %arg1[%c0, %c0_0] : memref<128x128xf32, #tpu.memory_space<vmem>>, vector<128x128xf32>
    %1 = vector.extract_strided_slice %0 {offsets = [0, 0], sizes = [128, 1], strides = [1, 1]} : vector<128x128xf32> to vector<128x1xf32>
    %c0_1 = arith.constant 0 : index
    %c0_2 = arith.constant 0 : index
    %2 = vector.load %arg2[%c0_1, %c0_2] : memref<1x128xf32, #tpu.memory_space<vmem>>, vector<1x128xf32>
    %3 = vector.broadcast %1 : vector<128x1xf32> to vector<128x128xf32>
    %4 = vector.broadcast %2 : vector<1x128xf32> to vector<128x128xf32>
    %5 = arith.mulf %3, %4 : vector<128x128xf32>
    %6 = vector.extract_strided_slice %0 {offsets = [0, 1], sizes = [128, 1], strides = [1, 1]} : vector<128x128xf32> to vector<128x1xf32>
    %c0_3 = arith.constant 0 : index
    %c0_4 = arith.constant 0 : index
    %7 = vector.load %arg3[%c0_3, %c0_4] : memref<1x128xf32, #tpu.memory_space<vmem>>, vector<1x128xf32>
    %8 = vector.broadcast %6 : vector<128x1xf32> to vector<128x128xf32>
    %9 = vector.broadcast %7 : vector<1x128xf32> to vector<128x128xf32>
    %10 = arith.mulf %8, %9 : vector<128x128xf32>
    %11 = arith.addf %5, %10 : vector<128x128xf32>
    %12 = vector.extract_strided_slice %0 {offsets = [0, 2], sizes = [128, 1], strides = [1, 1]} : vector<128x128xf32> to vector<128x1xf32>
    %c0_5 = arith.constant 0 : index
    %c0_6 = arith.constant 0 : index
    %13 = vector.load %arg4[%c0_5, %c0_6] : memref<1x128xf32, #tpu.memory_space<vmem>>, vector<1x128xf32>
    %14 = vector.broadcast %12 : vector<128x1xf32> to vector<128x128xf32>
    %15 = vector.broadcast %13 : vector<1x128xf32> to vector<128x128xf32>
    %16 = arith.mulf %14, %15 : vector<128x128xf32>
    %17 = arith.addf %11, %16 : vector<128x128xf32>
    %c0_7 = arith.constant 0 : index
    %c0_8 = arith.constant 0 : index
    %18 = vector.load %arg5[%c0_7, %c0_8] : memref<1x128xf32, #tpu.memory_space<vmem>>, vector<1x128xf32>
    %19 = vector.broadcast %18 : vector<1x128xf32> to vector<128x128xf32>
    %20 = arith.addf %17, %19 : vector<128x128xf32>
    %c0_9 = arith.constant 0 : index
    %c0_10 = arith.constant 0 : index
    %21 = vector.load %arg6[%c0_9, %c0_10] : memref<1x128xf32, #tpu.memory_space<vmem>>, vector<1x128xf32>
    %22 = math.sin %20 : vector<128x128xf32>
    %23 = vector.broadcast %21 : vector<1x128xf32> to vector<128x128xf32>
    %24 = arith.mulf %23, %22 : vector<128x128xf32>
    %25 = arith.addf %0, %24 : vector<128x128xf32>
    %26 = arith.truncf %25 : vector<128x128xf32> to vector<128x128xbf16>
    %c0_11 = arith.constant 0 : index
    %c0_12 = arith.constant 0 : index
    %27 = vector.load %arg7[%c0_11, %c0_12] : memref<128x256xbf16, #tpu.memory_space<vmem>>, vector<128x256xbf16>
    %cst = arith.constant dense<0.000000e+00> : vector<128x256xf32>
    %28 = tpu.matmul %26, %27, %cst {dimension_numbers = #tpu.dot_dimension_numbers<[1], [0], [0], [1], [0, 0, 1, 1], [], []>} : vector<128x128xbf16>, vector<128x256xbf16>, vector<128x256xf32> -> vector<128x256xf32>
    %c0_13 = arith.constant 0 : index
    %c0_14 = arith.constant 0 : index
    %29 = vector.load %arg8[%c0_13, %c0_14] : memref<1x256xf32, #tpu.memory_space<vmem>>, vector<1x256xf32>
    %30 = vector.broadcast %29 : vector<1x256xf32> to vector<128x256xf32>
    %31 = arith.addf %28, %30 : vector<128x256xf32>
    %cst_15 = arith.constant 0.000000e+00 : f32
    %32 = vector.broadcast %cst_15 : f32 to vector<128x256xf32>
    %33 = arith.maximumf %31, %32 : vector<128x256xf32>
    %34 = arith.truncf %33 : vector<128x256xf32> to vector<128x256xbf16>
    %c0_16 = arith.constant 0 : index
    %c0_17 = arith.constant 0 : index
    %35 = vector.load %arg9[%c0_16, %c0_17] : memref<256x256xbf16, #tpu.memory_space<vmem>>, vector<256x256xbf16>
    %cst_18 = arith.constant dense<0.000000e+00> : vector<128x256xf32>
    %36 = tpu.matmul %34, %35, %cst_18 {dimension_numbers = #tpu.dot_dimension_numbers<[1], [0], [0], [1], [0, 0, 1, 1], [], []>} : vector<128x256xbf16>, vector<256x256xbf16>, vector<128x256xf32> -> vector<128x256xf32>
    %c0_19 = arith.constant 0 : index
    %c0_20 = arith.constant 0 : index
    %37 = vector.load %arg10[%c0_19, %c0_20] : memref<1x256xf32, #tpu.memory_space<vmem>>, vector<1x256xf32>
    %38 = vector.broadcast %37 : vector<1x256xf32> to vector<128x256xf32>
    %39 = arith.addf %36, %38 : vector<128x256xf32>
    %cst_21 = arith.constant 0.000000e+00 : f32
    %40 = vector.broadcast %cst_21 : f32 to vector<128x256xf32>
    %41 = arith.maximumf %39, %40 : vector<128x256xf32>
    %42 = arith.truncf %41 : vector<128x256xf32> to vector<128x256xbf16>
    %c0_22 = arith.constant 0 : index
    %c0_23 = arith.constant 0 : index
    %43 = vector.load %arg11[%c0_22, %c0_23] : memref<256x256xbf16, #tpu.memory_space<vmem>>, vector<256x256xbf16>
    %cst_24 = arith.constant dense<0.000000e+00> : vector<128x256xf32>
    %44 = tpu.matmul %42, %43, %cst_24 {dimension_numbers = #tpu.dot_dimension_numbers<[1], [0], [0], [1], [0, 0, 1, 1], [], []>} : vector<128x256xbf16>, vector<256x256xbf16>, vector<128x256xf32> -> vector<128x256xf32>
    %c0_25 = arith.constant 0 : index
    %c0_26 = arith.constant 0 : index
    %45 = vector.load %arg12[%c0_25, %c0_26] : memref<1x256xf32, #tpu.memory_space<vmem>>, vector<1x256xf32>
    %46 = vector.broadcast %45 : vector<1x256xf32> to vector<128x256xf32>
    %47 = arith.addf %44, %46 : vector<128x256xf32>
    %cst_27 = arith.constant 0.000000e+00 : f32
    %48 = vector.broadcast %cst_27 : f32 to vector<128x256xf32>
    %49 = arith.maximumf %47, %48 : vector<128x256xf32>
    %50 = arith.truncf %49 : vector<128x256xf32> to vector<128x256xbf16>
    %c0_28 = arith.constant 0 : index
    %c0_29 = arith.constant 0 : index
    %51 = vector.load %arg13[%c0_28, %c0_29] : memref<256x256xbf16, #tpu.memory_space<vmem>>, vector<256x256xbf16>
    %cst_30 = arith.constant dense<0.000000e+00> : vector<128x256xf32>
    %52 = tpu.matmul %50, %51, %cst_30 {dimension_numbers = #tpu.dot_dimension_numbers<[1], [0], [0], [1], [0, 0, 1, 1], [], []>} : vector<128x256xbf16>, vector<256x256xbf16>, vector<128x256xf32> -> vector<128x256xf32>
    %c0_31 = arith.constant 0 : index
    %c0_32 = arith.constant 0 : index
    %53 = vector.load %arg14[%c0_31, %c0_32] : memref<1x256xf32, #tpu.memory_space<vmem>>, vector<1x256xf32>
    %54 = vector.broadcast %53 : vector<1x256xf32> to vector<128x256xf32>
    %55 = arith.addf %52, %54 : vector<128x256xf32>
    %cst_33 = arith.constant 0.000000e+00 : f32
    %56 = vector.broadcast %cst_33 : f32 to vector<128x256xf32>
    %57 = arith.maximumf %55, %56 : vector<128x256xf32>
    %58 = arith.truncf %57 : vector<128x256xf32> to vector<128x256xbf16>
    %c0_34 = arith.constant 0 : index
    %c0_35 = arith.constant 0 : index
    %59 = vector.load %arg15[%c0_34, %c0_35] : memref<256x256xbf16, #tpu.memory_space<vmem>>, vector<256x256xbf16>
    %cst_36 = arith.constant dense<0.000000e+00> : vector<128x256xf32>
    %60 = tpu.matmul %58, %59, %cst_36 {dimension_numbers = #tpu.dot_dimension_numbers<[1], [0], [0], [1], [0, 0, 1, 1], [], []>} : vector<128x256xbf16>, vector<256x256xbf16>, vector<128x256xf32> -> vector<128x256xf32>
    %c0_37 = arith.constant 0 : index
    %c0_38 = arith.constant 0 : index
    %61 = vector.load %arg16[%c0_37, %c0_38] : memref<1x256xf32, #tpu.memory_space<vmem>>, vector<1x256xf32>
    %62 = vector.broadcast %61 : vector<1x256xf32> to vector<128x256xf32>
    %63 = arith.addf %60, %62 : vector<128x256xf32>
    %cst_39 = arith.constant 0.000000e+00 : f32
    %64 = vector.broadcast %cst_39 : f32 to vector<128x256xf32>
    %65 = arith.maximumf %63, %64 : vector<128x256xf32>
    %c0_40 = arith.constant 0 : index
    %c0_41 = arith.constant 0 : index
    %66 = vector.load %arg17[%c0_40, %c0_41] : memref<128x256xbf16, #tpu.memory_space<vmem>>, vector<128x256xbf16>
    %cst_42 = arith.constant dense<0.000000e+00> : vector<128x256xf32>
    %67 = tpu.matmul %26, %66, %cst_42 {dimension_numbers = #tpu.dot_dimension_numbers<[1], [0], [0], [1], [0, 0, 1, 1], [], []>} : vector<128x128xbf16>, vector<128x256xbf16>, vector<128x256xf32> -> vector<128x256xf32>
    %68 = arith.truncf %65 : vector<128x256xf32> to vector<128x256xbf16>
    %c0_43 = arith.constant 0 : index
    %c0_44 = arith.constant 0 : index
    %69 = vector.load %arg18[%c0_43, %c0_44] : memref<256x256xbf16, #tpu.memory_space<vmem>>, vector<256x256xbf16>
    %cst_45 = arith.constant dense<0.000000e+00> : vector<128x256xf32>
    %70 = tpu.matmul %68, %69, %cst_45 {dimension_numbers = #tpu.dot_dimension_numbers<[1], [0], [0], [1], [0, 0, 1, 1], [], []>} : vector<128x256xbf16>, vector<256x256xbf16>, vector<128x256xf32> -> vector<128x256xf32>
    %71 = arith.addf %67, %70 : vector<128x256xf32>
    %c0_46 = arith.constant 0 : index
    %c0_47 = arith.constant 0 : index
    %72 = vector.load %arg19[%c0_46, %c0_47] : memref<1x256xf32, #tpu.memory_space<vmem>>, vector<1x256xf32>
    %73 = vector.broadcast %72 : vector<1x256xf32> to vector<128x256xf32>
    %74 = arith.addf %71, %73 : vector<128x256xf32>
    %cst_48 = arith.constant 0.000000e+00 : f32
    %75 = vector.broadcast %cst_48 : f32 to vector<128x256xf32>
    %76 = arith.maximumf %74, %75 : vector<128x256xf32>
    %77 = arith.truncf %76 : vector<128x256xf32> to vector<128x256xbf16>
    %c0_49 = arith.constant 0 : index
    %c0_50 = arith.constant 0 : index
    %78 = vector.load %arg20[%c0_49, %c0_50] : memref<256x256xbf16, #tpu.memory_space<vmem>>, vector<256x256xbf16>
    %cst_51 = arith.constant dense<0.000000e+00> : vector<128x256xf32>
    %79 = tpu.matmul %77, %78, %cst_51 {dimension_numbers = #tpu.dot_dimension_numbers<[1], [0], [0], [1], [0, 0, 1, 1], [], []>} : vector<128x256xbf16>, vector<256x256xbf16>, vector<128x256xf32> -> vector<128x256xf32>
    %c0_52 = arith.constant 0 : index
    %c0_53 = arith.constant 0 : index
    %80 = vector.load %arg21[%c0_52, %c0_53] : memref<1x256xf32, #tpu.memory_space<vmem>>, vector<1x256xf32>
    %81 = vector.broadcast %80 : vector<1x256xf32> to vector<128x256xf32>
    %82 = arith.addf %79, %81 : vector<128x256xf32>
    %cst_54 = arith.constant 0.000000e+00 : f32
    %83 = vector.broadcast %cst_54 : f32 to vector<128x256xf32>
    %84 = arith.maximumf %82, %83 : vector<128x256xf32>
    %85 = arith.truncf %84 : vector<128x256xf32> to vector<128x256xbf16>
    %c0_55 = arith.constant 0 : index
    %c0_56 = arith.constant 0 : index
    %86 = vector.load %arg22[%c0_55, %c0_56] : memref<256x256xbf16, #tpu.memory_space<vmem>>, vector<256x256xbf16>
    %cst_57 = arith.constant dense<0.000000e+00> : vector<128x256xf32>
    %87 = tpu.matmul %85, %86, %cst_57 {dimension_numbers = #tpu.dot_dimension_numbers<[1], [0], [0], [1], [0, 0, 1, 1], [], []>} : vector<128x256xbf16>, vector<256x256xbf16>, vector<128x256xf32> -> vector<128x256xf32>
    %c0_58 = arith.constant 0 : index
    %c0_59 = arith.constant 0 : index
    %88 = vector.load %arg23[%c0_58, %c0_59] : memref<1x256xf32, #tpu.memory_space<vmem>>, vector<1x256xf32>
    %89 = vector.broadcast %88 : vector<1x256xf32> to vector<128x256xf32>
    %90 = arith.addf %87, %89 : vector<128x256xf32>
    %cst_60 = arith.constant 0.000000e+00 : f32
    %91 = vector.broadcast %cst_60 : f32 to vector<128x256xf32>
    %92 = arith.maximumf %90, %91 : vector<128x256xf32>
    %93 = arith.truncf %92 : vector<128x256xf32> to vector<128x256xbf16>
    %c0_61 = arith.constant 0 : index
    %c0_62 = arith.constant 0 : index
    %94 = vector.load %arg24[%c0_61, %c0_62] : memref<256x256xbf16, #tpu.memory_space<vmem>>, vector<256x256xbf16>
    %cst_63 = arith.constant dense<0.000000e+00> : vector<128x256xf32>
    %95 = tpu.matmul %93, %94, %cst_63 {dimension_numbers = #tpu.dot_dimension_numbers<[1], [0], [0], [1], [0, 0, 1, 1], [], []>} : vector<128x256xbf16>, vector<256x256xbf16>, vector<128x256xf32> -> vector<128x256xf32>
    %c0_64 = arith.constant 0 : index
    %c0_65 = arith.constant 0 : index
    %96 = vector.load %arg25[%c0_64, %c0_65] : memref<1x256xf32, #tpu.memory_space<vmem>>, vector<1x256xf32>
    %97 = vector.broadcast %96 : vector<1x256xf32> to vector<128x256xf32>
    %98 = arith.addf %95, %97 : vector<128x256xf32>
    %99 = vector.extract_strided_slice %98 {offsets = [0, 0], sizes = [128, 128], strides = [1, 1]} : vector<128x256xf32> to vector<128x128xf32>
    %100 = vector.extract_strided_slice %98 {offsets = [0, 128], sizes = [128, 128], strides = [1, 1]} : vector<128x256xf32> to vector<128x128xf32>
    %101 = arith.truncf %99 : vector<128x128xf32> to vector<128x128xbf16>
    %c0_66 = arith.constant 0 : index
    %c0_67 = arith.constant 0 : index
    %102 = vector.load %arg26[%c0_66, %c0_67] : memref<128x256xbf16, #tpu.memory_space<vmem>>, vector<128x256xbf16>
    %cst_68 = arith.constant dense<0.000000e+00> : vector<128x256xf32>
    %103 = tpu.matmul %101, %102, %cst_68 {dimension_numbers = #tpu.dot_dimension_numbers<[1], [0], [0], [1], [0, 0, 1, 1], [], []>} : vector<128x128xbf16>, vector<128x256xbf16>, vector<128x256xf32> -> vector<128x256xf32>
    %c0_69 = arith.constant 0 : index
    %c0_70 = arith.constant 0 : index
    %104 = vector.load %arg27[%c0_69, %c0_70] : memref<128x256xbf16, #tpu.memory_space<vmem>>, vector<128x256xbf16>
    %cst_71 = arith.constant dense<0.000000e+00> : vector<128x256xf32>
    %105 = tpu.matmul %26, %104, %cst_71 {dimension_numbers = #tpu.dot_dimension_numbers<[1], [0], [0], [1], [0, 0, 1, 1], [], []>} : vector<128x128xbf16>, vector<128x256xbf16>, vector<128x256xf32> -> vector<128x256xf32>
    %106 = arith.addf %103, %105 : vector<128x256xf32>
    %c0_72 = arith.constant 0 : index
    %c0_73 = arith.constant 0 : index
    %107 = vector.load %arg28[%c0_72, %c0_73] : memref<1x256xf32, #tpu.memory_space<vmem>>, vector<1x256xf32>
    %108 = vector.broadcast %107 : vector<1x256xf32> to vector<128x256xf32>
    %109 = arith.addf %106, %108 : vector<128x256xf32>
    %cst_74 = arith.constant 0.000000e+00 : f32
    %110 = vector.broadcast %cst_74 : f32 to vector<128x256xf32>
    %111 = arith.maximumf %109, %110 : vector<128x256xf32>
    %112 = arith.truncf %111 : vector<128x256xf32> to vector<128x256xbf16>
    %c0_75 = arith.constant 0 : index
    %c0_76 = arith.constant 0 : index
    %113 = vector.load %arg29[%c0_75, %c0_76] : memref<256x128xbf16, #tpu.memory_space<vmem>>, vector<256x128xbf16>
    %cst_77 = arith.constant dense<0.000000e+00> : vector<128x128xf32>
    %114 = tpu.matmul %112, %113, %cst_77 {dimension_numbers = #tpu.dot_dimension_numbers<[1], [0], [0], [1], [0, 0, 1, 1], [], []>} : vector<128x256xbf16>, vector<256x128xbf16>, vector<128x128xf32> -> vector<128x128xf32>
    %c0_78 = arith.constant 0 : index
    %c0_79 = arith.constant 0 : index
    %115 = vector.load %arg30[%c0_78, %c0_79] : memref<1x128xf32, #tpu.memory_space<vmem>>, vector<1x128xf32>
    %116 = vector.broadcast %115 : vector<1x128xf32> to vector<128x128xf32>
    %117 = arith.addf %114, %116 : vector<128x128xf32>
    %118 = tpu.iota {dimensions = array<i32: 1>} : vector<128x128xi32>
    %c3_i32 = arith.constant 3 : i32
    %119 = vector.broadcast %c3_i32 : i32 to vector<128x128xi32>
    %120 = arith.cmpi slt, %118, %119 : vector<128x128xi32>
    %121 = arith.negf %117 : vector<128x128xf32>
    %122 = math.exp %121 : vector<128x128xf32>
    %cst_80 = arith.constant 1.000000e+00 : f32
    %123 = vector.broadcast %cst_80 : f32 to vector<128x128xf32>
    %124 = arith.addf %123, %122 : vector<128x128xf32>
    %125 = arith.divf %123, %124 : vector<128x128xf32>
    %126 = arith.select %120, %125, %100 : vector<128x128xi1>, vector<128x128xf32>
    %c0_81 = arith.constant 0 : index
    %c0_82 = arith.constant 0 : index
    %127 = vector.load %arg31[%c0_81, %c0_82] : memref<128x128xf32, #tpu.memory_space<vmem>>, vector<128x128xf32>
    tpu.vector_store %arg31[%c0_81, %c0_82], %126 {strides = array<i32>} : memref<128x128xf32, #tpu.memory_space<vmem>>, vector<128x128xf32>,
    return
  }
  func.func @transform_0(%arg0: i32) -> (i32, i32) {
    %c0_i32 = arith.constant 0 : i32
    %c0_i32_0 = arith.constant 0 : i32
    return %arg0, %c0_i32 : i32, i32
  }
  func.func @transform_1(%arg0: i32) -> (i32, i32) {
    %c0_i32 = arith.constant 0 : i32
    %c0_i32_0 = arith.constant 0 : i32
    %c0_i32_1 = arith.constant 0 : i32
    return %c0_i32, %c0_i32_0 : i32, i32
  }
  func.func @transform_2(%arg0: i32) -> (i32, i32) {
    %c0_i32 = arith.constant 0 : i32
    %c0_i32_0 = arith.constant 0 : i32
    %c0_i32_1 = arith.constant 0 : i32
    return %c0_i32, %c0_i32_0 : i32, i32
  }
  func.func @transform_3(%arg0: i32) -> (i32, i32) {
    %c0_i32 = arith.constant 0 : i32
    %c0_i32_0 = arith.constant 0 : i32
    %c0_i32_1 = arith.constant 0 : i32
    return %c0_i32, %c0_i32_0 : i32, i32
  }
  func.func @transform_4(%arg0: i32) -> (i32, i32) {
    %c0_i32 = arith.constant 0 : i32
    %c0_i32_0 = arith.constant 0 : i32
    %c0_i32_1 = arith.constant 0 : i32
    return %c0_i32, %c0_i32_0 : i32, i32
  }
  func.func @transform_5(%arg0: i32) -> (i32, i32) {
    %c0_i32 = arith.constant 0 : i32
    %c0_i32_0 = arith.constant 0 : i32
    %c0_i32_1 = arith.constant 0 : i32
    return %c0_i32, %c0_i32_0 : i32, i32
  }
  func.func @transform_6(%arg0: i32) -> (i32, i32) {
    %c0_i32 = arith.constant 0 : i32
    %c0_i32_0 = arith.constant 0 : i32
    %c0_i32_1 = arith.constant 0 : i32
    return %c0_i32, %c0_i32_0 : i32, i32
  }
  func.func @transform_7(%arg0: i32) -> (i32, i32) {
    %c0_i32 = arith.constant 0 : i32
    %c0_i32_0 = arith.constant 0 : i32
    %c0_i32_1 = arith.constant 0 : i32
    return %c0_i32, %c0_i32_0 : i32, i32
  }
  func.func @transform_8(%arg0: i32) -> (i32, i32) {
    %c0_i32 = arith.constant 0 : i32
    %c0_i32_0 = arith.constant 0 : i32
    %c0_i32_1 = arith.constant 0 : i32
    return %c0_i32, %c0_i32_0 : i32, i32
  }
  func.func @transform_9(%arg0: i32) -> (i32, i32) {
    %c0_i32 = arith.constant 0 : i32
    %c0_i32_0 = arith.constant 0 : i32
    %c0_i32_1 = arith.constant 0 : i32
    return %c0_i32, %c0_i32_0 : i32, i32
  }
  func.func @transform_10(%arg0: i32) -> (i32, i32) {
    %c0_i32 = arith.constant 0 : i32
    %c0_i32_0 = arith.constant 0 : i32
    %c0_i32_1 = arith.constant 0 : i32
    return %c0_i32, %c0_i32_0 : i32, i32
  }
  func.func @transform_11(%arg0: i32) -> (i32, i32) {
    %c0_i32 = arith.constant 0 : i32
    %c0_i32_0 = arith.constant 0 : i32
    %c0_i32_1 = arith.constant 0 : i32
    return %c0_i32, %c0_i32_0 : i32, i32
  }
  func.func @transform_12(%arg0: i32) -> (i32, i32) {
    %c0_i32 = arith.constant 0 : i32
    %c0_i32_0 = arith.constant 0 : i32
    %c0_i32_1 = arith.constant 0 : i32
    return %c0_i32, %c0_i32_0 : i32, i32
  }
  func.func @transform_13(%arg0: i32) -> (i32, i32) {
    %c0_i32 = arith.constant 0 : i32
    %c0_i32_0 = arith.constant 0 : i32
    %c0_i32_1 = arith.constant 0 : i32
    return %c0_i32, %c0_i32_0 : i32, i32
  }
  func.func @transform_14(%arg0: i32) -> (i32, i32) {
    %c0_i32 = arith.constant 0 : i32
    %c0_i32_0 = arith.constant 0 : i32
    %c0_i32_1 = arith.constant 0 : i32
    return %c0_i32, %c0_i32_0 : i32, i32
  }
  func.func @transform_15(%arg0: i32) -> (i32, i32) {
    %c0_i32 = arith.constant 0 : i32
    %c0_i32_0 = arith.constant 0 : i32
    %c0_i32_1 = arith.constant 0 : i32
    return %c0_i32, %c0_i32_0 : i32, i32
  }
  func.func @transform_16(%arg0: i32) -> (i32, i32) {
    %c0_i32 = arith.constant 0 : i32
    %c0_i32_0 = arith.constant 0 : i32
    %c0_i32_1 = arith.constant 0 : i32
    return %c0_i32, %c0_i32_0 : i32, i32
  }
  func.func @transform_17(%arg0: i32) -> (i32, i32) {
    %c0_i32 = arith.constant 0 : i32
    %c0_i32_0 = arith.constant 0 : i32
    %c0_i32_1 = arith.constant 0 : i32
    return %c0_i32, %c0_i32_0 : i32, i32
  }
  func.func @transform_18(%arg0: i32) -> (i32, i32) {
    %c0_i32 = arith.constant 0 : i32
    %c0_i32_0 = arith.constant 0 : i32
    %c0_i32_1 = arith.constant 0 : i32
    return %c0_i32, %c0_i32_0 : i32, i32
  }
  func.func @transform_19(%arg0: i32) -> (i32, i32) {
    %c0_i32 = arith.constant 0 : i32
    %c0_i32_0 = arith.constant 0 : i32
    %c0_i32_1 = arith.constant 0 : i32
    return %c0_i32, %c0_i32_0 : i32, i32
  }
  func.func @transform_20(%arg0: i32) -> (i32, i32) {
    %c0_i32 = arith.constant 0 : i32
    %c0_i32_0 = arith.constant 0 : i32
    %c0_i32_1 = arith.constant 0 : i32
    return %c0_i32, %c0_i32_0 : i32, i32
  }
  func.func @transform_21(%arg0: i32) -> (i32, i32) {
    %c0_i32 = arith.constant 0 : i32
    %c0_i32_0 = arith.constant 0 : i32
    %c0_i32_1 = arith.constant 0 : i32
    return %c0_i32, %c0_i32_0 : i32, i32
  }
  func.func @transform_22(%arg0: i32) -> (i32, i32) {
    %c0_i32 = arith.constant 0 : i32
    %c0_i32_0 = arith.constant 0 : i32
    %c0_i32_1 = arith.constant 0 : i32
    return %c0_i32, %c0_i32_0 : i32, i32
  }
  func.func @transform_23(%arg0: i32) -> (i32, i32) {
    %c0_i32 = arith.constant 0 : i32
    %c0_i32_0 = arith.constant 0 : i32
    %c0_i32_1 = arith.constant 0 : i32
    return %c0_i32, %c0_i32_0 : i32, i32
  }
  func.func @transform_24(%arg0: i32) -> (i32, i32) {
    %c0_i32 = arith.constant 0 : i32
    %c0_i32_0 = arith.constant 0 : i32
    %c0_i32_1 = arith.constant 0 : i32
    return %c0_i32, %c0_i32_0 : i32, i32
  }
  func.func @transform_25(%arg0: i32) -> (i32, i32) {
    %c0_i32 = arith.constant 0 : i32
    %c0_i32_0 = arith.constant 0 : i32
    %c0_i32_1 = arith.constant 0 : i32
    return %c0_i32, %c0_i32_0 : i32, i32
  }
  func.func @transform_26(%arg0: i32) -> (i32, i32) {
    %c0_i32 = arith.constant 0 : i32
    %c0_i32_0 = arith.constant 0 : i32
    %c0_i32_1 = arith.constant 0 : i32
    return %c0_i32, %c0_i32_0 : i32, i32
  }
  func.func @transform_27(%arg0: i32) -> (i32, i32) {
    %c0_i32 = arith.constant 0 : i32
    %c0_i32_0 = arith.constant 0 : i32
    %c0_i32_1 = arith.constant 0 : i32
    return %c0_i32, %c0_i32_0 : i32, i32
  }
  func.func @transform_28(%arg0: i32) -> (i32, i32) {
    %c0_i32 = arith.constant 0 : i32
    %c0_i32_0 = arith.constant 0 : i32
    %c0_i32_1 = arith.constant 0 : i32
    return %c0_i32, %c0_i32_0 : i32, i32
  }
  func.func @transform_29(%arg0: i32) -> (i32, i32) {
    %c0_i32 = arith.constant 0 : i32
    %c0_i32_0 = arith.constant 0 : i32
    %c0_i32_1 = arith.constant 0 : i32
    return %c0_i32, %c0_i32_0 : i32, i32
  }
  func.func @transform_30(%arg0: i32) -> (i32, i32) {
    %c0_i32 = arith.constant 0 : i32
    %c0_i32_0 = arith.constant 0 : i32
    return %arg0, %c0_i32 : i32, i32
  }
}

</mosaic_0001>

<llo_original>
// kernel: tpu_custom_call.1
$region0: #{tpu_custom_call.1}
  #allocation0 [shape = 'u32[]', space=smem, size = 0x4, offset = 0x4, fixed_abs, tag = 'smem constant byte address 0x4 - core index']
  #allocation1 [shape = 'u32[72,128]{1,0:T(1,128)}', space=vmem, size = 0x9000, scoped, tag = 'internal scratch']
  %s0 = inlined_call_operand.smem [shape: u32[31], index: -1, kind: input, shape index: {}]
  %s1 = sld [smem:[%s0]]
  %s2 = scalar_lea.smem %s0, 1
  %s3 = sld [smem:[%s2]]
  %s4 = scalar_lea.smem %s0, 2
  %s5 = sld [smem:[%s4]]
  %s6 = scalar_lea.smem %s0, 3
  %s7 = sld [smem:[%s6]]
  %s8 = scalar_lea.smem %s0, 4
  %s9 = sld [smem:[%s8]]
  %s10 = scalar_lea.smem %s0, 5
  %s11 = sld [smem:[%s10]]
  %s12 = scalar_lea.smem %s0, 6
  %s13 = sld [smem:[%s12]]
  %s14 = scalar_lea.smem %s0, 7
  %s15 = sld [smem:[%s14]]
  %s16 = scalar_lea.smem %s0, 8
  %s17 = sld [smem:[%s16]]
  %s18 = scalar_lea.smem %s0, 9
  %s19 = sld [smem:[%s18]]
  %s20 = scalar_lea.smem %s0, 10
  %s21 = sld [smem:[%s20]]
  %s22 = scalar_lea.smem %s0, 11
  %s23 = sld [smem:[%s22]]
  %s24 = scalar_lea.smem %s0, 12
  %s25 = sld [smem:[%s24]]
  %s26 = scalar_lea.smem %s0, 13
  %s27 = sld [smem:[%s26]]
  %s28 = scalar_lea.smem %s0, 14
  %s29 = sld [smem:[%s28]]
  %s30 = scalar_lea.smem %s0, 15
  %s31 = sld [smem:[%s30]]
  %s32 = scalar_lea.smem %s0, 16
  %s33 = sld [smem:[%s32]]
  %s34 = scalar_lea.smem %s0, 17
  %s35 = sld [smem:[%s34]]
  %s36 = scalar_lea.smem %s0, 18
  %s37 = sld [smem:[%s36]]
  %s38 = scalar_lea.smem %s0, 19
  %s39 = sld [smem:[%s38]]
  %s40 = scalar_lea.smem %s0, 20
  %s41 = sld [smem:[%s40]]
  %s42 = scalar_lea.smem %s0, 21
  %s43 = sld [smem:[%s42]]
  %s44 = scalar_lea.smem %s0, 22
  %s45 = sld [smem:[%s44]]
  %s46 = scalar_lea.smem %s0, 23
  %s47 = sld [smem:[%s46]]
  %s48 = scalar_lea.smem %s0, 24
  %s49 = sld [smem:[%s48]]
  %s50 = scalar_lea.smem %s0, 25
  %s51 = sld [smem:[%s50]]
  %s52 = scalar_lea.smem %s0, 26
  %s53 = sld [smem:[%s52]]
  %s54 = scalar_lea.smem %s0, 27
  %s55 = sld [smem:[%s54]]
  %s56 = scalar_lea.smem %s0, 28
  %s57 = sld [smem:[%s56]]
  %s58 = scalar_lea.smem %s0, 29
  %s59 = sld [smem:[%s58]]
  %s60 = scalar_lea.smem %s0, 30
  %s61 = sld [smem:[%s60]]
  %s62 = sld [smem:[#allocation0]]
  $region229: #{tpu_custom_call.1} parent=0
    _
  %s64 = ssub.s32 1, %s62
  %s65 = scalar_select 0, %s64, %s62
  $region1: #{tpu_custom_call.1} parent=0
    #allocation2 [shape = 'u8[131072]{0}', space=vmem, size = 0x20000, scoped, tag = 'input window, operand 0']
    #allocation3 [shape = 's32[2]{0}', space=sflag, size = 0x8, scoped, tag = 'scoped memory for tpu_custom_call.1']
    #allocation4 [shape = 's32[2]{0}', space=sflag, size = 0x8, scoped, tag = 'scoped memory for tpu_custom_call.1']
    #allocation5 [shape = 'u8[512]{0}', space=vmem, size = 0x400, scoped, tag = 'input window, operand 1, single buffered']
    #allocation6 [shape = 's32[1]{0}', space=sflag, size = 0x4, scoped, tag = 'scoped memory for tpu_custom_call.1']
    #allocation7 [shape = 'u8[512]{0}', space=vmem, size = 0x400, scoped, tag = 'input window, operand 2, single buffered']
    #allocation8 [shape = 'u8[512]{0}', space=vmem, size = 0x400, scoped, tag = 'input window, operand 3, single buffered']
    #allocation9 [shape = 's32[1]{0}', space=sflag, size = 0x4, scoped, tag = 'scoped memory for tpu_custom_call.1']
    #allocation10 [shape = 'u8[512]{0}', space=vmem, size = 0x400, scoped, tag = 'input window, operand 4, single buffered']
    #allocation11 [shape = 'u8[512]{0}', space=vmem, size = 0x400, scoped, tag = 'input window, operand 5, single buffered']
    #allocation12 [shape = 's32[1]{0}', space=sflag, size = 0x4, scoped, tag = 'scoped memory for tpu_custom_call.1']
    #allocation13 [shape = 'u8[65536]{0}', space=vmem, size = 0x10000, scoped, tag = 'input window, operand 6, single buffered']
    #allocation14 [shape = 'u8[131072]{0}', space=vmem, size = 0x20000, scoped, tag = 'input window, operand 8, single buffered']
    #allocation15 [shape = 's32[1]{0}', space=sflag, size = 0x4, scoped, tag = 'scoped memory for tpu_custom_call.1']
    #allocation16 [shape = 'u8[131072]{0}', space=vmem, size = 0x20000, scoped, tag = 'input window, operand 10, single buffered']
    #allocation17 [shape = 'u8[131072]{0}', space=vmem, size = 0x20000, scoped, tag = 'input window, operand 12, single buffered']
    #allocation18 [shape = 's32[1]{0}', space=sflag, size = 0x4, scoped, tag = 'scoped memory for tpu_custom_call.1']
    #allocation19 [shape = 'u8[131072]{0}', space=vmem, size = 0x20000, scoped, tag = 'input window, operand 14, single buffered']
    #allocation20 [shape = 'u8[65536]{0}', space=vmem, size = 0x10000, scoped, tag = 'input window, operand 16, single buffered']
    #allocation21 [shape = 's32[1]{0}', space=sflag, size = 0x4, scoped, tag = 'scoped memory for tpu_custom_call.1']
    #allocation22 [shape = 'u8[131072]{0}', space=vmem, size = 0x20000, scoped, tag = 'input window, operand 17, single buffered']
    #allocation23 [shape = 'u8[131072]{0}', space=vmem, size = 0x20000, scoped, tag = 'input window, operand 19, single buffered']
    #allocation24 [shape = 's32[1]{0}', space=sflag, size = 0x4, scoped, tag = 'scoped memory for tpu_custom_call.1']
    #allocation25 [shape = 'u8[131072]{0}', space=vmem, size = 0x20000, scoped, tag = 'input window, operand 21, single buffered']
    #allocation26 [shape = 'u8[131072]{0}', space=vmem, size = 0x20000, scoped, tag = 'input window, operand 23, single buffered']
    #allocation27 [shape = 's32[1]{0}', space=sflag, size = 0x4, scoped, tag = 'scoped memory for tpu_custom_call.1']
    #allocation28 [shape = 'u8[65536]{0}', space=vmem, size = 0x10000, scoped, tag = 'input window, operand 25, single buffered']
    #allocation29 [shape = 'u8[65536]{0}', space=vmem, size = 0x10000, scoped, tag = 'input window, operand 26, single buffered']
    #allocation30 [shape = 's32[1]{0}', space=sflag, size = 0x4, scoped, tag = 'scoped memory for tpu_custom_call.1']
    #allocation31 [shape = 'u8[65536]{0}', space=vmem, size = 0x10000, scoped, tag = 'input window, operand 28, single buffered']
    #allocation32 [shape = 'u8[131072]{0}', space=vmem, size = 0x20000, scoped, tag = 'output window, operand 0']
    %66 = vsyncpa [#allocation3], 0
    %s67 = scalar_lea.sflag [#allocation3], 1
    %68 = vsyncpa %s67, 0
    %69 = vsyncpa [#allocation6], 0
    %70 = vsyncpa [#allocation9], 0
    %71 = vsyncpa [#allocation12], 0
    %72 = vsyncpa [#allocation15], 0
    %73 = vsyncpa [#allocation18], 0
    %74 = vsyncpa [#allocation21], 0
    %75 = vsyncpa [#allocation24], 0
    %76 = vsyncpa [#allocation27], 0
    %77 = vsyncpa [#allocation30], 0
    %78 = vsyncpa [#allocation4], 0
    %s79 = scalar_lea.sflag [#allocation4], 1
    %80 = vsyncpa %s79, 0
    loop: start=0, step=1, limit=4
    $region2: #{tpu_custom_call.1} parent=1 // loop_pre_header
      _
    $region3: #{tpu_custom_call.1} parent=1 // loop_header
      %s82 = sphi 0, %s86
      %p83 = scmp.ge.s32.totalorder %s82, 4
      %s92 = sphi 0, %s94
      %s95 = sphi 0, %s92
      %s96 = sphi 0, %s95
      %s112 = sphi 0, %s96
      %s116 = sphi 0, %s116
      %s118 = sphi 0, %s116
      %s119 = sphi 0, %s118
      %s133 = sphi 0, %s119
      %s137 = sphi 0, %s137
      %s139 = sphi 0, %s137
      %s140 = sphi 0, %s139
      %s154 = sphi 0, %s140
      %s158 = sphi 0, %s158
      %s160 = sphi 0, %s158
      %s161 = sphi 0, %s160
      %s175 = sphi 0, %s161
      %s179 = sphi 0, %s179
      %s181 = sphi 0, %s179
      %s182 = sphi 0, %s181
      %s196 = sphi 0, %s182
      %s200 = sphi 0, %s200
      %s202 = sphi 0, %s200
      %s203 = sphi 0, %s202
      %s217 = sphi 0, %s203
      %s221 = sphi 0, %s221
      %s223 = sphi 0, %s221
      %s224 = sphi 0, %s223
      %s238 = sphi 0, %s224
      %s242 = sphi 0, %s242
      %s244 = sphi 0, %s242
      %s245 = sphi 0, %s244
      %s259 = sphi 0, %s245
      %s263 = sphi 0, %s263
      %s265 = sphi 0, %s263
      %s266 = sphi 0, %s265
      %s280 = sphi 0, %s266
      %s284 = sphi 0, %s284
      %s286 = sphi 0, %s284
      %s287 = sphi 0, %s286
      %s301 = sphi 0, %s287
      %s305 = sphi 0, %s305
      %s307 = sphi 0, %s305
      %s308 = sphi 0, %s307
      %s322 = sphi 0, %s308
      %s326 = sphi 0, %s326
      %s328 = sphi 0, %s326
      %s329 = sphi 0, %s328
      %s343 = sphi 0, %s329
      %s347 = sphi 0, %s347
      %s349 = sphi 0, %s347
      %s350 = sphi 0, %s349
      %s364 = sphi 0, %s350
      %s368 = sphi 0, %s368
      %s370 = sphi 0, %s368
      %s371 = sphi 0, %s370
      %s385 = sphi 0, %s371
      %s389 = sphi 0, %s389
      %s391 = sphi 0, %s389
      %s392 = sphi 0, %s391
      %s406 = sphi 0, %s392
      %s410 = sphi 0, %s410
      %s412 = sphi 0, %s410
      %s413 = sphi 0, %s412
      %s427 = sphi 0, %s413
      %s431 = sphi 0, %s431
      %s433 = sphi 0, %s431
      %s434 = sphi 0, %s433
      %s448 = sphi 0, %s434
      %s452 = sphi 0, %s452
      %s454 = sphi 0, %s452
      %s455 = sphi 0, %s454
      %s469 = sphi 0, %s455
      %s473 = sphi 0, %s473
      %s475 = sphi 0, %s473
      %s476 = sphi 0, %s475
      %s490 = sphi 0, %s476
      %s494 = sphi 0, %s494
      %s496 = sphi 0, %s494
      %s497 = sphi 0, %s496
      %s511 = sphi 0, %s497
      %s515 = sphi 0, %s515
      %s517 = sphi 0, %s515
      %s518 = sphi 0, %s517
      %s532 = sphi 0, %s518
      %s536 = sphi 0, %s536
      %s538 = sphi 0, %s536
      %s539 = sphi 0, %s538
      %s553 = sphi 0, %s539
      %s557 = sphi 0, %s557
      %s559 = sphi 0, %s557
      %s560 = sphi 0, %s559
      %s574 = sphi 0, %s560
      %s578 = sphi 0, %s578
      %s580 = sphi 0, %s578
      %s581 = sphi 0, %s580
      %s595 = sphi 0, %s581
      %s599 = sphi 0, %s599
      %s601 = sphi 0, %s599
      %s602 = sphi 0, %s601
      %s616 = sphi 0, %s602
      %s620 = sphi 0, %s620
      %s622 = sphi 0, %s620
      %s623 = sphi 0, %s622
      %s637 = sphi 0, %s623
      %s641 = sphi 0, %s641
      %s643 = sphi 0, %s641
      %s644 = sphi 0, %s643
      %s658 = sphi 0, %s644
      %s662 = sphi 0, %s662
      %s664 = sphi 0, %s662
      %s665 = sphi 0, %s664
      %s679 = sphi 0, %s665
      %s683 = sphi 0, %s683
      %s685 = sphi 0, %s683
      %s686 = sphi 0, %s685
      %s700 = sphi 0, %s686
      %s704 = sphi 0, %s704
      %s706 = sphi 0, %s704
      %s707 = sphi 0, %s706
      %s721 = sphi 0, %s707
      %s727 = sphi 0, %s729
      %s730 = sphi 0, %s727
      %s731 = sphi 0, %s730
      %s747 = sphi 0, %s731
    $region4: #{tpu_custom_call.1} parent=1 // loop_header_branch
      %85 = sbr.rel (%p83) target = $region8
    $region5: #{tpu_custom_call.1} parent=1 // loop_body
      %s87 = ssub.s32 %s82, 1
      %s88 = ssub.s32 %s82, 2
      %s89 = sadd.s32 %s82, 1
      %s90 = ssub.s32 %s82, %s89
      %p91 = scmp.eq.s32.totalorder %s90, 0
      %s93 = sadd.s32 %s92, 1
      %s94 = scalar_select %p91, %s92, %s93
      %p97 = pneg %p91
      %p98 = scmp.eq.s32.totalorder %s82, 1
      %p99 = por %p97, %p98
      %p100 = scmp.ne.s32.totalorder %s92, %s95
      %p101 = scmp.eq.s32.totalorder %s82, 0
      %p102 = por %p100, %p101
      %p103 = scmp.ne.s32.totalorder %s92, %s95
      %p104 = scmp.eq.s32.totalorder %s87, 1
      %p105 = por %p103, %p104
      %p106 = scmp.ne.s32.totalorder %s95, %s96
      %p107 = scmp.eq.s32.totalorder %s87, 0
      %p108 = por %p106, %p107
      %p109 = scmp.ne.s32.totalorder %s95, %s96
      %p110 = scmp.eq.s32.totalorder %s88, 1
      %p111 = por %p109, %p110
      %p113 = scmp.ne.s32.totalorder %s96, %s112
      %p114 = scmp.eq.s32.totalorder %s88, 0
      %p115 = por %p113, %p114
      %s117 = sadd.s32 %s116, 1
      %p120 = scmp.eq.s32.totalorder %s82, 1
      %p121 = scmp.ne.s32.totalorder %s116, %s118
      %p122 = scmp.eq.s32.totalorder %s82, 0
      %p123 = por %p121, %p122
      %p124 = scmp.ne.s32.totalorder %s116, %s118
      %p125 = scmp.eq.s32.totalorder %s87, 1
      %p126 = por %p124, %p125
      %p127 = scmp.ne.s32.totalorder %s118, %s119
      %p128 = scmp.eq.s32.totalorder %s87, 0
      %p129 = por %p127, %p128
      %p130 = scmp.ne.s32.totalorder %s118, %s119
      %p131 = scmp.eq.s32.totalorder %s88, 1
      %p132 = por %p130, %p131
      %p134 = scmp.ne.s32.totalorder %s119, %s133
      %p135 = scmp.eq.s32.totalorder %s88, 0
      %p136 = por %p134, %p135
      %s138 = sadd.s32 %s137, 1
      %p141 = scmp.eq.s32.totalorder %s82, 1
      %p142 = scmp.ne.s32.totalorder %s137, %s139
      %p143 = scmp.eq.s32.totalorder %s82, 0
      %p144 = por %p142, %p143
      %p145 = scmp.ne.s32.totalorder %s137, %s139
      %p146 = scmp.eq.s32.totalorder %s87, 1
      %p147 = por %p145, %p146
      %p148 = scmp.ne.s32.totalorder %s139, %s140
      %p149 = scmp.eq.s32.totalorder %s87, 0
      %p150 = por %p148, %p149
      %p151 = scmp.ne.s32.totalorder %s139, %s140
      %p152 = scmp.eq.s32.totalorder %s88, 1
      %p153 = por %p151, %p152
      %p155 = scmp.ne.s32.totalorder %s140, %s154
      %p156 = scmp.eq.s32.totalorder %s88, 0
      %p157 = por %p155, %p156
      %s159 = sadd.s32 %s158, 1
      %p162 = scmp.eq.s32.totalorder %s82, 1
      %p163 = scmp.ne.s32.totalorder %s158, %s160
      %p164 = scmp.eq.s32.totalorder %s82, 0
      %p165 = por %p163, %p164
      %p166 = scmp.ne.s32.totalorder %s158, %s160
      %p167 = scmp.eq.s32.totalorder %s87, 1
      %p168 = por %p166, %p167
      %p169 = scmp.ne.s32.totalorder %s160, %s161
      %p170 = scmp.eq.s32.totalorder %s87, 0
      %p171 = por %p169, %p170
      %p172 = scmp.ne.s32.totalorder %s160, %s161
      %p173 = scmp.eq.s32.totalorder %s88, 1
      %p174 = por %p172, %p173
      %p176 = scmp.ne.s32.totalorder %s161, %s175
      %p177 = scmp.eq.s32.totalorder %s88, 0
      %p178 = por %p176, %p177
      %s180 = sadd.s32 %s179, 1
      %p183 = scmp.eq.s32.totalorder %s82, 1
      %p184 = scmp.ne.s32.totalorder %s179, %s181
      %p185 = scmp.eq.s32.totalorder %s82, 0
      %p186 = por %p184, %p185
      %p187 = scmp.ne.s32.totalorder %s179, %s181
      %p188 = scmp.eq.s32.totalorder %s87, 1
      %p189 = por %p187, %p188
      %p190 = scmp.ne.s32.totalorder %s181, %s182
      %p191 = scmp.eq.s32.totalorder %s87, 0
      %p192 = por %p190, %p191
      %p193 = scmp.ne.s32.totalorder %s181, %s182
      %p194 = scmp.eq.s32.totalorder %s88, 1
      %p195 = por %p193, %p194
      %p197 = scmp.ne.s32.totalorder %s182, %s196
      %p198 = scmp.eq.s32.totalorder %s88, 0
      %p199 = por %p197, %p198
      %s201 = sadd.s32 %s200, 1
      %p204 = scmp.eq.s32.totalorder %s82, 1
      %p205 = scmp.ne.s32.totalorder %s200, %s202
      %p206 = scmp.eq.s32.totalorder %s82, 0
      %p207 = por %p205, %p206
      %p208 = scmp.ne.s32.totalorder %s200, %s202
      %p209 = scmp.eq.s32.totalorder %s87, 1
      %p210 = por %p208, %p209
      %p211 = scmp.ne.s32.totalorder %s202, %s203
      %p212 = scmp.eq.s32.totalorder %s87, 0
      %p213 = por %p211, %p212
      %p214 = scmp.ne.s32.totalorder %s202, %s203
      %p215 = scmp.eq.s32.totalorder %s88, 1
      %p216 = por %p214, %p215
      %p218 = scmp.ne.s32.totalorder %s203, %s217
      %p219 = scmp.eq.s32.totalorder %s88, 0
      %p220 = por %p218, %p219
      %s222 = sadd.s32 %s221, 1
      %p225 = scmp.eq.s32.totalorder %s82, 1
      %p226 = scmp.ne.s32.totalorder %s221, %s223
      %p227 = scmp.eq.s32.totalorder %s82, 0
      %p228 = por %p226, %p227
      %p229 = scmp.ne.s32.totalorder %s221, %s223
      %p230 = scmp.eq.s32.totalorder %s87, 1
      %p231 = por %p229, %p230
      %p232 = scmp.ne.s32.totalorder %s223, %s224
      %p233 = scmp.eq.s32.totalorder %s87, 0
      %p234 = por %p232, %p233
      %p235 = scmp.ne.s32.totalorder %s223, %s224
      %p236 = scmp.eq.s32.totalorder %s88, 1
      %p237 = por %p235, %p236
      %p239 = scmp.ne.s32.totalorder %s224, %s238
      %p240 = scmp.eq.s32.totalorder %s88, 0
      %p241 = por %p239, %p240
      %s243 = sadd.s32 %s242, 1
      %p246 = scmp.eq.s32.totalorder %s82, 1
      %p247 = scmp.ne.s32.totalorder %s242, %s244
      %p248 = scmp.eq.s32.totalorder %s82, 0
      %p249 = por %p247, %p248
      %p250 = scmp.ne.s32.totalorder %s242, %s244
      %p251 = scmp.eq.s32.totalorder %s87, 1
      %p252 = por %p250, %p251
      %p253 = scmp.ne.s32.totalorder %s244, %s245
      %p254 = scmp.eq.s32.totalorder %s87, 0
      %p255 = por %p253, %p254
      %p256 = scmp.ne.s32.totalorder %s244, %s245
      %p257 = scmp.eq.s32.totalorder %s88, 1
      %p258 = por %p256, %p257
      %p260 = scmp.ne.s32.totalorder %s245, %s259
      %p261 = scmp.eq.s32.totalorder %s88, 0
      %p262 = por %p260, %p261
      %s264 = sadd.s32 %s263, 1
      %p267 = scmp.eq.s32.totalorder %s82, 1
      %p268 = scmp.ne.s32.totalorder %s263, %s265
      %p269 = scmp.eq.s32.totalorder %s82, 0
      %p270 = por %p268, %p269
      %p271 = scmp.ne.s32.totalorder %s263, %s265
      %p272 = scmp.eq.s32.totalorder %s87, 1
      %p273 = por %p271, %p272
      %p274 = scmp.ne.s32.totalorder %s265, %s266
      %p275 = scmp.eq.s32.totalorder %s87, 0
      %p276 = por %p274, %p275
      %p277 = scmp.ne.s32.totalorder %s265, %s266
      %p278 = scmp.eq.s32.totalorder %s88, 1
      %p279 = por %p277, %p278
      %p281 = scmp.ne.s32.totalorder %s266, %s280
      %p282 = scmp.eq.s32.totalorder %s88, 0
      %p283 = por %p281, %p282
      %s285 = sadd.s32 %s284, 1
      %p288 = scmp.eq.s32.totalorder %s82, 1
      %p289 = scmp.ne.s32.totalorder %s284, %s286
      %p290 = scmp.eq.s32.totalorder %s82, 0
      %p291 = por %p289, %p290
      %p292 = scmp.ne.s32.totalorder %s284, %s286
      %p293 = scmp.eq.s32.totalorder %s87, 1
      %p294 = por %p292, %p293
      %p295 = scmp.ne.s32.totalorder %s286, %s287
      %p296 = scmp.eq.s32.totalorder %s87, 0
      %p297 = por %p295, %p296
      %p298 = scmp.ne.s32.totalorder %s286, %s287
      %p299 = scmp.eq.s32.totalorder %s88, 1
      %p300 = por %p298, %p299
      %p302 = scmp.ne.s32.totalorder %s287, %s301
      %p303 = scmp.eq.s32.totalorder %s88, 0
      %p304 = por %p302, %p303
      %s306 = sadd.s32 %s305, 1
      %p309 = scmp.eq.s32.totalorder %s82, 1
      %p310 = scmp.ne.s32.totalorder %s305, %s307
      %p311 = scmp.eq.s32.totalorder %s82, 0
      %p312 = por %p310, %p311
      %p313 = scmp.ne.s32.totalorder %s305, %s307
      %p314 = scmp.eq.s32.totalorder %s87, 1
      %p315 = por %p313, %p314
      %p316 = scmp.ne.s32.totalorder %s307, %s308
      %p317 = scmp.eq.s32.totalorder %s87, 0
      %p318 = por %p316, %p317
      %p319 = scmp.ne.s32.totalorder %s307, %s308
      %p320 = scmp.eq.s32.totalorder %s88, 1
      %p321 = por %p319, %p320
      %p323 = scmp.ne.s32.totalorder %s308, %s322
      %p324 = scmp.eq.s32.totalorder %s88, 0
      %p325 = por %p323, %p324
      %s327 = sadd.s32 %s326, 1
      %p330 = scmp.eq.s32.totalorder %s82, 1
      %p331 = scmp.ne.s32.totalorder %s326, %s328
      %p332 = scmp.eq.s32.totalorder %s82, 0
      %p333 = por %p331, %p332
      %p334 = scmp.ne.s32.totalorder %s326, %s328
      %p335 = scmp.eq.s32.totalorder %s87, 1
      %p336 = por %p334, %p335
      %p337 = scmp.ne.s32.totalorder %s328, %s329
      %p338 = scmp.eq.s32.totalorder %s87, 0
      %p339 = por %p337, %p338
      %p340 = scmp.ne.s32.totalorder %s328, %s329
      %p341 = scmp.eq.s32.totalorder %s88, 1
      %p342 = por %p340, %p341
      %p344 = scmp.ne.s32.totalorder %s329, %s343
      %p345 = scmp.eq.s32.totalorder %s88, 0
      %p346 = por %p344, %p345
      %s348 = sadd.s32 %s347, 1
      %p351 = scmp.eq.s32.totalorder %s82, 1
      %p352 = scmp.ne.s32.totalorder %s347, %s349
      %p353 = scmp.eq.s32.totalorder %s82, 0
      %p354 = por %p352, %p353
      %p355 = scmp.ne.s32.totalorder %s347, %s349
      %p356 = scmp.eq.s32.totalorder %s87, 1
      %p357 = por %p355, %p356
      %p358 = scmp.ne.s32.totalorder %s349, %s350
      %p359 = scmp.eq.s32.totalorder %s87, 0
      %p360 = por %p358, %p359
      %p361 = scmp.ne.s32.totalorder %s349, %s350
      %p362 = scmp.eq.s32.totalorder %s88, 1
      %p363 = por %p361, %p362
      %p365 = scmp.ne.s32.totalorder %s350, %s364
      %p366 = scmp.eq.s32.totalorder %s88, 0
      %p367 = por %p365, %p366
      %s369 = sadd.s32 %s368, 1
      %p372 = scmp.eq.s32.totalorder %s82, 1
      %p373 = scmp.ne.s32.totalorder %s368, %s370
      %p374 = scmp.eq.s32.totalorder %s82, 0
      %p375 = por %p373, %p374
      %p376 = scmp.ne.s32.totalorder %s368, %s370
      %p377 = scmp.eq.s32.totalorder %s87, 1
      %p378 = por %p376, %p377
      %p379 = scmp.ne.s32.totalorder %s370, %s371
      %p380 = scmp.eq.s32.totalorder %s87, 0
      %p381 = por %p379, %p380
      %p382 = scmp.ne.s32.totalorder %s370, %s371
      %p383 = scmp.eq.s32.totalorder %s88, 1
      %p384 = por %p382, %p383
      %p386 = scmp.ne.s32.totalorder %s371, %s385
      %p387 = scmp.eq.s32.totalorder %s88, 0
      %p388 = por %p386, %p387
      %s390 = sadd.s32 %s389, 1
      %p393 = scmp.eq.s32.totalorder %s82, 1
      %p394 = scmp.ne.s32.totalorder %s389, %s391
      %p395 = scmp.eq.s32.totalorder %s82, 0
      %p396 = por %p394, %p395
      %p397 = scmp.ne.s32.totalorder %s389, %s391
      %p398 = scmp.eq.s32.totalorder %s87, 1
      %p399 = por %p397, %p398
      %p400 = scmp.ne.s32.totalorder %s391, %s392
      %p401 = scmp.eq.s32.totalorder %s87, 0
      %p402 = por %p400, %p401
      %p403 = scmp.ne.s32.totalorder %s391, %s392
      %p404 = scmp.eq.s32.totalorder %s88, 1
      %p405 = por %p403, %p404
      %p407 = scmp.ne.s32.totalorder %s392, %s406
      %p408 = scmp.eq.s32.totalorder %s88, 0
      %p409 = por %p407, %p408
      %s411 = sadd.s32 %s410, 1
      %p414 = scmp.eq.s32.totalorder %s82, 1
      %p415 = scmp.ne.s32.totalorder %s410, %s412
      %p416 = scmp.eq.s32.totalorder %s82, 0
      %p417 = por %p415, %p416
      %p418 = scmp.ne.s32.totalorder %s410, %s412
      %p419 = scmp.eq.s32.totalorder %s87, 1
      %p420 = por %p418, %p419
      %p421 = scmp.ne.s32.totalorder %s412, %s413
      %p422 = scmp.eq.s32.totalorder %s87, 0
      %p423 = por %p421, %p422
      %p424 = scmp.ne.s32.totalorder %s412, %s413
      %p425 = scmp.eq.s32.totalorder %s88, 1
      %p426 = por %p424, %p425
      %p428 = scmp.ne.s32.totalorder %s413, %s427
      %p429 = scmp.eq.s32.totalorder %s88, 0
      %p430 = por %p428, %p429
      %s432 = sadd.s32 %s431, 1
      %p435 = scmp.eq.s32.totalorder %s82, 1
      %p436 = scmp.ne.s32.totalorder %s431, %s433
      %p437 = scmp.eq.s32.totalorder %s82, 0
      %p438 = por %p436, %p437
      %p439 = scmp.ne.s32.totalorder %s431, %s433
      %p440 = scmp.eq.s32.totalorder %s87, 1
      %p441 = por %p439, %p440
      %p442 = scmp.ne.s32.totalorder %s433, %s434
      %p443 = scmp.eq.s32.totalorder %s87, 0
      %p444 = por %p442, %p443
      %p445 = scmp.ne.s32.totalorder %s433, %s434
      %p446 = scmp.eq.s32.totalorder %s88, 1
      %p447 = por %p445, %p446
      %p449 = scmp.ne.s32.totalorder %s434, %s448
      %p450 = scmp.eq.s32.totalorder %s88, 0
      %p451 = por %p449, %p450
      %s453 = sadd.s32 %s452, 1
      %p456 = scmp.eq.s32.totalorder %s82, 1
      %p457 = scmp.ne.s32.totalorder %s452, %s454
      %p458 = scmp.eq.s32.totalorder %s82, 0
      %p459 = por %p457, %p458
      %p460 = scmp.ne.s32.totalorder %s452, %s454
      %p461 = scmp.eq.s32.totalorder %s87, 1
      %p462 = por %p460, %p461
      %p463 = scmp.ne.s32.totalorder %s454, %s455
      %p464 = scmp.eq.s32.totalorder %s87, 0
      %p465 = por %p463, %p464
      %p466 = scmp.ne.s32.totalorder %s454, %s455
      %p467 = scmp.eq.s32.totalorder %s88, 1
      %p468 = por %p466, %p467
      %p470 = scmp.ne.s32.totalorder %s455, %s469
      %p471 = scmp.eq.s32.totalorder %s88, 0
      %p472 = por %p470, %p471
      %s474 = sadd.s32 %s473, 1
      %p477 = scmp.eq.s32.totalorder %s82, 1
      %p478 = scmp.ne.s32.totalorder %s473, %s475
      %p479 = scmp.eq.s32.totalorder %s82, 0
      %p480 = por %p478, %p479
      %p481 = scmp.ne.s32.totalorder %s473, %s475
      %p482 = scmp.eq.s32.totalorder %s87, 1
      %p483 = por %p481, %p482
      %p484 = scmp.ne.s32.totalorder %s475, %s476
      %p485 = scmp.eq.s32.totalorder %s87, 0
      %p486 = por %p484, %p485
      %p487 = scmp.ne.s32.totalorder %s475, %s476
      %p488 = scmp.eq.s32.totalorder %s88, 1
      %p489 = por %p487, %p488
      %p491 = scmp.ne.s32.totalorder %s476, %s490
      %p492 = scmp.eq.s32.totalorder %s88, 0
      %p493 = por %p491, %p492
      %s495 = sadd.s32 %s494, 1
      %p498 = scmp.eq.s32.totalorder %s82, 1
      %p499 = scmp.ne.s32.totalorder %s494, %s496
      %p500 = scmp.eq.s32.totalorder %s82, 0
      %p501 = por %p499, %p500
      %p502 = scmp.ne.s32.totalorder %s494, %s496
      %p503 = scmp.eq.s32.totalorder %s87, 1
      %p504 = por %p502, %p503
      %p505 = scmp.ne.s32.totalorder %s496, %s497
      %p506 = scmp.eq.s32.totalorder %s87, 0
      %p507 = por %p505, %p506
      %p508 = scmp.ne.s32.totalorder %s496, %s497
      %p509 = scmp.eq.s32.totalorder %s88, 1
      %p510 = por %p508, %p509
      %p512 = scmp.ne.s32.totalorder %s497, %s511
      %p513 = scmp.eq.s32.totalorder %s88, 0
      %p514 = por %p512, %p513
      %s516 = sadd.s32 %s515, 1
      %p519 = scmp.eq.s32.totalorder %s82, 1
      %p520 = scmp.ne.s32.totalorder %s515, %s517
      %p521 = scmp.eq.s32.totalorder %s82, 0
      %p522 = por %p520, %p521
      %p523 = scmp.ne.s32.totalorder %s515, %s517
      %p524 = scmp.eq.s32.totalorder %s87, 1
      %p525 = por %p523, %p524
      %p526 = scmp.ne.s32.totalorder %s517, %s518
      %p527 = scmp.eq.s32.totalorder %s87, 0
      %p528 = por %p526, %p527
      %p529 = scmp.ne.s32.totalorder %s517, %s518
      %p530 = scmp.eq.s32.totalorder %s88, 1
      %p531 = por %p529, %p530
      %p533 = scmp.ne.s32.totalorder %s518, %s532
      %p534 = scmp.eq.s32.totalorder %s88, 0
      %p535 = por %p533, %p534
      %s537 = sadd.s32 %s536, 1
      %p540 = scmp.eq.s32.totalorder %s82, 1
      %p541 = scmp.ne.s32.totalorder %s536, %s538
      %p542 = scmp.eq.s32.totalorder %s82, 0
      %p543 = por %p541, %p542
      %p544 = scmp.ne.s32.totalorder %s536, %s538
      %p545 = scmp.eq.s32.totalorder %s87, 1
      %p546 = por %p544, %p545
      %p547 = scmp.ne.s32.totalorder %s538, %s539
      %p548 = scmp.eq.s32.totalorder %s87, 0
      %p549 = por %p547, %p548
      %p550 = scmp.ne.s32.totalorder %s538, %s539
      %p551 = scmp.eq.s32.totalorder %s88, 1
      %p552 = por %p550, %p551
      %p554 = scmp.ne.s32.totalorder %s539, %s553
      %p555 = scmp.eq.s32.totalorder %s88, 0
      %p556 = por %p554, %p555
      %s558 = sadd.s32 %s557, 1
      %p561 = scmp.eq.s32.totalorder %s82, 1
      %p562 = scmp.ne.s32.totalorder %s557, %s559
      %p563 = scmp.eq.s32.totalorder %s82, 0
      %p564 = por %p562, %p563
      %p565 = scmp.ne.s32.totalorder %s557, %s559
      %p566 = scmp.eq.s32.totalorder %s87, 1
      %p567 = por %p565, %p566
      %p568 = scmp.ne.s32.totalorder %s559, %s560
      %p569 = scmp.eq.s32.totalorder %s87, 0
      %p570 = por %p568, %p569
      %p571 = scmp.ne.s32.totalorder %s559, %s560
      %p572 = scmp.eq.s32.totalorder %s88, 1
      %p573 = por %p571, %p572
      %p575 = scmp.ne.s32.totalorder %s560, %s574
      %p576 = scmp.eq.s32.totalorder %s88, 0
      %p577 = por %p575, %p576
      %s579 = sadd.s32 %s578, 1
      %p582 = scmp.eq.s32.totalorder %s82, 1
      %p583 = scmp.ne.s32.totalorder %s578, %s580
      %p584 = scmp.eq.s32.totalorder %s82, 0
      %p585 = por %p583, %p584
      %p586 = scmp.ne.s32.totalorder %s578, %s580
      %p587 = scmp.eq.s32.totalorder %s87, 1
      %p588 = por %p586, %p587
      %p589 = scmp.ne.s32.totalorder %s580, %s581
      %p590 = scmp.eq.s32.totalorder %s87, 0
      %p591 = por %p589, %p590
      %p592 = scmp.ne.s32.totalorder %s580, %s581
      %p593 = scmp.eq.s32.totalorder %s88, 1
      %p594 = por %p592, %p593
      %p596 = scmp.ne.s32.totalorder %s581, %s595
      %p597 = scmp.eq.s32.totalorder %s88, 0
      %p598 = por %p596, %p597
      %s600 = sadd.s32 %s599, 1
      %p603 = scmp.eq.s32.totalorder %s82, 1
      %p604 = scmp.ne.s32.totalorder %s599, %s601
      %p605 = scmp.eq.s32.totalorder %s82, 0
      %p606 = por %p604, %p605
      %p607 = scmp.ne.s32.totalorder %s599, %s601
      %p608 = scmp.eq.s32.totalorder %s87, 1
      %p609 = por %p607, %p608
      %p610 = scmp.ne.s32.totalorder %s601, %s602
      %p611 = scmp.eq.s32.totalorder %s87, 0
      %p612 = por %p610, %p611
      %p613 = scmp.ne.s32.totalorder %s601, %s602
      %p614 = scmp.eq.s32.totalorder %s88, 1
      %p615 = por %p613, %p614
      %p617 = scmp.ne.s32.totalorder %s602, %s616
      %p618 = scmp.eq.s32.totalorder %s88, 0
      %p619 = por %p617, %p618
      %s621 = sadd.s32 %s620, 1
      %p624 = scmp.eq.s32.totalorder %s82, 1
      %p625 = scmp.ne.s32.totalorder %s620, %s622
      %p626 = scmp.eq.s32.totalorder %s82, 0
      %p627 = por %p625, %p626
      %p628 = scmp.ne.s32.totalorder %s620, %s622
      %p629 = scmp.eq.s32.totalorder %s87, 1
      %p630 = por %p628, %p629
      %p631 = scmp.ne.s32.totalorder %s622, %s623
      %p632 = scmp.eq.s32.totalorder %s87, 0
      %p633 = por %p631, %p632
      %p634 = scmp.ne.s32.totalorder %s622, %s623
      %p635 = scmp.eq.s32.totalorder %s88, 1
      %p636 = por %p634, %p635
      %p638 = scmp.ne.s32.totalorder %s623, %s637
      %p639 = scmp.eq.s32.totalorder %s88, 0
      %p640 = por %p638, %p639
      %s642 = sadd.s32 %s641, 1
      %p645 = scmp.eq.s32.totalorder %s82, 1
      %p646 = scmp.ne.s32.totalorder %s641, %s643
      %p647 = scmp.eq.s32.totalorder %s82, 0
      %p648 = por %p646, %p647
      %p649 = scmp.ne.s32.totalorder %s641, %s643
      %p650 = scmp.eq.s32.totalorder %s87, 1
      %p651 = por %p649, %p650
      %p652 = scmp.ne.s32.totalorder %s643, %s644
      %p653 = scmp.eq.s32.totalorder %s87, 0
      %p654 = por %p652, %p653
      %p655 = scmp.ne.s32.totalorder %s643, %s644
      %p656 = scmp.eq.s32.totalorder %s88, 1
      %p657 = por %p655, %p656
      %p659 = scmp.ne.s32.totalorder %s644, %s658
      %p660 = scmp.eq.s32.totalorder %s88, 0
      %p661 = por %p659, %p660
      %s663 = sadd.s32 %s662, 1
      %p666 = scmp.eq.s32.totalorder %s82, 1
      %p667 = scmp.ne.s32.totalorder %s662, %s664
      %p668 = scmp.eq.s32.totalorder %s82, 0
      %p669 = por %p667, %p668
      %p670 = scmp.ne.s32.totalorder %s662, %s664
      %p671 = scmp.eq.s32.totalorder %s87, 1
      %p672 = por %p670, %p671
      %p673 = scmp.ne.s32.totalorder %s664, %s665
      %p674 = scmp.eq.s32.totalorder %s87, 0
      %p675 = por %p673, %p674
      %p676 = scmp.ne.s32.totalorder %s664, %s665
      %p677 = scmp.eq.s32.totalorder %s88, 1
      %p678 = por %p676, %p677
      %p680 = scmp.ne.s32.totalorder %s665, %s679
      %p681 = scmp.eq.s32.totalorder %s88, 0
      %p682 = por %p680, %p681
      %s684 = sadd.s32 %s683, 1
      %p687 = scmp.eq.s32.totalorder %s82, 1
      %p688 = scmp.ne.s32.totalorder %s683, %s685
      %p689 = scmp.eq.s32.totalorder %s82, 0
      %p690 = por %p688, %p689
      %p691 = scmp.ne.s32.totalorder %s683, %s685
      %p692 = scmp.eq.s32.totalorder %s87, 1
      %p693 = por %p691, %p692
      %p694 = scmp.ne.s32.totalorder %s685, %s686
      %p695 = scmp.eq.s32.totalorder %s87, 0
      %p696 = por %p694, %p695
      %p697 = scmp.ne.s32.totalorder %s685, %s686
      %p698 = scmp.eq.s32.totalorder %s88, 1
      %p699 = por %p697, %p698
      %p701 = scmp.ne.s32.totalorder %s686, %s700
      %p702 = scmp.eq.s32.totalorder %s88, 0
      %p703 = por %p701, %p702
      %s705 = sadd.s32 %s704, 1
      %p708 = scmp.eq.s32.totalorder %s82, 1
      %p709 = scmp.ne.s32.totalorder %s704, %s706
      %p710 = scmp.eq.s32.totalorder %s82, 0
      %p711 = por %p709, %p710
      %p712 = scmp.ne.s32.totalorder %s704, %s706
      %p713 = scmp.eq.s32.totalorder %s87, 1
      %p714 = por %p712, %p713
      %p715 = scmp.ne.s32.totalorder %s706, %s707
      %p716 = scmp.eq.s32.totalorder %s87, 0
      %p717 = por %p715, %p716
      %p718 = scmp.ne.s32.totalorder %s706, %s707
      %p719 = scmp.eq.s32.totalorder %s88, 1
      %p720 = por %p718, %p719
      %p722 = scmp.ne.s32.totalorder %s707, %s721
      %p723 = scmp.eq.s32.totalorder %s88, 0
      %p724 = por %p722, %p723
      %s725 = ssub.s32 %s82, %s89
      %p726 = scmp.eq.s32.totalorder %s725, 0
      %s728 = sadd.s32 %s727, 1
      %s729 = scalar_select %p726, %s727, %s728
      %p732 = pneg %p726
      %p733 = scmp.eq.s32.totalorder %s82, 1
      %p734 = por %p732, %p733
      %p735 = scmp.ne.s32.totalorder %s727, %s730
      %p736 = scmp.eq.s32.totalorder %s82, 0
      %p737 = por %p735, %p736
      %p738 = scmp.ne.s32.totalorder %s727, %s730
      %p739 = scmp.eq.s32.totalorder %s87, 1
      %p740 = por %p738, %p739
      %p741 = scmp.ne.s32.totalorder %s730, %s731
      %p742 = scmp.eq.s32.totalorder %s87, 0
      %p743 = por %p741, %p742
      %p744 = scmp.ne.s32.totalorder %s730, %s731
      %p745 = scmp.eq.s32.totalorder %s88, 1
      %p746 = por %p744, %p745
      %p748 = scmp.ne.s32.totalorder %s731, %s747
      %p749 = scmp.eq.s32.totalorder %s88, 0
      %p750 = por %p748, %p749
      %p751 = scmp.le.s32.totalorder 1, %s82
      %p752 = scmp.lt.s32.totalorder %s82, 3
      %p753 = pnand %p751, %p752
      %p754 = pneg %p753
      // Predicated region
      $region9: #{tpu_custom_call.1} parent=5 // pred_check
        _
      $region10: #{tpu_custom_call.1} parent=5 // pred_check_branch
        %756 = sbr.rel (%p753) target = $region12
      $region11: #{tpu_custom_call.1} parent=5 // pred_region
        %s757 = ssub.s32 %s82, 1
        // Predicated region
        $region13: #{tpu_custom_call.1} parent=11 // pred_check
          %p758 = pneg %p129
        $region14: #{tpu_custom_call.1} parent=11 // pred_check_branch
          %760 = sbr.rel (%p758) target = $region16
        $region15: #{tpu_custom_call.1} parent=11 // pred_region
          %762 = vsyncadd [#allocation6], 0
          %s764 = sshll.u32 %s3, 4
          %s765 = int_to_ptr.hbm [resolvable:$true] %s764
          %s766 = sshll.u32 [#allocation5], 4
          %s767 = int_to_ptr.vmem [resolvable:$true] %s766
          %769 = dma.hbm_to_vmem [thread:$0]  %s765, 16, %s767, [#allocation6]
        $region16: #{tpu_custom_call.1} parent=11 // pred_fallthru
          _
        // Predicated region
        $region17: #{tpu_custom_call.1} parent=11 // pred_check
          %p770 = pneg %p150
        $region18: #{tpu_custom_call.1} parent=11 // pred_check_branch
          %772 = sbr.rel (%p770) target = $region20
        $region19: #{tpu_custom_call.1} parent=11 // pred_region
          %774 = vsyncadd [#allocation6], 0
          %s776 = sshll.u32 %s5, 4
          %s777 = int_to_ptr.hbm [resolvable:$true] %s776
          %s778 = sshll.u32 [#allocation7], 4
          %s779 = int_to_ptr.vmem [resolvable:$true] %s778
          %781 = dma.hbm_to_vmem [thread:$0]  %s777, 16, %s779, [#allocation6]
        $region20: #{tpu_custom_call.1} parent=11 // pred_fallthru
          _
        // Predicated region
        $region21: #{tpu_custom_call.1} parent=11 // pred_check
          %p782 = pneg %p171
        $region22: #{tpu_custom_call.1} parent=11 // pred_check_branch
          %784 = sbr.rel (%p782) target = $region24
        $region23: #{tpu_custom_call.1} parent=11 // pred_region
          %786 = vsyncadd [#allocation9], 0
          %s788 = sshll.u32 %s7, 4
          %s789 = int_to_ptr.hbm [resolvable:$true] %s788
          %s790 = sshll.u32 [#allocation8], 4
          %s791 = int_to_ptr.vmem [resolvable:$true] %s790
          %793 = dma.hbm_to_vmem [thread:$0]  %s789, 16, %s791, [#allocation9]
        $region24: #{tpu_custom_call.1} parent=11 // pred_fallthru
          _
        // Predicated region
        $region25: #{tpu_custom_call.1} parent=11 // pred_check
          %p794 = pneg %p192
        $region26: #{tpu_custom_call.1} parent=11 // pred_check_branch
          %796 = sbr.rel (%p794) target = $region28
        $region27: #{tpu_custom_call.1} parent=11 // pred_region
          %798 = vsyncadd [#allocation9], 0
          %s800 = sshll.u32 %s9, 4
          %s801 = int_to_ptr.hbm [resolvable:$true] %s800
          %s802 = sshll.u32 [#allocation10], 4
          %s803 = int_to_ptr.vmem [resolvable:$true] %s802
          %805 = dma.hbm_to_vmem [thread:$0]  %s801, 16, %s803, [#allocation9]
        $region28: #{tpu_custom_call.1} parent=11 // pred_fallthru
          _
        // Predicated region
        $region29: #{tpu_custom_call.1} parent=11 // pred_check
          %p806 = pneg %p213
        $region30: #{tpu_custom_call.1} parent=11 // pred_check_branch
          %808 = sbr.rel (%p806) target = $region32
        $region31: #{tpu_custom_call.1} parent=11 // pred_region
          %810 = vsyncadd [#allocation12], 0
          %s812 = sshll.u32 %s11, 4
          %s813 = int_to_ptr.hbm [resolvable:$true] %s812
          %s814 = sshll.u32 [#allocation11], 4
          %s815 = int_to_ptr.vmem [resolvable:$true] %s814
          %817 = dma.hbm_to_vmem [thread:$0]  %s813, 16, %s815, [#allocation12]
        $region32: #{tpu_custom_call.1} parent=11 // pred_fallthru
          _
        // Predicated region
        $region33: #{tpu_custom_call.1} parent=11 // pred_check
          %p818 = pneg %p234
        $region34: #{tpu_custom_call.1} parent=11 // pred_check_branch
          %820 = sbr.rel (%p818) target = $region36
        $region35: #{tpu_custom_call.1} parent=11 // pred_region
          %822 = vsyncadd [#allocation12], 0
          %s823 = sshll.u32 %s13, 4
          %s824 = int_to_ptr.hbm [resolvable:$true] %s823
          %s825 = sshll.u32 [#allocation13], 4
          %s826 = int_to_ptr.vmem [resolvable:$true] %s825
          %831 = dma.hbm_to_vmem [thread:$0]  %s824, 2048, %s826, [#allocation12], 128, 128, 8
        $region36: #{tpu_custom_call.1} parent=11 // pred_fallthru
          _
        // Predicated region
        $region37: #{tpu_custom_call.1} parent=11 // pred_check
          %p832 = pneg %p255
        $region38: #{tpu_custom_call.1} parent=11 // pred_check_branch
          %834 = sbr.rel (%p832) target = $region40
        $region39: #{tpu_custom_call.1} parent=11 // pred_region
          _
        $region40: #{tpu_custom_call.1} parent=11 // pred_fallthru
          _
        // Predicated region
        $region41: #{tpu_custom_call.1} parent=11 // pred_check
          %p835 = pneg %p276
        $region42: #{tpu_custom_call.1} parent=11 // pred_check_branch
          %837 = sbr.rel (%p835) target = $region44
        $region43: #{tpu_custom_call.1} parent=11 // pred_region
          %839 = vsyncadd [#allocation15], 0
          %s840 = sshll.u32 %s17, 4
          %s841 = int_to_ptr.hbm [resolvable:$true] %s840
          %s842 = sshll.u32 [#allocation14], 4
          %s843 = int_to_ptr.vmem [resolvable:$true] %s842
          %848 = dma.hbm_to_vmem [thread:$0]  %s841, 4096, %s843, [#allocation15], 128, 128, 8
        $region44: #{tpu_custom_call.1} parent=11 // pred_fallthru
          _
        // Predicated region
        $region45: #{tpu_custom_call.1} parent=11 // pred_check
          %p849 = pneg %p297
        $region46: #{tpu_custom_call.1} parent=11 // pred_check_branch
          %851 = sbr.rel (%p849) target = $region48
        $region47: #{tpu_custom_call.1} parent=11 // pred_region
          _
        $region48: #{tpu_custom_call.1} parent=11 // pred_fallthru
          _
        // Predicated region
        $region49: #{tpu_custom_call.1} parent=11 // pred_check
          %p852 = pneg %p318
        $region50: #{tpu_custom_call.1} parent=11 // pred_check_branch
          %854 = sbr.rel (%p852) target = $region52
        $region51: #{tpu_custom_call.1} parent=11 // pred_region
          %856 = vsyncadd [#allocation15], 0
          %s857 = sshll.u32 %s21, 4
          %s858 = int_to_ptr.hbm [resolvable:$true] %s857
          %s859 = sshll.u32 [#allocation16], 4
          %s860 = int_to_ptr.vmem [resolvable:$true] %s859
          %865 = dma.hbm_to_vmem [thread:$0]  %s858, 4096, %s860, [#allocation15], 128, 128, 8
        $region52: #{tpu_custom_call.1} parent=11 // pred_fallthru
          _
        // Predicated region
        $region53: #{tpu_custom_call.1} parent=11 // pred_check
          %p866 = pneg %p339
        $region54: #{tpu_custom_call.1} parent=11 // pred_check_branch
          %868 = sbr.rel (%p866) target = $region56
        $region55: #{tpu_custom_call.1} parent=11 // pred_region
          _
        $region56: #{tpu_custom_call.1} parent=11 // pred_fallthru
          _
        // Predicated region
        $region57: #{tpu_custom_call.1} parent=11 // pred_check
          %p869 = pneg %p360
        $region58: #{tpu_custom_call.1} parent=11 // pred_check_branch
          %871 = sbr.rel (%p869) target = $region60
        $region59: #{tpu_custom_call.1} parent=11 // pred_region
          %873 = vsyncadd [#allocation18], 0
          %s874 = sshll.u32 %s25, 4
          %s875 = int_to_ptr.hbm [resolvable:$true] %s874
          %s876 = sshll.u32 [#allocation17], 4
          %s877 = int_to_ptr.vmem [resolvable:$true] %s876
          %882 = dma.hbm_to_vmem [thread:$0]  %s875, 4096, %s877, [#allocation18], 128, 128, 8
        $region60: #{tpu_custom_call.1} parent=11 // pred_fallthru
          _
        // Predicated region
        $region61: #{tpu_custom_call.1} parent=11 // pred_check
          %p883 = pneg %p381
        $region62: #{tpu_custom_call.1} parent=11 // pred_check_branch
          %885 = sbr.rel (%p883) target = $region64
        $region63: #{tpu_custom_call.1} parent=11 // pred_region
          _
        $region64: #{tpu_custom_call.1} parent=11 // pred_fallthru
          _
        // Predicated region
        $region65: #{tpu_custom_call.1} parent=11 // pred_check
          %p886 = pneg %p402
        $region66: #{tpu_custom_call.1} parent=11 // pred_check_branch
          %888 = sbr.rel (%p886) target = $region68
        $region67: #{tpu_custom_call.1} parent=11 // pred_region
          %890 = vsyncadd [#allocation18], 0
          %s891 = sshll.u32 %s29, 4
          %s892 = int_to_ptr.hbm [resolvable:$true] %s891
          %s893 = sshll.u32 [#allocation19], 4
          %s894 = int_to_ptr.vmem [resolvable:$true] %s893
          %899 = dma.hbm_to_vmem [thread:$0]  %s892, 4096, %s894, [#allocation18], 128, 128, 8
        $region68: #{tpu_custom_call.1} parent=11 // pred_fallthru
          _
        // Predicated region
        $region69: #{tpu_custom_call.1} parent=11 // pred_check
          %p900 = pneg %p423
        $region70: #{tpu_custom_call.1} parent=11 // pred_check_branch
          %902 = sbr.rel (%p900) target = $region72
        $region71: #{tpu_custom_call.1} parent=11 // pred_region
          _
        $region72: #{tpu_custom_call.1} parent=11 // pred_fallthru
          _
        // Predicated region
        $region73: #{tpu_custom_call.1} parent=11 // pred_check
          %p903 = pneg %p444
        $region74: #{tpu_custom_call.1} parent=11 // pred_check_branch
          %905 = sbr.rel (%p903) target = $region76
        $region75: #{tpu_custom_call.1} parent=11 // pred_region
          %907 = vsyncadd [#allocation21], 0
          %s908 = sshll.u32 %s33, 4
          %s909 = int_to_ptr.hbm [resolvable:$true] %s908
          %s910 = sshll.u32 [#allocation20], 4
          %s911 = int_to_ptr.vmem [resolvable:$true] %s910
          %916 = dma.hbm_to_vmem [thread:$0]  %s909, 2048, %s911, [#allocation21], 128, 128, 8
        $region76: #{tpu_custom_call.1} parent=11 // pred_fallthru
          _
        // Predicated region
        $region77: #{tpu_custom_call.1} parent=11 // pred_check
          %p917 = pneg %p465
        $region78: #{tpu_custom_call.1} parent=11 // pred_check_branch
          %919 = sbr.rel (%p917) target = $region80
        $region79: #{tpu_custom_call.1} parent=11 // pred_region
          %921 = vsyncadd [#allocation21], 0
          %s922 = sshll.u32 %s35, 4
          %s923 = int_to_ptr.hbm [resolvable:$true] %s922
          %s924 = sshll.u32 [#allocation22], 4
          %s925 = int_to_ptr.vmem [resolvable:$true] %s924
          %930 = dma.hbm_to_vmem [thread:$0]  %s923, 4096, %s925, [#allocation21], 128, 128, 8
        $region80: #{tpu_custom_call.1} parent=11 // pred_fallthru
          _
        // Predicated region
        $region81: #{tpu_custom_call.1} parent=11 // pred_check
          %p931 = pneg %p486
        $region82: #{tpu_custom_call.1} parent=11 // pred_check_branch
          %933 = sbr.rel (%p931) target = $region84
        $region83: #{tpu_custom_call.1} parent=11 // pred_region
          _
        $region84: #{tpu_custom_call.1} parent=11 // pred_fallthru
          _
        // Predicated region
        $region85: #{tpu_custom_call.1} parent=11 // pred_check
          %p934 = pneg %p507
        $region86: #{tpu_custom_call.1} parent=11 // pred_check_branch
          %936 = sbr.rel (%p934) target = $region88
        $region87: #{tpu_custom_call.1} parent=11 // pred_region
          %938 = vsyncadd [#allocation24], 0
          %s939 = sshll.u32 %s39, 4
          %s940 = int_to_ptr.hbm [resolvable:$true] %s939
          %s941 = sshll.u32 [#allocation23], 4
          %s942 = int_to_ptr.vmem [resolvable:$true] %s941
          %947 = dma.hbm_to_vmem [thread:$0]  %s940, 4096, %s942, [#allocation24], 128, 128, 8
        $region88: #{tpu_custom_call.1} parent=11 // pred_fallthru
          _
        // Predicated region
        $region89: #{tpu_custom_call.1} parent=11 // pred_check
          %p948 = pneg %p528
        $region90: #{tpu_custom_call.1} parent=11 // pred_check_branch
          %950 = sbr.rel (%p948) target = $region92
        $region91: #{tpu_custom_call.1} parent=11 // pred_region
          _
        $region92: #{tpu_custom_call.1} parent=11 // pred_fallthru
          _
        // Predicated region
        $region93: #{tpu_custom_call.1} parent=11 // pred_check
          %p951 = pneg %p549
        $region94: #{tpu_custom_call.1} parent=11 // pred_check_branch
          %953 = sbr.rel (%p951) target = $region96
        $region95: #{tpu_custom_call.1} parent=11 // pred_region
          %955 = vsyncadd [#allocation24], 0
          %s956 = sshll.u32 %s43, 4
          %s957 = int_to_ptr.hbm [resolvable:$true] %s956
          %s958 = sshll.u32 [#allocation25], 4
          %s959 = int_to_ptr.vmem [resolvable:$true] %s958
          %964 = dma.hbm_to_vmem [thread:$0]  %s957, 4096, %s959, [#allocation24], 128, 128, 8
        $region96: #{tpu_custom_call.1} parent=11 // pred_fallthru
          _
        // Predicated region
        $region97: #{tpu_custom_call.1} parent=11 // pred_check
          %p965 = pneg %p570
        $region98: #{tpu_custom_call.1} parent=11 // pred_check_branch
          %967 = sbr.rel (%p965) target = $region100
        $region99: #{tpu_custom_call.1} parent=11 // pred_region
          _
        $region100: #{tpu_custom_call.1} parent=11 // pred_fallthru
          _
        // Predicated region
        $region101: #{tpu_custom_call.1} parent=11 // pred_check
          %p968 = pneg %p591
        $region102: #{tpu_custom_call.1} parent=11 // pred_check_branch
          %970 = sbr.rel (%p968) target = $region104
        $region103: #{tpu_custom_call.1} parent=11 // pred_region
          %972 = vsyncadd [#allocation27], 0
          %s973 = sshll.u32 %s47, 4
          %s974 = int_to_ptr.hbm [resolvable:$true] %s973
          %s975 = sshll.u32 [#allocation26], 4
          %s976 = int_to_ptr.vmem [resolvable:$true] %s975
          %981 = dma.hbm_to_vmem [thread:$0]  %s974, 4096, %s976, [#allocation27], 128, 128, 8
        $region104: #{tpu_custom_call.1} parent=11 // pred_fallthru
          _
        // Predicated region
        $region105: #{tpu_custom_call.1} parent=11 // pred_check
          %p982 = pneg %p612
        $region106: #{tpu_custom_call.1} parent=11 // pred_check_branch
          %984 = sbr.rel (%p982) target = $region108
        $region107: #{tpu_custom_call.1} parent=11 // pred_region
          _
        $region108: #{tpu_custom_call.1} parent=11 // pred_fallthru
          _
        // Predicated region
        $region109: #{tpu_custom_call.1} parent=11 // pred_check
          %p985 = pneg %p633
        $region110: #{tpu_custom_call.1} parent=11 // pred_check_branch
          %987 = sbr.rel (%p985) target = $region112
        $region111: #{tpu_custom_call.1} parent=11 // pred_region
          %989 = vsyncadd [#allocation27], 0
          %s990 = sshll.u32 %s51, 4
          %s991 = int_to_ptr.hbm [resolvable:$true] %s990
          %s992 = sshll.u32 [#allocation28], 4
          %s993 = int_to_ptr.vmem [resolvable:$true] %s992
          %998 = dma.hbm_to_vmem [thread:$0]  %s991, 2048, %s993, [#allocation27], 128, 128, 8
        $region112: #{tpu_custom_call.1} parent=11 // pred_fallthru
          _
        // Predicated region
        $region113: #{tpu_custom_call.1} parent=11 // pred_check
          %p999 = pneg %p654
        $region114: #{tpu_custom_call.1} parent=11 // pred_check_branch
          %1001 = sbr.rel (%p999) target = $region116
        $region115: #{tpu_custom_call.1} parent=11 // pred_region
          %1003 = vsyncadd [#allocation30], 0
          %s1004 = sshll.u32 %s53, 4
          %s1005 = int_to_ptr.hbm [resolvable:$true] %s1004
          %s1006 = sshll.u32 [#allocation29], 4
          %s1007 = int_to_ptr.vmem [resolvable:$true] %s1006
          %1012 = dma.hbm_to_vmem [thread:$0]  %s1005, 2048, %s1007, [#allocation30], 128, 128, 8
        $region116: #{tpu_custom_call.1} parent=11 // pred_fallthru
          _
        // Predicated region
        $region117: #{tpu_custom_call.1} parent=11 // pred_check
          %p1013 = pneg %p675
        $region118: #{tpu_custom_call.1} parent=11 // pred_check_branch
          %1015 = sbr.rel (%p1013) target = $region120
        $region119: #{tpu_custom_call.1} parent=11 // pred_region
          _
        $region120: #{tpu_custom_call.1} parent=11 // pred_fallthru
          _
        // Predicated region
        $region121: #{tpu_custom_call.1} parent=11 // pred_check
          %p1016 = pneg %p696
        $region122: #{tpu_custom_call.1} parent=11 // pred_check_branch
          %1018 = sbr.rel (%p1016) target = $region124
        $region123: #{tpu_custom_call.1} parent=11 // pred_region
          %1020 = vsyncadd [#allocation30], 0
          %s1021 = sshll.u32 %s57, 4
          %s1022 = int_to_ptr.hbm [resolvable:$true] %s1021
          %s1023 = sshll.u32 [#allocation31], 4
          %s1024 = int_to_ptr.vmem [resolvable:$true] %s1023
          %1029 = dma.hbm_to_vmem [thread:$0]  %s1022, 2048, %s1024, [#allocation30], 64, 64, 4
        $region124: #{tpu_custom_call.1} parent=11 // pred_fallthru
          _
        // Predicated region
        $region125: #{tpu_custom_call.1} parent=11 // pred_check
          %p1030 = pneg %p717
        $region126: #{tpu_custom_call.1} parent=11 // pred_check_branch
          %1032 = sbr.rel (%p1030) target = $region128
        $region127: #{tpu_custom_call.1} parent=11 // pred_region
          _
        $region128: #{tpu_custom_call.1} parent=11 // pred_fallthru
          _
      $region12: #{tpu_custom_call.1} parent=5 // pred_fallthru
        _
      %p1033 = scmp.lt.s32.totalorder %s82, 2
      // Predicated region
      $region129: #{tpu_custom_call.1} parent=5 // pred_check
        %p1034 = pneg %p1033
      $region130: #{tpu_custom_call.1} parent=5 // pred_check_branch
        %1036 = sbr.rel (%p1034) target = $region132
      $region131: #{tpu_custom_call.1} parent=5 // pred_region
        // Predicated region
        $region133: #{tpu_custom_call.1} parent=131 // pred_check
          %p1037 = pneg %p102
        $region134: #{tpu_custom_call.1} parent=131 // pred_check_branch
          %1039 = sbr.rel (%p1037) target = $region136
        $region135: #{tpu_custom_call.1} parent=131 // pred_region
          %s1040 = sand.u32 %s92, 1
          %s1041 = scalar_lea.sflag [#allocation3], %s1040
          %s1042 = sand.u32 %s92, 1
          %s1043 = smul.addr %s1042, 128
          %s1044 = scalar_lea.vmem [#allocation2], %s1043
          %s1045 = smul.u32 16, %s82
          %1047 = vsyncadd %s1041, 0
          %s1048 = smul.addr %s1045, 8
          %s1049 = scalar_lea.hbm %s1, %s1048
          %s1050 = sshll.u32 %s1049, 4
          %s1051 = int_to_ptr.hbm [resolvable:$true] %s1050
          %s1052 = sshll.u32 %s1044, 4
          %s1053 = int_to_ptr.vmem [resolvable:$true] %s1052
          %1058 = dma.hbm_to_vmem [thread:$0]  %s1051, 2048, %s1053, %s1041, 128, 128, 8
        $region136: #{tpu_custom_call.1} parent=131 // pred_fallthru
          _
      $region132: #{tpu_custom_call.1} parent=5 // pred_fallthru
        _
      %p1059 = scmp.le.s32.totalorder 1, %s82
      %p1060 = scmp.lt.s32.totalorder %s82, 3
      %p1061 = pnand %p1059, %p1060
      %p1062 = pneg %p1061
      // Predicated region
      $region137: #{tpu_custom_call.1} parent=5 // pred_check
        _
      $region138: #{tpu_custom_call.1} parent=5 // pred_check_branch
        %1064 = sbr.rel (%p1061) target = $region140
      $region139: #{tpu_custom_call.1} parent=5 // pred_region
        %s1065 = ssub.s32 %s82, 1
        %s1066 = sand.u32 %s95, 1
        %s1067 = scalar_lea.sflag [#allocation3], %s1066
        %s1068 = sand.u32 %s95, 1
        %s1069 = smul.addr %s1068, 128
        %s1070 = scalar_lea.vmem [#allocation2], %s1069
        // Predicated region
        $region141: #{tpu_custom_call.1} parent=139 // pred_check
          %p1071 = pneg %p108
        $region142: #{tpu_custom_call.1} parent=139 // pred_check_branch
          %1073 = sbr.rel (%p1071) target = $region144
        $region143: #{tpu_custom_call.1} parent=139 // pred_region
          %1075 = dma.done %s1067, 2048
        $region144: #{tpu_custom_call.1} parent=139 // pred_fallthru
          _
        // Predicated region
        $region145: #{tpu_custom_call.1} parent=139 // pred_check
          %p1076 = pneg %p129
        $region146: #{tpu_custom_call.1} parent=139 // pred_check_branch
          %1078 = sbr.rel (%p1076) target = $region148
        $region147: #{tpu_custom_call.1} parent=139 // pred_region
          %1080 = dma.done [#allocation6], 16
        $region148: #{tpu_custom_call.1} parent=139 // pred_fallthru
          _
        // Predicated region
        $region149: #{tpu_custom_call.1} parent=139 // pred_check
          %p1081 = pneg %p150
        $region150: #{tpu_custom_call.1} parent=139 // pred_check_branch
          %1083 = sbr.rel (%p1081) target = $region152
        $region151: #{tpu_custom_call.1} parent=139 // pred_region
          %1085 = dma.done [#allocation6], 16
        $region152: #{tpu_custom_call.1} parent=139 // pred_fallthru
          _
        // Predicated region
        $region153: #{tpu_custom_call.1} parent=139 // pred_check
          %p1086 = pneg %p171
        $region154: #{tpu_custom_call.1} parent=139 // pred_check_branch
          %1088 = sbr.rel (%p1086) target = $region156
        $region155: #{tpu_custom_call.1} parent=139 // pred_region
          %1090 = dma.done [#allocation9], 16
        $region156: #{tpu_custom_call.1} parent=139 // pred_fallthru
          _
        // Predicated region
        $region157: #{tpu_custom_call.1} parent=139 // pred_check
          %p1091 = pneg %p192
        $region158: #{tpu_custom_call.1} parent=139 // pred_check_branch
          %1093 = sbr.rel (%p1091) target = $region160
        $region159: #{tpu_custom_call.1} parent=139 // pred_region
          %1095 = dma.done [#allocation9], 16
        $region160: #{tpu_custom_call.1} parent=139 // pred_fallthru
          _
        // Predicated region
        $region161: #{tpu_custom_call.1} parent=139 // pred_check
          %p1096 = pneg %p213
        $region162: #{tpu_custom_call.1} parent=139 // pred_check_branch
          %1098 = sbr.rel (%p1096) target = $region164
        $region163: #{tpu_custom_call.1} parent=139 // pred_region
          %1100 = dma.done [#allocation12], 16
        $region164: #{tpu_custom_call.1} parent=139 // pred_fallthru
          _
        // Predicated region
        $region165: #{tpu_custom_call.1} parent=139 // pred_check
          %p1101 = pneg %p234
        $region166: #{tpu_custom_call.1} parent=139 // pred_check_branch
          %1103 = sbr.rel (%p1101) target = $region168
        $region167: #{tpu_custom_call.1} parent=139 // pred_region
          %1105 = dma.done [#allocation12], 2048
        $region168: #{tpu_custom_call.1} parent=139 // pred_fallthru
          _
        // Predicated region
        $region169: #{tpu_custom_call.1} parent=139 // pred_check
          %p1106 = pneg %p276
        $region170: #{tpu_custom_call.1} parent=139 // pred_check_branch
          %1108 = sbr.rel (%p1106) target = $region172
        $region171: #{tpu_custom_call.1} parent=139 // pred_region
          %1110 = dma.done [#allocation15], 4096
        $region172: #{tpu_custom_call.1} parent=139 // pred_fallthru
          _
        // Predicated region
        $region173: #{tpu_custom_call.1} parent=139 // pred_check
          %p1111 = pneg %p318
        $region174: #{tpu_custom_call.1} parent=139 // pred_check_branch
          %1113 = sbr.rel (%p1111) target = $region176
        $region175: #{tpu_custom_call.1} parent=139 // pred_region
          %1115 = dma.done [#allocation15], 4096
        $region176: #{tpu_custom_call.1} parent=139 // pred_fallthru
          _
        // Predicated region
        $region177: #{tpu_custom_call.1} parent=139 // pred_check
          %p1116 = pneg %p360
        $region178: #{tpu_custom_call.1} parent=139 // pred_check_branch
          %1118 = sbr.rel (%p1116) target = $region180
        $region179: #{tpu_custom_call.1} parent=139 // pred_region
          %1120 = dma.done [#allocation18], 4096
        $region180: #{tpu_custom_call.1} parent=139 // pred_fallthru
          _
        // Predicated region
        $region181: #{tpu_custom_call.1} parent=139 // pred_check
          %p1121 = pneg %p402
        $region182: #{tpu_custom_call.1} parent=139 // pred_check_branch
          %1123 = sbr.rel (%p1121) target = $region184
        $region183: #{tpu_custom_call.1} parent=139 // pred_region
          %1125 = dma.done [#allocation18], 4096
        $region184: #{tpu_custom_call.1} parent=139 // pred_fallthru
          _
        // Predicated region
        $region185: #{tpu_custom_call.1} parent=139 // pred_check
          %p1126 = pneg %p444
        $region186: #{tpu_custom_call.1} parent=139 // pred_check_branch
          %1128 = sbr.rel (%p1126) target = $region188
        $region187: #{tpu_custom_call.1} parent=139 // pred_region
          %1130 = dma.done [#allocation21], 2048
        $region188: #{tpu_custom_call.1} parent=139 // pred_fallthru
          _
        // Predicated region
        $region189: #{tpu_custom_call.1} parent=139 // pred_check
          %p1131 = pneg %p465
        $region190: #{tpu_custom_call.1} parent=139 // pred_check_branch
          %1133 = sbr.rel (%p1131) target = $region192
        $region191: #{tpu_custom_call.1} parent=139 // pred_region
          %1135 = dma.done [#allocation21], 4096
        $region192: #{tpu_custom_call.1} parent=139 // pred_fallthru
          _
        // Predicated region
        $region193: #{tpu_custom_call.1} parent=139 // pred_check
          %p1136 = pneg %p507
        $region194: #{tpu_custom_call.1} parent=139 // pred_check_branch
          %1138 = sbr.rel (%p1136) target = $region196
        $region195: #{tpu_custom_call.1} parent=139 // pred_region
          %1140 = dma.done [#allocation24], 4096
        $region196: #{tpu_custom_call.1} parent=139 // pred_fallthru
          _
        // Predicated region
        $region197: #{tpu_custom_call.1} parent=139 // pred_check
          %p1141 = pneg %p549
        $region198: #{tpu_custom_call.1} parent=139 // pred_check_branch
          %1143 = sbr.rel (%p1141) target = $region200
        $region199: #{tpu_custom_call.1} parent=139 // pred_region
          %1145 = dma.done [#allocation24], 4096
        $region200: #{tpu_custom_call.1} parent=139 // pred_fallthru
          _
        // Predicated region
        $region201: #{tpu_custom_call.1} parent=139 // pred_check
          %p1146 = pneg %p591
        $region202: #{tpu_custom_call.1} parent=139 // pred_check_branch
          %1148 = sbr.rel (%p1146) target = $region204
        $region203: #{tpu_custom_call.1} parent=139 // pred_region
          %1150 = dma.done [#allocation27], 4096
        $region204: #{tpu_custom_call.1} parent=139 // pred_fallthru
          _
        // Predicated region
        $region205: #{tpu_custom_call.1} parent=139 // pred_check
          %p1151 = pneg %p633
        $region206: #{tpu_custom_call.1} parent=139 // pred_check_branch
          %1153 = sbr.rel (%p1151) target = $region208
        $region207: #{tpu_custom_call.1} parent=139 // pred_region
          %1155 = dma.done [#allocation27], 2048
        $region208: #{tpu_custom_call.1} parent=139 // pred_fallthru
          _
        // Predicated region
        $region209: #{tpu_custom_call.1} parent=139 // pred_check
          %p1156 = pneg %p654
        $region210: #{tpu_custom_call.1} parent=139 // pred_check_branch
          %1158 = sbr.rel (%p1156) target = $region212
        $region211: #{tpu_custom_call.1} parent=139 // pred_region
          %1160 = dma.done [#allocation30], 2048
        $region212: #{tpu_custom_call.1} parent=139 // pred_fallthru
          _
        // Predicated region
        $region213: #{tpu_custom_call.1} parent=139 // pred_check
          %p1161 = pneg %p696
        $region214: #{tpu_custom_call.1} parent=139 // pred_check_branch
          %1163 = sbr.rel (%p1161) target = $region216
        $region215: #{tpu_custom_call.1} parent=139 // pred_region
          %1165 = dma.done [#allocation30], 2048
        $region216: #{tpu_custom_call.1} parent=139 // pred_fallthru
          _
        %s1166 = sand.u32 %s95, 1
        %s1167 = scalar_lea.sflag [#allocation3], %s1166
        %s1168 = sand.u32 %s95, 1
        %s1169 = smul.addr %s1168, 128
        %s1170 = scalar_lea.vmem [#allocation2], %s1169
        %p1171 = pneg %p108
        %p1172 = pneg %p105
        %p1173 = pneg %p129
        %p1174 = pneg %p126
        %p1175 = pneg %p150
        %p1176 = pneg %p147
        %p1177 = pneg %p171
        %p1178 = pneg %p168
        %p1179 = pneg %p192
        %p1180 = pneg %p189
        %p1181 = pneg %p213
        %p1182 = pneg %p210
        %p1183 = pneg %p234
        %p1184 = pneg %p231
        %p1185 = pneg %p255
        %p1186 = pneg %p252
        %p1187 = pneg %p276
        %p1188 = pneg %p273
        %p1189 = pneg %p297
        %p1190 = pneg %p294
        %p1191 = pneg %p318
        %p1192 = pneg %p315
        %p1193 = pneg %p339
        %p1194 = pneg %p336
        %p1195 = pneg %p360
        %p1196 = pneg %p357
        %p1197 = pneg %p381
        %p1198 = pneg %p378
        %p1199 = pneg %p402
        %p1200 = pneg %p399
        %p1201 = pneg %p423
        %p1202 = pneg %p420
        %p1203 = pneg %p444
        %p1204 = pneg %p441
        %p1205 = pneg %p465
        %p1206 = pneg %p462
        %p1207 = pneg %p486
        %p1208 = pneg %p483
        %p1209 = pneg %p507
        %p1210 = pneg %p504
        %p1211 = pneg %p528
        %p1212 = pneg %p525
        %p1213 = pneg %p549
        %p1214 = pneg %p546
        %p1215 = pneg %p570
        %p1216 = pneg %p567
        %p1217 = pneg %p591
        %p1218 = pneg %p588
        %p1219 = pneg %p612
        %p1220 = pneg %p609
        %p1221 = pneg %p633
        %p1222 = pneg %p630
        %p1223 = pneg %p654
        %p1224 = pneg %p651
        %p1225 = pneg %p675
        %p1226 = pneg %p672
        %p1227 = pneg %p696
        %p1228 = pneg %p693
        %p1229 = pneg %p717
        %p1230 = pneg %p714
        %p1231 = pneg %p743
        %p1232 = pneg %p740
        %s1233 = sand.u32 %s730, 1
        %s1234 = scalar_lea.sflag [#allocation4], %s1233
        %s1235 = sand.u32 %s730, 1
        %s1236 = smul.addr %s1235, 128
        %s1237 = scalar_lea.vmem [#allocation32], %s1236
        %s1238 = smul.u32 16, %s87
        %s1239 = smul.u32 16, %s87
        %v1240 = vld [vmem:[%s1070] sm:$0xff]
        %v1241 = vld [vmem:[%s1070 + $0x8] sm:$0xff]
        %v1242 = vld [vmem:[%s1070 + $0x10] sm:$0xff]
        %v1243 = vld [vmem:[%s1070 + $0x18] sm:$0xff]
        %v1244 = vld [vmem:[%s1070 + $0x20] sm:$0xff]
        %v1245 = vld [vmem:[%s1070 + $0x28] sm:$0xff]
        %v1246 = vld [vmem:[%s1070 + $0x30] sm:$0xff]
        %v1247 = vld [vmem:[%s1070 + $0x38] sm:$0xff]
        %v1248 = vld [vmem:[%s1070 + $0x40] sm:$0xff]
        %v1249 = vld [vmem:[%s1070 + $0x48] sm:$0xff]
        %v1250 = vld [vmem:[%s1070 + $0x50] sm:$0xff]
        %v1251 = vld [vmem:[%s1070 + $0x58] sm:$0xff]
        %v1252 = vld [vmem:[%s1070 + $0x60] sm:$0xff]
        %v1253 = vld [vmem:[%s1070 + $0x68] sm:$0xff]
        %v1254 = vld [vmem:[%s1070 + $0x70] sm:$0xff]
        %v1255 = vld [vmem:[%s1070 + $0x78] sm:$0xff]
        %v1256 = vld [vmem:[#allocation5] sm:$0x1]
        %1258 = vset.pattern.permute.xlu0 0
        %1259 = vperm.xlu0 %1258, %v1240
        %v1260 = vpop.permute.xlu0 %1259
        %1263 = vset.pattern.permute.xlu0 0
        %1264 = vperm.xlu0 %1263, %v1241
        %v1265 = vpop.permute.xlu0 %1264
        %1268 = vset.pattern.permute.xlu0 0
        %1269 = vperm.xlu0 %1268, %v1242
        %v1270 = vpop.permute.xlu0 %1269
        %1273 = vset.pattern.permute.xlu0 0
        %1274 = vperm.xlu0 %1273, %v1243
        %v1275 = vpop.permute.xlu0 %1274
        %1278 = vset.pattern.permute.xlu0 0
        %1279 = vperm.xlu0 %1278, %v1244
        %v1280 = vpop.permute.xlu0 %1279
        %1283 = vset.pattern.permute.xlu0 0
        %1284 = vperm.xlu0 %1283, %v1245
        %v1285 = vpop.permute.xlu0 %1284
        %1288 = vset.pattern.permute.xlu0 0
        %1289 = vperm.xlu0 %1288, %v1246
        %v1290 = vpop.permute.xlu0 %1289
        %1293 = vset.pattern.permute.xlu0 0
        %1294 = vperm.xlu0 %1293, %v1247
        %v1295 = vpop.permute.xlu0 %1294
        %1298 = vset.pattern.permute.xlu0 0
        %1299 = vperm.xlu0 %1298, %v1248
        %v1300 = vpop.permute.xlu0 %1299
        %1303 = vset.pattern.permute.xlu0 0
        %1304 = vperm.xlu0 %1303, %v1249
        %v1305 = vpop.permute.xlu0 %1304
        %1308 = vset.pattern.permute.xlu0 0
        %1309 = vperm.xlu0 %1308, %v1250
        %v1310 = vpop.permute.xlu0 %1309
        %1313 = vset.pattern.permute.xlu0 0
        %1314 = vperm.xlu0 %1313, %v1251
        %v1315 = vpop.permute.xlu0 %1314
        %1318 = vset.pattern.permute.xlu0 0
        %1319 = vperm.xlu0 %1318, %v1252
        %v1320 = vpop.permute.xlu0 %1319
        %1323 = vset.pattern.permute.xlu0 0
        %1324 = vperm.xlu0 %1323, %v1253
        %v1325 = vpop.permute.xlu0 %1324
        %1328 = vset.pattern.permute.xlu0 0
        %1329 = vperm.xlu0 %1328, %v1254
        %v1330 = vpop.permute.xlu0 %1329
        %1333 = vset.pattern.permute.xlu0 0
        %1334 = vperm.xlu0 %1333, %v1255
        %v1335 = vpop.permute.xlu0 %1334
        %v1338 = vperm.slane %v1256, 0
        %v1340 = vmul.f32 %v1260, %v1338
        %v1341 = vmul.f32 %v1265, %v1338
        %v1342 = vmul.f32 %v1270, %v1338
        %v1343 = vmul.f32 %v1275, %v1338
        %v1344 = vmul.f32 %v1280, %v1338
        %v1345 = vmul.f32 %v1285, %v1338
        %v1346 = vmul.f32 %v1290, %v1338
        %v1347 = vmul.f32 %v1295, %v1338
        %v1348 = vmul.f32 %v1300, %v1338
        %v1349 = vmul.f32 %v1305, %v1338
        %v1350 = vmul.f32 %v1310, %v1338
        %v1351 = vmul.f32 %v1315, %v1338
        %v1352 = vmul.f32 %v1320, %v1338
        %v1353 = vmul.f32 %v1325, %v1338
        %v1354 = vmul.f32 %v1330, %v1338
        %v1355 = vmul.f32 %v1335, %v1338
        %v1356 = vld [vmem:[#allocation7] sm:$0x1]
        %1357 = vset.pattern.permute.xlu0 1
        %1358 = vperm.xlu0 %1357, %v1240
        %v1359 = vpop.permute.xlu0 %1358
        %1361 = vset.pattern.permute.xlu0 1
        %1362 = vperm.xlu0 %1361, %v1241
        %v1363 = vpop.permute.xlu0 %1362
        %1365 = vset.pattern.permute.xlu0 1
        %1366 = vperm.xlu0 %1365, %v1242
        %v1367 = vpop.permute.xlu0 %1366
        %1369 = vset.pattern.permute.xlu0 1
        %1370 = vperm.xlu0 %1369, %v1243
        %v1371 = vpop.permute.xlu0 %1370
        %1373 = vset.pattern.permute.xlu0 1
        %1374 = vperm.xlu0 %1373, %v1244
        %v1375 = vpop.permute.xlu0 %1374
        %1377 = vset.pattern.permute.xlu0 1
        %1378 = vperm.xlu0 %1377, %v1245
        %v1379 = vpop.permute.xlu0 %1378
        %1381 = vset.pattern.permute.xlu0 1
        %1382 = vperm.xlu0 %1381, %v1246
        %v1383 = vpop.permute.xlu0 %1382
        %1385 = vset.pattern.permute.xlu0 1
        %1386 = vperm.xlu0 %1385, %v1247
        %v1387 = vpop.permute.xlu0 %1386
        %1389 = vset.pattern.permute.xlu0 1
        %1390 = vperm.xlu0 %1389, %v1248
        %v1391 = vpop.permute.xlu0 %1390
        %1393 = vset.pattern.permute.xlu0 1
        %1394 = vperm.xlu0 %1393, %v1249
        %v1395 = vpop.permute.xlu0 %1394
        %1397 = vset.pattern.permute.xlu0 1
        %1398 = vperm.xlu0 %1397, %v1250
        %v1399 = vpop.permute.xlu0 %1398
        %1401 = vset.pattern.permute.xlu0 1
        %1402 = vperm.xlu0 %1401, %v1251
        %v1403 = vpop.permute.xlu0 %1402
        %1405 = vset.pattern.permute.xlu0 1
        %1406 = vperm.xlu0 %1405, %v1252
        %v1407 = vpop.permute.xlu0 %1406
        %1409 = vset.pattern.permute.xlu0 1
        %1410 = vperm.xlu0 %1409, %v1253
        %v1411 = vpop.permute.xlu0 %1410
        %1413 = vset.pattern.permute.xlu0 1
        %1414 = vperm.xlu0 %1413, %v1254
        %v1415 = vpop.permute.xlu0 %1414
        %1417 = vset.pattern.permute.xlu0 1
        %1418 = vperm.xlu0 %1417, %v1255
        %v1419 = vpop.permute.xlu0 %1418
        %v1422 = vperm.slane %v1356, 0
        %v1424 = vmul.f32 %v1359, %v1422
        %v1425 = vmul.f32 %v1363, %v1422
        %v1426 = vmul.f32 %v1367, %v1422
        %v1427 = vmul.f32 %v1371, %v1422
        %v1428 = vmul.f32 %v1375, %v1422
        %v1429 = vmul.f32 %v1379, %v1422
        %v1430 = vmul.f32 %v1383, %v1422
        %v1431 = vmul.f32 %v1387, %v1422
        %v1432 = vmul.f32 %v1391, %v1422
        %v1433 = vmul.f32 %v1395, %v1422
        %v1434 = vmul.f32 %v1399, %v1422
        %v1435 = vmul.f32 %v1403, %v1422
        %v1436 = vmul.f32 %v1407, %v1422
        %v1437 = vmul.f32 %v1411, %v1422
        %v1438 = vmul.f32 %v1415, %v1422
        %v1439 = vmul.f32 %v1419, %v1422
        %v1440 = vadd.f32 %v1340, %v1424
        %v1441 = vadd.f32 %v1341, %v1425
        %v1442 = vadd.f32 %v1342, %v1426
        %v1443 = vadd.f32 %v1343, %v1427
        %v1444 = vadd.f32 %v1344, %v1428
        %v1445 = vadd.f32 %v1345, %v1429
        %v1446 = vadd.f32 %v1346, %v1430
        %v1447 = vadd.f32 %v1347, %v1431
        %v1448 = vadd.f32 %v1348, %v1432
        %v1449 = vadd.f32 %v1349, %v1433
        %v1450 = vadd.f32 %v1350, %v1434
        %v1451 = vadd.f32 %v1351, %v1435
        %v1452 = vadd.f32 %v1352, %v1436
        %v1453 = vadd.f32 %v1353, %v1437
        %v1454 = vadd.f32 %v1354, %v1438
        %v1455 = vadd.f32 %v1355, %v1439
        %v1456 = vld [vmem:[#allocation8] sm:$0x1]
        %1457 = vset.pattern.permute.xlu0 2
        %1458 = vperm.xlu0 %1457, %v1240
        %v1459 = vpop.permute.xlu0 %1458
        %1461 = vset.pattern.permute.xlu0 2
        %1462 = vperm.xlu0 %1461, %v1241
        %v1463 = vpop.permute.xlu0 %1462
        %1465 = vset.pattern.permute.xlu0 2
        %1466 = vperm.xlu0 %1465, %v1242
        %v1467 = vpop.permute.xlu0 %1466
        %1469 = vset.pattern.permute.xlu0 2
        %1470 = vperm.xlu0 %1469, %v1243
        %v1471 = vpop.permute.xlu0 %1470
        %1473 = vset.pattern.permute.xlu0 2
        %1474 = vperm.xlu0 %1473, %v1244
        %v1475 = vpop.permute.xlu0 %1474
        %1477 = vset.pattern.permute.xlu0 2
        %1478 = vperm.xlu0 %1477, %v1245
        %v1479 = vpop.permute.xlu0 %1478
        %1481 = vset.pattern.permute.xlu0 2
        %1482 = vperm.xlu0 %1481, %v1246
        %v1483 = vpop.permute.xlu0 %1482
        %1485 = vset.pattern.permute.xlu0 2
        %1486 = vperm.xlu0 %1485, %v1247
        %v1487 = vpop.permute.xlu0 %1486
        %1489 = vset.pattern.permute.xlu0 2
        %1490 = vperm.xlu0 %1489, %v1248
        %v1491 = vpop.permute.xlu0 %1490
        %1493 = vset.pattern.permute.xlu0 2
        %1494 = vperm.xlu0 %1493, %v1249
        %v1495 = vpop.permute.xlu0 %1494
        %1497 = vset.pattern.permute.xlu0 2
        %1498 = vperm.xlu0 %1497, %v1250
        %v1499 = vpop.permute.xlu0 %1498
        %1501 = vset.pattern.permute.xlu0 2
        %1502 = vperm.xlu0 %1501, %v1251
        %v1503 = vpop.permute.xlu0 %1502
        %1505 = vset.pattern.permute.xlu0 2
        %1506 = vperm.xlu0 %1505, %v1252
        %v1507 = vpop.permute.xlu0 %1506
        %1509 = vset.pattern.permute.xlu0 2
        %1510 = vperm.xlu0 %1509, %v1253
        %v1511 = vpop.permute.xlu0 %1510
        %1513 = vset.pattern.permute.xlu0 2
        %1514 = vperm.xlu0 %1513, %v1254
        %v1515 = vpop.permute.xlu0 %1514
        %1517 = vset.pattern.permute.xlu0 2
        %1518 = vperm.xlu0 %1517, %v1255
        %v1519 = vpop.permute.xlu0 %1518
        %v1522 = vperm.slane %v1456, 0
        %v1524 = vmul.f32 %v1459, %v1522
        %v1525 = vmul.f32 %v1463, %v1522
        %v1526 = vmul.f32 %v1467, %v1522
        %v1527 = vmul.f32 %v1471, %v1522
        %v1528 = vmul.f32 %v1475, %v1522
        %v1529 = vmul.f32 %v1479, %v1522
        %v1530 = vmul.f32 %v1483, %v1522
        %v1531 = vmul.f32 %v1487, %v1522
        %v1532 = vmul.f32 %v1491, %v1522
        %v1533 = vmul.f32 %v1495, %v1522
        %v1534 = vmul.f32 %v1499, %v1522
        %v1535 = vmul.f32 %v1503, %v1522
        %v1536 = vmul.f32 %v1507, %v1522
        %v1537 = vmul.f32 %v1511, %v1522
        %v1538 = vmul.f32 %v1515, %v1522
        %v1539 = vmul.f32 %v1519, %v1522
        %v1540 = vadd.f32 %v1440, %v1524
        %v1541 = vadd.f32 %v1441, %v1525
        %v1542 = vadd.f32 %v1442, %v1526
        %v1543 = vadd.f32 %v1443, %v1527
        %v1544 = vadd.f32 %v1444, %v1528
        %v1545 = vadd.f32 %v1445, %v1529
        %v1546 = vadd.f32 %v1446, %v1530
        %v1547 = vadd.f32 %v1447, %v1531
        %v1548 = vadd.f32 %v1448, %v1532
        %v1549 = vadd.f32 %v1449, %v1533
        %v1550 = vadd.f32 %v1450, %v1534
        %v1551 = vadd.f32 %v1451, %v1535
        %v1552 = vadd.f32 %v1452, %v1536
        %v1553 = vadd.f32 %v1453, %v1537
        %v1554 = vadd.f32 %v1454, %v1538
        %v1555 = vadd.f32 %v1455, %v1539
        %v1556 = vld [vmem:[#allocation10] sm:$0x1]
        %v1558 = vperm.slane %v1556, 0
        %v1560 = vadd.f32 %v1540, %v1558
        %v1561 = vadd.f32 %v1541, %v1558
        %v1562 = vadd.f32 %v1542, %v1558
        %v1563 = vadd.f32 %v1543, %v1558
        %v1564 = vadd.f32 %v1544, %v1558
        %v1565 = vadd.f32 %v1545, %v1558
        %v1566 = vadd.f32 %v1546, %v1558
        %v1567 = vadd.f32 %v1547, %v1558
        %v1568 = vadd.f32 %v1548, %v1558
        %v1569 = vadd.f32 %v1549, %v1558
        %v1570 = vadd.f32 %v1550, %v1558
        %v1571 = vadd.f32 %v1551, %v1558
        %v1572 = vadd.f32 %v1552, %v1558
        %v1573 = vadd.f32 %v1553, %v1558
        %v1574 = vadd.f32 %v1554, %v1558
        %v1575 = vadd.f32 %v1555, %v1558
        %v1576 = vld [vmem:[#allocation11] sm:$0x1]
        %v1577 = vand.u32 2147483647, %v1560
        %vm1578 = vcmp.le.f32.partialorder %v1577, 0.7853982
        %vm1579 = vcmp.lt.s32.totalorder %v1560, 0
        %v1580 = vand.u32 %v1560, 2139095040
        %v1581 = vshrl.u32 %v1580, 23
        %v1582 = vsub.s32 %v1581, 127
        %v1583 = vand.u32 2147483647, %v1560
        %v1584 = vand.u32 %v1583, 8388607
        %v1585 = vor.u32 %v1584, 8388608
        %v1586 = vsub.s32 0, %v1585
        %v1587 = vadd.s32 %v1582, 1
        %vm1588 = vcmp.gt.s32.totalorder %v1587, 0
        %v1589 = vsel %vm1588, %v1587, 0
        %v1590 = vshrl.u32 %v1589, 5
        %v1591 = vand.u32 %v1589, 31
        %v1592 = vsub.s32 32, %v1591
        %v1593 = vshrl.u32 683565275, %v1592
        %v1594 = vshll.u32 683565275, %v1591
        %v1595 = vshrl.u32 2475754826, %v1592
        %v1596 = vor.u32 %v1594, %v1595
        %v1597 = vshll.u32 2475754826, %v1591
        %v1598 = vshrl.u32 2131351028, %v1592
        %v1599 = vor.u32 %v1597, %v1598
        %v1600 = vshll.u32 2131351028, %v1591
        %v1601 = vshrl.u32 2102212464, %v1592
        %v1602 = vor.u32 %v1600, %v1601
        %v1603 = vshll.u32 2102212464, %v1591
        %v1604 = vshrl.u32 920167782, %v1592
        %v1605 = vor.u32 %v1603, %v1604
        %v1606 = vshll.u32 920167782, %v1591
        %v1607 = vshrl.u32 1326507024, %v1592
        %v1608 = vor.u32 %v1606, %v1607
        %vm1609 = vcmp.lt.s32.totalorder %v1590, 1
        %vm1610 = vcmp.lt.s32.totalorder %v1590, 2
        %vm1611 = vcmp.lt.s32.totalorder %v1590, 3
        %vm1612 = vcmp.lt.s32.totalorder %v1590, 4
        %v1613 = vsel %vm1609, %v1593, %v1596
        %v1614 = vsel %vm1612, %v1602, 2102212464
        %v1615 = vsel %vm1611, %v1599, %v1614
        %v1616 = vsel %vm1610, %v1613, %v1615
        %v1617 = vsel %vm1609, %v1596, %v1599
        %v1618 = vsel %vm1612, %v1605, 920167782
        %v1619 = vsel %vm1611, %v1602, %v1618
        %v1620 = vsel %vm1610, %v1617, %v1619
        %v1621 = vsel %vm1609, %v1599, %v1602
        %v1622 = vsel %vm1612, %v1608, 1326507024
        %v1623 = vsel %vm1611, %v1605, %v1622
        %v1624 = vsel %vm1610, %v1621, %v1623
        %v1625 = vshll.u32 %v1585, 8
        %v1626 = vand.u32 %v1625, 65535
        %v1627 = vshrl.u32 %v1625, 16
        %v1628 = vand.u32 %v1624, 65535
        %v1629 = vshrl.u32 %v1624, 16
        %v1630 = vmul.u32 %v1626, %v1628
        %v1631 = vmul.u32 %v1626, %v1629
        %v1632 = vmul.u32 %v1627, %v1628
        %v1633 = vmul.u32 %v1627, %v1629
        %v1634 = vshll.u32 %v1631, 16
        %v1635 = vshrl.u32 %v1631, 16
        %v1636 = vshll.u32 %v1632, 16
        %v1637 = vshrl.u32 %v1632, 16
        %vm1638 = vc.u32 %v1630, %v1634
        %v1639 = vsel %vm1638, 1, 0
        %v1640 = vadd.s32 %v1630, %v1634
        %v1641 = vadd.s32 %v1633, %v1639
        %vm1642 = vc.u32 %v1640, %v1636
        %v1643 = vsel %vm1642, 1, 0
        %v1644 = vadd.s32 %v1640, %v1636
        %v1645 = vadd.s32 %v1641, %v1643
        %v1646 = vadd.s32 %v1645, %v1635
        %v1647 = vadd.s32 %v1646, %v1637
        %v1648 = vand.u32 %v1625, 65535
        %v1649 = vshrl.u32 %v1625, 16
        %v1650 = vand.u32 %v1620, 65535
        %v1651 = vshrl.u32 %v1620, 16
        %v1652 = vmul.u32 %v1648, %v1650
        %v1653 = vmul.u32 %v1648, %v1651
        %v1654 = vmul.u32 %v1649, %v1650
        %v1655 = vmul.u32 %v1649, %v1651
        %v1656 = vshll.u32 %v1653, 16
        %v1657 = vshrl.u32 %v1653, 16
        %v1658 = vshll.u32 %v1654, 16
        %v1659 = vshrl.u32 %v1654, 16
        %vm1660 = vc.u32 %v1652, %v1656
        %v1661 = vsel %vm1660, 1, 0
        %v1662 = vadd.s32 %v1652, %v1656
        %v1663 = vadd.s32 %v1655, %v1661
        %vm1664 = vc.u32 %v1662, %v1658
        %v1665 = vsel %vm1664, 1, 0
        %v1666 = vadd.s32 %v1662, %v1658
        %v1667 = vadd.s32 %v1663, %v1665
        %v1668 = vadd.s32 %v1667, %v1657
        %v1669 = vadd.s32 %v1668, %v1659
        %v1670 = vmul.u32 %v1625, %v1616
        %v1671 = vadd.s32 %v1647, %v1666
        %vm1672 = vc.u32 %v1647, %v1666
        %v1673 = vadd.s32 %v1669, 1
        %v1674 = vsel %vm1672, %v1673, %v1669
        %v1675 = vadd.s32 %v1670, %v1674
        %v1676 = vadd.s32 %v1675, 536870912
        %v1677 = vshrl.u32 %v1676, 30
        %v1678 = vshll.u32 %v1677, 30
        %v1679 = vsub.s32 %v1675, %v1678
        %vm1680 = vcmp.lt.s32.totalorder %v1679, 0
        %v1681 = vsub.s32 0, %v1679
        %v1682 = vsel %vm1680, %v1681, %v1679
        %v1683 = vclz %v1682
        %v1684 = vsub.s32 %v1683, 2
        %vm1685 = vcmp.gt.s32.totalorder 0, %v1684
        %v1686 = vsel %vm1685, 0, %v1684
        %v1687 = vsub.s32 32, %v1686
        %v1688 = vshll.u32 %v1679, %v1686
        %v1689 = vshrl.u32 %v1671, %v1687
        %v1690 = vor.u32 %v1688, %v1689
        %v1691 = vsub.s32 4294967266, %v1686
        %v1692 = vadd.s32 %v1691, 127
        %v1693 = vshll.u32 %v1692, 23
        %v1694 = vor.u32 4788187, %v1693
        %v1695 = vand.u32 2147483647, %v1694
        %v1697 = vcvt.s32.f32 %v1690
        %v1698 = vmul.f32 %v1697, %v1695
        %v1699 = vxor.u32 %v1698, 2147483648
        %v1700 = vsel %vm1579, %v1699, %v1698
        %v1701 = vsub.s32 4, %v1677
        %v1702 = vsel %vm1579, %v1701, %v1677
        %v1703 = vsel %vm1578, %v1560, %v1700
        %v1704 = vsel %vm1578, 0, %v1702
        %v1705 = vmul.f32 %v1703, %v1703
        %v1706 = vmul.f32 %v1705, -0.001358992
        %v1707 = vadd.f32 %v1706, 0.041655596
        %v1708 = vmul.f32 %v1705, %v1707
        %v1709 = vadd.f32 %v1708, -0.4999988
        %v1710 = vmul.f32 %v1705, %v1709
        %v1711 = vadd.f32 1.0, %v1710
        %v1712 = vmul.f32 %v1703, %v1703
        %v1713 = vmul.f32 %v1712, -0.00019511016
        %v1714 = vadd.f32 %v1713, 0.008332121
        %v1715 = vmul.f32 %v1712, %v1714
        %v1716 = vadd.f32 %v1715, -0.16666654
        %v1717 = vmul.f32 %v1712, %v1716
        %v1718 = vadd.f32 %v1717, 1.0
        %v1719 = vmul.f32 %v1718, %v1703
        %vm1720 = vweird.f32 %v1560
        %v1721 = vadd.s32 %v1704, 3
        %v1722 = vand.u32 %v1721, 3
        %vm1723 = vcmp.lt.s32.totalorder %v1722, 2
        %vm1724 = vcmp.eq.s32.totalorder %v1722, 0
        %v1725 = vxor.u32 %v1719, 2147483648
        %v1726 = vsel %vm1724, %v1711, %v1725
        %vm1727 = vcmp.eq.s32.totalorder %v1722, 2
        %v1728 = vxor.u32 %v1711, 2147483648
        %v1729 = vsel %vm1727, %v1728, %v1719
        %v1730 = vsel %vm1723, %v1726, %v1729
        %v1731 = vsel %vm1720, nan, %v1730
        %v1732 = vand.u32 2147483647, %v1561
        %vm1733 = vcmp.le.f32.partialorder %v1732, 0.7853982
        %vm1734 = vcmp.lt.s32.totalorder %v1561, 0
        %v1735 = vand.u32 %v1561, 2139095040
        %v1736 = vshrl.u32 %v1735, 23
        %v1737 = vsub.s32 %v1736, 127
        %v1738 = vand.u32 2147483647, %v1561
        %v1739 = vand.u32 %v1738, 8388607
        %v1740 = vor.u32 %v1739, 8388608
        %v1741 = vsub.s32 0, %v1740
        %v1742 = vadd.s32 %v1737, 1
        %vm1743 = vcmp.gt.s32.totalorder %v1742, 0
        %v1744 = vsel %vm1743, %v1742, 0
        %v1745 = vshrl.u32 %v1744, 5
        %v1746 = vand.u32 %v1744, 31
        %v1747 = vsub.s32 32, %v1746
        %v1748 = vshrl.u32 683565275, %v1747
        %v1749 = vshll.u32 683565275, %v1746
        %v1750 = vshrl.u32 2475754826, %v1747
        %v1751 = vor.u32 %v1749, %v1750
        %v1752 = vshll.u32 2475754826, %v1746
        %v1753 = vshrl.u32 2131351028, %v1747
        %v1754 = vor.u32 %v1752, %v1753
        %v1755 = vshll.u32 2131351028, %v1746
        %v1756 = vshrl.u32 2102212464, %v1747
        %v1757 = vor.u32 %v1755, %v1756
        %v1758 = vshll.u32 2102212464, %v1746
        %v1759 = vshrl.u32 920167782, %v1747
        %v1760 = vor.u32 %v1758, %v1759
        %v1761 = vshll.u32 920167782, %v1746
        %v1762 = vshrl.u32 1326507024, %v1747
        %v1763 = vor.u32 %v1761, %v1762
        %vm1764 = vcmp.lt.s32.totalorder %v1745, 1
        %vm1765 = vcmp.lt.s32.totalorder %v1745, 2
        %vm1766 = vcmp.lt.s32.totalorder %v1745, 3
        %vm1767 = vcmp.lt.s32.totalorder %v1745, 4
        %v1768 = vsel %vm1764, %v1748, %v1751
        %v1769 = vsel %vm1767, %v1757, 2102212464
        %v1770 = vsel %vm1766, %v1754, %v1769
        %v1771 = vsel %vm1765, %v1768, %v1770
        %v1772 = vsel %vm1764, %v1751, %v1754
        %v1773 = vsel %vm1767, %v1760, 920167782
        %v1774 = vsel %vm1766, %v1757, %v1773
        %v1775 = vsel %vm1765, %v1772, %v1774
        %v1776 = vsel %vm1764, %v1754, %v1757
        %v1777 = vsel %vm1767, %v1763, 1326507024
        %v1778 = vsel %vm1766, %v1760, %v1777
        %v1779 = vsel %vm1765, %v1776, %v1778
        %v1780 = vshll.u32 %v1740, 8
        %v1781 = vand.u32 %v1780, 65535
        %v1782 = vshrl.u32 %v1780, 16
        %v1783 = vand.u32 %v1779, 65535
        %v1784 = vshrl.u32 %v1779, 16
        %v1785 = vmul.u32 %v1781, %v1783
        %v1786 = vmul.u32 %v1781, %v1784
        %v1787 = vmul.u32 %v1782, %v1783
        %v1788 = vmul.u32 %v1782, %v1784
        %v1789 = vshll.u32 %v1786, 16
        %v1790 = vshrl.u32 %v1786, 16
        %v1791 = vshll.u32 %v1787, 16
        %v1792 = vshrl.u32 %v1787, 16
        %vm1793 = vc.u32 %v1785, %v1789
        %v1794 = vsel %vm1793, 1, 0
        %v1795 = vadd.s32 %v1785, %v1789
        %v1796 = vadd.s32 %v1788, %v1794
        %vm1797 = vc.u32 %v1795, %v1791
        %v1798 = vsel %vm1797, 1, 0
        %v1799 = vadd.s32 %v1795, %v1791
        %v1800 = vadd.s32 %v1796, %v1798
        %v1801 = vadd.s32 %v1800, %v1790
        %v1802 = vadd.s32 %v1801, %v1792
        %v1803 = vand.u32 %v1780, 65535
        %v1804 = vshrl.u32 %v1780, 16
        %v1805 = vand.u32 %v1775, 65535
        %v1806 = vshrl.u32 %v1775, 16
        %v1807 = vmul.u32 %v1803, %v1805
        %v1808 = vmul.u32 %v1803, %v1806
        %v1809 = vmul.u32 %v1804, %v1805
        %v1810 = vmul.u32 %v1804, %v1806
        %v1811 = vshll.u32 %v1808, 16
        %v1812 = vshrl.u32 %v1808, 16
        %v1813 = vshll.u32 %v1809, 16
        %v1814 = vshrl.u32 %v1809, 16
        %vm1815 = vc.u32 %v1807, %v1811
        %v1816 = vsel %vm1815, 1, 0
        %v1817 = vadd.s32 %v1807, %v1811
        %v1818 = vadd.s32 %v1810, %v1816
        %vm1819 = vc.u32 %v1817, %v1813
        %v1820 = vsel %vm1819, 1, 0
        %v1821 = vadd.s32 %v1817, %v1813
        %v1822 = vadd.s32 %v1818, %v1820
        %v1823 = vadd.s32 %v1822, %v1812
        %v1824 = vadd.s32 %v1823, %v1814
        %v1825 = vmul.u32 %v1780, %v1771
        %v1826 = vadd.s32 %v1802, %v1821
        %vm1827 = vc.u32 %v1802, %v1821
        %v1828 = vadd.s32 %v1824, 1
        %v1829 = vsel %vm1827, %v1828, %v1824
        %v1830 = vadd.s32 %v1825, %v1829
        %v1831 = vadd.s32 %v1830, 536870912
        %v1832 = vshrl.u32 %v1831, 30
        %v1833 = vshll.u32 %v1832, 30
        %v1834 = vsub.s32 %v1830, %v1833
        %vm1835 = vcmp.lt.s32.totalorder %v1834, 0
        %v1836 = vsub.s32 0, %v1834
        %v1837 = vsel %vm1835, %v1836, %v1834
        %v1838 = vclz %v1837
        %v1839 = vsub.s32 %v1838, 2
        %vm1840 = vcmp.gt.s32.totalorder 0, %v1839
        %v1841 = vsel %vm1840, 0, %v1839
        %v1842 = vsub.s32 32, %v1841
        %v1843 = vshll.u32 %v1834, %v1841
        %v1844 = vshrl.u32 %v1826, %v1842
        %v1845 = vor.u32 %v1843, %v1844
        %v1846 = vsub.s32 4294967266, %v1841
        %v1847 = vadd.s32 %v1846, 127
        %v1848 = vshll.u32 %v1847, 23
        %v1849 = vor.u32 4788187, %v1848
        %v1850 = vand.u32 2147483647, %v1849
        %v1852 = vcvt.s32.f32 %v1845
        %v1853 = vmul.f32 %v1852, %v1850
        %v1854 = vxor.u32 %v1853, 2147483648
        %v1855 = vsel %vm1734, %v1854, %v1853
        %v1856 = vsub.s32 4, %v1832
        %v1857 = vsel %vm1734, %v1856, %v1832
        %v1858 = vsel %vm1733, %v1561, %v1855
        %v1859 = vsel %vm1733, 0, %v1857
        %v1860 = vmul.f32 %v1858, %v1858
        %v1861 = vmul.f32 %v1860, -0.001358992
        %v1862 = vadd.f32 %v1861, 0.041655596
        %v1863 = vmul.f32 %v1860, %v1862
        %v1864 = vadd.f32 %v1863, -0.4999988
        %v1865 = vmul.f32 %v1860, %v1864
        %v1866 = vadd.f32 1.0, %v1865
        %v1867 = vmul.f32 %v1858, %v1858
        %v1868 = vmul.f32 %v1867, -0.00019511016
        %v1869 = vadd.f32 %v1868, 0.008332121
        %v1870 = vmul.f32 %v1867, %v1869
        %v1871 = vadd.f32 %v1870, -0.16666654
        %v1872 = vmul.f32 %v1867, %v1871
        %v1873 = vadd.f32 %v1872, 1.0
        %v1874 = vmul.f32 %v1873, %v1858
        %vm1875 = vweird.f32 %v1561
        %v1876 = vadd.s32 %v1859, 3
        %v1877 = vand.u32 %v1876, 3
        %vm1878 = vcmp.lt.s32.totalorder %v1877, 2
        %vm1879 = vcmp.eq.s32.totalorder %v1877, 0
        %v1880 = vxor.u32 %v1874, 2147483648
        %v1881 = vsel %vm1879, %v1866, %v1880
        %vm1882 = vcmp.eq.s32.totalorder %v1877, 2
        %v1883 = vxor.u32 %v1866, 2147483648
        %v1884 = vsel %vm1882, %v1883, %v1874
        %v1885 = vsel %vm1878, %v1881, %v1884
        %v1886 = vsel %vm1875, nan, %v1885
        %v1887 = vand.u32 2147483647, %v1562
        %vm1888 = vcmp.le.f32.partialorder %v1887, 0.7853982
        %vm1889 = vcmp.lt.s32.totalorder %v1562, 0
        %v1890 = vand.u32 %v1562, 2139095040
        %v1891 = vshrl.u32 %v1890, 23
        %v1892 = vsub.s32 %v1891, 127
        %v1893 = vand.u32 2147483647, %v1562
        %v1894 = vand.u32 %v1893, 8388607
        %v1895 = vor.u32 %v1894, 8388608
        %v1896 = vsub.s32 0, %v1895
        %v1897 = vadd.s32 %v1892, 1
        %vm1898 = vcmp.gt.s32.totalorder %v1897, 0
        %v1899 = vsel %vm1898, %v1897, 0
        %v1900 = vshrl.u32 %v1899, 5
        %v1901 = vand.u32 %v1899, 31
        %v1902 = vsub.s32 32, %v1901
        %v1903 = vshrl.u32 683565275, %v1902
        %v1904 = vshll.u32 683565275, %v1901
        %v1905 = vshrl.u32 2475754826, %v1902
        %v1906 = vor.u32 %v1904, %v1905
        %v1907 = vshll.u32 2475754826, %v1901
        %v1908 = vshrl.u32 2131351028, %v1902
        %v1909 = vor.u32 %v1907, %v1908
        %v1910 = vshll.u32 2131351028, %v1901
        %v1911 = vshrl.u32 2102212464, %v1902
        %v1912 = vor.u32 %v1910, %v1911
        %v1913 = vshll.u32 2102212464, %v1901
        %v1914 = vshrl.u32 920167782, %v1902
        %v1915 = vor.u32 %v1913, %v1914
        %v1916 = vshll.u32 920167782, %v1901
        %v1917 = vshrl.u32 1326507024, %v1902
        %v1918 = vor.u32 %v1916, %v1917
        %vm1919 = vcmp.lt.s32.totalorder %v1900, 1
        %vm1920 = vcmp.lt.s32.totalorder %v1900, 2
        %vm1921 = vcmp.lt.s32.totalorder %v1900, 3
        %vm1922 = vcmp.lt.s32.totalorder %v1900, 4
        %v1923 = vsel %vm1919, %v1903, %v1906
        %v1924 = vsel %vm1922, %v1912, 2102212464
        %v1925 = vsel %vm1921, %v1909, %v1924
        %v1926 = vsel %vm1920, %v1923, %v1925
        %v1927 = vsel %vm1919, %v1906, %v1909
        %v1928 = vsel %vm1922, %v1915, 920167782
        %v1929 = vsel %vm1921, %v1912, %v1928
        %v1930 = vsel %vm1920, %v1927, %v1929
        %v1931 = vsel %vm1919, %v1909, %v1912
        %v1932 = vsel %vm1922, %v1918, 1326507024
        %v1933 = vsel %vm1921, %v1915, %v1932
        %v1934 = vsel %vm1920, %v1931, %v1933
        %v1935 = vshll.u32 %v1895, 8
        %v1936 = vand.u32 %v1935, 65535
        %v1937 = vshrl.u32 %v1935, 16
        %v1938 = vand.u32 %v1934, 65535
        %v1939 = vshrl.u32 %v1934, 16
        %v1940 = vmul.u32 %v1936, %v1938
        %v1941 = vmul.u32 %v1936, %v1939
        %v1942 = vmul.u32 %v1937, %v1938
        %v1943 = vmul.u32 %v1937, %v1939
        %v1944 = vshll.u32 %v1941, 16
        %v1945 = vshrl.u32 %v1941, 16
        %v1946 = vshll.u32 %v1942, 16
        %v1947 = vshrl.u32 %v1942, 16
        %vm1948 = vc.u32 %v1940, %v1944
        %v1949 = vsel %vm1948, 1, 0
        %v1950 = vadd.s32 %v1940, %v1944
        %v1951 = vadd.s32 %v1943, %v1949
        %vm1952 = vc.u32 %v1950, %v1946
        %v1953 = vsel %vm1952, 1, 0
        %v1954 = vadd.s32 %v1950, %v1946
        %v1955 = vadd.s32 %v1951, %v1953
        %v1956 = vadd.s32 %v1955, %v1945
        %v1957 = vadd.s32 %v1956, %v1947
        %v1958 = vand.u32 %v1935, 65535
        %v1959 = vshrl.u32 %v1935, 16
        %v1960 = vand.u32 %v1930, 65535
        %v1961 = vshrl.u32 %v1930, 16
        %v1962 = vmul.u32 %v1958, %v1960
        %v1963 = vmul.u32 %v1958, %v1961
        %v1964 = vmul.u32 %v1959, %v1960
        %v1965 = vmul.u32 %v1959, %v1961
        %v1966 = vshll.u32 %v1963, 16
        %v1967 = vshrl.u32 %v1963, 16
        %v1968 = vshll.u32 %v1964, 16
        %v1969 = vshrl.u32 %v1964, 16
        %vm1970 = vc.u32 %v1962, %v1966
        %v1971 = vsel %vm1970, 1, 0
        %v1972 = vadd.s32 %v1962, %v1966
        %v1973 = vadd.s32 %v1965, %v1971
        %vm1974 = vc.u32 %v1972, %v1968
        %v1975 = vsel %vm1974, 1, 0
        %v1976 = vadd.s32 %v1972, %v1968
        %v1977 = vadd.s32 %v1973, %v1975
        %v1978 = vadd.s32 %v1977, %v1967
        %v1979 = vadd.s32 %v1978, %v1969
        %v1980 = vmul.u32 %v1935, %v1926
        %v1981 = vadd.s32 %v1957, %v1976
        %vm1982 = vc.u32 %v1957, %v1976
        %v1983 = vadd.s32 %v1979, 1
        %v1984 = vsel %vm1982, %v1983, %v1979
        %v1985 = vadd.s32 %v1980, %v1984
        %v1986 = vadd.s32 %v1985, 536870912
        %v1987 = vshrl.u32 %v1986, 30
        %v1988 = vshll.u32 %v1987, 30
        %v1989 = vsub.s32 %v1985, %v1988
        %vm1990 = vcmp.lt.s32.totalorder %v1989, 0
        %v1991 = vsub.s32 0, %v1989
        %v1992 = vsel %vm1990, %v1991, %v1989
        %v1993 = vclz %v1992
        %v1994 = vsub.s32 %v1993, 2
        %vm1995 = vcmp.gt.s32.totalorder 0, %v1994
        %v1996 = vsel %vm1995, 0, %v1994
        %v1997 = vsub.s32 32, %v1996
        %v1998 = vshll.u32 %v1989, %v1996
        %v1999 = vshrl.u32 %v1981, %v1997
        %v2000 = vor.u32 %v1998, %v1999
        %v2001 = vsub.s32 4294967266, %v1996
        %v2002 = vadd.s32 %v2001, 127
        %v2003 = vshll.u32 %v2002, 23
        %v2004 = vor.u32 4788187, %v2003
        %v2005 = vand.u32 2147483647, %v2004
        %v2007 = vcvt.s32.f32 %v2000
        %v2008 = vmul.f32 %v2007, %v2005
        %v2009 = vxor.u32 %v2008, 2147483648
        %v2010 = vsel %vm1889, %v2009, %v2008
        %v2011 = vsub.s32 4, %v1987
        %v2012 = vsel %vm1889, %v2011, %v1987
        %v2013 = vsel %vm1888, %v1562, %v2010
        %v2014 = vsel %vm1888, 0, %v2012
        %v2015 = vmul.f32 %v2013, %v2013
        %v2016 = vmul.f32 %v2015, -0.001358992
        %v2017 = vadd.f32 %v2016, 0.041655596
        %v2018 = vmul.f32 %v2015, %v2017
        %v2019 = vadd.f32 %v2018, -0.4999988
        %v2020 = vmul.f32 %v2015, %v2019
        %v2021 = vadd.f32 1.0, %v2020
        %v2022 = vmul.f32 %v2013, %v2013
        %v2023 = vmul.f32 %v2022, -0.00019511016
        %v2024 = vadd.f32 %v2023, 0.008332121
        %v2025 = vmul.f32 %v2022, %v2024
        %v2026 = vadd.f32 %v2025, -0.16666654
        %v2027 = vmul.f32 %v2022, %v2026
        %v2028 = vadd.f32 %v2027, 1.0
        %v2029 = vmul.f32 %v2028, %v2013
        %vm2030 = vweird.f32 %v1562
        %v2031 = vadd.s32 %v2014, 3
        %v2032 = vand.u32 %v2031, 3
        %vm2033 = vcmp.lt.s32.totalorder %v2032, 2
        %vm2034 = vcmp.eq.s32.totalorder %v2032, 0
        %v2035 = vxor.u32 %v2029, 2147483648
        %v2036 = vsel %vm2034, %v2021, %v2035
        %vm2037 = vcmp.eq.s32.totalorder %v2032, 2
        %v2038 = vxor.u32 %v2021, 2147483648
        %v2039 = vsel %vm2037, %v2038, %v2029
        %v2040 = vsel %vm2033, %v2036, %v2039
        %v2041 = vsel %vm2030, nan, %v2040
        %v2042 = vand.u32 2147483647, %v1563
        %vm2043 = vcmp.le.f32.partialorder %v2042, 0.7853982
        %vm2044 = vcmp.lt.s32.totalorder %v1563, 0
        %v2045 = vand.u32 %v1563, 2139095040
        %v2046 = vshrl.u32 %v2045, 23
        %v2047 = vsub.s32 %v2046, 127
        %v2048 = vand.u32 2147483647, %v1563
        %v2049 = vand.u32 %v2048, 8388607
        %v2050 = vor.u32 %v2049, 8388608
        %v2051 = vsub.s32 0, %v2050
        %v2052 = vadd.s32 %v2047, 1
        %vm2053 = vcmp.gt.s32.totalorder %v2052, 0
        %v2054 = vsel %vm2053, %v2052, 0
        %v2055 = vshrl.u32 %v2054, 5
        %v2056 = vand.u32 %v2054, 31
        %v2057 = vsub.s32 32, %v2056
        %v2058 = vshrl.u32 683565275, %v2057
        %v2059 = vshll.u32 683565275, %v2056
        %v2060 = vshrl.u32 2475754826, %v2057
        %v2061 = vor.u32 %v2059, %v2060
        %v2062 = vshll.u32 2475754826, %v2056
        %v2063 = vshrl.u32 2131351028, %v2057
        %v2064 = vor.u32 %v2062, %v2063
        %v2065 = vshll.u32 2131351028, %v2056
        %v2066 = vshrl.u32 2102212464, %v2057
        %v2067 = vor.u32 %v2065, %v2066
        %v2068 = vshll.u32 2102212464, %v2056
        %v2069 = vshrl.u32 920167782, %v2057
        %v2070 = vor.u32 %v2068, %v2069
        %v2071 = vshll.u32 920167782, %v2056
        %v2072 = vshrl.u32 1326507024, %v2057
        %v2073 = vor.u32 %v2071, %v2072
        %vm2074 = vcmp.lt.s32.totalorder %v2055, 1
        %vm2075 = vcmp.lt.s32.totalorder %v2055, 2
        %vm2076 = vcmp.lt.s32.totalorder %v2055, 3
        %vm2077 = vcmp.lt.s32.totalorder %v2055, 4
        %v2078 = vsel %vm2074, %v2058, %v2061
        %v2079 = vsel %vm2077, %v2067, 2102212464
        %v2080 = vsel %vm2076, %v2064, %v2079
        %v2081 = vsel %vm2075, %v2078, %v2080
        %v2082 = vsel %vm2074, %v2061, %v2064
        %v2083 = vsel %vm2077, %v2070, 920167782
        %v2084 = vsel %vm2076, %v2067, %v2083
        %v2085 = vsel %vm2075, %v2082, %v2084
        %v2086 = vsel %vm2074, %v2064, %v2067
        %v2087 = vsel %vm2077, %v2073, 1326507024
        %v2088 = vsel %vm2076, %v2070, %v2087
        %v2089 = vsel %vm2075, %v2086, %v2088
        %v2090 = vshll.u32 %v2050, 8
        %v2091 = vand.u32 %v2090, 65535
        %v2092 = vshrl.u32 %v2090, 16
        %v2093 = vand.u32 %v2089, 65535
        %v2094 = vshrl.u32 %v2089, 16
        %v2095 = vmul.u32 %v2091, %v2093
        %v2096 = vmul.u32 %v2091, %v2094
        %v2097 = vmul.u32 %v2092, %v2093
        %v2098 = vmul.u32 %v2092, %v2094
        %v2099 = vshll.u32 %v2096, 16
        %v2100 = vshrl.u32 %v2096, 16
        %v2101 = vshll.u32 %v2097, 16
        %v2102 = vshrl.u32 %v2097, 16
        %vm2103 = vc.u32 %v2095, %v2099
        %v2104 = vsel %vm2103, 1, 0
        %v2105 = vadd.s32 %v2095, %v2099
        %v2106 = vadd.s32 %v2098, %v2104
        %vm2107 = vc.u32 %v2105, %v2101
        %v2108 = vsel %vm2107, 1, 0
        %v2109 = vadd.s32 %v2105, %v2101
        %v2110 = vadd.s32 %v2106, %v2108
        %v2111 = vadd.s32 %v2110, %v2100
        %v2112 = vadd.s32 %v2111, %v2102
        %v2113 = vand.u32 %v2090, 65535
        %v2114 = vshrl.u32 %v2090, 16
        %v2115 = vand.u32 %v2085, 65535
        %v2116 = vshrl.u32 %v2085, 16
        %v2117 = vmul.u32 %v2113, %v2115
        %v2118 = vmul.u32 %v2113, %v2116
        %v2119 = vmul.u32 %v2114, %v2115
        %v2120 = vmul.u32 %v2114, %v2116
        %v2121 = vshll.u32 %v2118, 16
        %v2122 = vshrl.u32 %v2118, 16
        %v2123 = vshll.u32 %v2119, 16
        %v2124 = vshrl.u32 %v2119, 16
        %vm2125 = vc.u32 %v2117, %v2121
        %v2126 = vsel %vm2125, 1, 0
        %v2127 = vadd.s32 %v2117, %v2121
        %v2128 = vadd.s32 %v2120, %v2126
        %vm2129 = vc.u32 %v2127, %v2123
        %v2130 = vsel %vm2129, 1, 0
        %v2131 = vadd.s32 %v2127, %v2123
        %v2132 = vadd.s32 %v2128, %v2130
        %v2133 = vadd.s32 %v2132, %v2122
        %v2134 = vadd.s32 %v2133, %v2124
        %v2135 = vmul.u32 %v2090, %v2081
        %v2136 = vadd.s32 %v2112, %v2131
        %vm2137 = vc.u32 %v2112, %v2131
        %v2138 = vadd.s32 %v2134, 1
        %v2139 = vsel %vm2137, %v2138, %v2134
        %v2140 = vadd.s32 %v2135, %v2139
        %v2141 = vadd.s32 %v2140, 536870912
        %v2142 = vshrl.u32 %v2141, 30
        %v2143 = vshll.u32 %v2142, 30
        %v2144 = vsub.s32 %v2140, %v2143
        %vm2145 = vcmp.lt.s32.totalorder %v2144, 0
        %v2146 = vsub.s32 0, %v2144
        %v2147 = vsel %vm2145, %v2146, %v2144
        %v2148 = vclz %v2147
        %v2149 = vsub.s32 %v2148, 2
        %vm2150 = vcmp.gt.s32.totalorder 0, %v2149
        %v2151 = vsel %vm2150, 0, %v2149
        %v2152 = vsub.s32 32, %v2151
        %v2153 = vshll.u32 %v2144, %v2151
        %v2154 = vshrl.u32 %v2136, %v2152
        %v2155 = vor.u32 %v2153, %v2154
        %v2156 = vsub.s32 4294967266, %v2151
        %v2157 = vadd.s32 %v2156, 127
        %v2158 = vshll.u32 %v2157, 23
        %v2159 = vor.u32 4788187, %v2158
        %v2160 = vand.u32 2147483647, %v2159
        %v2162 = vcvt.s32.f32 %v2155
        %v2163 = vmul.f32 %v2162, %v2160
        %v2164 = vxor.u32 %v2163, 2147483648
        %v2165 = vsel %vm2044, %v2164, %v2163
        %v2166 = vsub.s32 4, %v2142
        %v2167 = vsel %vm2044, %v2166, %v2142
        %v2168 = vsel %vm2043, %v1563, %v2165
        %v2169 = vsel %vm2043, 0, %v2167
        %v2170 = vmul.f32 %v2168, %v2168
        %v2171 = vmul.f32 %v2170, -0.001358992
        %v2172 = vadd.f32 %v2171, 0.041655596
        %v2173 = vmul.f32 %v2170, %v2172
        %v2174 = vadd.f32 %v2173, -0.4999988
        %v2175 = vmul.f32 %v2170, %v2174
        %v2176 = vadd.f32 1.0, %v2175
        %v2177 = vmul.f32 %v2168, %v2168
        %v2178 = vmul.f32 %v2177, -0.00019511016
        %v2179 = vadd.f32 %v2178, 0.008332121
        %v2180 = vmul.f32 %v2177, %v2179
        %v2181 = vadd.f32 %v2180, -0.16666654
        %v2182 = vmul.f32 %v2177, %v2181
        %v2183 = vadd.f32 %v2182, 1.0
        %v2184 = vmul.f32 %v2183, %v2168
        %vm2185 = vweird.f32 %v1563
        %v2186 = vadd.s32 %v2169, 3
        %v2187 = vand.u32 %v2186, 3
        %vm2188 = vcmp.lt.s32.totalorder %v2187, 2
        %vm2189 = vcmp.eq.s32.totalorder %v2187, 0
        %v2190 = vxor.u32 %v2184, 2147483648
        %v2191 = vsel %vm2189, %v2176, %v2190
        %vm2192 = vcmp.eq.s32.totalorder %v2187, 2
        %v2193 = vxor.u32 %v2176, 2147483648
        %v2194 = vsel %vm2192, %v2193, %v2184
        %v2195 = vsel %vm2188, %v2191, %v2194
        %v2196 = vsel %vm2185, nan, %v2195
        %v2197 = vand.u32 2147483647, %v1564
        %vm2198 = vcmp.le.f32.partialorder %v2197, 0.7853982
        %vm2199 = vcmp.lt.s32.totalorder %v1564, 0
        %v2200 = vand.u32 %v1564, 2139095040
        %v2201 = vshrl.u32 %v2200, 23
        %v2202 = vsub.s32 %v2201, 127
        %v2203 = vand.u32 2147483647, %v1564
        %v2204 = vand.u32 %v2203, 8388607
        %v2205 = vor.u32 %v2204, 8388608
        %v2206 = vsub.s32 0, %v2205
        %v2207 = vadd.s32 %v2202, 1
        %vm2208 = vcmp.gt.s32.totalorder %v2207, 0
        %v2209 = vsel %vm2208, %v2207, 0
        %v2210 = vshrl.u32 %v2209, 5
        %v2211 = vand.u32 %v2209, 31
        %v2212 = vsub.s32 32, %v2211
        %v2213 = vshrl.u32 683565275, %v2212
        %v2214 = vshll.u32 683565275, %v2211
        %v2215 = vshrl.u32 2475754826, %v2212
        %v2216 = vor.u32 %v2214, %v2215
        %v2217 = vshll.u32 2475754826, %v2211
        %v2218 = vshrl.u32 2131351028, %v2212
        %v2219 = vor.u32 %v2217, %v2218
        %v2220 = vshll.u32 2131351028, %v2211
        %v2221 = vshrl.u32 2102212464, %v2212
        %v2222 = vor.u32 %v2220, %v2221
        %v2223 = vshll.u32 2102212464, %v2211
        %v2224 = vshrl.u32 920167782, %v2212
        %v2225 = vor.u32 %v2223, %v2224
        %v2226 = vshll.u32 920167782, %v2211
        %v2227 = vshrl.u32 1326507024, %v2212
        %v2228 = vor.u32 %v2226, %v2227
        %vm2229 = vcmp.lt.s32.totalorder %v2210, 1
        %vm2230 = vcmp.lt.s32.totalorder %v2210, 2
        %vm2231 = vcmp.lt.s32.totalorder %v2210, 3
        %vm2232 = vcmp.lt.s32.totalorder %v2210, 4
        %v2233 = vsel %vm2229, %v2213, %v2216
        %v2234 = vsel %vm2232, %v2222, 2102212464
        %v2235 = vsel %vm2231, %v2219, %v2234
        %v2236 = vsel %vm2230, %v2233, %v2235
        %v2237 = vsel %vm2229, %v2216, %v2219
        %v2238 = vsel %vm2232, %v2225, 920167782
        %v2239 = vsel %vm2231, %v2222, %v2238
        %v2240 = vsel %vm2230, %v2237, %v2239
        %v2241 = vsel %vm2229, %v2219, %v2222
        %v2242 = vsel %vm2232, %v2228, 1326507024
        %v2243 = vsel %vm2231, %v2225, %v2242
        %v2244 = vsel %vm2230, %v2241, %v2243
        %v2245 = vshll.u32 %v2205, 8
        %v2246 = vand.u32 %v2245, 65535
        %v2247 = vshrl.u32 %v2245, 16
        %v2248 = vand.u32 %v2244, 65535
        %v2249 = vshrl.u32 %v2244, 16
        %v2250 = vmul.u32 %v2246, %v2248
        %v2251 = vmul.u32 %v2246, %v2249
        %v2252 = vmul.u32 %v2247, %v2248
        %v2253 = vmul.u32 %v2247, %v2249
        %v2254 = vshll.u32 %v2251, 16
        %v2255 = vshrl.u32 %v2251, 16
        %v2256 = vshll.u32 %v2252, 16
        %v2257 = vshrl.u32 %v2252, 16
        %vm2258 = vc.u32 %v2250, %v2254
        %v2259 = vsel %vm2258, 1, 0
        %v2260 = vadd.s32 %v2250, %v2254
        %v2261 = vadd.s32 %v2253, %v2259
        %vm2262 = vc.u32 %v2260, %v2256
        %v2263 = vsel %vm2262, 1, 0
        %v2264 = vadd.s32 %v2260, %v2256
        %v2265 = vadd.s32 %v2261, %v2263
        %v2266 = vadd.s32 %v2265, %v2255
        %v2267 = vadd.s32 %v2266, %v2257
        %v2268 = vand.u32 %v2245, 65535
        %v2269 = vshrl.u32 %v2245, 16
        %v2270 = vand.u32 %v2240, 65535
        %v2271 = vshrl.u32 %v2240, 16
        %v2272 = vmul.u32 %v2268, %v2270
        %v2273 = vmul.u32 %v2268, %v2271
        %v2274 = vmul.u32 %v2269, %v2270
        %v2275 = vmul.u32 %v2269, %v2271
        %v2276 = vshll.u32 %v2273, 16
        %v2277 = vshrl.u32 %v2273, 16
        %v2278 = vshll.u32 %v2274, 16
        %v2279 = vshrl.u32 %v2274, 16
        %vm2280 = vc.u32 %v2272, %v2276
        %v2281 = vsel %vm2280, 1, 0
        %v2282 = vadd.s32 %v2272, %v2276
        %v2283 = vadd.s32 %v2275, %v2281
        %vm2284 = vc.u32 %v2282, %v2278
        %v2285 = vsel %vm2284, 1, 0
        %v2286 = vadd.s32 %v2282, %v2278
        %v2287 = vadd.s32 %v2283, %v2285
        %v2288 = vadd.s32 %v2287, %v2277
        %v2289 = vadd.s32 %v2288, %v2279
        %v2290 = vmul.u32 %v2245, %v2236
        %v2291 = vadd.s32 %v2267, %v2286
        %vm2292 = vc.u32 %v2267, %v2286
        %v2293 = vadd.s32 %v2289, 1
        %v2294 = vsel %vm2292, %v2293, %v2289
        %v2295 = vadd.s32 %v2290, %v2294
        %v2296 = vadd.s32 %v2295, 536870912
        %v2297 = vshrl.u32 %v2296, 30
        %v2298 = vshll.u32 %v2297, 30
        %v2299 = vsub.s32 %v2295, %v2298
        %vm2300 = vcmp.lt.s32.totalorder %v2299, 0
        %v2301 = vsub.s32 0, %v2299
        %v2302 = vsel %vm2300, %v2301, %v2299
        %v2303 = vclz %v2302
        %v2304 = vsub.s32 %v2303, 2
        %vm2305 = vcmp.gt.s32.totalorder 0, %v2304
        %v2306 = vsel %vm2305, 0, %v2304
        %v2307 = vsub.s32 32, %v2306
        %v2308 = vshll.u32 %v2299, %v2306
        %v2309 = vshrl.u32 %v2291, %v2307
        %v2310 = vor.u32 %v2308, %v2309
        %v2311 = vsub.s32 4294967266, %v2306
        %v2312 = vadd.s32 %v2311, 127
        %v2313 = vshll.u32 %v2312, 23
        %v2314 = vor.u32 4788187, %v2313
        %v2315 = vand.u32 2147483647, %v2314
        %v2317 = vcvt.s32.f32 %v2310
        %v2318 = vmul.f32 %v2317, %v2315
        %v2319 = vxor.u32 %v2318, 2147483648
        %v2320 = vsel %vm2199, %v2319, %v2318
        %v2321 = vsub.s32 4, %v2297
        %v2322 = vsel %vm2199, %v2321, %v2297
        %v2323 = vsel %vm2198, %v1564, %v2320
        %v2324 = vsel %vm2198, 0, %v2322
        %v2325 = vmul.f32 %v2323, %v2323
        %v2326 = vmul.f32 %v2325, -0.001358992
        %v2327 = vadd.f32 %v2326, 0.041655596
        %v2328 = vmul.f32 %v2325, %v2327
        %v2329 = vadd.f32 %v2328, -0.4999988
        %v2330 = vmul.f32 %v2325, %v2329
        %v2331 = vadd.f32 1.0, %v2330
        %v2332 = vmul.f32 %v2323, %v2323
        %v2333 = vmul.f32 %v2332, -0.00019511016
        %v2334 = vadd.f32 %v2333, 0.008332121
        %v2335 = vmul.f32 %v2332, %v2334
        %v2336 = vadd.f32 %v2335, -0.16666654
        %v2337 = vmul.f32 %v2332, %v2336
        %v2338 = vadd.f32 %v2337, 1.0
        %v2339 = vmul.f32 %v2338, %v2323
        %vm2340 = vweird.f32 %v1564
        %v2341 = vadd.s32 %v2324, 3
        %v2342 = vand.u32 %v2341, 3
        %vm2343 = vcmp.lt.s32.totalorder %v2342, 2
        %vm2344 = vcmp.eq.s32.totalorder %v2342, 0
        %v2345 = vxor.u32 %v2339, 2147483648
        %v2346 = vsel %vm2344, %v2331, %v2345
        %vm2347 = vcmp.eq.s32.totalorder %v2342, 2
        %v2348 = vxor.u32 %v2331, 2147483648
        %v2349 = vsel %vm2347, %v2348, %v2339
        %v2350 = vsel %vm2343, %v2346, %v2349
        %v2351 = vsel %vm2340, nan, %v2350
        %v2352 = vand.u32 2147483647, %v1565
        %vm2353 = vcmp.le.f32.partialorder %v2352, 0.7853982
        %vm2354 = vcmp.lt.s32.totalorder %v1565, 0
        %v2355 = vand.u32 %v1565, 2139095040
        %v2356 = vshrl.u32 %v2355, 23
        %v2357 = vsub.s32 %v2356, 127
        %v2358 = vand.u32 2147483647, %v1565
        %v2359 = vand.u32 %v2358, 8388607
        %v2360 = vor.u32 %v2359, 8388608
        %v2361 = vsub.s32 0, %v2360
        %v2362 = vadd.s32 %v2357, 1
        %vm2363 = vcmp.gt.s32.totalorder %v2362, 0
        %v2364 = vsel %vm2363, %v2362, 0
        %v2365 = vshrl.u32 %v2364, 5
        %v2366 = vand.u32 %v2364, 31
        %v2367 = vsub.s32 32, %v2366
        %v2368 = vshrl.u32 683565275, %v2367
        %v2369 = vshll.u32 683565275, %v2366
        %v2370 = vshrl.u32 2475754826, %v2367
        %v2371 = vor.u32 %v2369, %v2370
        %v2372 = vshll.u32 2475754826, %v2366
        %v2373 = vshrl.u32 2131351028, %v2367
        %v2374 = vor.u32 %v2372, %v2373
        %v2375 = vshll.u32 2131351028, %v2366
        %v2376 = vshrl.u32 2102212464, %v2367
        %v2377 = vor.u32 %v2375, %v2376
        %v2378 = vshll.u32 2102212464, %v2366
        %v2379 = vshrl.u32 920167782, %v2367
        %v2380 = vor.u32 %v2378, %v2379
        %v2381 = vshll.u32 920167782, %v2366
        %v2382 = vshrl.u32 1326507024, %v2367
        %v2383 = vor.u32 %v2381, %v2382
        %vm2384 = vcmp.lt.s32.totalorder %v2365, 1
        %vm2385 = vcmp.lt.s32.totalorder %v2365, 2
        %vm2386 = vcmp.lt.s32.totalorder %v2365, 3
        %vm2387 = vcmp.lt.s32.totalorder %v2365, 4
        %v2388 = vsel %vm2384, %v2368, %v2371
        %v2389 = vsel %vm2387, %v2377, 2102212464
        %v2390 = vsel %vm2386, %v2374, %v2389
        %v2391 = vsel %vm2385, %v2388, %v2390
        %v2392 = vsel %vm2384, %v2371, %v2374
        %v2393 = vsel %vm2387, %v2380, 920167782
        %v2394 = vsel %vm2386, %v2377, %v2393
        %v2395 = vsel %vm2385, %v2392, %v2394
        %v2396 = vsel %vm2384, %v2374, %v2377
        %v2397 = vsel %vm2387, %v2383, 1326507024
        %v2398 = vsel %vm2386, %v2380, %v2397
        %v2399 = vsel %vm2385, %v2396, %v2398
        %v2400 = vshll.u32 %v2360, 8
        %v2401 = vand.u32 %v2400, 65535
        %v2402 = vshrl.u32 %v2400, 16
        %v2403 = vand.u32 %v2399, 65535
        %v2404 = vshrl.u32 %v2399, 16
        %v2405 = vmul.u32 %v2401, %v2403
        %v2406 = vmul.u32 %v2401, %v2404
        %v2407 = vmul.u32 %v2402, %v2403
        %v2408 = vmul.u32 %v2402, %v2404
        %v2409 = vshll.u32 %v2406, 16
        %v2410 = vshrl.u32 %v2406, 16
        %v2411 = vshll.u32 %v2407, 16
        %v2412 = vshrl.u32 %v2407, 16
        %vm2413 = vc.u32 %v2405, %v2409
        %v2414 = vsel %vm2413, 1, 0
        %v2415 = vadd.s32 %v2405, %v2409
        %v2416 = vadd.s32 %v2408, %v2414
        %vm2417 = vc.u32 %v2415, %v2411
        %v2418 = vsel %vm2417, 1, 0
        %v2419 = vadd.s32 %v2415, %v2411
        %v2420 = vadd.s32 %v2416, %v2418
        %v2421 = vadd.s32 %v2420, %v2410
        %v2422 = vadd.s32 %v2421, %v2412
        %v2423 = vand.u32 %v2400, 65535
        %v2424 = vshrl.u32 %v2400, 16
        %v2425 = vand.u32 %v2395, 65535
        %v2426 = vshrl.u32 %v2395, 16
        %v2427 = vmul.u32 %v2423, %v2425
        %v2428 = vmul.u32 %v2423, %v2426
        %v2429 = vmul.u32 %v2424, %v2425
        %v2430 = vmul.u32 %v2424, %v2426
        %v2431 = vshll.u32 %v2428, 16
        %v2432 = vshrl.u32 %v2428, 16
        %v2433 = vshll.u32 %v2429, 16
        %v2434 = vshrl.u32 %v2429, 16
        %vm2435 = vc.u32 %v2427, %v2431
        %v2436 = vsel %vm2435, 1, 0
        %v2437 = vadd.s32 %v2427, %v2431
        %v2438 = vadd.s32 %v2430, %v2436
        %vm2439 = vc.u32 %v2437, %v2433
        %v2440 = vsel %vm2439, 1, 0
        %v2441 = vadd.s32 %v2437, %v2433
        %v2442 = vadd.s32 %v2438, %v2440
        %v2443 = vadd.s32 %v2442, %v2432
        %v2444 = vadd.s32 %v2443, %v2434
        %v2445 = vmul.u32 %v2400, %v2391
        %v2446 = vadd.s32 %v2422, %v2441
        %vm2447 = vc.u32 %v2422, %v2441
        %v2448 = vadd.s32 %v2444, 1
        %v2449 = vsel %vm2447, %v2448, %v2444
        %v2450 = vadd.s32 %v2445, %v2449
        %v2451 = vadd.s32 %v2450, 536870912
        %v2452 = vshrl.u32 %v2451, 30
        %v2453 = vshll.u32 %v2452, 30
        %v2454 = vsub.s32 %v2450, %v2453
        %vm2455 = vcmp.lt.s32.totalorder %v2454, 0
        %v2456 = vsub.s32 0, %v2454
        %v2457 = vsel %vm2455, %v2456, %v2454
        %v2458 = vclz %v2457
        %v2459 = vsub.s32 %v2458, 2
        %vm2460 = vcmp.gt.s32.totalorder 0, %v2459
        %v2461 = vsel %vm2460, 0, %v2459
        %v2462 = vsub.s32 32, %v2461
        %v2463 = vshll.u32 %v2454, %v2461
        %v2464 = vshrl.u32 %v2446, %v2462
        %v2465 = vor.u32 %v2463, %v2464
        %v2466 = vsub.s32 4294967266, %v2461
        %v2467 = vadd.s32 %v2466, 127
        %v2468 = vshll.u32 %v2467, 23
        %v2469 = vor.u32 4788187, %v2468
        %v2470 = vand.u32 2147483647, %v2469
        %v2472 = vcvt.s32.f32 %v2465
        %v2473 = vmul.f32 %v2472, %v2470
        %v2474 = vxor.u32 %v2473, 2147483648
        %v2475 = vsel %vm2354, %v2474, %v2473
        %v2476 = vsub.s32 4, %v2452
        %v2477 = vsel %vm2354, %v2476, %v2452
        %v2478 = vsel %vm2353, %v1565, %v2475
        %v2479 = vsel %vm2353, 0, %v2477
        %v2480 = vmul.f32 %v2478, %v2478
        %v2481 = vmul.f32 %v2480, -0.001358992
        %v2482 = vadd.f32 %v2481, 0.041655596
        %v2483 = vmul.f32 %v2480, %v2482
        %v2484 = vadd.f32 %v2483, -0.4999988
        %v2485 = vmul.f32 %v2480, %v2484
        %v2486 = vadd.f32 1.0, %v2485
        %v2487 = vmul.f32 %v2478, %v2478
        %v2488 = vmul.f32 %v2487, -0.00019511016
        %v2489 = vadd.f32 %v2488, 0.008332121
        %v2490 = vmul.f32 %v2487, %v2489
        %v2491 = vadd.f32 %v2490, -0.16666654
        %v2492 = vmul.f32 %v2487, %v2491
        %v2493 = vadd.f32 %v2492, 1.0
        %v2494 = vmul.f32 %v2493, %v2478
        %vm2495 = vweird.f32 %v1565
        %v2496 = vadd.s32 %v2479, 3
        %v2497 = vand.u32 %v2496, 3
        %vm2498 = vcmp.lt.s32.totalorder %v2497, 2
        %vm2499 = vcmp.eq.s32.totalorder %v2497, 0
        %v2500 = vxor.u32 %v2494, 2147483648
        %v2501 = vsel %vm2499, %v2486, %v2500
        %vm2502 = vcmp.eq.s32.totalorder %v2497, 2
        %v2503 = vxor.u32 %v2486, 2147483648
        %v2504 = vsel %vm2502, %v2503, %v2494
        %v2505 = vsel %vm2498, %v2501, %v2504
        %v2506 = vsel %vm2495, nan, %v2505
        %v2507 = vand.u32 2147483647, %v1566
        %vm2508 = vcmp.le.f32.partialorder %v2507, 0.7853982
        %vm2509 = vcmp.lt.s32.totalorder %v1566, 0
        %v2510 = vand.u32 %v1566, 2139095040
        %v2511 = vshrl.u32 %v2510, 23
        %v2512 = vsub.s32 %v2511, 127
        %v2513 = vand.u32 2147483647, %v1566
        %v2514 = vand.u32 %v2513, 8388607
        %v2515 = vor.u32 %v2514, 8388608
        %v2516 = vsub.s32 0, %v2515
        %v2517 = vadd.s32 %v2512, 1
        %vm2518 = vcmp.gt.s32.totalorder %v2517, 0
        %v2519 = vsel %vm2518, %v2517, 0
        %v2520 = vshrl.u32 %v2519, 5
        %v2521 = vand.u32 %v2519, 31
        %v2522 = vsub.s32 32, %v2521
        %v2523 = vshrl.u32 683565275, %v2522
        %v2524 = vshll.u32 683565275, %v2521
        %v2525 = vshrl.u32 2475754826, %v2522
        %v2526 = vor.u32 %v2524, %v2525
        %v2527 = vshll.u32 2475754826, %v2521
        %v2528 = vshrl.u32 2131351028, %v2522
        %v2529 = vor.u32 %v2527, %v2528
        %v2530 = vshll.u32 2131351028, %v2521
        %v2531 = vshrl.u32 2102212464, %v2522
        %v2532 = vor.u32 %v2530, %v2531
        %v2533 = vshll.u32 2102212464, %v2521
        %v2534 = vshrl.u32 920167782, %v2522
        %v2535 = vor.u32 %v2533, %v2534
        %v2536 = vshll.u32 920167782, %v2521
        %v2537 = vshrl.u32 1326507024, %v2522
        %v2538 = vor.u32 %v2536, %v2537
        %vm2539 = vcmp.lt.s32.totalorder %v2520, 1
        %vm2540 = vcmp.lt.s32.totalorder %v2520, 2
        %vm2541 = vcmp.lt.s32.totalorder %v2520, 3
        %vm2542 = vcmp.lt.s32.totalorder %v2520, 4
        %v2543 = vsel %vm2539, %v2523, %v2526
        %v2544 = vsel %vm2542, %v2532, 2102212464
        %v2545 = vsel %vm2541, %v2529, %v2544
        %v2546 = vsel %vm2540, %v2543, %v2545
        %v2547 = vsel %vm2539, %v2526, %v2529
        %v2548 = vsel %vm2542, %v2535, 920167782
        %v2549 = vsel %vm2541, %v2532, %v2548
        %v2550 = vsel %vm2540, %v2547, %v2549
        %v2551 = vsel %vm2539, %v2529, %v2532
        %v2552 = vsel %vm2542, %v2538, 1326507024
        %v2553 = vsel %vm2541, %v2535, %v2552
        %v2554 = vsel %vm2540, %v2551, %v2553
        %v2555 = vshll.u32 %v2515, 8
        %v2556 = vand.u32 %v2555, 65535
        %v2557 = vshrl.u32 %v2555, 16
        %v2558 = vand.u32 %v2554, 65535
        %v2559 = vshrl.u32 %v2554, 16
        %v2560 = vmul.u32 %v2556, %v2558
        %v2561 = vmul.u32 %v2556, %v2559
        %v2562 = vmul.u32 %v2557, %v2558
        %v2563 = vmul.u32 %v2557, %v2559
        %v2564 = vshll.u32 %v2561, 16
        %v2565 = vshrl.u32 %v2561, 16
        %v2566 = vshll.u32 %v2562, 16
        %v2567 = vshrl.u32 %v2562, 16
        %vm2568 = vc.u32 %v2560, %v2564
        %v2569 = vsel %vm2568, 1, 0
        %v2570 = vadd.s32 %v2560, %v2564
        %v2571 = vadd.s32 %v2563, %v2569
        %vm2572 = vc.u32 %v2570, %v2566
        %v2573 = vsel %vm2572, 1, 0
        %v2574 = vadd.s32 %v2570, %v2566
        %v2575 = vadd.s32 %v2571, %v2573
        %v2576 = vadd.s32 %v2575, %v2565
        %v2577 = vadd.s32 %v2576, %v2567
        %v2578 = vand.u32 %v2555, 65535
        %v2579 = vshrl.u32 %v2555, 16
        %v2580 = vand.u32 %v2550, 65535
        %v2581 = vshrl.u32 %v2550, 16
        %v2582 = vmul.u32 %v2578, %v2580
        %v2583 = vmul.u32 %v2578, %v2581
        %v2584 = vmul.u32 %v2579, %v2580
        %v2585 = vmul.u32 %v2579, %v2581
        %v2586 = vshll.u32 %v2583, 16
        %v2587 = vshrl.u32 %v2583, 16
        %v2588 = vshll.u32 %v2584, 16
        %v2589 = vshrl.u32 %v2584, 16
        %vm2590 = vc.u32 %v2582, %v2586
        %v2591 = vsel %vm2590, 1, 0
        %v2592 = vadd.s32 %v2582, %v2586
        %v2593 = vadd.s32 %v2585, %v2591
        %vm2594 = vc.u32 %v2592, %v2588
        %v2595 = vsel %vm2594, 1, 0
        %v2596 = vadd.s32 %v2592, %v2588
        %v2597 = vadd.s32 %v2593, %v2595
        %v2598 = vadd.s32 %v2597, %v2587
        %v2599 = vadd.s32 %v2598, %v2589
        %v2600 = vmul.u32 %v2555, %v2546
        %v2601 = vadd.s32 %v2577, %v2596
        %vm2602 = vc.u32 %v2577, %v2596
        %v2603 = vadd.s32 %v2599, 1
        %v2604 = vsel %vm2602, %v2603, %v2599
        %v2605 = vadd.s32 %v2600, %v2604
        %v2606 = vadd.s32 %v2605, 536870912
        %v2607 = vshrl.u32 %v2606, 30
        %v2608 = vshll.u32 %v2607, 30
        %v2609 = vsub.s32 %v2605, %v2608
        %vm2610 = vcmp.lt.s32.totalorder %v2609, 0
        %v2611 = vsub.s32 0, %v2609
        %v2612 = vsel %vm2610, %v2611, %v2609
        %v2613 = vclz %v2612
        %v2614 = vsub.s32 %v2613, 2
        %vm2615 = vcmp.gt.s32.totalorder 0, %v2614
        %v2616 = vsel %vm2615, 0, %v2614
        %v2617 = vsub.s32 32, %v2616
        %v2618 = vshll.u32 %v2609, %v2616
        %v2619 = vshrl.u32 %v2601, %v2617
        %v2620 = vor.u32 %v2618, %v2619
        %v2621 = vsub.s32 4294967266, %v2616
        %v2622 = vadd.s32 %v2621, 127
        %v2623 = vshll.u32 %v2622, 23
        %v2624 = vor.u32 4788187, %v2623
        %v2625 = vand.u32 2147483647, %v2624
        %v2627 = vcvt.s32.f32 %v2620
        %v2628 = vmul.f32 %v2627, %v2625
        %v2629 = vxor.u32 %v2628, 2147483648
        %v2630 = vsel %vm2509, %v2629, %v2628
        %v2631 = vsub.s32 4, %v2607
        %v2632 = vsel %vm2509, %v2631, %v2607
        %v2633 = vsel %vm2508, %v1566, %v2630
        %v2634 = vsel %vm2508, 0, %v2632
        %v2635 = vmul.f32 %v2633, %v2633
        %v2636 = vmul.f32 %v2635, -0.001358992
        %v2637 = vadd.f32 %v2636, 0.041655596
        %v2638 = vmul.f32 %v2635, %v2637
        %v2639 = vadd.f32 %v2638, -0.4999988
        %v2640 = vmul.f32 %v2635, %v2639
        %v2641 = vadd.f32 1.0, %v2640
        %v2642 = vmul.f32 %v2633, %v2633
        %v2643 = vmul.f32 %v2642, -0.00019511016
        %v2644 = vadd.f32 %v2643, 0.008332121
        %v2645 = vmul.f32 %v2642, %v2644
        %v2646 = vadd.f32 %v2645, -0.16666654
        %v2647 = vmul.f32 %v2642, %v2646
        %v2648 = vadd.f32 %v2647, 1.0
        %v2649 = vmul.f32 %v2648, %v2633
        %vm2650 = vweird.f32 %v1566
        %v2651 = vadd.s32 %v2634, 3
        %v2652 = vand.u32 %v2651, 3
        %vm2653 = vcmp.lt.s32.totalorder %v2652, 2
        %vm2654 = vcmp.eq.s32.totalorder %v2652, 0
        %v2655 = vxor.u32 %v2649, 2147483648
        %v2656 = vsel %vm2654, %v2641, %v2655
        %vm2657 = vcmp.eq.s32.totalorder %v2652, 2
        %v2658 = vxor.u32 %v2641, 2147483648
        %v2659 = vsel %vm2657, %v2658, %v2649
        %v2660 = vsel %vm2653, %v2656, %v2659
        %v2661 = vsel %vm2650, nan, %v2660
        %v2662 = vand.u32 2147483647, %v1567
        %vm2663 = vcmp.le.f32.partialorder %v2662, 0.7853982
        %vm2664 = vcmp.lt.s32.totalorder %v1567, 0
        %v2665 = vand.u32 %v1567, 2139095040
        %v2666 = vshrl.u32 %v2665, 23
        %v2667 = vsub.s32 %v2666, 127
        %v2668 = vand.u32 2147483647, %v1567
        %v2669 = vand.u32 %v2668, 8388607
        %v2670 = vor.u32 %v2669, 8388608
        %v2671 = vsub.s32 0, %v2670
        %v2672 = vadd.s32 %v2667, 1
        %vm2673 = vcmp.gt.s32.totalorder %v2672, 0
        %v2674 = vsel %vm2673, %v2672, 0
        %v2675 = vshrl.u32 %v2674, 5
        %v2676 = vand.u32 %v2674, 31
        %v2677 = vsub.s32 32, %v2676
        %v2678 = vshrl.u32 683565275, %v2677
        %v2679 = vshll.u32 683565275, %v2676
        %v2680 = vshrl.u32 2475754826, %v2677
        %v2681 = vor.u32 %v2679, %v2680
        %v2682 = vshll.u32 2475754826, %v2676
        %v2683 = vshrl.u32 2131351028, %v2677
        %v2684 = vor.u32 %v2682, %v2683
        %v2685 = vshll.u32 2131351028, %v2676
        %v2686 = vshrl.u32 2102212464, %v2677
        %v2687 = vor.u32 %v2685, %v2686
        %v2688 = vshll.u32 2102212464, %v2676
        %v2689 = vshrl.u32 920167782, %v2677
        %v2690 = vor.u32 %v2688, %v2689
        %v2691 = vshll.u32 920167782, %v2676
        %v2692 = vshrl.u32 1326507024, %v2677
        %v2693 = vor.u32 %v2691, %v2692
        %vm2694 = vcmp.lt.s32.totalorder %v2675, 1
        %vm2695 = vcmp.lt.s32.totalorder %v2675, 2
        %vm2696 = vcmp.lt.s32.totalorder %v2675, 3
        %vm2697 = vcmp.lt.s32.totalorder %v2675, 4
        %v2698 = vsel %vm2694, %v2678, %v2681
        %v2699 = vsel %vm2697, %v2687, 2102212464
        %v2700 = vsel %vm2696, %v2684, %v2699
        %v2701 = vsel %vm2695, %v2698, %v2700
        %v2702 = vsel %vm2694, %v2681, %v2684
        %v2703 = vsel %vm2697, %v2690, 920167782
        %v2704 = vsel %vm2696, %v2687, %v2703
        %v2705 = vsel %vm2695, %v2702, %v2704
        %v2706 = vsel %vm2694, %v2684, %v2687
        %v2707 = vsel %vm2697, %v2693, 1326507024
        %v2708 = vsel %vm2696, %v2690, %v2707
        %v2709 = vsel %vm2695, %v2706, %v2708
        %v2710 = vshll.u32 %v2670, 8
        %v2711 = vand.u32 %v2710, 65535
        %v2712 = vshrl.u32 %v2710, 16
        %v2713 = vand.u32 %v2709, 65535
        %v2714 = vshrl.u32 %v2709, 16
        %v2715 = vmul.u32 %v2711, %v2713
        %v2716 = vmul.u32 %v2711, %v2714
        %v2717 = vmul.u32 %v2712, %v2713
        %v2718 = vmul.u32 %v2712, %v2714
        %v2719 = vshll.u32 %v2716, 16
        %v2720 = vshrl.u32 %v2716, 16
        %v2721 = vshll.u32 %v2717, 16
        %v2722 = vshrl.u32 %v2717, 16
        %vm2723 = vc.u32 %v2715, %v2719
        %v2724 = vsel %vm2723, 1, 0
        %v2725 = vadd.s32 %v2715, %v2719
        %v2726 = vadd.s32 %v2718, %v2724
        %vm2727 = vc.u32 %v2725, %v2721
        %v2728 = vsel %vm2727, 1, 0
        %v2729 = vadd.s32 %v2725, %v2721
        %v2730 = vadd.s32 %v2726, %v2728
        %v2731 = vadd.s32 %v2730, %v2720
        %v2732 = vadd.s32 %v2731, %v2722
        %v2733 = vand.u32 %v2710, 65535
        %v2734 = vshrl.u32 %v2710, 16
        %v2735 = vand.u32 %v2705, 65535
        %v2736 = vshrl.u32 %v2705, 16
        %v2737 = vmul.u32 %v2733, %v2735
        %v2738 = vmul.u32 %v2733, %v2736
        %v2739 = vmul.u32 %v2734, %v2735
        %v2740 = vmul.u32 %v2734, %v2736
        %v2741 = vshll.u32 %v2738, 16
        %v2742 = vshrl.u32 %v2738, 16
        %v2743 = vshll.u32 %v2739, 16
        %v2744 = vshrl.u32 %v2739, 16
        %vm2745 = vc.u32 %v2737, %v2741
        %v2746 = vsel %vm2745, 1, 0
        %v2747 = vadd.s32 %v2737, %v2741
        %v2748 = vadd.s32 %v2740, %v2746
        %vm2749 = vc.u32 %v2747, %v2743
        %v2750 = vsel %vm2749, 1, 0
        %v2751 = vadd.s32 %v2747, %v2743
        %v2752 = vadd.s32 %v2748, %v2750
        %v2753 = vadd.s32 %v2752, %v2742
        %v2754 = vadd.s32 %v2753, %v2744
        %v2755 = vmul.u32 %v2710, %v2701
        %v2756 = vadd.s32 %v2732, %v2751
        %vm2757 = vc.u32 %v2732, %v2751
        %v2758 = vadd.s32 %v2754, 1
        %v2759 = vsel %vm2757, %v2758, %v2754
        %v2760 = vadd.s32 %v2755, %v2759
        %v2761 = vadd.s32 %v2760, 536870912
        %v2762 = vshrl.u32 %v2761, 30
        %v2763 = vshll.u32 %v2762, 30
        %v2764 = vsub.s32 %v2760, %v2763
        %vm2765 = vcmp.lt.s32.totalorder %v2764, 0
        %v2766 = vsub.s32 0, %v2764
        %v2767 = vsel %vm2765, %v2766, %v2764
        %v2768 = vclz %v2767
        %v2769 = vsub.s32 %v2768, 2
        %vm2770 = vcmp.gt.s32.totalorder 0, %v2769
        %v2771 = vsel %vm2770, 0, %v2769
        %v2772 = vsub.s32 32, %v2771
        %v2773 = vshll.u32 %v2764, %v2771
        %v2774 = vshrl.u32 %v2756, %v2772
        %v2775 = vor.u32 %v2773, %v2774
        %v2776 = vsub.s32 4294967266, %v2771
        %v2777 = vadd.s32 %v2776, 127
        %v2778 = vshll.u32 %v2777, 23
        %v2779 = vor.u32 4788187, %v2778
        %v2780 = vand.u32 2147483647, %v2779
        %v2782 = vcvt.s32.f32 %v2775
        %v2783 = vmul.f32 %v2782, %v2780
        %v2784 = vxor.u32 %v2783, 2147483648
        %v2785 = vsel %vm2664, %v2784, %v2783
        %v2786 = vsub.s32 4, %v2762
        %v2787 = vsel %vm2664, %v2786, %v2762
        %v2788 = vsel %vm2663, %v1567, %v2785
        %v2789 = vsel %vm2663, 0, %v2787
        %v2790 = vmul.f32 %v2788, %v2788
        %v2791 = vmul.f32 %v2790, -0.001358992
        %v2792 = vadd.f32 %v2791, 0.041655596
        %v2793 = vmul.f32 %v2790, %v2792
        %v2794 = vadd.f32 %v2793, -0.4999988
        %v2795 = vmul.f32 %v2790, %v2794
        %v2796 = vadd.f32 1.0, %v2795
        %v2797 = vmul.f32 %v2788, %v2788
        %v2798 = vmul.f32 %v2797, -0.00019511016
        %v2799 = vadd.f32 %v2798, 0.008332121
        %v2800 = vmul.f32 %v2797, %v2799
        %v2801 = vadd.f32 %v2800, -0.16666654
        %v2802 = vmul.f32 %v2797, %v2801
        %v2803 = vadd.f32 %v2802, 1.0
        %v2804 = vmul.f32 %v2803, %v2788
        %vm2805 = vweird.f32 %v1567
        %v2806 = vadd.s32 %v2789, 3
        %v2807 = vand.u32 %v2806, 3
        %vm2808 = vcmp.lt.s32.totalorder %v2807, 2
        %vm2809 = vcmp.eq.s32.totalorder %v2807, 0
        %v2810 = vxor.u32 %v2804, 2147483648
        %v2811 = vsel %vm2809, %v2796, %v2810
        %vm2812 = vcmp.eq.s32.totalorder %v2807, 2
        %v2813 = vxor.u32 %v2796, 2147483648
        %v2814 = vsel %vm2812, %v2813, %v2804
        %v2815 = vsel %vm2808, %v2811, %v2814
        %v2816 = vsel %vm2805, nan, %v2815
        %v2817 = vand.u32 2147483647, %v1568
        %vm2818 = vcmp.le.f32.partialorder %v2817, 0.7853982
        %vm2819 = vcmp.lt.s32.totalorder %v1568, 0
        %v2820 = vand.u32 %v1568, 2139095040
        %v2821 = vshrl.u32 %v2820, 23
        %v2822 = vsub.s32 %v2821, 127
        %v2823 = vand.u32 2147483647, %v1568
        %v2824 = vand.u32 %v2823, 8388607
        %v2825 = vor.u32 %v2824, 8388608
        %v2826 = vsub.s32 0, %v2825
        %v2827 = vadd.s32 %v2822, 1
        %vm2828 = vcmp.gt.s32.totalorder %v2827, 0
        %v2829 = vsel %vm2828, %v2827, 0
        %v2830 = vshrl.u32 %v2829, 5
        %v2831 = vand.u32 %v2829, 31
        %v2832 = vsub.s32 32, %v2831
        %v2833 = vshrl.u32 683565275, %v2832
        %v2834 = vshll.u32 683565275, %v2831
        %v2835 = vshrl.u32 2475754826, %v2832
        %v2836 = vor.u32 %v2834, %v2835
        %v2837 = vshll.u32 2475754826, %v2831
        %v2838 = vshrl.u32 2131351028, %v2832
        %v2839 = vor.u32 %v2837, %v2838
        %v2840 = vshll.u32 2131351028, %v2831
        %v2841 = vshrl.u32 2102212464, %v2832
        %v2842 = vor.u32 %v2840, %v2841
        %v2843 = vshll.u32 2102212464, %v2831
        %v2844 = vshrl.u32 920167782, %v2832
        %v2845 = vor.u32 %v2843, %v2844
        %v2846 = vshll.u32 920167782, %v2831
        %v2847 = vshrl.u32 1326507024, %v2832
        %v2848 = vor.u32 %v2846, %v2847
        %vm2849 = vcmp.lt.s32.totalorder %v2830, 1
        %vm2850 = vcmp.lt.s32.totalorder %v2830, 2
        %vm2851 = vcmp.lt.s32.totalorder %v2830, 3
        %vm2852 = vcmp.lt.s32.totalorder %v2830, 4
        %v2853 = vsel %vm2849, %v2833, %v2836
        %v2854 = vsel %vm2852, %v2842, 2102212464
        %v2855 = vsel %vm2851, %v2839, %v2854
        %v2856 = vsel %vm2850, %v2853, %v2855
        %v2857 = vsel %vm2849, %v2836, %v2839
        %v2858 = vsel %vm2852, %v2845, 920167782
        %v2859 = vsel %vm2851, %v2842, %v2858
        %v2860 = vsel %vm2850, %v2857, %v2859
        %v2861 = vsel %vm2849, %v2839, %v2842
        %v2862 = vsel %vm2852, %v2848, 1326507024
        %v2863 = vsel %vm2851, %v2845, %v2862
        %v2864 = vsel %vm2850, %v2861, %v2863
        %v2865 = vshll.u32 %v2825, 8
        %v2866 = vand.u32 %v2865, 65535
        %v2867 = vshrl.u32 %v2865, 16
        %v2868 = vand.u32 %v2864, 65535
        %v2869 = vshrl.u32 %v2864, 16
        %v2870 = vmul.u32 %v2866, %v2868
        %v2871 = vmul.u32 %v2866, %v2869
        %v2872 = vmul.u32 %v2867, %v2868
        %v2873 = vmul.u32 %v2867, %v2869
        %v2874 = vshll.u32 %v2871, 16
        %v2875 = vshrl.u32 %v2871, 16
        %v2876 = vshll.u32 %v2872, 16
        %v2877 = vshrl.u32 %v2872, 16
        %vm2878 = vc.u32 %v2870, %v2874
        %v2879 = vsel %vm2878, 1, 0
        %v2880 = vadd.s32 %v2870, %v2874
        %v2881 = vadd.s32 %v2873, %v2879
        %vm2882 = vc.u32 %v2880, %v2876
        %v2883 = vsel %vm2882, 1, 0
        %v2884 = vadd.s32 %v2880, %v2876
        %v2885 = vadd.s32 %v2881, %v2883
        %v2886 = vadd.s32 %v2885, %v2875
        %v2887 = vadd.s32 %v2886, %v2877
        %v2888 = vand.u32 %v2865, 65535
        %v2889 = vshrl.u32 %v2865, 16
        %v2890 = vand.u32 %v2860, 65535
        %v2891 = vshrl.u32 %v2860, 16
        %v2892 = vmul.u32 %v2888, %v2890
        %v2893 = vmul.u32 %v2888, %v2891
        %v2894 = vmul.u32 %v2889, %v2890
        %v2895 = vmul.u32 %v2889, %v2891
        %v2896 = vshll.u32 %v2893, 16
        %v2897 = vshrl.u32 %v2893, 16
        %v2898 = vshll.u32 %v2894, 16
        %v2899 = vshrl.u32 %v2894, 16
        %vm2900 = vc.u32 %v2892, %v2896
        %v2901 = vsel %vm2900, 1, 0
        %v2902 = vadd.s32 %v2892, %v2896
        %v2903 = vadd.s32 %v2895, %v2901
        %vm2904 = vc.u32 %v2902, %v2898
        %v2905 = vsel %vm2904, 1, 0
        %v2906 = vadd.s32 %v2902, %v2898
        %v2907 = vadd.s32 %v2903, %v2905
        %v2908 = vadd.s32 %v2907, %v2897
        %v2909 = vadd.s32 %v2908, %v2899
        %v2910 = vmul.u32 %v2865, %v2856
        %v2911 = vadd.s32 %v2887, %v2906
        %vm2912 = vc.u32 %v2887, %v2906
        %v2913 = vadd.s32 %v2909, 1
        %v2914 = vsel %vm2912, %v2913, %v2909
        %v2915 = vadd.s32 %v2910, %v2914
        %v2916 = vadd.s32 %v2915, 536870912
        %v2917 = vshrl.u32 %v2916, 30
        %v2918 = vshll.u32 %v2917, 30
        %v2919 = vsub.s32 %v2915, %v2918
        %vm2920 = vcmp.lt.s32.totalorder %v2919, 0
        %v2921 = vsub.s32 0, %v2919
        %v2922 = vsel %vm2920, %v2921, %v2919
        %v2923 = vclz %v2922
        %v2924 = vsub.s32 %v2923, 2
        %vm2925 = vcmp.gt.s32.totalorder 0, %v2924
        %v2926 = vsel %vm2925, 0, %v2924
        %v2927 = vsub.s32 32, %v2926
        %v2928 = vshll.u32 %v2919, %v2926
        %v2929 = vshrl.u32 %v2911, %v2927
        %v2930 = vor.u32 %v2928, %v2929
        %v2931 = vsub.s32 4294967266, %v2926
        %v2932 = vadd.s32 %v2931, 127
        %v2933 = vshll.u32 %v2932, 23
        %v2934 = vor.u32 4788187, %v2933
        %v2935 = vand.u32 2147483647, %v2934
        %v2937 = vcvt.s32.f32 %v2930
        %v2938 = vmul.f32 %v2937, %v2935
        %v2939 = vxor.u32 %v2938, 2147483648
        %v2940 = vsel %vm2819, %v2939, %v2938
        %v2941 = vsub.s32 4, %v2917
        %v2942 = vsel %vm2819, %v2941, %v2917
        %v2943 = vsel %vm2818, %v1568, %v2940
        %v2944 = vsel %vm2818, 0, %v2942
        %v2945 = vmul.f32 %v2943, %v2943
        %v2946 = vmul.f32 %v2945, -0.001358992
        %v2947 = vadd.f32 %v2946, 0.041655596
        %v2948 = vmul.f32 %v2945, %v2947
        %v2949 = vadd.f32 %v2948, -0.4999988
        %v2950 = vmul.f32 %v2945, %v2949
        %v2951 = vadd.f32 1.0, %v2950
        %v2952 = vmul.f32 %v2943, %v2943
        %v2953 = vmul.f32 %v2952, -0.00019511016
        %v2954 = vadd.f32 %v2953, 0.008332121
        %v2955 = vmul.f32 %v2952, %v2954
        %v2956 = vadd.f32 %v2955, -0.16666654
        %v2957 = vmul.f32 %v2952, %v2956
        %v2958 = vadd.f32 %v2957, 1.0
        %v2959 = vmul.f32 %v2958, %v2943
        %vm2960 = vweird.f32 %v1568
        %v2961 = vadd.s32 %v2944, 3
        %v2962 = vand.u32 %v2961, 3
        %vm2963 = vcmp.lt.s32.totalorder %v2962, 2
        %vm2964 = vcmp.eq.s32.totalorder %v2962, 0
        %v2965 = vxor.u32 %v2959, 2147483648
        %v2966 = vsel %vm2964, %v2951, %v2965
        %vm2967 = vcmp.eq.s32.totalorder %v2962, 2
        %v2968 = vxor.u32 %v2951, 2147483648
        %v2969 = vsel %vm2967, %v2968, %v2959
        %v2970 = vsel %vm2963, %v2966, %v2969
        %v2971 = vsel %vm2960, nan, %v2970
        %v2972 = vand.u32 2147483647, %v1569
        %vm2973 = vcmp.le.f32.partialorder %v2972, 0.7853982
        %vm2974 = vcmp.lt.s32.totalorder %v1569, 0
        %v2975 = vand.u32 %v1569, 2139095040
        %v2976 = vshrl.u32 %v2975, 23
        %v2977 = vsub.s32 %v2976, 127
        %v2978 = vand.u32 2147483647, %v1569
        %v2979 = vand.u32 %v2978, 8388607
        %v2980 = vor.u32 %v2979, 8388608
        %v2981 = vsub.s32 0, %v2980
        %v2982 = vadd.s32 %v2977, 1
        %vm2983 = vcmp.gt.s32.totalorder %v2982, 0
        %v2984 = vsel %vm2983, %v2982, 0
        %v2985 = vshrl.u32 %v2984, 5
        %v2986 = vand.u32 %v2984, 31
        %v2987 = vsub.s32 32, %v2986
        %v2988 = vshrl.u32 683565275, %v2987
        %v2989 = vshll.u32 683565275, %v2986
        %v2990 = vshrl.u32 2475754826, %v2987
        %v2991 = vor.u32 %v2989, %v2990
        %v2992 = vshll.u32 2475754826, %v2986
        %v2993 = vshrl.u32 2131351028, %v2987
        %v2994 = vor.u32 %v2992, %v2993
        %v2995 = vshll.u32 2131351028, %v2986
        %v2996 = vshrl.u32 2102212464, %v2987
        %v2997 = vor.u32 %v2995, %v2996
        %v2998 = vshll.u32 2102212464, %v2986
        %v2999 = vshrl.u32 920167782, %v2987
        %v3000 = vor.u32 %v2998, %v2999
        %v3001 = vshll.u32 920167782, %v2986
        %v3002 = vshrl.u32 1326507024, %v2987
        %v3003 = vor.u32 %v3001, %v3002
        %vm3004 = vcmp.lt.s32.totalorder %v2985, 1
        %vm3005 = vcmp.lt.s32.totalorder %v2985, 2
        %vm3006 = vcmp.lt.s32.totalorder %v2985, 3
        %vm3007 = vcmp.lt.s32.totalorder %v2985, 4
        %v3008 = vsel %vm3004, %v2988, %v2991
        %v3009 = vsel %vm3007, %v2997, 2102212464
        %v3010 = vsel %vm3006, %v2994, %v3009
        %v3011 = vsel %vm3005, %v3008, %v3010
        %v3012 = vsel %vm3004, %v2991, %v2994
        %v3013 = vsel %vm3007, %v3000, 920167782
        %v3014 = vsel %vm3006, %v2997, %v3013
        %v3015 = vsel %vm3005, %v3012, %v3014
        %v3016 = vsel %vm3004, %v2994, %v2997
        %v3017 = vsel %vm3007, %v3003, 1326507024
        %v3018 = vsel %vm3006, %v3000, %v3017
        %v3019 = vsel %vm3005, %v3016, %v3018
        %v3020 = vshll.u32 %v2980, 8
        %v3021 = vand.u32 %v3020, 65535
        %v3022 = vshrl.u32 %v3020, 16
        %v3023 = vand.u32 %v3019, 65535
        %v3024 = vshrl.u32 %v3019, 16
        %v3025 = vmul.u32 %v3021, %v3023
        %v3026 = vmul.u32 %v3021, %v3024
        %v3027 = vmul.u32 %v3022, %v3023
        %v3028 = vmul.u32 %v3022, %v3024
        %v3029 = vshll.u32 %v3026, 16
        %v3030 = vshrl.u32 %v3026, 16
        %v3031 = vshll.u32 %v3027, 16
        %v3032 = vshrl.u32 %v3027, 16
        %vm3033 = vc.u32 %v3025, %v3029
        %v3034 = vsel %vm3033, 1, 0
        %v3035 = vadd.s32 %v3025, %v3029
        %v3036 = vadd.s32 %v3028, %v3034
        %vm3037 = vc.u32 %v3035, %v3031
        %v3038 = vsel %vm3037, 1, 0
        %v3039 = vadd.s32 %v3035, %v3031
        %v3040 = vadd.s32 %v3036, %v3038
        %v3041 = vadd.s32 %v3040, %v3030
        %v3042 = vadd.s32 %v3041, %v3032
        %v3043 = vand.u32 %v3020, 65535
        %v3044 = vshrl.u32 %v3020, 16
        %v3045 = vand.u32 %v3015, 65535
        %v3046 = vshrl.u32 %v3015, 16
        %v3047 = vmul.u32 %v3043, %v3045
        %v3048 = vmul.u32 %v3043, %v3046
        %v3049 = vmul.u32 %v3044, %v3045
        %v3050 = vmul.u32 %v3044, %v3046
        %v3051 = vshll.u32 %v3048, 16
        %v3052 = vshrl.u32 %v3048, 16
        %v3053 = vshll.u32 %v3049, 16
        %v3054 = vshrl.u32 %v3049, 16
        %vm3055 = vc.u32 %v3047, %v3051
        %v3056 = vsel %vm3055, 1, 0
        %v3057 = vadd.s32 %v3047, %v3051
        %v3058 = vadd.s32 %v3050, %v3056
        %vm3059 = vc.u32 %v3057, %v3053
        %v3060 = vsel %vm3059, 1, 0
        %v3061 = vadd.s32 %v3057, %v3053
        %v3062 = vadd.s32 %v3058, %v3060
        %v3063 = vadd.s32 %v3062, %v3052
        %v3064 = vadd.s32 %v3063, %v3054
        %v3065 = vmul.u32 %v3020, %v3011
        %v3066 = vadd.s32 %v3042, %v3061
        %vm3067 = vc.u32 %v3042, %v3061
        %v3068 = vadd.s32 %v3064, 1
        %v3069 = vsel %vm3067, %v3068, %v3064
        %v3070 = vadd.s32 %v3065, %v3069
        %v3071 = vadd.s32 %v3070, 536870912
        %v3072 = vshrl.u32 %v3071, 30
        %v3073 = vshll.u32 %v3072, 30
        %v3074 = vsub.s32 %v3070, %v3073
        %vm3075 = vcmp.lt.s32.totalorder %v3074, 0
        %v3076 = vsub.s32 0, %v3074
        %v3077 = vsel %vm3075, %v3076, %v3074
        %v3078 = vclz %v3077
        %v3079 = vsub.s32 %v3078, 2
        %vm3080 = vcmp.gt.s32.totalorder 0, %v3079
        %v3081 = vsel %vm3080, 0, %v3079
        %v3082 = vsub.s32 32, %v3081
        %v3083 = vshll.u32 %v3074, %v3081
        %v3084 = vshrl.u32 %v3066, %v3082
        %v3085 = vor.u32 %v3083, %v3084
        %v3086 = vsub.s32 4294967266, %v3081
        %v3087 = vadd.s32 %v3086, 127
        %v3088 = vshll.u32 %v3087, 23
        %v3089 = vor.u32 4788187, %v3088
        %v3090 = vand.u32 2147483647, %v3089
        %v3092 = vcvt.s32.f32 %v3085
        %v3093 = vmul.f32 %v3092, %v3090
        %v3094 = vxor.u32 %v3093, 2147483648
        %v3095 = vsel %vm2974, %v3094, %v3093
        %v3096 = vsub.s32 4, %v3072
        %v3097 = vsel %vm2974, %v3096, %v3072
        %v3098 = vsel %vm2973, %v1569, %v3095
        %v3099 = vsel %vm2973, 0, %v3097
        %v3100 = vmul.f32 %v3098, %v3098
        %v3101 = vmul.f32 %v3100, -0.001358992
        %v3102 = vadd.f32 %v3101, 0.041655596
        %v3103 = vmul.f32 %v3100, %v3102
        %v3104 = vadd.f32 %v3103, -0.4999988
        %v3105 = vmul.f32 %v3100, %v3104
        %v3106 = vadd.f32 1.0, %v3105
        %v3107 = vmul.f32 %v3098, %v3098
        %v3108 = vmul.f32 %v3107, -0.00019511016
        %v3109 = vadd.f32 %v3108, 0.008332121
        %v3110 = vmul.f32 %v3107, %v3109
        %v3111 = vadd.f32 %v3110, -0.16666654
        %v3112 = vmul.f32 %v3107, %v3111
        %v3113 = vadd.f32 %v3112, 1.0
        %v3114 = vmul.f32 %v3113, %v3098
        %vm3115 = vweird.f32 %v1569
        %v3116 = vadd.s32 %v3099, 3
        %v3117 = vand.u32 %v3116, 3
        %vm3118 = vcmp.lt.s32.totalorder %v3117, 2
        %vm3119 = vcmp.eq.s32.totalorder %v3117, 0
        %v3120 = vxor.u32 %v3114, 2147483648
        %v3121 = vsel %vm3119, %v3106, %v3120
        %vm3122 = vcmp.eq.s32.totalorder %v3117, 2
        %v3123 = vxor.u32 %v3106, 2147483648
        %v3124 = vsel %vm3122, %v3123, %v3114
        %v3125 = vsel %vm3118, %v3121, %v3124
        %v3126 = vsel %vm3115, nan, %v3125
        %v3127 = vand.u32 2147483647, %v1570
        %vm3128 = vcmp.le.f32.partialorder %v3127, 0.7853982
        %vm3129 = vcmp.lt.s32.totalorder %v1570, 0
        %v3130 = vand.u32 %v1570, 2139095040
        %v3131 = vshrl.u32 %v3130, 23
        %v3132 = vsub.s32 %v3131, 127
        %v3133 = vand.u32 2147483647, %v1570
        %v3134 = vand.u32 %v3133, 8388607
        %v3135 = vor.u32 %v3134, 8388608
        %v3136 = vsub.s32 0, %v3135
        %v3137 = vadd.s32 %v3132, 1
        %vm3138 = vcmp.gt.s32.totalorder %v3137, 0
        %v3139 = vsel %vm3138, %v3137, 0
        %v3140 = vshrl.u32 %v3139, 5
        %v3141 = vand.u32 %v3139, 31
        %v3142 = vsub.s32 32, %v3141
        %v3143 = vshrl.u32 683565275, %v3142
        %v3144 = vshll.u32 683565275, %v3141
        %v3145 = vshrl.u32 2475754826, %v3142
        %v3146 = vor.u32 %v3144, %v3145
        %v3147 = vshll.u32 2475754826, %v3141
        %v3148 = vshrl.u32 2131351028, %v3142
        %v3149 = vor.u32 %v3147, %v3148
        %v3150 = vshll.u32 2131351028, %v3141
        %v3151 = vshrl.u32 2102212464, %v3142
        %v3152 = vor.u32 %v3150, %v3151
        %v3153 = vshll.u32 2102212464, %v3141
        %v3154 = vshrl.u32 920167782, %v3142
        %v3155 = vor.u32 %v3153, %v3154
        %v3156 = vshll.u32 920167782, %v3141
        %v3157 = vshrl.u32 1326507024, %v3142
        %v3158 = vor.u32 %v3156, %v3157
        %vm3159 = vcmp.lt.s32.totalorder %v3140, 1
        %vm3160 = vcmp.lt.s32.totalorder %v3140, 2
        %vm3161 = vcmp.lt.s32.totalorder %v3140, 3
        %vm3162 = vcmp.lt.s32.totalorder %v3140, 4
        %v3163 = vsel %vm3159, %v3143, %v3146
        %v3164 = vsel %vm3162, %v3152, 2102212464
        %v3165 = vsel %vm3161, %v3149, %v3164
        %v3166 = vsel %vm3160, %v3163, %v3165
        %v3167 = vsel %vm3159, %v3146, %v3149
        %v3168 = vsel %vm3162, %v3155, 920167782
        %v3169 = vsel %vm3161, %v3152, %v3168
        %v3170 = vsel %vm3160, %v3167, %v3169
        %v3171 = vsel %vm3159, %v3149, %v3152
        %v3172 = vsel %vm3162, %v3158, 1326507024
        %v3173 = vsel %vm3161, %v3155, %v3172
        %v3174 = vsel %vm3160, %v3171, %v3173
        %v3175 = vshll.u32 %v3135, 8
        %v3176 = vand.u32 %v3175, 65535
        %v3177 = vshrl.u32 %v3175, 16
        %v3178 = vand.u32 %v3174, 65535
        %v3179 = vshrl.u32 %v3174, 16
        %v3180 = vmul.u32 %v3176, %v3178
        %v3181 = vmul.u32 %v3176, %v3179
        %v3182 = vmul.u32 %v3177, %v3178
        %v3183 = vmul.u32 %v3177, %v3179
        %v3184 = vshll.u32 %v3181, 16
        %v3185 = vshrl.u32 %v3181, 16
        %v3186 = vshll.u32 %v3182, 16
        %v3187 = vshrl.u32 %v3182, 16
        %vm3188 = vc.u32 %v3180, %v3184
        %v3189 = vsel %vm3188, 1, 0
        %v3190 = vadd.s32 %v3180, %v3184
        %v3191 = vadd.s32 %v3183, %v3189
        %vm3192 = vc.u32 %v3190, %v3186
        %v3193 = vsel %vm3192, 1, 0
        %v3194 = vadd.s32 %v3190, %v3186
        %v3195 = vadd.s32 %v3191, %v3193
        %v3196 = vadd.s32 %v3195, %v3185
        %v3197 = vadd.s32 %v3196, %v3187
        %v3198 = vand.u32 %v3175, 65535
        %v3199 = vshrl.u32 %v3175, 16
        %v3200 = vand.u32 %v3170, 65535
        %v3201 = vshrl.u32 %v3170, 16
        %v3202 = vmul.u32 %v3198, %v3200
        %v3203 = vmul.u32 %v3198, %v3201
        %v3204 = vmul.u32 %v3199, %v3200
        %v3205 = vmul.u32 %v3199, %v3201
        %v3206 = vshll.u32 %v3203, 16
        %v3207 = vshrl.u32 %v3203, 16
        %v3208 = vshll.u32 %v3204, 16
        %v3209 = vshrl.u32 %v3204, 16
        %vm3210 = vc.u32 %v3202, %v3206
        %v3211 = vsel %vm3210, 1, 0
        %v3212 = vadd.s32 %v3202, %v3206
        %v3213 = vadd.s32 %v3205, %v3211
        %vm3214 = vc.u32 %v3212, %v3208
        %v3215 = vsel %vm3214, 1, 0
        %v3216 = vadd.s32 %v3212, %v3208
        %v3217 = vadd.s32 %v3213, %v3215
        %v3218 = vadd.s32 %v3217, %v3207
        %v3219 = vadd.s32 %v3218, %v3209
        %v3220 = vmul.u32 %v3175, %v3166
        %v3221 = vadd.s32 %v3197, %v3216
        %vm3222 = vc.u32 %v3197, %v3216
        %v3223 = vadd.s32 %v3219, 1
        %v3224 = vsel %vm3222, %v3223, %v3219
        %v3225 = vadd.s32 %v3220, %v3224
        %v3226 = vadd.s32 %v3225, 536870912
        %v3227 = vshrl.u32 %v3226, 30
        %v3228 = vshll.u32 %v3227, 30
        %v3229 = vsub.s32 %v3225, %v3228
        %vm3230 = vcmp.lt.s32.totalorder %v3229, 0
        %v3231 = vsub.s32 0, %v3229
        %v3232 = vsel %vm3230, %v3231, %v3229
        %v3233 = vclz %v3232
        %v3234 = vsub.s32 %v3233, 2
        %vm3235 = vcmp.gt.s32.totalorder 0, %v3234
        %v3236 = vsel %vm3235, 0, %v3234
        %v3237 = vsub.s32 32, %v3236
        %v3238 = vshll.u32 %v3229, %v3236
        %v3239 = vshrl.u32 %v3221, %v3237
        %v3240 = vor.u32 %v3238, %v3239
        %v3241 = vsub.s32 4294967266, %v3236
        %v3242 = vadd.s32 %v3241, 127
        %v3243 = vshll.u32 %v3242, 23
        %v3244 = vor.u32 4788187, %v3243
        %v3245 = vand.u32 2147483647, %v3244
        %v3247 = vcvt.s32.f32 %v3240
        %v3248 = vmul.f32 %v3247, %v3245
        %v3249 = vxor.u32 %v3248, 2147483648
        %v3250 = vsel %vm3129, %v3249, %v3248
        %v3251 = vsub.s32 4, %v3227
        %v3252 = vsel %vm3129, %v3251, %v3227
        %v3253 = vsel %vm3128, %v1570, %v3250
        %v3254 = vsel %vm3128, 0, %v3252
        %v3255 = vmul.f32 %v3253, %v3253
        %v3256 = vmul.f32 %v3255, -0.001358992
        %v3257 = vadd.f32 %v3256, 0.041655596
        %v3258 = vmul.f32 %v3255, %v3257
        %v3259 = vadd.f32 %v3258, -0.4999988
        %v3260 = vmul.f32 %v3255, %v3259
        %v3261 = vadd.f32 1.0, %v3260
        %v3262 = vmul.f32 %v3253, %v3253
        %v3263 = vmul.f32 %v3262, -0.00019511016
        %v3264 = vadd.f32 %v3263, 0.008332121
        %v3265 = vmul.f32 %v3262, %v3264
        %v3266 = vadd.f32 %v3265, -0.16666654
        %v3267 = vmul.f32 %v3262, %v3266
        %v3268 = vadd.f32 %v3267, 1.0
        %v3269 = vmul.f32 %v3268, %v3253
        %vm3270 = vweird.f32 %v1570
        %v3271 = vadd.s32 %v3254, 3
        %v3272 = vand.u32 %v3271, 3
        %vm3273 = vcmp.lt.s32.totalorder %v3272, 2
        %vm3274 = vcmp.eq.s32.totalorder %v3272, 0
        %v3275 = vxor.u32 %v3269, 2147483648
        %v3276 = vsel %vm3274, %v3261, %v3275
        %vm3277 = vcmp.eq.s32.totalorder %v3272, 2
        %v3278 = vxor.u32 %v3261, 2147483648
        %v3279 = vsel %vm3277, %v3278, %v3269
        %v3280 = vsel %vm3273, %v3276, %v3279
        %v3281 = vsel %vm3270, nan, %v3280
        %v3282 = vand.u32 2147483647, %v1571
        %vm3283 = vcmp.le.f32.partialorder %v3282, 0.7853982
        %vm3284 = vcmp.lt.s32.totalorder %v1571, 0
        %v3285 = vand.u32 %v1571, 2139095040
        %v3286 = vshrl.u32 %v3285, 23
        %v3287 = vsub.s32 %v3286, 127
        %v3288 = vand.u32 2147483647, %v1571
        %v3289 = vand.u32 %v3288, 8388607
        %v3290 = vor.u32 %v3289, 8388608
        %v3291 = vsub.s32 0, %v3290
        %v3292 = vadd.s32 %v3287, 1
        %vm3293 = vcmp.gt.s32.totalorder %v3292, 0
        %v3294 = vsel %vm3293, %v3292, 0
        %v3295 = vshrl.u32 %v3294, 5
        %v3296 = vand.u32 %v3294, 31
        %v3297 = vsub.s32 32, %v3296
        %v3298 = vshrl.u32 683565275, %v3297
        %v3299 = vshll.u32 683565275, %v3296
        %v3300 = vshrl.u32 2475754826, %v3297
        %v3301 = vor.u32 %v3299, %v3300
        %v3302 = vshll.u32 2475754826, %v3296
        %v3303 = vshrl.u32 2131351028, %v3297
        %v3304 = vor.u32 %v3302, %v3303
        %v3305 = vshll.u32 2131351028, %v3296
        %v3306 = vshrl.u32 2102212464, %v3297
        %v3307 = vor.u32 %v3305, %v3306
        %v3308 = vshll.u32 2102212464, %v3296
        %v3309 = vshrl.u32 920167782, %v3297
        %v3310 = vor.u32 %v3308, %v3309
        %v3311 = vshll.u32 920167782, %v3296
        %v3312 = vshrl.u32 1326507024, %v3297
        %v3313 = vor.u32 %v3311, %v3312
        %vm3314 = vcmp.lt.s32.totalorder %v3295, 1
        %vm3315 = vcmp.lt.s32.totalorder %v3295, 2
        %vm3316 = vcmp.lt.s32.totalorder %v3295, 3
        %vm3317 = vcmp.lt.s32.totalorder %v3295, 4
        %v3318 = vsel %vm3314, %v3298, %v3301
        %v3319 = vsel %vm3317, %v3307, 2102212464
        %v3320 = vsel %vm3316, %v3304, %v3319
        %v3321 = vsel %vm3315, %v3318, %v3320
        %v3322 = vsel %vm3314, %v3301, %v3304
        %v3323 = vsel %vm3317, %v3310, 920167782
        %v3324 = vsel %vm3316, %v3307, %v3323
        %v3325 = vsel %vm3315, %v3322, %v3324
        %v3326 = vsel %vm3314, %v3304, %v3307
        %v3327 = vsel %vm3317, %v3313, 1326507024
        %v3328 = vsel %vm3316, %v3310, %v3327
        %v3329 = vsel %vm3315, %v3326, %v3328
        %v3330 = vshll.u32 %v3290, 8
        %v3331 = vand.u32 %v3330, 65535
        %v3332 = vshrl.u32 %v3330, 16
        %v3333 = vand.u32 %v3329, 65535
        %v3334 = vshrl.u32 %v3329, 16
        %v3335 = vmul.u32 %v3331, %v3333
        %v3336 = vmul.u32 %v3331, %v3334
        %v3337 = vmul.u32 %v3332, %v3333
        %v3338 = vmul.u32 %v3332, %v3334
        %v3339 = vshll.u32 %v3336, 16
        %v3340 = vshrl.u32 %v3336, 16
        %v3341 = vshll.u32 %v3337, 16
        %v3342 = vshrl.u32 %v3337, 16
        %vm3343 = vc.u32 %v3335, %v3339
        %v3344 = vsel %vm3343, 1, 0
        %v3345 = vadd.s32 %v3335, %v3339
        %v3346 = vadd.s32 %v3338, %v3344
        %vm3347 = vc.u32 %v3345, %v3341
        %v3348 = vsel %vm3347, 1, 0
        %v3349 = vadd.s32 %v3345, %v3341
        %v3350 = vadd.s32 %v3346, %v3348
        %v3351 = vadd.s32 %v3350, %v3340
        %v3352 = vadd.s32 %v3351, %v3342
        %v3353 = vand.u32 %v3330, 65535
        %v3354 = vshrl.u32 %v3330, 16
        %v3355 = vand.u32 %v3325, 65535
        %v3356 = vshrl.u32 %v3325, 16
        %v3357 = vmul.u32 %v3353, %v3355
        %v3358 = vmul.u32 %v3353, %v3356
        %v3359 = vmul.u32 %v3354, %v3355
        %v3360 = vmul.u32 %v3354, %v3356
        %v3361 = vshll.u32 %v3358, 16
        %v3362 = vshrl.u32 %v3358, 16
        %v3363 = vshll.u32 %v3359, 16
        %v3364 = vshrl.u32 %v3359, 16
        %vm3365 = vc.u32 %v3357, %v3361
        %v3366 = vsel %vm3365, 1, 0
        %v3367 = vadd.s32 %v3357, %v3361
        %v3368 = vadd.s32 %v3360, %v3366
        %vm3369 = vc.u32 %v3367, %v3363
        %v3370 = vsel %vm3369, 1, 0
        %v3371 = vadd.s32 %v3367, %v3363
        %v3372 = vadd.s32 %v3368, %v3370
        %v3373 = vadd.s32 %v3372, %v3362
        %v3374 = vadd.s32 %v3373, %v3364
        %v3375 = vmul.u32 %v3330, %v3321
        %v3376 = vadd.s32 %v3352, %v3371
        %vm3377 = vc.u32 %v3352, %v3371
        %v3378 = vadd.s32 %v3374, 1
        %v3379 = vsel %vm3377, %v3378, %v3374
        %v3380 = vadd.s32 %v3375, %v3379
        %v3381 = vadd.s32 %v3380, 536870912
        %v3382 = vshrl.u32 %v3381, 30
        %v3383 = vshll.u32 %v3382, 30
        %v3384 = vsub.s32 %v3380, %v3383
        %vm3385 = vcmp.lt.s32.totalorder %v3384, 0
        %v3386 = vsub.s32 0, %v3384
        %v3387 = vsel %vm3385, %v3386, %v3384
        %v3388 = vclz %v3387
        %v3389 = vsub.s32 %v3388, 2
        %vm3390 = vcmp.gt.s32.totalorder 0, %v3389
        %v3391 = vsel %vm3390, 0, %v3389
        %v3392 = vsub.s32 32, %v3391
        %v3393 = vshll.u32 %v3384, %v3391
        %v3394 = vshrl.u32 %v3376, %v3392
        %v3395 = vor.u32 %v3393, %v3394
        %v3396 = vsub.s32 4294967266, %v3391
        %v3397 = vadd.s32 %v3396, 127
        %v3398 = vshll.u32 %v3397, 23
        %v3399 = vor.u32 4788187, %v3398
        %v3400 = vand.u32 2147483647, %v3399
        %v3402 = vcvt.s32.f32 %v3395
        %v3403 = vmul.f32 %v3402, %v3400
        %v3404 = vxor.u32 %v3403, 2147483648
        %v3405 = vsel %vm3284, %v3404, %v3403
        %v3406 = vsub.s32 4, %v3382
        %v3407 = vsel %vm3284, %v3406, %v3382
        %v3408 = vsel %vm3283, %v1571, %v3405
        %v3409 = vsel %vm3283, 0, %v3407
        %v3410 = vmul.f32 %v3408, %v3408
        %v3411 = vmul.f32 %v3410, -0.001358992
        %v3412 = vadd.f32 %v3411, 0.041655596
        %v3413 = vmul.f32 %v3410, %v3412
        %v3414 = vadd.f32 %v3413, -0.4999988
        %v3415 = vmul.f32 %v3410, %v3414
        %v3416 = vadd.f32 1.0, %v3415
        %v3417 = vmul.f32 %v3408, %v3408
        %v3418 = vmul.f32 %v3417, -0.00019511016
        %v3419 = vadd.f32 %v3418, 0.008332121
        %v3420 = vmul.f32 %v3417, %v3419
        %v3421 = vadd.f32 %v3420, -0.16666654
        %v3422 = vmul.f32 %v3417, %v3421
        %v3423 = vadd.f32 %v3422, 1.0
        %v3424 = vmul.f32 %v3423, %v3408
        %vm3425 = vweird.f32 %v1571
        %v3426 = vadd.s32 %v3409, 3
        %v3427 = vand.u32 %v3426, 3
        %vm3428 = vcmp.lt.s32.totalorder %v3427, 2
        %vm3429 = vcmp.eq.s32.totalorder %v3427, 0
        %v3430 = vxor.u32 %v3424, 2147483648
        %v3431 = vsel %vm3429, %v3416, %v3430
        %vm3432 = vcmp.eq.s32.totalorder %v3427, 2
        %v3433 = vxor.u32 %v3416, 2147483648
        %v3434 = vsel %vm3432, %v3433, %v3424
        %v3435 = vsel %vm3428, %v3431, %v3434
        %v3436 = vsel %vm3425, nan, %v3435
        %v3437 = vand.u32 2147483647, %v1572
        %vm3438 = vcmp.le.f32.partialorder %v3437, 0.7853982
        %vm3439 = vcmp.lt.s32.totalorder %v1572, 0
        %v3440 = vand.u32 %v1572, 2139095040
        %v3441 = vshrl.u32 %v3440, 23
        %v3442 = vsub.s32 %v3441, 127
        %v3443 = vand.u32 2147483647, %v1572
        %v3444 = vand.u32 %v3443, 8388607
        %v3445 = vor.u32 %v3444, 8388608
        %v3446 = vsub.s32 0, %v3445
        %v3447 = vadd.s32 %v3442, 1
        %vm3448 = vcmp.gt.s32.totalorder %v3447, 0
        %v3449 = vsel %vm3448, %v3447, 0
        %v3450 = vshrl.u32 %v3449, 5
        %v3451 = vand.u32 %v3449, 31
        %v3452 = vsub.s32 32, %v3451
        %v3453 = vshrl.u32 683565275, %v3452
        %v3454 = vshll.u32 683565275, %v3451
        %v3455 = vshrl.u32 2475754826, %v3452
        %v3456 = vor.u32 %v3454, %v3455
        %v3457 = vshll.u32 2475754826, %v3451
        %v3458 = vshrl.u32 2131351028, %v3452
        %v3459 = vor.u32 %v3457, %v3458
        %v3460 = vshll.u32 2131351028, %v3451
        %v3461 = vshrl.u32 2102212464, %v3452
        %v3462 = vor.u32 %v3460, %v3461
        %v3463 = vshll.u32 2102212464, %v3451
        %v3464 = vshrl.u32 920167782, %v3452
        %v3465 = vor.u32 %v3463, %v3464
        %v3466 = vshll.u32 920167782, %v3451
        %v3467 = vshrl.u32 1326507024, %v3452
        %v3468 = vor.u32 %v3466, %v3467
        %vm3469 = vcmp.lt.s32.totalorder %v3450, 1
        %vm3470 = vcmp.lt.s32.totalorder %v3450, 2
        %vm3471 = vcmp.lt.s32.totalorder %v3450, 3
        %vm3472 = vcmp.lt.s32.totalorder %v3450, 4
        %v3473 = vsel %vm3469, %v3453, %v3456
        %v3474 = vsel %vm3472, %v3462, 2102212464
        %v3475 = vsel %vm3471, %v3459, %v3474
        %v3476 = vsel %vm3470, %v3473, %v3475
        %v3477 = vsel %vm3469, %v3456, %v3459
        %v3478 = vsel %vm3472, %v3465, 920167782
        %v3479 = vsel %vm3471, %v3462, %v3478
        %v3480 = vsel %vm3470, %v3477, %v3479
        %v3481 = vsel %vm3469, %v3459, %v3462
        %v3482 = vsel %vm3472, %v3468, 1326507024
        %v3483 = vsel %vm3471, %v3465, %v3482
        %v3484 = vsel %vm3470, %v3481, %v3483
        %v3485 = vshll.u32 %v3445, 8
        %v3486 = vand.u32 %v3485, 65535
        %v3487 = vshrl.u32 %v3485, 16
        %v3488 = vand.u32 %v3484, 65535
        %v3489 = vshrl.u32 %v3484, 16
        %v3490 = vmul.u32 %v3486, %v3488
        %v3491 = vmul.u32 %v3486, %v3489
        %v3492 = vmul.u32 %v3487, %v3488
        %v3493 = vmul.u32 %v3487, %v3489
        %v3494 = vshll.u32 %v3491, 16
        %v3495 = vshrl.u32 %v3491, 16
        %v3496 = vshll.u32 %v3492, 16
        %v3497 = vshrl.u32 %v3492, 16
        %vm3498 = vc.u32 %v3490, %v3494
        %v3499 = vsel %vm3498, 1, 0
        %v3500 = vadd.s32 %v3490, %v3494
        %v3501 = vadd.s32 %v3493, %v3499
        %vm3502 = vc.u32 %v3500, %v3496
        %v3503 = vsel %vm3502, 1, 0
        %v3504 = vadd.s32 %v3500, %v3496
        %v3505 = vadd.s32 %v3501, %v3503
        %v3506 = vadd.s32 %v3505, %v3495
        %v3507 = vadd.s32 %v3506, %v3497
        %v3508 = vand.u32 %v3485, 65535
        %v3509 = vshrl.u32 %v3485, 16
        %v3510 = vand.u32 %v3480, 65535
        %v3511 = vshrl.u32 %v3480, 16
        %v3512 = vmul.u32 %v3508, %v3510
        %v3513 = vmul.u32 %v3508, %v3511
        %v3514 = vmul.u32 %v3509, %v3510
        %v3515 = vmul.u32 %v3509, %v3511
        %v3516 = vshll.u32 %v3513, 16
        %v3517 = vshrl.u32 %v3513, 16
        %v3518 = vshll.u32 %v3514, 16
        %v3519 = vshrl.u32 %v3514, 16
        %vm3520 = vc.u32 %v3512, %v3516
        %v3521 = vsel %vm3520, 1, 0
        %v3522 = vadd.s32 %v3512, %v3516
        %v3523 = vadd.s32 %v3515, %v3521
        %vm3524 = vc.u32 %v3522, %v3518
        %v3525 = vsel %vm3524, 1, 0
        %v3526 = vadd.s32 %v3522, %v3518
        %v3527 = vadd.s32 %v3523, %v3525
        %v3528 = vadd.s32 %v3527, %v3517
        %v3529 = vadd.s32 %v3528, %v3519
        %v3530 = vmul.u32 %v3485, %v3476
        %v3531 = vadd.s32 %v3507, %v3526
        %vm3532 = vc.u32 %v3507, %v3526
        %v3533 = vadd.s32 %v3529, 1
        %v3534 = vsel %vm3532, %v3533, %v3529
        %v3535 = vadd.s32 %v3530, %v3534
        %v3536 = vadd.s32 %v3535, 536870912
        %v3537 = vshrl.u32 %v3536, 30
        %v3538 = vshll.u32 %v3537, 30
        %v3539 = vsub.s32 %v3535, %v3538
        %vm3540 = vcmp.lt.s32.totalorder %v3539, 0
        %v3541 = vsub.s32 0, %v3539
        %v3542 = vsel %vm3540, %v3541, %v3539
        %v3543 = vclz %v3542
        %v3544 = vsub.s32 %v3543, 2
        %vm3545 = vcmp.gt.s32.totalorder 0, %v3544
        %v3546 = vsel %vm3545, 0, %v3544
        %v3547 = vsub.s32 32, %v3546
        %v3548 = vshll.u32 %v3539, %v3546
        %v3549 = vshrl.u32 %v3531, %v3547
        %v3550 = vor.u32 %v3548, %v3549
        %v3551 = vsub.s32 4294967266, %v3546
        %v3552 = vadd.s32 %v3551, 127
        %v3553 = vshll.u32 %v3552, 23
        %v3554 = vor.u32 4788187, %v3553
        %v3555 = vand.u32 2147483647, %v3554
        %v3557 = vcvt.s32.f32 %v3550
        %v3558 = vmul.f32 %v3557, %v3555
        %v3559 = vxor.u32 %v3558, 2147483648
        %v3560 = vsel %vm3439, %v3559, %v3558
        %v3561 = vsub.s32 4, %v3537
        %v3562 = vsel %vm3439, %v3561, %v3537
        %v3563 = vsel %vm3438, %v1572, %v3560
        %v3564 = vsel %vm3438, 0, %v3562
        %v3565 = vmul.f32 %v3563, %v3563
        %v3566 = vmul.f32 %v3565, -0.001358992
        %v3567 = vadd.f32 %v3566, 0.041655596
        %v3568 = vmul.f32 %v3565, %v3567
        %v3569 = vadd.f32 %v3568, -0.4999988
        %v3570 = vmul.f32 %v3565, %v3569
        %v3571 = vadd.f32 1.0, %v3570
        %v3572 = vmul.f32 %v3563, %v3563
        %v3573 = vmul.f32 %v3572, -0.00019511016
        %v3574 = vadd.f32 %v3573, 0.008332121
        %v3575 = vmul.f32 %v3572, %v3574
        %v3576 = vadd.f32 %v3575, -0.16666654
        %v3577 = vmul.f32 %v3572, %v3576
        %v3578 = vadd.f32 %v3577, 1.0
        %v3579 = vmul.f32 %v3578, %v3563
        %vm3580 = vweird.f32 %v1572
        %v3581 = vadd.s32 %v3564, 3
        %v3582 = vand.u32 %v3581, 3
        %vm3583 = vcmp.lt.s32.totalorder %v3582, 2
        %vm3584 = vcmp.eq.s32.totalorder %v3582, 0
        %v3585 = vxor.u32 %v3579, 2147483648
        %v3586 = vsel %vm3584, %v3571, %v3585
        %vm3587 = vcmp.eq.s32.totalorder %v3582, 2
        %v3588 = vxor.u32 %v3571, 2147483648
        %v3589 = vsel %vm3587, %v3588, %v3579
        %v3590 = vsel %vm3583, %v3586, %v3589
        %v3591 = vsel %vm3580, nan, %v3590
        %v3592 = vand.u32 2147483647, %v1573
        %vm3593 = vcmp.le.f32.partialorder %v3592, 0.7853982
        %vm3594 = vcmp.lt.s32.totalorder %v1573, 0
        %v3595 = vand.u32 %v1573, 2139095040
        %v3596 = vshrl.u32 %v3595, 23
        %v3597 = vsub.s32 %v3596, 127
        %v3598 = vand.u32 2147483647, %v1573
        %v3599 = vand.u32 %v3598, 8388607
        %v3600 = vor.u32 %v3599, 8388608
        %v3601 = vsub.s32 0, %v3600
        %v3602 = vadd.s32 %v3597, 1
        %vm3603 = vcmp.gt.s32.totalorder %v3602, 0
        %v3604 = vsel %vm3603, %v3602, 0
        %v3605 = vshrl.u32 %v3604, 5
        %v3606 = vand.u32 %v3604, 31
        %v3607 = vsub.s32 32, %v3606
        %v3608 = vshrl.u32 683565275, %v3607
        %v3609 = vshll.u32 683565275, %v3606
        %v3610 = vshrl.u32 2475754826, %v3607
        %v3611 = vor.u32 %v3609, %v3610
        %v3612 = vshll.u32 2475754826, %v3606
        %v3613 = vshrl.u32 2131351028, %v3607
        %v3614 = vor.u32 %v3612, %v3613
        %v3615 = vshll.u32 2131351028, %v3606
        %v3616 = vshrl.u32 2102212464, %v3607
        %v3617 = vor.u32 %v3615, %v3616
        %v3618 = vshll.u32 2102212464, %v3606
        %v3619 = vshrl.u32 920167782, %v3607
        %v3620 = vor.u32 %v3618, %v3619
        %v3621 = vshll.u32 920167782, %v3606
        %v3622 = vshrl.u32 1326507024, %v3607
        %v3623 = vor.u32 %v3621, %v3622
        %vm3624 = vcmp.lt.s32.totalorder %v3605, 1
        %vm3625 = vcmp.lt.s32.totalorder %v3605, 2
        %vm3626 = vcmp.lt.s32.totalorder %v3605, 3
        %vm3627 = vcmp.lt.s32.totalorder %v3605, 4
        %v3628 = vsel %vm3624, %v3608, %v3611
        %v3629 = vsel %vm3627, %v3617, 2102212464
        %v3630 = vsel %vm3626, %v3614, %v3629
        %v3631 = vsel %vm3625, %v3628, %v3630
        %v3632 = vsel %vm3624, %v3611, %v3614
        %v3633 = vsel %vm3627, %v3620, 920167782
        %v3634 = vsel %vm3626, %v3617, %v3633
        %v3635 = vsel %vm3625, %v3632, %v3634
        %v3636 = vsel %vm3624, %v3614, %v3617
        %v3637 = vsel %vm3627, %v3623, 1326507024
        %v3638 = vsel %vm3626, %v3620, %v3637
        %v3639 = vsel %vm3625, %v3636, %v3638
        %v3640 = vshll.u32 %v3600, 8
        %v3641 = vand.u32 %v3640, 65535
        %v3642 = vshrl.u32 %v3640, 16
        %v3643 = vand.u32 %v3639, 65535
        %v3644 = vshrl.u32 %v3639, 16
        %v3645 = vmul.u32 %v3641, %v3643
        %v3646 = vmul.u32 %v3641, %v3644
        %v3647 = vmul.u32 %v3642, %v3643
        %v3648 = vmul.u32 %v3642, %v3644
        %v3649 = vshll.u32 %v3646, 16
        %v3650 = vshrl.u32 %v3646, 16
        %v3651 = vshll.u32 %v3647, 16
        %v3652 = vshrl.u32 %v3647, 16
        %vm3653 = vc.u32 %v3645, %v3649
        %v3654 = vsel %vm3653, 1, 0
        %v3655 = vadd.s32 %v3645, %v3649
        %v3656 = vadd.s32 %v3648, %v3654
        %vm3657 = vc.u32 %v3655, %v3651
        %v3658 = vsel %vm3657, 1, 0
        %v3659 = vadd.s32 %v3655, %v3651
        %v3660 = vadd.s32 %v3656, %v3658
        %v3661 = vadd.s32 %v3660, %v3650
        %v3662 = vadd.s32 %v3661, %v3652
        %v3663 = vand.u32 %v3640, 65535
        %v3664 = vshrl.u32 %v3640, 16
        %v3665 = vand.u32 %v3635, 65535
        %v3666 = vshrl.u32 %v3635, 16
        %v3667 = vmul.u32 %v3663, %v3665
        %v3668 = vmul.u32 %v3663, %v3666
        %v3669 = vmul.u32 %v3664, %v3665
        %v3670 = vmul.u32 %v3664, %v3666
        %v3671 = vshll.u32 %v3668, 16
        %v3672 = vshrl.u32 %v3668, 16
        %v3673 = vshll.u32 %v3669, 16
        %v3674 = vshrl.u32 %v3669, 16
        %vm3675 = vc.u32 %v3667, %v3671
        %v3676 = vsel %vm3675, 1, 0
        %v3677 = vadd.s32 %v3667, %v3671
        %v3678 = vadd.s32 %v3670, %v3676
        %vm3679 = vc.u32 %v3677, %v3673
        %v3680 = vsel %vm3679, 1, 0
        %v3681 = vadd.s32 %v3677, %v3673
        %v3682 = vadd.s32 %v3678, %v3680
        %v3683 = vadd.s32 %v3682, %v3672
        %v3684 = vadd.s32 %v3683, %v3674
        %v3685 = vmul.u32 %v3640, %v3631
        %v3686 = vadd.s32 %v3662, %v3681
        %vm3687 = vc.u32 %v3662, %v3681
        %v3688 = vadd.s32 %v3684, 1
        %v3689 = vsel %vm3687, %v3688, %v3684
        %v3690 = vadd.s32 %v3685, %v3689
        %v3691 = vadd.s32 %v3690, 536870912
        %v3692 = vshrl.u32 %v3691, 30
        %v3693 = vshll.u32 %v3692, 30
        %v3694 = vsub.s32 %v3690, %v3693
        %vm3695 = vcmp.lt.s32.totalorder %v3694, 0
        %v3696 = vsub.s32 0, %v3694
        %v3697 = vsel %vm3695, %v3696, %v3694
        %v3698 = vclz %v3697
        %v3699 = vsub.s32 %v3698, 2
        %vm3700 = vcmp.gt.s32.totalorder 0, %v3699
        %v3701 = vsel %vm3700, 0, %v3699
        %v3702 = vsub.s32 32, %v3701
        %v3703 = vshll.u32 %v3694, %v3701
        %v3704 = vshrl.u32 %v3686, %v3702
        %v3705 = vor.u32 %v3703, %v3704
        %v3706 = vsub.s32 4294967266, %v3701
        %v3707 = vadd.s32 %v3706, 127
        %v3708 = vshll.u32 %v3707, 23
        %v3709 = vor.u32 4788187, %v3708
        %v3710 = vand.u32 2147483647, %v3709
        %v3712 = vcvt.s32.f32 %v3705
        %v3713 = vmul.f32 %v3712, %v3710
        %v3714 = vxor.u32 %v3713, 2147483648
        %v3715 = vsel %vm3594, %v3714, %v3713
        %v3716 = vsub.s32 4, %v3692
        %v3717 = vsel %vm3594, %v3716, %v3692
        %v3718 = vsel %vm3593, %v1573, %v3715
        %v3719 = vsel %vm3593, 0, %v3717
        %v3720 = vmul.f32 %v3718, %v3718
        %v3721 = vmul.f32 %v3720, -0.001358992
        %v3722 = vadd.f32 %v3721, 0.041655596
        %v3723 = vmul.f32 %v3720, %v3722
        %v3724 = vadd.f32 %v3723, -0.4999988
        %v3725 = vmul.f32 %v3720, %v3724
        %v3726 = vadd.f32 1.0, %v3725
        %v3727 = vmul.f32 %v3718, %v3718
        %v3728 = vmul.f32 %v3727, -0.00019511016
        %v3729 = vadd.f32 %v3728, 0.008332121
        %v3730 = vmul.f32 %v3727, %v3729
        %v3731 = vadd.f32 %v3730, -0.16666654
        %v3732 = vmul.f32 %v3727, %v3731
        %v3733 = vadd.f32 %v3732, 1.0
        %v3734 = vmul.f32 %v3733, %v3718
        %vm3735 = vweird.f32 %v1573
        %v3736 = vadd.s32 %v3719, 3
        %v3737 = vand.u32 %v3736, 3
        %vm3738 = vcmp.lt.s32.totalorder %v3737, 2
        %vm3739 = vcmp.eq.s32.totalorder %v3737, 0
        %v3740 = vxor.u32 %v3734, 2147483648
        %v3741 = vsel %vm3739, %v3726, %v3740
        %vm3742 = vcmp.eq.s32.totalorder %v3737, 2
        %v3743 = vxor.u32 %v3726, 2147483648
        %v3744 = vsel %vm3742, %v3743, %v3734
        %v3745 = vsel %vm3738, %v3741, %v3744
        %v3746 = vsel %vm3735, nan, %v3745
        %v3747 = vand.u32 2147483647, %v1574
        %vm3748 = vcmp.le.f32.partialorder %v3747, 0.7853982
        %vm3749 = vcmp.lt.s32.totalorder %v1574, 0
        %v3750 = vand.u32 %v1574, 2139095040
        %v3751 = vshrl.u32 %v3750, 23
        %v3752 = vsub.s32 %v3751, 127
        %v3753 = vand.u32 2147483647, %v1574
        %v3754 = vand.u32 %v3753, 8388607
        %v3755 = vor.u32 %v3754, 8388608
        %v3756 = vsub.s32 0, %v3755
        %v3757 = vadd.s32 %v3752, 1
        %vm3758 = vcmp.gt.s32.totalorder %v3757, 0
        %v3759 = vsel %vm3758, %v3757, 0
        %v3760 = vshrl.u32 %v3759, 5
        %v3761 = vand.u32 %v3759, 31
        %v3762 = vsub.s32 32, %v3761
        %v3763 = vshrl.u32 683565275, %v3762
        %v3764 = vshll.u32 683565275, %v3761
        %v3765 = vshrl.u32 2475754826, %v3762
        %v3766 = vor.u32 %v3764, %v3765
        %v3767 = vshll.u32 2475754826, %v3761
        %v3768 = vshrl.u32 2131351028, %v3762
        %v3769 = vor.u32 %v3767, %v3768
        %v3770 = vshll.u32 2131351028, %v3761
        %v3771 = vshrl.u32 2102212464, %v3762
        %v3772 = vor.u32 %v3770, %v3771
        %v3773 = vshll.u32 2102212464, %v3761
        %v3774 = vshrl.u32 920167782, %v3762
        %v3775 = vor.u32 %v3773, %v3774
        %v3776 = vshll.u32 920167782, %v3761
        %v3777 = vshrl.u32 1326507024, %v3762
        %v3778 = vor.u32 %v3776, %v3777
        %vm3779 = vcmp.lt.s32.totalorder %v3760, 1
        %vm3780 = vcmp.lt.s32.totalorder %v3760, 2
        %vm3781 = vcmp.lt.s32.totalorder %v3760, 3
        %vm3782 = vcmp.lt.s32.totalorder %v3760, 4
        %v3783 = vsel %vm3779, %v3763, %v3766
        %v3784 = vsel %vm3782, %v3772, 2102212464
        %v3785 = vsel %vm3781, %v3769, %v3784
        %v3786 = vsel %vm3780, %v3783, %v3785
        %v3787 = vsel %vm3779, %v3766, %v3769
        %v3788 = vsel %vm3782, %v3775, 920167782
        %v3789 = vsel %vm3781, %v3772, %v3788
        %v3790 = vsel %vm3780, %v3787, %v3789
        %v3791 = vsel %vm3779, %v3769, %v3772
        %v3792 = vsel %vm3782, %v3778, 1326507024
        %v3793 = vsel %vm3781, %v3775, %v3792
        %v3794 = vsel %vm3780, %v3791, %v3793
        %v3795 = vshll.u32 %v3755, 8
        %v3796 = vand.u32 %v3795, 65535
        %v3797 = vshrl.u32 %v3795, 16
        %v3798 = vand.u32 %v3794, 65535
        %v3799 = vshrl.u32 %v3794, 16
        %v3800 = vmul.u32 %v3796, %v3798
        %v3801 = vmul.u32 %v3796, %v3799
        %v3802 = vmul.u32 %v3797, %v3798
        %v3803 = vmul.u32 %v3797, %v3799
        %v3804 = vshll.u32 %v3801, 16
        %v3805 = vshrl.u32 %v3801, 16
        %v3806 = vshll.u32 %v3802, 16
        %v3807 = vshrl.u32 %v3802, 16
        %vm3808 = vc.u32 %v3800, %v3804
        %v3809 = vsel %vm3808, 1, 0
        %v3810 = vadd.s32 %v3800, %v3804
        %v3811 = vadd.s32 %v3803, %v3809
        %vm3812 = vc.u32 %v3810, %v3806
        %v3813 = vsel %vm3812, 1, 0
        %v3814 = vadd.s32 %v3810, %v3806
        %v3815 = vadd.s32 %v3811, %v3813
        %v3816 = vadd.s32 %v3815, %v3805
        %v3817 = vadd.s32 %v3816, %v3807
        %v3818 = vand.u32 %v3795, 65535
        %v3819 = vshrl.u32 %v3795, 16
        %v3820 = vand.u32 %v3790, 65535
        %v3821 = vshrl.u32 %v3790, 16
        %v3822 = vmul.u32 %v3818, %v3820
        %v3823 = vmul.u32 %v3818, %v3821
        %v3824 = vmul.u32 %v3819, %v3820
        %v3825 = vmul.u32 %v3819, %v3821
        %v3826 = vshll.u32 %v3823, 16
        %v3827 = vshrl.u32 %v3823, 16
        %v3828 = vshll.u32 %v3824, 16
        %v3829 = vshrl.u32 %v3824, 16
        %vm3830 = vc.u32 %v3822, %v3826
        %v3831 = vsel %vm3830, 1, 0
        %v3832 = vadd.s32 %v3822, %v3826
        %v3833 = vadd.s32 %v3825, %v3831
        %vm3834 = vc.u32 %v3832, %v3828
        %v3835 = vsel %vm3834, 1, 0
        %v3836 = vadd.s32 %v3832, %v3828
        %v3837 = vadd.s32 %v3833, %v3835
        %v3838 = vadd.s32 %v3837, %v3827
        %v3839 = vadd.s32 %v3838, %v3829
        %v3840 = vmul.u32 %v3795, %v3786
        %v3841 = vadd.s32 %v3817, %v3836
        %vm3842 = vc.u32 %v3817, %v3836
        %v3843 = vadd.s32 %v3839, 1
        %v3844 = vsel %vm3842, %v3843, %v3839
        %v3845 = vadd.s32 %v3840, %v3844
        %v3846 = vadd.s32 %v3845, 536870912
        %v3847 = vshrl.u32 %v3846, 30
        %v3848 = vshll.u32 %v3847, 30
        %v3849 = vsub.s32 %v3845, %v3848
        %vm3850 = vcmp.lt.s32.totalorder %v3849, 0
        %v3851 = vsub.s32 0, %v3849
        %v3852 = vsel %vm3850, %v3851, %v3849
        %v3853 = vclz %v3852
        %v3854 = vsub.s32 %v3853, 2
        %vm3855 = vcmp.gt.s32.totalorder 0, %v3854
        %v3856 = vsel %vm3855, 0, %v3854
        %v3857 = vsub.s32 32, %v3856
        %v3858 = vshll.u32 %v3849, %v3856
        %v3859 = vshrl.u32 %v3841, %v3857
        %v3860 = vor.u32 %v3858, %v3859
        %v3861 = vsub.s32 4294967266, %v3856
        %v3862 = vadd.s32 %v3861, 127
        %v3863 = vshll.u32 %v3862, 23
        %v3864 = vor.u32 4788187, %v3863
        %v3865 = vand.u32 2147483647, %v3864
        %v3867 = vcvt.s32.f32 %v3860
        %v3868 = vmul.f32 %v3867, %v3865
        %v3869 = vxor.u32 %v3868, 2147483648
        %v3870 = vsel %vm3749, %v3869, %v3868
        %v3871 = vsub.s32 4, %v3847
        %v3872 = vsel %vm3749, %v3871, %v3847
        %v3873 = vsel %vm3748, %v1574, %v3870
        %v3874 = vsel %vm3748, 0, %v3872
        %v3875 = vmul.f32 %v3873, %v3873
        %v3876 = vmul.f32 %v3875, -0.001358992
        %v3877 = vadd.f32 %v3876, 0.041655596
        %v3878 = vmul.f32 %v3875, %v3877
        %v3879 = vadd.f32 %v3878, -0.4999988
        %v3880 = vmul.f32 %v3875, %v3879
        %v3881 = vadd.f32 1.0, %v3880
        %v3882 = vmul.f32 %v3873, %v3873
        %v3883 = vmul.f32 %v3882, -0.00019511016
        %v3884 = vadd.f32 %v3883, 0.008332121
        %v3885 = vmul.f32 %v3882, %v3884
        %v3886 = vadd.f32 %v3885, -0.16666654
        %v3887 = vmul.f32 %v3882, %v3886
        %v3888 = vadd.f32 %v3887, 1.0
        %v3889 = vmul.f32 %v3888, %v3873
        %vm3890 = vweird.f32 %v1574
        %v3891 = vadd.s32 %v3874, 3
        %v3892 = vand.u32 %v3891, 3
        %vm3893 = vcmp.lt.s32.totalorder %v3892, 2
        %vm3894 = vcmp.eq.s32.totalorder %v3892, 0
        %v3895 = vxor.u32 %v3889, 2147483648
        %v3896 = vsel %vm3894, %v3881, %v3895
        %vm3897 = vcmp.eq.s32.totalorder %v3892, 2
        %v3898 = vxor.u32 %v3881, 2147483648
        %v3899 = vsel %vm3897, %v3898, %v3889
        %v3900 = vsel %vm3893, %v3896, %v3899
        %v3901 = vsel %vm3890, nan, %v3900
        %v3902 = vand.u32 2147483647, %v1575
        %vm3903 = vcmp.le.f32.partialorder %v3902, 0.7853982
        %vm3904 = vcmp.lt.s32.totalorder %v1575, 0
        %v3905 = vand.u32 %v1575, 2139095040
        %v3906 = vshrl.u32 %v3905, 23
        %v3907 = vsub.s32 %v3906, 127
        %v3908 = vand.u32 2147483647, %v1575
        %v3909 = vand.u32 %v3908, 8388607
        %v3910 = vor.u32 %v3909, 8388608
        %v3911 = vsub.s32 0, %v3910
        %v3912 = vadd.s32 %v3907, 1
        %vm3913 = vcmp.gt.s32.totalorder %v3912, 0
        %v3914 = vsel %vm3913, %v3912, 0
        %v3915 = vshrl.u32 %v3914, 5
        %v3916 = vand.u32 %v3914, 31
        %v3917 = vsub.s32 32, %v3916
        %v3918 = vshrl.u32 683565275, %v3917
        %v3919 = vshll.u32 683565275, %v3916
        %v3920 = vshrl.u32 2475754826, %v3917
        %v3921 = vor.u32 %v3919, %v3920
        %v3922 = vshll.u32 2475754826, %v3916
        %v3923 = vshrl.u32 2131351028, %v3917
        %v3924 = vor.u32 %v3922, %v3923
        %v3925 = vshll.u32 2131351028, %v3916
        %v3926 = vshrl.u32 2102212464, %v3917
        %v3927 = vor.u32 %v3925, %v3926
        %v3928 = vshll.u32 2102212464, %v3916
        %v3929 = vshrl.u32 920167782, %v3917
        %v3930 = vor.u32 %v3928, %v3929
        %v3931 = vshll.u32 920167782, %v3916
        %v3932 = vshrl.u32 1326507024, %v3917
        %v3933 = vor.u32 %v3931, %v3932
        %vm3934 = vcmp.lt.s32.totalorder %v3915, 1
        %vm3935 = vcmp.lt.s32.totalorder %v3915, 2
        %vm3936 = vcmp.lt.s32.totalorder %v3915, 3
        %vm3937 = vcmp.lt.s32.totalorder %v3915, 4
        %v3938 = vsel %vm3934, %v3918, %v3921
        %v3939 = vsel %vm3937, %v3927, 2102212464
        %v3940 = vsel %vm3936, %v3924, %v3939
        %v3941 = vsel %vm3935, %v3938, %v3940
        %v3942 = vsel %vm3934, %v3921, %v3924
        %v3943 = vsel %vm3937, %v3930, 920167782
        %v3944 = vsel %vm3936, %v3927, %v3943
        %v3945 = vsel %vm3935, %v3942, %v3944
        %v3946 = vsel %vm3934, %v3924, %v3927
        %v3947 = vsel %vm3937, %v3933, 1326507024
        %v3948 = vsel %vm3936, %v3930, %v3947
        %v3949 = vsel %vm3935, %v3946, %v3948
        %v3950 = vshll.u32 %v3910, 8
        %v3951 = vand.u32 %v3950, 65535
        %v3952 = vshrl.u32 %v3950, 16
        %v3953 = vand.u32 %v3949, 65535
        %v3954 = vshrl.u32 %v3949, 16
        %v3955 = vmul.u32 %v3951, %v3953
        %v3956 = vmul.u32 %v3951, %v3954
        %v3957 = vmul.u32 %v3952, %v3953
        %v3958 = vmul.u32 %v3952, %v3954
        %v3959 = vshll.u32 %v3956, 16
        %v3960 = vshrl.u32 %v3956, 16
        %v3961 = vshll.u32 %v3957, 16
        %v3962 = vshrl.u32 %v3957, 16
        %vm3963 = vc.u32 %v3955, %v3959
        %v3964 = vsel %vm3963, 1, 0
        %v3965 = vadd.s32 %v3955, %v3959
        %v3966 = vadd.s32 %v3958, %v3964
        %vm3967 = vc.u32 %v3965, %v3961
        %v3968 = vsel %vm3967, 1, 0
        %v3969 = vadd.s32 %v3965, %v3961
        %v3970 = vadd.s32 %v3966, %v3968
        %v3971 = vadd.s32 %v3970, %v3960
        %v3972 = vadd.s32 %v3971, %v3962
        %v3973 = vand.u32 %v3950, 65535
        %v3974 = vshrl.u32 %v3950, 16
        %v3975 = vand.u32 %v3945, 65535
        %v3976 = vshrl.u32 %v3945, 16
        %v3977 = vmul.u32 %v3973, %v3975
        %v3978 = vmul.u32 %v3973, %v3976
        %v3979 = vmul.u32 %v3974, %v3975
        %v3980 = vmul.u32 %v3974, %v3976
        %v3981 = vshll.u32 %v3978, 16
        %v3982 = vshrl.u32 %v3978, 16
        %v3983 = vshll.u32 %v3979, 16
        %v3984 = vshrl.u32 %v3979, 16
        %vm3985 = vc.u32 %v3977, %v3981
        %v3986 = vsel %vm3985, 1, 0
        %v3987 = vadd.s32 %v3977, %v3981
        %v3988 = vadd.s32 %v3980, %v3986
        %vm3989 = vc.u32 %v3987, %v3983
        %v3990 = vsel %vm3989, 1, 0
        %v3991 = vadd.s32 %v3987, %v3983
        %v3992 = vadd.s32 %v3988, %v3990
        %v3993 = vadd.s32 %v3992, %v3982
        %v3994 = vadd.s32 %v3993, %v3984
        %v3995 = vmul.u32 %v3950, %v3941
        %v3996 = vadd.s32 %v3972, %v3991
        %vm3997 = vc.u32 %v3972, %v3991
        %v3998 = vadd.s32 %v3994, 1
        %v3999 = vsel %vm3997, %v3998, %v3994
        %v4000 = vadd.s32 %v3995, %v3999
        %v4001 = vadd.s32 %v4000, 536870912
        %v4002 = vshrl.u32 %v4001, 30
        %v4003 = vshll.u32 %v4002, 30
        %v4004 = vsub.s32 %v4000, %v4003
        %vm4005 = vcmp.lt.s32.totalorder %v4004, 0
        %v4006 = vsub.s32 0, %v4004
        %v4007 = vsel %vm4005, %v4006, %v4004
        %v4008 = vclz %v4007
        %v4009 = vsub.s32 %v4008, 2
        %vm4010 = vcmp.gt.s32.totalorder 0, %v4009
        %v4011 = vsel %vm4010, 0, %v4009
        %v4012 = vsub.s32 32, %v4011
        %v4013 = vshll.u32 %v4004, %v4011
        %v4014 = vshrl.u32 %v3996, %v4012
        %v4015 = vor.u32 %v4013, %v4014
        %v4016 = vsub.s32 4294967266, %v4011
        %v4017 = vadd.s32 %v4016, 127
        %v4018 = vshll.u32 %v4017, 23
        %v4019 = vor.u32 4788187, %v4018
        %v4020 = vand.u32 2147483647, %v4019
        %v4022 = vcvt.s32.f32 %v4015
        %v4023 = vmul.f32 %v4022, %v4020
        %v4024 = vxor.u32 %v4023, 2147483648
        %v4025 = vsel %vm3904, %v4024, %v4023
        %v4026 = vsub.s32 4, %v4002
        %v4027 = vsel %vm3904, %v4026, %v4002
        %v4028 = vsel %vm3903, %v1575, %v4025
        %v4029 = vsel %vm3903, 0, %v4027
        %v4030 = vmul.f32 %v4028, %v4028
        %v4031 = vmul.f32 %v4030, -0.001358992
        %v4032 = vadd.f32 %v4031, 0.041655596
        %v4033 = vmul.f32 %v4030, %v4032
        %v4034 = vadd.f32 %v4033, -0.4999988
        %v4035 = vmul.f32 %v4030, %v4034
        %v4036 = vadd.f32 1.0, %v4035
        %v4037 = vmul.f32 %v4028, %v4028
        %v4038 = vmul.f32 %v4037, -0.00019511016
        %v4039 = vadd.f32 %v4038, 0.008332121
        %v4040 = vmul.f32 %v4037, %v4039
        %v4041 = vadd.f32 %v4040, -0.16666654
        %v4042 = vmul.f32 %v4037, %v4041
        %v4043 = vadd.f32 %v4042, 1.0
        %v4044 = vmul.f32 %v4043, %v4028
        %vm4045 = vweird.f32 %v1575
        %v4046 = vadd.s32 %v4029, 3
        %v4047 = vand.u32 %v4046, 3
        %vm4048 = vcmp.lt.s32.totalorder %v4047, 2
        %vm4049 = vcmp.eq.s32.totalorder %v4047, 0
        %v4050 = vxor.u32 %v4044, 2147483648
        %v4051 = vsel %vm4049, %v4036, %v4050
        %vm4052 = vcmp.eq.s32.totalorder %v4047, 2
        %v4053 = vxor.u32 %v4036, 2147483648
        %v4054 = vsel %vm4052, %v4053, %v4044
        %v4055 = vsel %vm4048, %v4051, %v4054
        %v4056 = vsel %vm4045, nan, %v4055
        %v4058 = vperm.slane %v1576, 0
        %v4060 = vmul.f32 %v4058, %v1731
        %v4061 = vmul.f32 %v4058, %v1886
        %v4062 = vmul.f32 %v4058, %v2041
        %v4063 = vmul.f32 %v4058, %v2196
        %v4064 = vmul.f32 %v4058, %v2351
        %v4065 = vmul.f32 %v4058, %v2506
        %v4066 = vmul.f32 %v4058, %v2661
        %v4067 = vmul.f32 %v4058, %v2816
        %v4068 = vmul.f32 %v4058, %v2971
        %v4069 = vmul.f32 %v4058, %v3126
        %v4070 = vmul.f32 %v4058, %v3281
        %v4071 = vmul.f32 %v4058, %v3436
        %v4072 = vmul.f32 %v4058, %v3591
        %v4073 = vmul.f32 %v4058, %v3746
        %v4074 = vmul.f32 %v4058, %v3901
        %v4075 = vmul.f32 %v4058, %v4056
        %v4076 = vadd.f32 %v1240, %v4060
        %v4077 = vadd.f32 %v1241, %v4061
        %v4078 = vadd.f32 %v1242, %v4062
        %v4079 = vadd.f32 %v1243, %v4063
        %v4080 = vadd.f32 %v1244, %v4064
        %v4081 = vadd.f32 %v1245, %v4065
        %v4082 = vadd.f32 %v1246, %v4066
        %v4083 = vadd.f32 %v1247, %v4067
        %v4084 = vadd.f32 %v1248, %v4068
        %v4085 = vadd.f32 %v1249, %v4069
        %v4086 = vadd.f32 %v1250, %v4070
        %v4087 = vadd.f32 %v1251, %v4071
        %v4088 = vadd.f32 %v1252, %v4072
        %v4089 = vadd.f32 %v1253, %v4073
        %v4090 = vadd.f32 %v1254, %v4074
        %v4091 = vadd.f32 %v1255, %v4075
        %v4092 = vpack.c.bf16 %v4077, %v4076
        %v4093 = vpack.c.bf16 %v4079, %v4078
        %v4094 = vpack.c.bf16 %v4081, %v4080
        %v4095 = vpack.c.bf16 %v4083, %v4082
        %v4096 = vpack.c.bf16 %v4085, %v4084
        %v4097 = vpack.c.bf16 %v4087, %v4086
        %v4098 = vpack.c.bf16 %v4089, %v4088
        %v4099 = vpack.c.bf16 %v4091, %v4090
        %v4100 = vld [vmem:[#allocation13] sm:$0xff]
        %v4101 = vld [vmem:[#allocation13 + $0x8] sm:$0xff]
        %v4102 = vld [vmem:[#allocation13 + $0x10] sm:$0xff]
        %v4103 = vld [vmem:[#allocation13 + $0x18] sm:$0xff]
        %v4104 = vld [vmem:[#allocation13 + $0x20] sm:$0xff]
        %v4105 = vld [vmem:[#allocation13 + $0x28] sm:$0xff]
        %v4106 = vld [vmem:[#allocation13 + $0x30] sm:$0xff]
        %v4107 = vld [vmem:[#allocation13 + $0x38] sm:$0xff]
        %v4108 = vld [vmem:[#allocation13 + $0x40] sm:$0xff]
        %v4109 = vld [vmem:[#allocation13 + $0x48] sm:$0xff]
        %v4110 = vld [vmem:[#allocation13 + $0x50] sm:$0xff]
        %v4111 = vld [vmem:[#allocation13 + $0x58] sm:$0xff]
        %v4112 = vld [vmem:[#allocation13 + $0x60] sm:$0xff]
        %v4113 = vld [vmem:[#allocation13 + $0x68] sm:$0xff]
        %v4114 = vld [vmem:[#allocation13 + $0x70] sm:$0xff]
        %v4115 = vld [vmem:[#allocation13 + $0x78] sm:$0xff]
        %v4116 = vld [vmem:[%s15] sm:$0x3]
        %v4118 = vperm.slane %v4116, 0
        %v4119 = vperm.slane %v4116, 1
        %v4138 = vunpack.c.l.b16 %v4100
        %v4139 = vunpack.c.h.b16 %v4100
        %v4140 = vunpack.c.l.b16 %v4101
        %v4141 = vunpack.c.h.b16 %v4101
        %v4142 = vunpack.c.l.b16 %v4102
        %v4143 = vunpack.c.h.b16 %v4102
        %v4144 = vunpack.c.l.b16 %v4103
        %v4145 = vunpack.c.h.b16 %v4103
        %v4146 = vunpack.c.l.b16 %v4104
        %v4147 = vunpack.c.h.b16 %v4104
        %v4148 = vunpack.c.l.b16 %v4105
        %v4149 = vunpack.c.h.b16 %v4105
        %v4150 = vunpack.c.l.b16 %v4106
        %v4151 = vunpack.c.h.b16 %v4106
        %v4152 = vunpack.c.l.b16 %v4107
        %v4153 = vunpack.c.h.b16 %v4107
        %v4154 = vunpack.c.l.b16 %v4108
        %v4155 = vunpack.c.h.b16 %v4108
        %v4156 = vunpack.c.l.b16 %v4109
        %v4157 = vunpack.c.h.b16 %v4109
        %v4158 = vunpack.c.l.b16 %v4110
        %v4159 = vunpack.c.h.b16 %v4110
        %v4160 = vunpack.c.l.b16 %v4111
        %v4161 = vunpack.c.h.b16 %v4111
        %v4162 = vunpack.c.l.b16 %v4112
        %v4163 = vunpack.c.h.b16 %v4112
        %v4164 = vunpack.c.l.b16 %v4113
        %v4165 = vunpack.c.h.b16 %v4113
        %v4166 = vunpack.c.l.b16 %v4114
        %v4167 = vunpack.c.h.b16 %v4114
        %v4168 = vunpack.c.l.b16 %v4115
        %v4169 = vunpack.c.h.b16 %v4115
        %v4170 = vpack.c.b16 %v4140, %v4138
        %v4171 = vpack.c.b16 %v4141, %v4139
        %v4172 = vpack.c.b16 %v4144, %v4142
        %v4173 = vpack.c.b16 %v4145, %v4143
        %v4174 = vpack.c.b16 %v4148, %v4146
        %v4175 = vpack.c.b16 %v4149, %v4147
        %v4176 = vpack.c.b16 %v4152, %v4150
        %v4177 = vpack.c.b16 %v4153, %v4151
        %v4178 = vpack.c.b16 %v4156, %v4154
        %v4179 = vpack.c.b16 %v4157, %v4155
        %v4180 = vpack.c.b16 %v4160, %v4158
        %v4181 = vpack.c.b16 %v4161, %v4159
        %v4182 = vpack.c.b16 %v4164, %v4162
        %v4183 = vpack.c.b16 %v4165, %v4163
        %v4184 = vpack.c.b16 %v4168, %v4166
        %v4185 = vpack.c.b16 %v4169, %v4167
        %4202 = vmatpush.bf16.msra.mxu0 %v4184
        %4203 = vmatpush.bf16.msra.mxu0 %v4182
        %4204 = vmatpush.bf16.msra.mxu0 %v4180
        %4205 = vmatpush.bf16.msra.mxu0 %v4178
        %4206 = vmatpush.bf16.msra.mxu0 %v4176
        %4207 = vmatpush.bf16.msra.mxu0 %v4174
        %4208 = vmatpush.bf16.msra.mxu0 %v4172
        %4209 = vmatpush.bf16.msra.mxu0 %v4170
        %4210 = vmatmul.bf16.gmra.mxu0 %v4092
        %v4211 = vpop.f32.mrf.mxu0
        %v4212 = vadd.f32 %v4118, %v4211
        %v4213 = vpop.f32.mrf.mxu0
        %v4214 = vadd.f32 %v4118, %v4213
        %4215 = vmatmul.bf16.gmra.mxu0 %v4093
        %v4216 = vpop.f32.mrf.mxu0
        %v4217 = vadd.f32 %v4118, %v4216
        %v4218 = vpop.f32.mrf.mxu0
        %v4219 = vadd.f32 %v4118, %v4218
        %4220 = vmatmul.bf16.gmra.mxu0 %v4094
        %v4221 = vpop.f32.mrf.mxu0
        %v4222 = vadd.f32 %v4118, %v4221
        %v4223 = vpop.f32.mrf.mxu0
        %v4224 = vadd.f32 %v4118, %v4223
        %4225 = vmatmul.bf16.gmra.mxu0 %v4095
        %v4226 = vpop.f32.mrf.mxu0
        %v4227 = vadd.f32 %v4118, %v4226
        %v4228 = vpop.f32.mrf.mxu0
        %v4229 = vadd.f32 %v4118, %v4228
        %4230 = vmatmul.bf16.gmra.mxu0 %v4096
        %v4231 = vpop.f32.mrf.mxu0
        %v4232 = vadd.f32 %v4118, %v4231
        %v4233 = vpop.f32.mrf.mxu0
        %v4234 = vadd.f32 %v4118, %v4233
        %4235 = vmatmul.bf16.gmra.mxu0 %v4097
        %v4236 = vpop.f32.mrf.mxu0
        %v4237 = vadd.f32 %v4118, %v4236
        %v4238 = vpop.f32.mrf.mxu0
        %v4239 = vadd.f32 %v4118, %v4238
        %4240 = vmatmul.bf16.gmra.mxu0 %v4098
        %v4241 = vpop.f32.mrf.mxu0
        %v4242 = vadd.f32 %v4118, %v4241
        %v4243 = vpop.f32.mrf.mxu0
        %v4244 = vadd.f32 %v4118, %v4243
        %4245 = vmatmul.bf16.gmra.mxu0 %v4099
        %v4246 = vpop.f32.mrf.mxu0
        %v4247 = vadd.f32 %v4118, %v4246
        %v4248 = vpop.f32.mrf.mxu0
        %v4249 = vadd.f32 %v4118, %v4248
        %4250 = vdwg.mxu0
        %4251 = vmatpush.bf16.msra.mxu0 %v4185
        %4252 = vmatpush.bf16.msra.mxu0 %v4183
        %4253 = vmatpush.bf16.msra.mxu0 %v4181
        %4254 = vmatpush.bf16.msra.mxu0 %v4179
        %4255 = vmatpush.bf16.msra.mxu0 %v4177
        %4256 = vmatpush.bf16.msra.mxu0 %v4175
        %4257 = vmatpush.bf16.msra.mxu0 %v4173
        %4258 = vmatpush.bf16.msra.mxu0 %v4171
        %4259 = vmatmul.bf16.gmra.mxu0 %v4092
        %v4260 = vpop.f32.mrf.mxu0
        %v4261 = vadd.f32 %v4119, %v4260
        %v4262 = vpop.f32.mrf.mxu0
        %v4263 = vadd.f32 %v4119, %v4262
        %4264 = vmatmul.bf16.gmra.mxu0 %v4093
        %v4265 = vpop.f32.mrf.mxu0
        %v4266 = vadd.f32 %v4119, %v4265
        %v4267 = vpop.f32.mrf.mxu0
        %v4268 = vadd.f32 %v4119, %v4267
        %4269 = vmatmul.bf16.gmra.mxu0 %v4094
        %v4270 = vpop.f32.mrf.mxu0
        %v4271 = vadd.f32 %v4119, %v4270
        %v4272 = vpop.f32.mrf.mxu0
        %v4273 = vadd.f32 %v4119, %v4272
        %4274 = vmatmul.bf16.gmra.mxu0 %v4095
        %v4275 = vpop.f32.mrf.mxu0
        %v4276 = vadd.f32 %v4119, %v4275
        %v4277 = vpop.f32.mrf.mxu0
        %v4278 = vadd.f32 %v4119, %v4277
        %4279 = vmatmul.bf16.gmra.mxu0 %v4096
        %v4280 = vpop.f32.mrf.mxu0
        %v4281 = vadd.f32 %v4119, %v4280
        %v4282 = vpop.f32.mrf.mxu0
        %v4283 = vadd.f32 %v4119, %v4282
        %4284 = vmatmul.bf16.gmra.mxu0 %v4097
        %v4285 = vpop.f32.mrf.mxu0
        %v4286 = vadd.f32 %v4119, %v4285
        %v4287 = vpop.f32.mrf.mxu0
        %v4288 = vadd.f32 %v4119, %v4287
        %4289 = vmatmul.bf16.gmra.mxu0 %v4098
        %v4290 = vpop.f32.mrf.mxu0
        %v4291 = vadd.f32 %v4119, %v4290
        %v4292 = vpop.f32.mrf.mxu0
        %v4293 = vadd.f32 %v4119, %v4292
        %4294 = vmatmul.bf16.gmra.mxu0 %v4099
        %v4295 = vpop.f32.mrf.mxu0
        %v4296 = vadd.f32 %v4119, %v4295
        %v4297 = vpop.f32.mrf.mxu0
        %v4298 = vadd.f32 %v4119, %v4297
        %4299 = vdwg.mxu0
        %v4300 = vmax.f32 %v4212, 0.0
        %v4301 = vmax.f32 %v4261, 0.0
        %v4302 = vmax.f32 %v4214, 0.0
        %v4303 = vmax.f32 %v4263, 0.0
        %v4304 = vmax.f32 %v4217, 0.0
        %v4305 = vmax.f32 %v4266, 0.0
        %v4306 = vmax.f32 %v4219, 0.0
        %v4307 = vmax.f32 %v4268, 0.0
        %v4308 = vmax.f32 %v4222, 0.0
        %v4309 = vmax.f32 %v4271, 0.0
        %v4310 = vmax.f32 %v4224, 0.0
        %v4311 = vmax.f32 %v4273, 0.0
        %v4312 = vmax.f32 %v4227, 0.0
        %v4313 = vmax.f32 %v4276, 0.0
        %v4314 = vmax.f32 %v4229, 0.0
        %v4315 = vmax.f32 %v4278, 0.0
        %v4316 = vmax.f32 %v4232, 0.0
        %v4317 = vmax.f32 %v4281, 0.0
        %v4318 = vmax.f32 %v4234, 0.0
        %v4319 = vmax.f32 %v4283, 0.0
        %v4320 = vmax.f32 %v4237, 0.0
        %v4321 = vmax.f32 %v4286, 0.0
        %v4322 = vmax.f32 %v4239, 0.0
        %v4323 = vmax.f32 %v4288, 0.0
        %v4324 = vmax.f32 %v4242, 0.0
        %v4325 = vmax.f32 %v4291, 0.0
        %v4326 = vmax.f32 %v4244, 0.0
        %v4327 = vmax.f32 %v4293, 0.0
        %v4328 = vmax.f32 %v4247, 0.0
        %v4329 = vmax.f32 %v4296, 0.0
        %v4330 = vmax.f32 %v4249, 0.0
        %v4331 = vmax.f32 %v4298, 0.0
        %v4332 = vpack.c.bf16 %v4302, %v4300
        %v4333 = vpack.c.bf16 %v4303, %v4301
        %v4334 = vpack.c.bf16 %v4306, %v4304
        %v4335 = vpack.c.bf16 %v4307, %v4305
        %v4336 = vpack.c.bf16 %v4310, %v4308
        %v4337 = vpack.c.bf16 %v4311, %v4309
        %v4338 = vpack.c.bf16 %v4314, %v4312
        %v4339 = vpack.c.bf16 %v4315, %v4313
        %v4340 = vpack.c.bf16 %v4318, %v4316
        %v4341 = vpack.c.bf16 %v4319, %v4317
        %v4342 = vpack.c.bf16 %v4322, %v4320
        %v4343 = vpack.c.bf16 %v4323, %v4321
        %v4344 = vpack.c.bf16 %v4326, %v4324
        %v4345 = vpack.c.bf16 %v4327, %v4325
        %v4346 = vpack.c.bf16 %v4330, %v4328
        %v4347 = vpack.c.bf16 %v4331, %v4329
        %v4348 = vld [vmem:[#allocation14] sm:$0xff]
        %v4349 = vld [vmem:[#allocation14 + $0x8] sm:$0xff]
        %v4350 = vld [vmem:[#allocation14 + $0x10] sm:$0xff]
        %v4351 = vld [vmem:[#allocation14 + $0x18] sm:$0xff]
        %v4352 = vld [vmem:[#allocation14 + $0x20] sm:$0xff]
        %v4353 = vld [vmem:[#allocation14 + $0x28] sm:$0xff]
        %v4354 = vld [vmem:[#allocation14 + $0x30] sm:$0xff]
        %v4355 = vld [vmem:[#allocation14 + $0x38] sm:$0xff]
        %v4356 = vld [vmem:[#allocation14 + $0x40] sm:$0xff]
        %v4357 = vld [vmem:[#allocation14 + $0x48] sm:$0xff]
        %v4358 = vld [vmem:[#allocation14 + $0x50] sm:$0xff]
        %v4359 = vld [vmem:[#allocation14 + $0x58] sm:$0xff]
        %v4360 = vld [vmem:[#allocation14 + $0x60] sm:$0xff]
        %v4361 = vld [vmem:[#allocation14 + $0x68] sm:$0xff]
        %v4362 = vld [vmem:[#allocation14 + $0x70] sm:$0xff]
        %v4363 = vld [vmem:[#allocation14 + $0x78] sm:$0xff]
        %v4364 = vld [vmem:[#allocation14 + $0x80] sm:$0xff]
        %v4365 = vld [vmem:[#allocation14 + $0x88] sm:$0xff]
        %v4366 = vld [vmem:[#allocation14 + $0x90] sm:$0xff]
        %v4367 = vld [vmem:[#allocation14 + $0x98] sm:$0xff]
        %v4368 = vld [vmem:[#allocation14 + $0xa0] sm:$0xff]
        %v4369 = vld [vmem:[#allocation14 + $0xa8] sm:$0xff]
        %v4370 = vld [vmem:[#allocation14 + $0xb0] sm:$0xff]
        %v4371 = vld [vmem:[#allocation14 + $0xb8] sm:$0xff]
        %v4372 = vld [vmem:[#allocation14 + $0xc0] sm:$0xff]
        %v4373 = vld [vmem:[#allocation14 + $0xc8] sm:$0xff]
        %v4374 = vld [vmem:[#allocation14 + $0xd0] sm:$0xff]
        %v4375 = vld [vmem:[#allocation14 + $0xd8] sm:$0xff]
        %v4376 = vld [vmem:[#allocation14 + $0xe0] sm:$0xff]
        %v4377 = vld [vmem:[#allocation14 + $0xe8] sm:$0xff]
        %v4378 = vld [vmem:[#allocation14 + $0xf0] sm:$0xff]
        %v4379 = vld [vmem:[#allocation14 + $0xf8] sm:$0xff]
        %v4380 = vld [vmem:[%s19] sm:$0x3]
        %v4382 = vperm.slane %v4380, 0
        %v4383 = vperm.slane %v4380, 1
        %v4418 = vunpack.c.l.b16 %v4348
        %v4419 = vunpack.c.h.b16 %v4348
        %v4420 = vunpack.c.l.b16 %v4349
        %v4421 = vunpack.c.h.b16 %v4349
        %v4422 = vunpack.c.l.b16 %v4350
        %v4423 = vunpack.c.h.b16 %v4350
        %v4424 = vunpack.c.l.b16 %v4351
        %v4425 = vunpack.c.h.b16 %v4351
        %v4426 = vunpack.c.l.b16 %v4352
        %v4427 = vunpack.c.h.b16 %v4352
        %v4428 = vunpack.c.l.b16 %v4353
        %v4429 = vunpack.c.h.b16 %v4353
        %v4430 = vunpack.c.l.b16 %v4354
        %v4431 = vunpack.c.h.b16 %v4354
        %v4432 = vunpack.c.l.b16 %v4355
        %v4433 = vunpack.c.h.b16 %v4355
        %v4434 = vunpack.c.l.b16 %v4356
        %v4435 = vunpack.c.h.b16 %v4356
        %v4436 = vunpack.c.l.b16 %v4357
        %v4437 = vunpack.c.h.b16 %v4357
        %v4438 = vunpack.c.l.b16 %v4358
        %v4439 = vunpack.c.h.b16 %v4358
        %v4440 = vunpack.c.l.b16 %v4359
        %v4441 = vunpack.c.h.b16 %v4359
        %v4442 = vunpack.c.l.b16 %v4360
        %v4443 = vunpack.c.h.b16 %v4360
        %v4444 = vunpack.c.l.b16 %v4361
        %v4445 = vunpack.c.h.b16 %v4361
        %v4446 = vunpack.c.l.b16 %v4362
        %v4447 = vunpack.c.h.b16 %v4362
        %v4448 = vunpack.c.l.b16 %v4363
        %v4449 = vunpack.c.h.b16 %v4363
        %v4450 = vunpack.c.l.b16 %v4364
        %v4451 = vunpack.c.h.b16 %v4364
        %v4452 = vunpack.c.l.b16 %v4365
        %v4453 = vunpack.c.h.b16 %v4365
        %v4454 = vunpack.c.l.b16 %v4366
        %v4455 = vunpack.c.h.b16 %v4366
        %v4456 = vunpack.c.l.b16 %v4367
        %v4457 = vunpack.c.h.b16 %v4367
        %v4458 = vunpack.c.l.b16 %v4368
        %v4459 = vunpack.c.h.b16 %v4368
        %v4460 = vunpack.c.l.b16 %v4369
        %v4461 = vunpack.c.h.b16 %v4369
        %v4462 = vunpack.c.l.b16 %v4370
        %v4463 = vunpack.c.h.b16 %v4370
        %v4464 = vunpack.c.l.b16 %v4371
        %v4465 = vunpack.c.h.b16 %v4371
        %v4466 = vunpack.c.l.b16 %v4372
        %v4467 = vunpack.c.h.b16 %v4372
        %v4468 = vunpack.c.l.b16 %v4373
        %v4469 = vunpack.c.h.b16 %v4373
        %v4470 = vunpack.c.l.b16 %v4374
        %v4471 = vunpack.c.h.b16 %v4374
        %v4472 = vunpack.c.l.b16 %v4375
        %v4473 = vunpack.c.h.b16 %v4375
        %v4474 = vunpack.c.l.b16 %v4376
        %v4475 = vunpack.c.h.b16 %v4376
        %v4476 = vunpack.c.l.b16 %v4377
        %v4477 = vunpack.c.h.b16 %v4377
        %v4478 = vunpack.c.l.b16 %v4378
        %v4479 = vunpack.c.h.b16 %v4378
        %v4480 = vunpack.c.l.b16 %v4379
        %v4481 = vunpack.c.h.b16 %v4379
        %v4482 = vpack.c.b16 %v4420, %v4418
        %v4483 = vpack.c.b16 %v4421, %v4419
        %v4484 = vpack.c.b16 %v4424, %v4422
        %v4485 = vpack.c.b16 %v4425, %v4423
        %v4486 = vpack.c.b16 %v4428, %v4426
        %v4487 = vpack.c.b16 %v4429, %v4427
        %v4488 = vpack.c.b16 %v4432, %v4430
        %v4489 = vpack.c.b16 %v4433, %v4431
        %v4490 = vpack.c.b16 %v4436, %v4434
        %v4491 = vpack.c.b16 %v4437, %v4435
        %v4492 = vpack.c.b16 %v4440, %v4438
        %v4493 = vpack.c.b16 %v4441, %v4439
        %v4494 = vpack.c.b16 %v4444, %v4442
        %v4495 = vpack.c.b16 %v4445, %v4443
        %v4496 = vpack.c.b16 %v4448, %v4446
        %v4497 = vpack.c.b16 %v4449, %v4447
        %v4498 = vpack.c.b16 %v4452, %v4450
        %v4499 = vpack.c.b16 %v4453, %v4451
        %v4500 = vpack.c.b16 %v4456, %v4454
        %v4501 = vpack.c.b16 %v4457, %v4455
        %v4502 = vpack.c.b16 %v4460, %v4458
        %v4503 = vpack.c.b16 %v4461, %v4459
        %v4504 = vpack.c.b16 %v4464, %v4462
        %v4505 = vpack.c.b16 %v4465, %v4463
        %v4506 = vpack.c.b16 %v4468, %v4466
        %v4507 = vpack.c.b16 %v4469, %v4467
        %v4508 = vpack.c.b16 %v4472, %v4470
        %v4509 = vpack.c.b16 %v4473, %v4471
        %v4510 = vpack.c.b16 %v4476, %v4474
        %v4511 = vpack.c.b16 %v4477, %v4475
        %v4512 = vpack.c.b16 %v4480, %v4478
        %v4513 = vpack.c.b16 %v4481, %v4479
        %4546 = vmatpush.bf16.msra.mxu0 %v4496
        %4547 = vmatpush.bf16.msra.mxu0 %v4494
        %4548 = vmatpush.bf16.msra.mxu0 %v4492
        %4549 = vmatpush.bf16.msra.mxu0 %v4490
        %4550 = vmatpush.bf16.msra.mxu0 %v4488
        %4551 = vmatpush.bf16.msra.mxu0 %v4486
        %4552 = vmatpush.bf16.msra.mxu0 %v4484
        %4553 = vmatpush.bf16.msra.mxu0 %v4482
        %4554 = vmatmul.bf16.gmra.mxu0 %v4332
        %v4555 = vpop.f32.mrf.mxu0
        %v4556 = vadd.f32 %v4382, %v4555
        %v4557 = vpop.f32.mrf.mxu0
        %v4558 = vadd.f32 %v4382, %v4557
        %4559 = vmatmul.bf16.gmra.mxu0 %v4334
        %v4560 = vpop.f32.mrf.mxu0
        %v4561 = vadd.f32 %v4382, %v4560
        %v4562 = vpop.f32.mrf.mxu0
        %v4563 = vadd.f32 %v4382, %v4562
        %4564 = vmatmul.bf16.gmra.mxu0 %v4336
        %v4565 = vpop.f32.mrf.mxu0
        %v4566 = vadd.f32 %v4382, %v4565
        %v4567 = vpop.f32.mrf.mxu0
        %v4568 = vadd.f32 %v4382, %v4567
        %4569 = vmatmul.bf16.gmra.mxu0 %v4338
        %v4570 = vpop.f32.mrf.mxu0
        %v4571 = vadd.f32 %v4382, %v4570
        %v4572 = vpop.f32.mrf.mxu0
        %v4573 = vadd.f32 %v4382, %v4572
        %4574 = vmatmul.bf16.gmra.mxu0 %v4340
        %v4575 = vpop.f32.mrf.mxu0
        %v4576 = vadd.f32 %v4382, %v4575
        %v4577 = vpop.f32.mrf.mxu0
        %v4578 = vadd.f32 %v4382, %v4577
        %4579 = vmatmul.bf16.gmra.mxu0 %v4342
        %v4580 = vpop.f32.mrf.mxu0
        %v4581 = vadd.f32 %v4382, %v4580
        %v4582 = vpop.f32.mrf.mxu0
        %v4583 = vadd.f32 %v4382, %v4582
        %4584 = vmatmul.bf16.gmra.mxu0 %v4344
        %v4585 = vpop.f32.mrf.mxu0
        %v4586 = vadd.f32 %v4382, %v4585
        %v4587 = vpop.f32.mrf.mxu0
        %v4588 = vadd.f32 %v4382, %v4587
        %4589 = vmatmul.bf16.gmra.mxu0 %v4346
        %v4590 = vpop.f32.mrf.mxu0
        %v4591 = vadd.f32 %v4382, %v4590
        %v4592 = vpop.f32.mrf.mxu0
        %v4593 = vadd.f32 %v4382, %v4592
        %4594 = vdwg.mxu0
        %4595 = vmatpush.bf16.msra.mxu0 %v4512
        %4596 = vmatpush.bf16.msra.mxu0 %v4510
        %4597 = vmatpush.bf16.msra.mxu0 %v4508
        %4598 = vmatpush.bf16.msra.mxu0 %v4506
        %4599 = vmatpush.bf16.msra.mxu0 %v4504
        %4600 = vmatpush.bf16.msra.mxu0 %v4502
        %4601 = vmatpush.bf16.msra.mxu0 %v4500
        %4602 = vmatpush.bf16.msra.mxu0 %v4498
        %4603 = vmatmul.bf16.gmra.mxu0 %v4333
        %v4604 = vpop.f32.mrf.mxu0
        %v4605 = vadd.f32 %v4556, %v4604
        %v4606 = vpop.f32.mrf.mxu0
        %v4607 = vadd.f32 %v4558, %v4606
        %4608 = vmatmul.bf16.gmra.mxu0 %v4335
        %v4609 = vpop.f32.mrf.mxu0
        %v4610 = vadd.f32 %v4561, %v4609
        %v4611 = vpop.f32.mrf.mxu0
        %v4612 = vadd.f32 %v4563, %v4611
        %4613 = vmatmul.bf16.gmra.mxu0 %v4337
        %v4614 = vpop.f32.mrf.mxu0
        %v4615 = vadd.f32 %v4566, %v4614
        %v4616 = vpop.f32.mrf.mxu0
        %v4617 = vadd.f32 %v4568, %v4616
        %4618 = vmatmul.bf16.gmra.mxu0 %v4339
        %v4619 = vpop.f32.mrf.mxu0
        %v4620 = vadd.f32 %v4571, %v4619
        %v4621 = vpop.f32.mrf.mxu0
        %v4622 = vadd.f32 %v4573, %v4621
        %4623 = vmatmul.bf16.gmra.mxu0 %v4341
        %v4624 = vpop.f32.mrf.mxu0
        %v4625 = vadd.f32 %v4576, %v4624
        %v4626 = vpop.f32.mrf.mxu0
        %v4627 = vadd.f32 %v4578, %v4626
        %4628 = vmatmul.bf16.gmra.mxu0 %v4343
        %v4629 = vpop.f32.mrf.mxu0
        %v4630 = vadd.f32 %v4581, %v4629
        %v4631 = vpop.f32.mrf.mxu0
        %v4632 = vadd.f32 %v4583, %v4631
        %4633 = vmatmul.bf16.gmra.mxu0 %v4345
        %v4634 = vpop.f32.mrf.mxu0
        %v4635 = vadd.f32 %v4586, %v4634
        %v4636 = vpop.f32.mrf.mxu0
        %v4637 = vadd.f32 %v4588, %v4636
        %4638 = vmatmul.bf16.gmra.mxu0 %v4347
        %v4639 = vpop.f32.mrf.mxu0
        %v4640 = vadd.f32 %v4591, %v4639
        %v4641 = vpop.f32.mrf.mxu0
        %v4642 = vadd.f32 %v4593, %v4641
        %4643 = vdwg.mxu0
        %4644 = vmatpush.bf16.msra.mxu0 %v4497
        %4645 = vmatpush.bf16.msra.mxu0 %v4495
        %4646 = vmatpush.bf16.msra.mxu0 %v4493
        %4647 = vmatpush.bf16.msra.mxu0 %v4491
        %4648 = vmatpush.bf16.msra.mxu0 %v4489
        %4649 = vmatpush.bf16.msra.mxu0 %v4487
        %4650 = vmatpush.bf16.msra.mxu0 %v4485
        %4651 = vmatpush.bf16.msra.mxu0 %v4483
        %4652 = vmatmul.bf16.gmra.mxu0 %v4332
        %v4653 = vpop.f32.mrf.mxu0
        %v4654 = vadd.f32 %v4383, %v4653
        %v4655 = vpop.f32.mrf.mxu0
        %v4656 = vadd.f32 %v4383, %v4655
        %4657 = vmatmul.bf16.gmra.mxu0 %v4334
        %v4658 = vpop.f32.mrf.mxu0
        %v4659 = vadd.f32 %v4383, %v4658
        %v4660 = vpop.f32.mrf.mxu0
        %v4661 = vadd.f32 %v4383, %v4660
        %4662 = vmatmul.bf16.gmra.mxu0 %v4336
        %v4663 = vpop.f32.mrf.mxu0
        %v4664 = vadd.f32 %v4383, %v4663
        %v4665 = vpop.f32.mrf.mxu0
        %v4666 = vadd.f32 %v4383, %v4665
        %4667 = vmatmul.bf16.gmra.mxu0 %v4338
        %v4668 = vpop.f32.mrf.mxu0
        %v4669 = vadd.f32 %v4383, %v4668
        %v4670 = vpop.f32.mrf.mxu0
        %v4671 = vadd.f32 %v4383, %v4670
        %4672 = vmatmul.bf16.gmra.mxu0 %v4340
        %v4673 = vpop.f32.mrf.mxu0
        %v4674 = vadd.f32 %v4383, %v4673
        %v4675 = vpop.f32.mrf.mxu0
        %v4676 = vadd.f32 %v4383, %v4675
        %4677 = vmatmul.bf16.gmra.mxu0 %v4342
        %v4678 = vpop.f32.mrf.mxu0
        %v4679 = vadd.f32 %v4383, %v4678
        %v4680 = vpop.f32.mrf.mxu0
        %v4681 = vadd.f32 %v4383, %v4680
        %4682 = vmatmul.bf16.gmra.mxu0 %v4344
        %v4683 = vpop.f32.mrf.mxu0
        %v4684 = vadd.f32 %v4383, %v4683
        %v4685 = vpop.f32.mrf.mxu0
        %v4686 = vadd.f32 %v4383, %v4685
        %4687 = vmatmul.bf16.gmra.mxu0 %v4346
        %v4688 = vpop.f32.mrf.mxu0
        %v4689 = vadd.f32 %v4383, %v4688
        %v4690 = vpop.f32.mrf.mxu0
        %v4691 = vadd.f32 %v4383, %v4690
        %4692 = vdwg.mxu0
        %4693 = vmatpush.bf16.msra.mxu0 %v4513
        %4694 = vmatpush.bf16.msra.mxu0 %v4511
        %4695 = vmatpush.bf16.msra.mxu0 %v4509
        %4696 = vmatpush.bf16.msra.mxu0 %v4507
        %4697 = vmatpush.bf16.msra.mxu0 %v4505
        %4698 = vmatpush.bf16.msra.mxu0 %v4503
        %4699 = vmatpush.bf16.msra.mxu0 %v4501
        %4700 = vmatpush.bf16.msra.mxu0 %v4499
        %4701 = vmatmul.bf16.gmra.mxu0 %v4333
        %v4702 = vpop.f32.mrf.mxu0
        %v4703 = vadd.f32 %v4654, %v4702
        %v4704 = vpop.f32.mrf.mxu0
        %v4705 = vadd.f32 %v4656, %v4704
        %4706 = vmatmul.bf16.gmra.mxu0 %v4335
        %v4707 = vpop.f32.mrf.mxu0
        %v4708 = vadd.f32 %v4659, %v4707
        %v4709 = vpop.f32.mrf.mxu0
        %v4710 = vadd.f32 %v4661, %v4709
        %4711 = vmatmul.bf16.gmra.mxu0 %v4337
        %v4712 = vpop.f32.mrf.mxu0
        %v4713 = vadd.f32 %v4664, %v4712
        %v4714 = vpop.f32.mrf.mxu0
        %v4715 = vadd.f32 %v4666, %v4714
        %4716 = vmatmul.bf16.gmra.mxu0 %v4339
        %v4717 = vpop.f32.mrf.mxu0
        %v4718 = vadd.f32 %v4669, %v4717
        %v4719 = vpop.f32.mrf.mxu0
        %v4720 = vadd.f32 %v4671, %v4719
        %4721 = vmatmul.bf16.gmra.mxu0 %v4341
        %v4722 = vpop.f32.mrf.mxu0
        %v4723 = vadd.f32 %v4674, %v4722
        %v4724 = vpop.f32.mrf.mxu0
        %v4725 = vadd.f32 %v4676, %v4724
        %4726 = vmatmul.bf16.gmra.mxu0 %v4343
        %v4727 = vpop.f32.mrf.mxu0
        %v4728 = vadd.f32 %v4679, %v4727
        %v4729 = vpop.f32.mrf.mxu0
        %v4730 = vadd.f32 %v4681, %v4729
        %4731 = vmatmul.bf16.gmra.mxu0 %v4345
        %v4732 = vpop.f32.mrf.mxu0
        %v4733 = vadd.f32 %v4684, %v4732
        %v4734 = vpop.f32.mrf.mxu0
        %v4735 = vadd.f32 %v4686, %v4734
        %4736 = vmatmul.bf16.gmra.mxu0 %v4347
        %v4737 = vpop.f32.mrf.mxu0
        %v4738 = vadd.f32 %v4689, %v4737
        %v4739 = vpop.f32.mrf.mxu0
        %v4740 = vadd.f32 %v4691, %v4739
        %4741 = vdwg.mxu0
        %v4742 = vmax.f32 %v4605, 0.0
        %v4743 = vmax.f32 %v4703, 0.0
        %v4744 = vmax.f32 %v4607, 0.0
        %v4745 = vmax.f32 %v4705, 0.0
        %v4746 = vmax.f32 %v4610, 0.0
        %v4747 = vmax.f32 %v4708, 0.0
        %v4748 = vmax.f32 %v4612, 0.0
        %v4749 = vmax.f32 %v4710, 0.0
        %v4750 = vmax.f32 %v4615, 0.0
        %v4751 = vmax.f32 %v4713, 0.0
        %v4752 = vmax.f32 %v4617, 0.0
        %v4753 = vmax.f32 %v4715, 0.0
        %v4754 = vmax.f32 %v4620, 0.0
        %v4755 = vmax.f32 %v4718, 0.0
        %v4756 = vmax.f32 %v4622, 0.0
        %v4757 = vmax.f32 %v4720, 0.0
        %v4758 = vmax.f32 %v4625, 0.0
        %v4759 = vmax.f32 %v4723, 0.0
        %v4760 = vmax.f32 %v4627, 0.0
        %v4761 = vmax.f32 %v4725, 0.0
        %v4762 = vmax.f32 %v4630, 0.0
        %v4763 = vmax.f32 %v4728, 0.0
        %v4764 = vmax.f32 %v4632, 0.0
        %v4765 = vmax.f32 %v4730, 0.0
        %v4766 = vmax.f32 %v4635, 0.0
        %v4767 = vmax.f32 %v4733, 0.0
        %v4768 = vmax.f32 %v4637, 0.0
        %v4769 = vmax.f32 %v4735, 0.0
        %v4770 = vmax.f32 %v4640, 0.0
        %v4771 = vmax.f32 %v4738, 0.0
        %v4772 = vmax.f32 %v4642, 0.0
        %v4773 = vmax.f32 %v4740, 0.0
        %v4774 = vpack.c.bf16 %v4744, %v4742
        %v4775 = vpack.c.bf16 %v4745, %v4743
        %v4776 = vpack.c.bf16 %v4748, %v4746
        %v4777 = vpack.c.bf16 %v4749, %v4747
        %v4778 = vpack.c.bf16 %v4752, %v4750
        %v4779 = vpack.c.bf16 %v4753, %v4751
        %v4780 = vpack.c.bf16 %v4756, %v4754
        %v4781 = vpack.c.bf16 %v4757, %v4755
        %v4782 = vpack.c.bf16 %v4760, %v4758
        %v4783 = vpack.c.bf16 %v4761, %v4759
        %v4784 = vpack.c.bf16 %v4764, %v4762
        %v4785 = vpack.c.bf16 %v4765, %v4763
        %v4786 = vpack.c.bf16 %v4768, %v4766
        %v4787 = vpack.c.bf16 %v4769, %v4767
        %v4788 = vpack.c.bf16 %v4772, %v4770
        %v4789 = vpack.c.bf16 %v4773, %v4771
        %v4790 = vld [vmem:[#allocation16] sm:$0xff]
        %v4791 = vld [vmem:[#allocation16 + $0x8] sm:$0xff]
        %v4792 = vld [vmem:[#allocation16 + $0x10] sm:$0xff]
        %v4793 = vld [vmem:[#allocation16 + $0x18] sm:$0xff]
        %v4794 = vld [vmem:[#allocation16 + $0x20] sm:$0xff]
        %v4795 = vld [vmem:[#allocation16 + $0x28] sm:$0xff]
        %v4796 = vld [vmem:[#allocation16 + $0x30] sm:$0xff]
        %v4797 = vld [vmem:[#allocation16 + $0x38] sm:$0xff]
        %v4798 = vld [vmem:[#allocation16 + $0x40] sm:$0xff]
        %v4799 = vld [vmem:[#allocation16 + $0x48] sm:$0xff]
        %v4800 = vld [vmem:[#allocation16 + $0x50] sm:$0xff]
        %v4801 = vld [vmem:[#allocation16 + $0x58] sm:$0xff]
        %v4802 = vld [vmem:[#allocation16 + $0x60] sm:$0xff]
        %v4803 = vld [vmem:[#allocation16 + $0x68] sm:$0xff]
        %v4804 = vld [vmem:[#allocation16 + $0x70] sm:$0xff]
        %v4805 = vld [vmem:[#allocation16 + $0x78] sm:$0xff]
        %v4806 = vld [vmem:[#allocation16 + $0x80] sm:$0xff]
        %v4807 = vld [vmem:[#allocation16 + $0x88] sm:$0xff]
        %v4808 = vld [vmem:[#allocation16 + $0x90] sm:$0xff]
        %v4809 = vld [vmem:[#allocation16 + $0x98] sm:$0xff]
        %v4810 = vld [vmem:[#allocation16 + $0xa0] sm:$0xff]
        %v4811 = vld [vmem:[#allocation16 + $0xa8] sm:$0xff]
        %v4812 = vld [vmem:[#allocation16 + $0xb0] sm:$0xff]
        %v4813 = vld [vmem:[#allocation16 + $0xb8] sm:$0xff]
        %v4814 = vld [vmem:[#allocation16 + $0xc0] sm:$0xff]
        %v4815 = vld [vmem:[#allocation16 + $0xc8] sm:$0xff]
        %v4816 = vld [vmem:[#allocation16 + $0xd0] sm:$0xff]
        %v4817 = vld [vmem:[#allocation16 + $0xd8] sm:$0xff]
        %v4818 = vld [vmem:[#allocation16 + $0xe0] sm:$0xff]
        %v4819 = vld [vmem:[#allocation16 + $0xe8] sm:$0xff]
        %v4820 = vld [vmem:[#allocation16 + $0xf0] sm:$0xff]
        %v4821 = vld [vmem:[#allocation16 + $0xf8] sm:$0xff]
        %v4822 = vld [vmem:[%s23] sm:$0x3]
        %v4824 = vperm.slane %v4822, 0
        %v4825 = vperm.slane %v4822, 1
        %v4860 = vunpack.c.l.b16 %v4790
        %v4861 = vunpack.c.h.b16 %v4790
        %v4862 = vunpack.c.l.b16 %v4791
        %v4863 = vunpack.c.h.b16 %v4791
        %v4864 = vunpack.c.l.b16 %v4792
        %v4865 = vunpack.c.h.b16 %v4792
        %v4866 = vunpack.c.l.b16 %v4793
        %v4867 = vunpack.c.h.b16 %v4793
        %v4868 = vunpack.c.l.b16 %v4794
        %v4869 = vunpack.c.h.b16 %v4794
        %v4870 = vunpack.c.l.b16 %v4795
        %v4871 = vunpack.c.h.b16 %v4795
        %v4872 = vunpack.c.l.b16 %v4796
        %v4873 = vunpack.c.h.b16 %v4796
        %v4874 = vunpack.c.l.b16 %v4797
        %v4875 = vunpack.c.h.b16 %v4797
        %v4876 = vunpack.c.l.b16 %v4798
        %v4877 = vunpack.c.h.b16 %v4798
        %v4878 = vunpack.c.l.b16 %v4799
        %v4879 = vunpack.c.h.b16 %v4799
        %v4880 = vunpack.c.l.b16 %v4800
        %v4881 = vunpack.c.h.b16 %v4800
        %v4882 = vunpack.c.l.b16 %v4801
        %v4883 = vunpack.c.h.b16 %v4801
        %v4884 = vunpack.c.l.b16 %v4802
        %v4885 = vunpack.c.h.b16 %v4802
        %v4886 = vunpack.c.l.b16 %v4803
        %v4887 = vunpack.c.h.b16 %v4803
        %v4888 = vunpack.c.l.b16 %v4804
        %v4889 = vunpack.c.h.b16 %v4804
        %v4890 = vunpack.c.l.b16 %v4805
        %v4891 = vunpack.c.h.b16 %v4805
        %v4892 = vunpack.c.l.b16 %v4806
        %v4893 = vunpack.c.h.b16 %v4806
        %v4894 = vunpack.c.l.b16 %v4807
        %v4895 = vunpack.c.h.b16 %v4807
        %v4896 = vunpack.c.l.b16 %v4808
        %v4897 = vunpack.c.h.b16 %v4808
        %v4898 = vunpack.c.l.b16 %v4809
        %v4899 = vunpack.c.h.b16 %v4809
        %v4900 = vunpack.c.l.b16 %v4810
        %v4901 = vunpack.c.h.b16 %v4810
        %v4902 = vunpack.c.l.b16 %v4811
        %v4903 = vunpack.c.h.b16 %v4811
        %v4904 = vunpack.c.l.b16 %v4812
        %v4905 = vunpack.c.h.b16 %v4812
        %v4906 = vunpack.c.l.b16 %v4813
        %v4907 = vunpack.c.h.b16 %v4813
        %v4908 = vunpack.c.l.b16 %v4814
        %v4909 = vunpack.c.h.b16 %v4814
        %v4910 = vunpack.c.l.b16 %v4815
        %v4911 = vunpack.c.h.b16 %v4815
        %v4912 = vunpack.c.l.b16 %v4816
        %v4913 = vunpack.c.h.b16 %v4816
        %v4914 = vunpack.c.l.b16 %v4817
        %v4915 = vunpack.c.h.b16 %v4817
        %v4916 = vunpack.c.l.b16 %v4818
        %v4917 = vunpack.c.h.b16 %v4818
        %v4918 = vunpack.c.l.b16 %v4819
        %v4919 = vunpack.c.h.b16 %v4819
        %v4920 = vunpack.c.l.b16 %v4820
        %v4921 = vunpack.c.h.b16 %v4820
        %v4922 = vunpack.c.l.b16 %v4821
        %v4923 = vunpack.c.h.b16 %v4821
        %v4924 = vpack.c.b16 %v4862, %v4860
        %v4925 = vpack.c.b16 %v4863, %v4861
        %v4926 = vpack.c.b16 %v4866, %v4864
        %v4927 = vpack.c.b16 %v4867, %v4865
        %v4928 = vpack.c.b16 %v4870, %v4868
        %v4929 = vpack.c.b16 %v4871, %v4869
        %v4930 = vpack.c.b16 %v4874, %v4872
        %v4931 = vpack.c.b16 %v4875, %v4873
        %v4932 = vpack.c.b16 %v4878, %v4876
        %v4933 = vpack.c.b16 %v4879, %v4877
        %v4934 = vpack.c.b16 %v4882, %v4880
        %v4935 = vpack.c.b16 %v4883, %v4881
        %v4936 = vpack.c.b16 %v4886, %v4884
        %v4937 = vpack.c.b16 %v4887, %v4885
        %v4938 = vpack.c.b16 %v4890, %v4888
        %v4939 = vpack.c.b16 %v4891, %v4889
        %v4940 = vpack.c.b16 %v4894, %v4892
        %v4941 = vpack.c.b16 %v4895, %v4893
        %v4942 = vpack.c.b16 %v4898, %v4896
        %v4943 = vpack.c.b16 %v4899, %v4897
        %v4944 = vpack.c.b16 %v4902, %v4900
        %v4945 = vpack.c.b16 %v4903, %v4901
        %v4946 = vpack.c.b16 %v4906, %v4904
        %v4947 = vpack.c.b16 %v4907, %v4905
        %v4948 = vpack.c.b16 %v4910, %v4908
        %v4949 = vpack.c.b16 %v4911, %v4909
        %v4950 = vpack.c.b16 %v4914, %v4912
        %v4951 = vpack.c.b16 %v4915, %v4913
        %v4952 = vpack.c.b16 %v4918, %v4916
        %v4953 = vpack.c.b16 %v4919, %v4917
        %v4954 = vpack.c.b16 %v4922, %v4920
        %v4955 = vpack.c.b16 %v4923, %v4921
        %4988 = vmatpush.bf16.msra.mxu0 %v4938
        %4989 = vmatpush.bf16.msra.mxu0 %v4936
        %4990 = vmatpush.bf16.msra.mxu0 %v4934
        %4991 = vmatpush.bf16.msra.mxu0 %v4932
        %4992 = vmatpush.bf16.msra.mxu0 %v4930
        %4993 = vmatpush.bf16.msra.mxu0 %v4928
        %4994 = vmatpush.bf16.msra.mxu0 %v4926
        %4995 = vmatpush.bf16.msra.mxu0 %v4924
        %4996 = vmatmul.bf16.gmra.mxu0 %v4774
        %v4997 = vpop.f32.mrf.mxu0
        %v4998 = vadd.f32 %v4824, %v4997
        %v4999 = vpop.f32.mrf.mxu0
        %v5000 = vadd.f32 %v4824, %v4999
        %5001 = vmatmul.bf16.gmra.mxu0 %v4776
        %v5002 = vpop.f32.mrf.mxu0
        %v5003 = vadd.f32 %v4824, %v5002
        %v5004 = vpop.f32.mrf.mxu0
        %v5005 = vadd.f32 %v4824, %v5004
        %5006 = vmatmul.bf16.gmra.mxu0 %v4778
        %v5007 = vpop.f32.mrf.mxu0
        %v5008 = vadd.f32 %v4824, %v5007
        %v5009 = vpop.f32.mrf.mxu0
        %v5010 = vadd.f32 %v4824, %v5009
        %5011 = vmatmul.bf16.gmra.mxu0 %v4780
        %v5012 = vpop.f32.mrf.mxu0
        %v5013 = vadd.f32 %v4824, %v5012
        %v5014 = vpop.f32.mrf.mxu0
        %v5015 = vadd.f32 %v4824, %v5014
        %5016 = vmatmul.bf16.gmra.mxu0 %v4782
        %v5017 = vpop.f32.mrf.mxu0
        %v5018 = vadd.f32 %v4824, %v5017
        %v5019 = vpop.f32.mrf.mxu0
        %v5020 = vadd.f32 %v4824, %v5019
        %5021 = vmatmul.bf16.gmra.mxu0 %v4784
        %v5022 = vpop.f32.mrf.mxu0
        %v5023 = vadd.f32 %v4824, %v5022
        %v5024 = vpop.f32.mrf.mxu0
        %v5025 = vadd.f32 %v4824, %v5024
        %5026 = vmatmul.bf16.gmra.mxu0 %v4786
        %v5027 = vpop.f32.mrf.mxu0
        %v5028 = vadd.f32 %v4824, %v5027
        %v5029 = vpop.f32.mrf.mxu0
        %v5030 = vadd.f32 %v4824, %v5029
        %5031 = vmatmul.bf16.gmra.mxu0 %v4788
        %v5032 = vpop.f32.mrf.mxu0
        %v5033 = vadd.f32 %v4824, %v5032
        %v5034 = vpop.f32.mrf.mxu0
        %v5035 = vadd.f32 %v4824, %v5034
        %5036 = vdwg.mxu0
        %5037 = vmatpush.bf16.msra.mxu0 %v4954
        %5038 = vmatpush.bf16.msra.mxu0 %v4952
        %5039 = vmatpush.bf16.msra.mxu0 %v4950
        %5040 = vmatpush.bf16.msra.mxu0 %v4948
        %5041 = vmatpush.bf16.msra.mxu0 %v4946
        %5042 = vmatpush.bf16.msra.mxu0 %v4944
        %5043 = vmatpush.bf16.msra.mxu0 %v4942
        %5044 = vmatpush.bf16.msra.mxu0 %v4940
        %5045 = vmatmul.bf16.gmra.mxu0 %v4775
        %v5046 = vpop.f32.mrf.mxu0
        %v5047 = vadd.f32 %v4998, %v5046
        %v5048 = vpop.f32.mrf.mxu0
        %v5049 = vadd.f32 %v5000, %v5048
        %5050 = vmatmul.bf16.gmra.mxu0 %v4777
        %v5051 = vpop.f32.mrf.mxu0
        %v5052 = vadd.f32 %v5003, %v5051
        %v5053 = vpop.f32.mrf.mxu0
        %v5054 = vadd.f32 %v5005, %v5053
        %5055 = vmatmul.bf16.gmra.mxu0 %v4779
        %v5056 = vpop.f32.mrf.mxu0
        %v5057 = vadd.f32 %v5008, %v5056
        %v5058 = vpop.f32.mrf.mxu0
        %v5059 = vadd.f32 %v5010, %v5058
        %5060 = vmatmul.bf16.gmra.mxu0 %v4781
        %v5061 = vpop.f32.mrf.mxu0
        %v5062 = vadd.f32 %v5013, %v5061
        %v5063 = vpop.f32.mrf.mxu0
        %v5064 = vadd.f32 %v5015, %v5063
        %5065 = vmatmul.bf16.gmra.mxu0 %v4783
        %v5066 = vpop.f32.mrf.mxu0
        %v5067 = vadd.f32 %v5018, %v5066
        %v5068 = vpop.f32.mrf.mxu0
        %v5069 = vadd.f32 %v5020, %v5068
        %5070 = vmatmul.bf16.gmra.mxu0 %v4785
        %v5071 = vpop.f32.mrf.mxu0
        %v5072 = vadd.f32 %v5023, %v5071
        %v5073 = vpop.f32.mrf.mxu0
        %v5074 = vadd.f32 %v5025, %v5073
        %5075 = vmatmul.bf16.gmra.mxu0 %v4787
        %v5076 = vpop.f32.mrf.mxu0
        %v5077 = vadd.f32 %v5028, %v5076
        %v5078 = vpop.f32.mrf.mxu0
        %v5079 = vadd.f32 %v5030, %v5078
        %5080 = vmatmul.bf16.gmra.mxu0 %v4789
        %v5081 = vpop.f32.mrf.mxu0
        %v5082 = vadd.f32 %v5033, %v5081
        %v5083 = vpop.f32.mrf.mxu0
        %v5084 = vadd.f32 %v5035, %v5083
        %5085 = vdwg.mxu0
        %5086 = vmatpush.bf16.msra.mxu0 %v4939
        %5087 = vmatpush.bf16.msra.mxu0 %v4937
        %5088 = vmatpush.bf16.msra.mxu0 %v4935
        %5089 = vmatpush.bf16.msra.mxu0 %v4933
        %5090 = vmatpush.bf16.msra.mxu0 %v4931
        %5091 = vmatpush.bf16.msra.mxu0 %v4929
        %5092 = vmatpush.bf16.msra.mxu0 %v4927
        %5093 = vmatpush.bf16.msra.mxu0 %v4925
        %5094 = vmatmul.bf16.gmra.mxu0 %v4774
        %v5095 = vpop.f32.mrf.mxu0
        %v5096 = vadd.f32 %v4825, %v5095
        %v5097 = vpop.f32.mrf.mxu0
        %v5098 = vadd.f32 %v4825, %v5097
        %5099 = vmatmul.bf16.gmra.mxu0 %v4776
        %v5100 = vpop.f32.mrf.mxu0
        %v5101 = vadd.f32 %v4825, %v5100
        %v5102 = vpop.f32.mrf.mxu0
        %v5103 = vadd.f32 %v4825, %v5102
        %5104 = vmatmul.bf16.gmra.mxu0 %v4778
        %v5105 = vpop.f32.mrf.mxu0
        %v5106 = vadd.f32 %v4825, %v5105
        %v5107 = vpop.f32.mrf.mxu0
        %v5108 = vadd.f32 %v4825, %v5107
        %5109 = vmatmul.bf16.gmra.mxu0 %v4780
        %v5110 = vpop.f32.mrf.mxu0
        %v5111 = vadd.f32 %v4825, %v5110
        %v5112 = vpop.f32.mrf.mxu0
        %v5113 = vadd.f32 %v4825, %v5112
        %5114 = vmatmul.bf16.gmra.mxu0 %v4782
        %v5115 = vpop.f32.mrf.mxu0
        %v5116 = vadd.f32 %v4825, %v5115
        %v5117 = vpop.f32.mrf.mxu0
        %v5118 = vadd.f32 %v4825, %v5117
        %5119 = vmatmul.bf16.gmra.mxu0 %v4784
        %v5120 = vpop.f32.mrf.mxu0
        %v5121 = vadd.f32 %v4825, %v5120
        %v5122 = vpop.f32.mrf.mxu0
        %v5123 = vadd.f32 %v4825, %v5122
        %5124 = vmatmul.bf16.gmra.mxu0 %v4786
        %v5125 = vpop.f32.mrf.mxu0
        %v5126 = vadd.f32 %v4825, %v5125
        %v5127 = vpop.f32.mrf.mxu0
        %v5128 = vadd.f32 %v4825, %v5127
        %5129 = vmatmul.bf16.gmra.mxu0 %v4788
        %v5130 = vpop.f32.mrf.mxu0
        %v5131 = vadd.f32 %v4825, %v5130
        %v5132 = vpop.f32.mrf.mxu0
        %v5133 = vadd.f32 %v4825, %v5132
        %5134 = vdwg.mxu0
        %5135 = vmatpush.bf16.msra.mxu0 %v4955
        %5136 = vmatpush.bf16.msra.mxu0 %v4953
        %5137 = vmatpush.bf16.msra.mxu0 %v4951
        %5138 = vmatpush.bf16.msra.mxu0 %v4949
        %5139 = vmatpush.bf16.msra.mxu0 %v4947
        %5140 = vmatpush.bf16.msra.mxu0 %v4945
        %5141 = vmatpush.bf16.msra.mxu0 %v4943
        %5142 = vmatpush.bf16.msra.mxu0 %v4941
        %5143 = vmatmul.bf16.gmra.mxu0 %v4775
        %v5144 = vpop.f32.mrf.mxu0
        %v5145 = vadd.f32 %v5096, %v5144
        %v5146 = vpop.f32.mrf.mxu0
        %v5147 = vadd.f32 %v5098, %v5146
        %5148 = vmatmul.bf16.gmra.mxu0 %v4777
        %v5149 = vpop.f32.mrf.mxu0
        %v5150 = vadd.f32 %v5101, %v5149
        %v5151 = vpop.f32.mrf.mxu0
        %v5152 = vadd.f32 %v5103, %v5151
        %5153 = vmatmul.bf16.gmra.mxu0 %v4779
        %v5154 = vpop.f32.mrf.mxu0
        %v5155 = vadd.f32 %v5106, %v5154
        %v5156 = vpop.f32.mrf.mxu0
        %v5157 = vadd.f32 %v5108, %v5156
        %5158 = vmatmul.bf16.gmra.mxu0 %v4781
        %v5159 = vpop.f32.mrf.mxu0
        %v5160 = vadd.f32 %v5111, %v5159
        %v5161 = vpop.f32.mrf.mxu0
        %v5162 = vadd.f32 %v5113, %v5161
        %5163 = vmatmul.bf16.gmra.mxu0 %v4783
        %v5164 = vpop.f32.mrf.mxu0
        %v5165 = vadd.f32 %v5116, %v5164
        %v5166 = vpop.f32.mrf.mxu0
        %v5167 = vadd.f32 %v5118, %v5166
        %5168 = vmatmul.bf16.gmra.mxu0 %v4785
        %v5169 = vpop.f32.mrf.mxu0
        %v5170 = vadd.f32 %v5121, %v5169
        %v5171 = vpop.f32.mrf.mxu0
        %v5172 = vadd.f32 %v5123, %v5171
        %5173 = vmatmul.bf16.gmra.mxu0 %v4787
        %v5174 = vpop.f32.mrf.mxu0
        %v5175 = vadd.f32 %v5126, %v5174
        %v5176 = vpop.f32.mrf.mxu0
        %v5177 = vadd.f32 %v5128, %v5176
        %5178 = vmatmul.bf16.gmra.mxu0 %v4789
        %v5179 = vpop.f32.mrf.mxu0
        %v5180 = vadd.f32 %v5131, %v5179
        %v5181 = vpop.f32.mrf.mxu0
        %v5182 = vadd.f32 %v5133, %v5181
        %5183 = vdwg.mxu0
        %v5184 = vmax.f32 %v5047, 0.0
        %v5185 = vmax.f32 %v5145, 0.0
        %v5186 = vmax.f32 %v5049, 0.0
        %v5187 = vmax.f32 %v5147, 0.0
        %v5188 = vmax.f32 %v5052, 0.0
        %v5189 = vmax.f32 %v5150, 0.0
        %v5190 = vmax.f32 %v5054, 0.0
        %v5191 = vmax.f32 %v5152, 0.0
        %v5192 = vmax.f32 %v5057, 0.0
        %v5193 = vmax.f32 %v5155, 0.0
        %v5194 = vmax.f32 %v5059, 0.0
        %v5195 = vmax.f32 %v5157, 0.0
        %v5196 = vmax.f32 %v5062, 0.0
        %v5197 = vmax.f32 %v5160, 0.0
        %v5198 = vmax.f32 %v5064, 0.0
        %v5199 = vmax.f32 %v5162, 0.0
        %v5200 = vmax.f32 %v5067, 0.0
        %v5201 = vmax.f32 %v5165, 0.0
        %v5202 = vmax.f32 %v5069, 0.0
        %v5203 = vmax.f32 %v5167, 0.0
        %v5204 = vmax.f32 %v5072, 0.0
        %v5205 = vmax.f32 %v5170, 0.0
        %v5206 = vmax.f32 %v5074, 0.0
        %v5207 = vmax.f32 %v5172, 0.0
        %v5208 = vmax.f32 %v5077, 0.0
        %v5209 = vmax.f32 %v5175, 0.0
        %v5210 = vmax.f32 %v5079, 0.0
        %v5211 = vmax.f32 %v5177, 0.0
        %v5212 = vmax.f32 %v5082, 0.0
        %v5213 = vmax.f32 %v5180, 0.0
        %v5214 = vmax.f32 %v5084, 0.0
        %v5215 = vmax.f32 %v5182, 0.0
        %v5216 = vpack.c.bf16 %v5186, %v5184
        %v5217 = vpack.c.bf16 %v5187, %v5185
        %v5218 = vpack.c.bf16 %v5190, %v5188
        %v5219 = vpack.c.bf16 %v5191, %v5189
        %v5220 = vpack.c.bf16 %v5194, %v5192
        %v5221 = vpack.c.bf16 %v5195, %v5193
        %v5222 = vpack.c.bf16 %v5198, %v5196
        %v5223 = vpack.c.bf16 %v5199, %v5197
        %v5224 = vpack.c.bf16 %v5202, %v5200
        %v5225 = vpack.c.bf16 %v5203, %v5201
        %v5226 = vpack.c.bf16 %v5206, %v5204
        %v5227 = vpack.c.bf16 %v5207, %v5205
        %v5228 = vpack.c.bf16 %v5210, %v5208
        %v5229 = vpack.c.bf16 %v5211, %v5209
        %v5230 = vpack.c.bf16 %v5214, %v5212
        %v5231 = vpack.c.bf16 %v5215, %v5213
        %v5232 = vld [vmem:[#allocation17] sm:$0xff]
        %v5233 = vld [vmem:[#allocation17 + $0x8] sm:$0xff]
        %v5234 = vld [vmem:[#allocation17 + $0x10] sm:$0xff]
        %v5235 = vld [vmem:[#allocation17 + $0x18] sm:$0xff]
        %v5236 = vld [vmem:[#allocation17 + $0x20] sm:$0xff]
        %v5237 = vld [vmem:[#allocation17 + $0x28] sm:$0xff]
        %v5238 = vld [vmem:[#allocation17 + $0x30] sm:$0xff]
        %v5239 = vld [vmem:[#allocation17 + $0x38] sm:$0xff]
        %v5240 = vld [vmem:[#allocation17 + $0x40] sm:$0xff]
        %v5241 = vld [vmem:[#allocation17 + $0x48] sm:$0xff]
        %v5242 = vld [vmem:[#allocation17 + $0x50] sm:$0xff]
        %v5243 = vld [vmem:[#allocation17 + $0x58] sm:$0xff]
        %v5244 = vld [vmem:[#allocation17 + $0x60] sm:$0xff]
        %v5245 = vld [vmem:[#allocation17 + $0x68] sm:$0xff]
        %v5246 = vld [vmem:[#allocation17 + $0x70] sm:$0xff]
        %v5247 = vld [vmem:[#allocation17 + $0x78] sm:$0xff]
        %v5248 = vld [vmem:[#allocation17 + $0x80] sm:$0xff]
        %v5249 = vld [vmem:[#allocation17 + $0x88] sm:$0xff]
        %v5250 = vld [vmem:[#allocation17 + $0x90] sm:$0xff]
        %v5251 = vld [vmem:[#allocation17 + $0x98] sm:$0xff]
        %v5252 = vld [vmem:[#allocation17 + $0xa0] sm:$0xff]
        %v5253 = vld [vmem:[#allocation17 + $0xa8] sm:$0xff]
        %v5254 = vld [vmem:[#allocation17 + $0xb0] sm:$0xff]
        %v5255 = vld [vmem:[#allocation17 + $0xb8] sm:$0xff]
        %v5256 = vld [vmem:[#allocation17 + $0xc0] sm:$0xff]
        %v5257 = vld [vmem:[#allocation17 + $0xc8] sm:$0xff]
        %v5258 = vld [vmem:[#allocation17 + $0xd0] sm:$0xff]
        %v5259 = vld [vmem:[#allocation17 + $0xd8] sm:$0xff]
        %v5260 = vld [vmem:[#allocation17 + $0xe0] sm:$0xff]
        %v5261 = vld [vmem:[#allocation17 + $0xe8] sm:$0xff]
        %v5262 = vld [vmem:[#allocation17 + $0xf0] sm:$0xff]
        %v5263 = vld [vmem:[#allocation17 + $0xf8] sm:$0xff]
        %v5264 = vld [vmem:[%s27] sm:$0x3]
        %v5266 = vperm.slane %v5264, 0
        %v5267 = vperm.slane %v5264, 1
        %v5302 = vunpack.c.l.b16 %v5232
        %v5303 = vunpack.c.h.b16 %v5232
        %v5304 = vunpack.c.l.b16 %v5233
        %v5305 = vunpack.c.h.b16 %v5233
        %v5306 = vunpack.c.l.b16 %v5234
        %v5307 = vunpack.c.h.b16 %v5234
        %v5308 = vunpack.c.l.b16 %v5235
        %v5309 = vunpack.c.h.b16 %v5235
        %v5310 = vunpack.c.l.b16 %v5236
        %v5311 = vunpack.c.h.b16 %v5236
        %v5312 = vunpack.c.l.b16 %v5237
        %v5313 = vunpack.c.h.b16 %v5237
        %v5314 = vunpack.c.l.b16 %v5238
        %v5315 = vunpack.c.h.b16 %v5238
        %v5316 = vunpack.c.l.b16 %v5239
        %v5317 = vunpack.c.h.b16 %v5239
        %v5318 = vunpack.c.l.b16 %v5240
        %v5319 = vunpack.c.h.b16 %v5240
        %v5320 = vunpack.c.l.b16 %v5241
        %v5321 = vunpack.c.h.b16 %v5241
        %v5322 = vunpack.c.l.b16 %v5242
        %v5323 = vunpack.c.h.b16 %v5242
        %v5324 = vunpack.c.l.b16 %v5243
        %v5325 = vunpack.c.h.b16 %v5243
        %v5326 = vunpack.c.l.b16 %v5244
        %v5327 = vunpack.c.h.b16 %v5244
        %v5328 = vunpack.c.l.b16 %v5245
        %v5329 = vunpack.c.h.b16 %v5245
        %v5330 = vunpack.c.l.b16 %v5246
        %v5331 = vunpack.c.h.b16 %v5246
        %v5332 = vunpack.c.l.b16 %v5247
        %v5333 = vunpack.c.h.b16 %v5247
        %v5334 = vunpack.c.l.b16 %v5248
        %v5335 = vunpack.c.h.b16 %v5248
        %v5336 = vunpack.c.l.b16 %v5249
        %v5337 = vunpack.c.h.b16 %v5249
        %v5338 = vunpack.c.l.b16 %v5250
        %v5339 = vunpack.c.h.b16 %v5250
        %v5340 = vunpack.c.l.b16 %v5251
        %v5341 = vunpack.c.h.b16 %v5251
        %v5342 = vunpack.c.l.b16 %v5252
        %v5343 = vunpack.c.h.b16 %v5252
        %v5344 = vunpack.c.l.b16 %v5253
        %v5345 = vunpack.c.h.b16 %v5253
        %v5346 = vunpack.c.l.b16 %v5254
        %v5347 = vunpack.c.h.b16 %v5254
        %v5348 = vunpack.c.l.b16 %v5255
        %v5349 = vunpack.c.h.b16 %v5255
        %v5350 = vunpack.c.l.b16 %v5256
        %v5351 = vunpack.c.h.b16 %v5256
        %v5352 = vunpack.c.l.b16 %v5257
        %v5353 = vunpack.c.h.b16 %v5257
        %v5354 = vunpack.c.l.b16 %v5258
        %v5355 = vunpack.c.h.b16 %v5258
        %v5356 = vunpack.c.l.b16 %v5259
        %v5357 = vunpack.c.h.b16 %v5259
        %v5358 = vunpack.c.l.b16 %v5260
        %v5359 = vunpack.c.h.b16 %v5260
        %v5360 = vunpack.c.l.b16 %v5261
        %v5361 = vunpack.c.h.b16 %v5261
        %v5362 = vunpack.c.l.b16 %v5262
        %v5363 = vunpack.c.h.b16 %v5262
        %v5364 = vunpack.c.l.b16 %v5263
        %v5365 = vunpack.c.h.b16 %v5263
        %v5366 = vpack.c.b16 %v5304, %v5302
        %v5367 = vpack.c.b16 %v5305, %v5303
        %v5368 = vpack.c.b16 %v5308, %v5306
        %v5369 = vpack.c.b16 %v5309, %v5307
        %v5370 = vpack.c.b16 %v5312, %v5310
        %v5371 = vpack.c.b16 %v5313, %v5311
        %v5372 = vpack.c.b16 %v5316, %v5314
        %v5373 = vpack.c.b16 %v5317, %v5315
        %v5374 = vpack.c.b16 %v5320, %v5318
        %v5375 = vpack.c.b16 %v5321, %v5319
        %v5376 = vpack.c.b16 %v5324, %v5322
        %v5377 = vpack.c.b16 %v5325, %v5323
        %v5378 = vpack.c.b16 %v5328, %v5326
        %v5379 = vpack.c.b16 %v5329, %v5327
        %v5380 = vpack.c.b16 %v5332, %v5330
        %v5381 = vpack.c.b16 %v5333, %v5331
        %v5382 = vpack.c.b16 %v5336, %v5334
        %v5383 = vpack.c.b16 %v5337, %v5335
        %v5384 = vpack.c.b16 %v5340, %v5338
        %v5385 = vpack.c.b16 %v5341, %v5339
        %v5386 = vpack.c.b16 %v5344, %v5342
        %v5387 = vpack.c.b16 %v5345, %v5343
        %v5388 = vpack.c.b16 %v5348, %v5346
        %v5389 = vpack.c.b16 %v5349, %v5347
        %v5390 = vpack.c.b16 %v5352, %v5350
        %v5391 = vpack.c.b16 %v5353, %v5351
        %v5392 = vpack.c.b16 %v5356, %v5354
        %v5393 = vpack.c.b16 %v5357, %v5355
        %v5394 = vpack.c.b16 %v5360, %v5358
        %v5395 = vpack.c.b16 %v5361, %v5359
        %v5396 = vpack.c.b16 %v5364, %v5362
        %v5397 = vpack.c.b16 %v5365, %v5363
        %5430 = vmatpush.bf16.msra.mxu0 %v5380
        %5431 = vmatpush.bf16.msra.mxu0 %v5378
        %5432 = vmatpush.bf16.msra.mxu0 %v5376
        %5433 = vmatpush.bf16.msra.mxu0 %v5374
        %5434 = vmatpush.bf16.msra.mxu0 %v5372
        %5435 = vmatpush.bf16.msra.mxu0 %v5370
        %5436 = vmatpush.bf16.msra.mxu0 %v5368
        %5437 = vmatpush.bf16.msra.mxu0 %v5366
        %5438 = vmatmul.bf16.gmra.mxu0 %v5216
        %v5439 = vpop.f32.mrf.mxu0
        %v5440 = vadd.f32 %v5266, %v5439
        %v5441 = vpop.f32.mrf.mxu0
        %v5442 = vadd.f32 %v5266, %v5441
        %5443 = vmatmul.bf16.gmra.mxu0 %v5218
        %v5444 = vpop.f32.mrf.mxu0
        %v5445 = vadd.f32 %v5266, %v5444
        %v5446 = vpop.f32.mrf.mxu0
        %v5447 = vadd.f32 %v5266, %v5446
        %5448 = vmatmul.bf16.gmra.mxu0 %v5220
        %v5449 = vpop.f32.mrf.mxu0
        %v5450 = vadd.f32 %v5266, %v5449
        %v5451 = vpop.f32.mrf.mxu0
        %v5452 = vadd.f32 %v5266, %v5451
        %5453 = vmatmul.bf16.gmra.mxu0 %v5222
        %v5454 = vpop.f32.mrf.mxu0
        %v5455 = vadd.f32 %v5266, %v5454
        %v5456 = vpop.f32.mrf.mxu0
        %v5457 = vadd.f32 %v5266, %v5456
        %5458 = vmatmul.bf16.gmra.mxu0 %v5224
        %v5459 = vpop.f32.mrf.mxu0
        %v5460 = vadd.f32 %v5266, %v5459
        %v5461 = vpop.f32.mrf.mxu0
        %v5462 = vadd.f32 %v5266, %v5461
        %5463 = vmatmul.bf16.gmra.mxu0 %v5226
        %v5464 = vpop.f32.mrf.mxu0
        %v5465 = vadd.f32 %v5266, %v5464
        %v5466 = vpop.f32.mrf.mxu0
        %v5467 = vadd.f32 %v5266, %v5466
        %5468 = vmatmul.bf16.gmra.mxu0 %v5228
        %v5469 = vpop.f32.mrf.mxu0
        %v5470 = vadd.f32 %v5266, %v5469
        %v5471 = vpop.f32.mrf.mxu0
        %v5472 = vadd.f32 %v5266, %v5471
        %5473 = vmatmul.bf16.gmra.mxu0 %v5230
        %v5474 = vpop.f32.mrf.mxu0
        %v5475 = vadd.f32 %v5266, %v5474
        %v5476 = vpop.f32.mrf.mxu0
        %v5477 = vadd.f32 %v5266, %v5476
        %5478 = vdwg.mxu0
        %5479 = vmatpush.bf16.msra.mxu0 %v5396
        %5480 = vmatpush.bf16.msra.mxu0 %v5394
        %5481 = vmatpush.bf16.msra.mxu0 %v5392
        %5482 = vmatpush.bf16.msra.mxu0 %v5390
        %5483 = vmatpush.bf16.msra.mxu0 %v5388
        %5484 = vmatpush.bf16.msra.mxu0 %v5386
        %5485 = vmatpush.bf16.msra.mxu0 %v5384
        %5486 = vmatpush.bf16.msra.mxu0 %v5382
        %5487 = vmatmul.bf16.gmra.mxu0 %v5217
        %v5488 = vpop.f32.mrf.mxu0
        %v5489 = vadd.f32 %v5440, %v5488
        %v5490 = vpop.f32.mrf.mxu0
        %v5491 = vadd.f32 %v5442, %v5490
        %5492 = vmatmul.bf16.gmra.mxu0 %v5219
        %v5493 = vpop.f32.mrf.mxu0
        %v5494 = vadd.f32 %v5445, %v5493
        %v5495 = vpop.f32.mrf.mxu0
        %v5496 = vadd.f32 %v5447, %v5495
        %5497 = vmatmul.bf16.gmra.mxu0 %v5221
        %v5498 = vpop.f32.mrf.mxu0
        %v5499 = vadd.f32 %v5450, %v5498
        %v5500 = vpop.f32.mrf.mxu0
        %v5501 = vadd.f32 %v5452, %v5500
        %5502 = vmatmul.bf16.gmra.mxu0 %v5223
        %v5503 = vpop.f32.mrf.mxu0
        %v5504 = vadd.f32 %v5455, %v5503
        %v5505 = vpop.f32.mrf.mxu0
        %v5506 = vadd.f32 %v5457, %v5505
        %5507 = vmatmul.bf16.gmra.mxu0 %v5225
        %v5508 = vpop.f32.mrf.mxu0
        %v5509 = vadd.f32 %v5460, %v5508
        %v5510 = vpop.f32.mrf.mxu0
        %v5511 = vadd.f32 %v5462, %v5510
        %5512 = vmatmul.bf16.gmra.mxu0 %v5227
        %v5513 = vpop.f32.mrf.mxu0
        %v5514 = vadd.f32 %v5465, %v5513
        %v5515 = vpop.f32.mrf.mxu0
        %v5516 = vadd.f32 %v5467, %v5515
        %5517 = vmatmul.bf16.gmra.mxu0 %v5229
        %v5518 = vpop.f32.mrf.mxu0
        %v5519 = vadd.f32 %v5470, %v5518
        %v5520 = vpop.f32.mrf.mxu0
        %v5521 = vadd.f32 %v5472, %v5520
        %5522 = vmatmul.bf16.gmra.mxu0 %v5231
        %v5523 = vpop.f32.mrf.mxu0
        %v5524 = vadd.f32 %v5475, %v5523
        %v5525 = vpop.f32.mrf.mxu0
        %v5526 = vadd.f32 %v5477, %v5525
        %5527 = vdwg.mxu0
        %5528 = vmatpush.bf16.msra.mxu0 %v5381
        %5529 = vmatpush.bf16.msra.mxu0 %v5379
        %5530 = vmatpush.bf16.msra.mxu0 %v5377
        %5531 = vmatpush.bf16.msra.mxu0 %v5375
        %5532 = vmatpush.bf16.msra.mxu0 %v5373
        %5533 = vmatpush.bf16.msra.mxu0 %v5371
        %5534 = vmatpush.bf16.msra.mxu0 %v5369
        %5535 = vmatpush.bf16.msra.mxu0 %v5367
        %5536 = vmatmul.bf16.gmra.mxu0 %v5216
        %v5537 = vpop.f32.mrf.mxu0
        %v5538 = vadd.f32 %v5267, %v5537
        %v5539 = vpop.f32.mrf.mxu0
        %v5540 = vadd.f32 %v5267, %v5539
        %5541 = vmatmul.bf16.gmra.mxu0 %v5218
        %v5542 = vpop.f32.mrf.mxu0
        %v5543 = vadd.f32 %v5267, %v5542
        %v5544 = vpop.f32.mrf.mxu0
        %v5545 = vadd.f32 %v5267, %v5544
        %5546 = vmatmul.bf16.gmra.mxu0 %v5220
        %v5547 = vpop.f32.mrf.mxu0
        %v5548 = vadd.f32 %v5267, %v5547
        %v5549 = vpop.f32.mrf.mxu0
        %v5550 = vadd.f32 %v5267, %v5549
        %5551 = vmatmul.bf16.gmra.mxu0 %v5222
        %v5552 = vpop.f32.mrf.mxu0
        %v5553 = vadd.f32 %v5267, %v5552
        %v5554 = vpop.f32.mrf.mxu0
        %v5555 = vadd.f32 %v5267, %v5554
        %5556 = vmatmul.bf16.gmra.mxu0 %v5224
        %v5557 = vpop.f32.mrf.mxu0
        %v5558 = vadd.f32 %v5267, %v5557
        %v5559 = vpop.f32.mrf.mxu0
        %v5560 = vadd.f32 %v5267, %v5559
        %5561 = vmatmul.bf16.gmra.mxu0 %v5226
        %v5562 = vpop.f32.mrf.mxu0
        %v5563 = vadd.f32 %v5267, %v5562
        %v5564 = vpop.f32.mrf.mxu0
        %v5565 = vadd.f32 %v5267, %v5564
        %5566 = vmatmul.bf16.gmra.mxu0 %v5228
        %v5567 = vpop.f32.mrf.mxu0
        %v5568 = vadd.f32 %v5267, %v5567
        %v5569 = vpop.f32.mrf.mxu0
        %v5570 = vadd.f32 %v5267, %v5569
        %5571 = vmatmul.bf16.gmra.mxu0 %v5230
        %v5572 = vpop.f32.mrf.mxu0
        %v5573 = vadd.f32 %v5267, %v5572
        %v5574 = vpop.f32.mrf.mxu0
        %v5575 = vadd.f32 %v5267, %v5574
        %5576 = vdwg.mxu0
        %5577 = vmatpush.bf16.msra.mxu0 %v5397
        %5578 = vmatpush.bf16.msra.mxu0 %v5395
        %5579 = vmatpush.bf16.msra.mxu0 %v5393
        %5580 = vmatpush.bf16.msra.mxu0 %v5391
        %5581 = vmatpush.bf16.msra.mxu0 %v5389
        %5582 = vmatpush.bf16.msra.mxu0 %v5387
        %5583 = vmatpush.bf16.msra.mxu0 %v5385
        %5584 = vmatpush.bf16.msra.mxu0 %v5383
        %5585 = vmatmul.bf16.gmra.mxu0 %v5217
        %v5586 = vpop.f32.mrf.mxu0
        %v5587 = vadd.f32 %v5538, %v5586
        %v5588 = vpop.f32.mrf.mxu0
        %v5589 = vadd.f32 %v5540, %v5588
        %5590 = vmatmul.bf16.gmra.mxu0 %v5219
        %v5591 = vpop.f32.mrf.mxu0
        %v5592 = vadd.f32 %v5543, %v5591
        %v5593 = vpop.f32.mrf.mxu0
        %v5594 = vadd.f32 %v5545, %v5593
        %5595 = vmatmul.bf16.gmra.mxu0 %v5221
        %v5596 = vpop.f32.mrf.mxu0
        %v5597 = vadd.f32 %v5548, %v5596
        %v5598 = vpop.f32.mrf.mxu0
        %v5599 = vadd.f32 %v5550, %v5598
        %5600 = vmatmul.bf16.gmra.mxu0 %v5223
        %v5601 = vpop.f32.mrf.mxu0
        %v5602 = vadd.f32 %v5553, %v5601
        %v5603 = vpop.f32.mrf.mxu0
        %v5604 = vadd.f32 %v5555, %v5603
        %5605 = vmatmul.bf16.gmra.mxu0 %v5225
        %v5606 = vpop.f32.mrf.mxu0
        %v5607 = vadd.f32 %v5558, %v5606
        %v5608 = vpop.f32.mrf.mxu0
        %v5609 = vadd.f32 %v5560, %v5608
        %5610 = vmatmul.bf16.gmra.mxu0 %v5227
        %v5611 = vpop.f32.mrf.mxu0
        %v5612 = vadd.f32 %v5563, %v5611
        %v5613 = vpop.f32.mrf.mxu0
        %v5614 = vadd.f32 %v5565, %v5613
        %5615 = vmatmul.bf16.gmra.mxu0 %v5229
        %v5616 = vpop.f32.mrf.mxu0
        %v5617 = vadd.f32 %v5568, %v5616
        %v5618 = vpop.f32.mrf.mxu0
        %v5619 = vadd.f32 %v5570, %v5618
        %5620 = vmatmul.bf16.gmra.mxu0 %v5231
        %v5621 = vpop.f32.mrf.mxu0
        %v5622 = vadd.f32 %v5573, %v5621
        %v5623 = vpop.f32.mrf.mxu0
        %v5624 = vadd.f32 %v5575, %v5623
        %5625 = vdwg.mxu0
        %v5626 = vmax.f32 %v5489, 0.0
        %v5627 = vmax.f32 %v5587, 0.0
        %v5628 = vmax.f32 %v5491, 0.0
        %v5629 = vmax.f32 %v5589, 0.0
        %v5630 = vmax.f32 %v5494, 0.0
        %v5631 = vmax.f32 %v5592, 0.0
        %v5632 = vmax.f32 %v5496, 0.0
        %v5633 = vmax.f32 %v5594, 0.0
        %v5634 = vmax.f32 %v5499, 0.0
        %v5635 = vmax.f32 %v5597, 0.0
        %v5636 = vmax.f32 %v5501, 0.0
        %v5637 = vmax.f32 %v5599, 0.0
        %v5638 = vmax.f32 %v5504, 0.0
        %v5639 = vmax.f32 %v5602, 0.0
        %v5640 = vmax.f32 %v5506, 0.0
        %v5641 = vmax.f32 %v5604, 0.0
        %v5642 = vmax.f32 %v5509, 0.0
        %v5643 = vmax.f32 %v5607, 0.0
        %v5644 = vmax.f32 %v5511, 0.0
        %v5645 = vmax.f32 %v5609, 0.0
        %v5646 = vmax.f32 %v5514, 0.0
        %v5647 = vmax.f32 %v5612, 0.0
        %v5648 = vmax.f32 %v5516, 0.0
        %v5649 = vmax.f32 %v5614, 0.0
        %v5650 = vmax.f32 %v5519, 0.0
        %v5651 = vmax.f32 %v5617, 0.0
        %v5652 = vmax.f32 %v5521, 0.0
        %v5653 = vmax.f32 %v5619, 0.0
        %v5654 = vmax.f32 %v5524, 0.0
        %v5655 = vmax.f32 %v5622, 0.0
        %v5656 = vmax.f32 %v5526, 0.0
        %v5657 = vmax.f32 %v5624, 0.0
        %v5658 = vpack.c.bf16 %v5628, %v5626
        %v5659 = vpack.c.bf16 %v5629, %v5627
        %v5660 = vpack.c.bf16 %v5632, %v5630
        %v5661 = vpack.c.bf16 %v5633, %v5631
        %v5662 = vpack.c.bf16 %v5636, %v5634
        %v5663 = vpack.c.bf16 %v5637, %v5635
        %v5664 = vpack.c.bf16 %v5640, %v5638
        %v5665 = vpack.c.bf16 %v5641, %v5639
        %v5666 = vpack.c.bf16 %v5644, %v5642
        %v5667 = vpack.c.bf16 %v5645, %v5643
        %v5668 = vpack.c.bf16 %v5648, %v5646
        %v5669 = vpack.c.bf16 %v5649, %v5647
        %v5670 = vpack.c.bf16 %v5652, %v5650
        %v5671 = vpack.c.bf16 %v5653, %v5651
        %v5672 = vpack.c.bf16 %v5656, %v5654
        %v5673 = vpack.c.bf16 %v5657, %v5655
        %v5674 = vld [vmem:[#allocation19] sm:$0xff]
        %v5675 = vld [vmem:[#allocation19 + $0x8] sm:$0xff]
        %v5676 = vld [vmem:[#allocation19 + $0x10] sm:$0xff]
        %v5677 = vld [vmem:[#allocation19 + $0x18] sm:$0xff]
        %v5678 = vld [vmem:[#allocation19 + $0x20] sm:$0xff]
        %v5679 = vld [vmem:[#allocation19 + $0x28] sm:$0xff]
        %v5680 = vld [vmem:[#allocation19 + $0x30] sm:$0xff]
        %v5681 = vld [vmem:[#allocation19 + $0x38] sm:$0xff]
        %v5682 = vld [vmem:[#allocation19 + $0x40] sm:$0xff]
        %v5683 = vld [vmem:[#allocation19 + $0x48] sm:$0xff]
        %v5684 = vld [vmem:[#allocation19 + $0x50] sm:$0xff]
        %v5685 = vld [vmem:[#allocation19 + $0x58] sm:$0xff]
        %v5686 = vld [vmem:[#allocation19 + $0x60] sm:$0xff]
        %v5687 = vld [vmem:[#allocation19 + $0x68] sm:$0xff]
        %v5688 = vld [vmem:[#allocation19 + $0x70] sm:$0xff]
        %v5689 = vld [vmem:[#allocation19 + $0x78] sm:$0xff]
        %v5690 = vld [vmem:[#allocation19 + $0x80] sm:$0xff]
        %v5691 = vld [vmem:[#allocation19 + $0x88] sm:$0xff]
        %v5692 = vld [vmem:[#allocation19 + $0x90] sm:$0xff]
        %v5693 = vld [vmem:[#allocation19 + $0x98] sm:$0xff]
        %v5694 = vld [vmem:[#allocation19 + $0xa0] sm:$0xff]
        %v5695 = vld [vmem:[#allocation19 + $0xa8] sm:$0xff]
        %v5696 = vld [vmem:[#allocation19 + $0xb0] sm:$0xff]
        %v5697 = vld [vmem:[#allocation19 + $0xb8] sm:$0xff]
        %v5698 = vld [vmem:[#allocation19 + $0xc0] sm:$0xff]
        %v5699 = vld [vmem:[#allocation19 + $0xc8] sm:$0xff]
        %v5700 = vld [vmem:[#allocation19 + $0xd0] sm:$0xff]
        %v5701 = vld [vmem:[#allocation19 + $0xd8] sm:$0xff]
        %v5702 = vld [vmem:[#allocation19 + $0xe0] sm:$0xff]
        %v5703 = vld [vmem:[#allocation19 + $0xe8] sm:$0xff]
        %v5704 = vld [vmem:[#allocation19 + $0xf0] sm:$0xff]
        %v5705 = vld [vmem:[#allocation19 + $0xf8] sm:$0xff]
        %v5706 = vld [vmem:[%s31] sm:$0x3]
        %v5708 = vperm.slane %v5706, 0
        %v5709 = vperm.slane %v5706, 1
        %v5744 = vunpack.c.l.b16 %v5674
        %v5745 = vunpack.c.h.b16 %v5674
        %v5746 = vunpack.c.l.b16 %v5675
        %v5747 = vunpack.c.h.b16 %v5675
        %v5748 = vunpack.c.l.b16 %v5676
        %v5749 = vunpack.c.h.b16 %v5676
        %v5750 = vunpack.c.l.b16 %v5677
        %v5751 = vunpack.c.h.b16 %v5677
        %v5752 = vunpack.c.l.b16 %v5678
        %v5753 = vunpack.c.h.b16 %v5678
        %v5754 = vunpack.c.l.b16 %v5679
        %v5755 = vunpack.c.h.b16 %v5679
        %v5756 = vunpack.c.l.b16 %v5680
        %v5757 = vunpack.c.h.b16 %v5680
        %v5758 = vunpack.c.l.b16 %v5681
        %v5759 = vunpack.c.h.b16 %v5681
        %v5760 = vunpack.c.l.b16 %v5682
        %v5761 = vunpack.c.h.b16 %v5682
        %v5762 = vunpack.c.l.b16 %v5683
        %v5763 = vunpack.c.h.b16 %v5683
        %v5764 = vunpack.c.l.b16 %v5684
        %v5765 = vunpack.c.h.b16 %v5684
        %v5766 = vunpack.c.l.b16 %v5685
        %v5767 = vunpack.c.h.b16 %v5685
        %v5768 = vunpack.c.l.b16 %v5686
        %v5769 = vunpack.c.h.b16 %v5686
        %v5770 = vunpack.c.l.b16 %v5687
        %v5771 = vunpack.c.h.b16 %v5687
        %v5772 = vunpack.c.l.b16 %v5688
        %v5773 = vunpack.c.h.b16 %v5688
        %v5774 = vunpack.c.l.b16 %v5689
        %v5775 = vunpack.c.h.b16 %v5689
        %v5776 = vunpack.c.l.b16 %v5690
        %v5777 = vunpack.c.h.b16 %v5690
        %v5778 = vunpack.c.l.b16 %v5691
        %v5779 = vunpack.c.h.b16 %v5691
        %v5780 = vunpack.c.l.b16 %v5692
        %v5781 = vunpack.c.h.b16 %v5692
        %v5782 = vunpack.c.l.b16 %v5693
        %v5783 = vunpack.c.h.b16 %v5693
        %v5784 = vunpack.c.l.b16 %v5694
        %v5785 = vunpack.c.h.b16 %v5694
        %v5786 = vunpack.c.l.b16 %v5695
        %v5787 = vunpack.c.h.b16 %v5695
        %v5788 = vunpack.c.l.b16 %v5696
        %v5789 = vunpack.c.h.b16 %v5696
        %v5790 = vunpack.c.l.b16 %v5697
        %v5791 = vunpack.c.h.b16 %v5697
        %v5792 = vunpack.c.l.b16 %v5698
        %v5793 = vunpack.c.h.b16 %v5698
        %v5794 = vunpack.c.l.b16 %v5699
        %v5795 = vunpack.c.h.b16 %v5699
        %v5796 = vunpack.c.l.b16 %v5700
        %v5797 = vunpack.c.h.b16 %v5700
        %v5798 = vunpack.c.l.b16 %v5701
        %v5799 = vunpack.c.h.b16 %v5701
        %v5800 = vunpack.c.l.b16 %v5702
        %v5801 = vunpack.c.h.b16 %v5702
        %v5802 = vunpack.c.l.b16 %v5703
        %v5803 = vunpack.c.h.b16 %v5703
        %v5804 = vunpack.c.l.b16 %v5704
        %v5805 = vunpack.c.h.b16 %v5704
        %v5806 = vunpack.c.l.b16 %v5705
        %v5807 = vunpack.c.h.b16 %v5705
        %v5808 = vpack.c.b16 %v5746, %v5744
        %v5809 = vpack.c.b16 %v5747, %v5745
        %v5810 = vpack.c.b16 %v5750, %v5748
        %v5811 = vpack.c.b16 %v5751, %v5749
        %v5812 = vpack.c.b16 %v5754, %v5752
        %v5813 = vpack.c.b16 %v5755, %v5753
        %v5814 = vpack.c.b16 %v5758, %v5756
        %v5815 = vpack.c.b16 %v5759, %v5757
        %v5816 = vpack.c.b16 %v5762, %v5760
        %v5817 = vpack.c.b16 %v5763, %v5761
        %v5818 = vpack.c.b16 %v5766, %v5764
        %v5819 = vpack.c.b16 %v5767, %v5765
        %v5820 = vpack.c.b16 %v5770, %v5768
        %v5821 = vpack.c.b16 %v5771, %v5769
        %v5822 = vpack.c.b16 %v5774, %v5772
        %v5823 = vpack.c.b16 %v5775, %v5773
        %v5824 = vpack.c.b16 %v5778, %v5776
        %v5825 = vpack.c.b16 %v5779, %v5777
        %v5826 = vpack.c.b16 %v5782, %v5780
        %v5827 = vpack.c.b16 %v5783, %v5781
        %v5828 = vpack.c.b16 %v5786, %v5784
        %v5829 = vpack.c.b16 %v5787, %v5785
        %v5830 = vpack.c.b16 %v5790, %v5788
        %v5831 = vpack.c.b16 %v5791, %v5789
        %v5832 = vpack.c.b16 %v5794, %v5792
        %v5833 = vpack.c.b16 %v5795, %v5793
        %v5834 = vpack.c.b16 %v5798, %v5796
        %v5835 = vpack.c.b16 %v5799, %v5797
        %v5836 = vpack.c.b16 %v5802, %v5800
        %v5837 = vpack.c.b16 %v5803, %v5801
        %v5838 = vpack.c.b16 %v5806, %v5804
        %v5839 = vpack.c.b16 %v5807, %v5805
        %5872 = vmatpush.bf16.msra.mxu0 %v5822
        %5873 = vmatpush.bf16.msra.mxu0 %v5820
        %5874 = vmatpush.bf16.msra.mxu0 %v5818
        %5875 = vmatpush.bf16.msra.mxu0 %v5816
        %5876 = vmatpush.bf16.msra.mxu0 %v5814
        %5877 = vmatpush.bf16.msra.mxu0 %v5812
        %5878 = vmatpush.bf16.msra.mxu0 %v5810
        %5879 = vmatpush.bf16.msra.mxu0 %v5808
        %5880 = vmatmul.bf16.gmra.mxu0 %v5658
        %v5881 = vpop.f32.mrf.mxu0
        %v5882 = vadd.f32 %v5708, %v5881
        %v5883 = vpop.f32.mrf.mxu0
        %v5884 = vadd.f32 %v5708, %v5883
        %5885 = vmatmul.bf16.gmra.mxu0 %v5660
        %v5886 = vpop.f32.mrf.mxu0
        %v5887 = vadd.f32 %v5708, %v5886
        %v5888 = vpop.f32.mrf.mxu0
        %v5889 = vadd.f32 %v5708, %v5888
        %5890 = vmatmul.bf16.gmra.mxu0 %v5662
        %v5891 = vpop.f32.mrf.mxu0
        %v5892 = vadd.f32 %v5708, %v5891
        %v5893 = vpop.f32.mrf.mxu0
        %v5894 = vadd.f32 %v5708, %v5893
        %5895 = vmatmul.bf16.gmra.mxu0 %v5664
        %v5896 = vpop.f32.mrf.mxu0
        %v5897 = vadd.f32 %v5708, %v5896
        %v5898 = vpop.f32.mrf.mxu0
        %v5899 = vadd.f32 %v5708, %v5898
        %5900 = vmatmul.bf16.gmra.mxu0 %v5666
        %v5901 = vpop.f32.mrf.mxu0
        %v5902 = vadd.f32 %v5708, %v5901
        %v5903 = vpop.f32.mrf.mxu0
        %v5904 = vadd.f32 %v5708, %v5903
        %5905 = vmatmul.bf16.gmra.mxu0 %v5668
        %v5906 = vpop.f32.mrf.mxu0
        %v5907 = vadd.f32 %v5708, %v5906
        %v5908 = vpop.f32.mrf.mxu0
        %v5909 = vadd.f32 %v5708, %v5908
        %5910 = vmatmul.bf16.gmra.mxu0 %v5670
        %v5911 = vpop.f32.mrf.mxu0
        %v5912 = vadd.f32 %v5708, %v5911
        %v5913 = vpop.f32.mrf.mxu0
        %v5914 = vadd.f32 %v5708, %v5913
        %5915 = vmatmul.bf16.gmra.mxu0 %v5672
        %v5916 = vpop.f32.mrf.mxu0
        %v5917 = vadd.f32 %v5708, %v5916
        %v5918 = vpop.f32.mrf.mxu0
        %v5919 = vadd.f32 %v5708, %v5918
        %5920 = vdwg.mxu0
        %5921 = vmatpush.bf16.msra.mxu0 %v5838
        %5922 = vmatpush.bf16.msra.mxu0 %v5836
        %5923 = vmatpush.bf16.msra.mxu0 %v5834
        %5924 = vmatpush.bf16.msra.mxu0 %v5832
        %5925 = vmatpush.bf16.msra.mxu0 %v5830
        %5926 = vmatpush.bf16.msra.mxu0 %v5828
        %5927 = vmatpush.bf16.msra.mxu0 %v5826
        %5928 = vmatpush.bf16.msra.mxu0 %v5824
        %5929 = vmatmul.bf16.gmra.mxu0 %v5659
        %v5930 = vpop.f32.mrf.mxu0
        %v5931 = vadd.f32 %v5882, %v5930
        %v5932 = vpop.f32.mrf.mxu0
        %v5933 = vadd.f32 %v5884, %v5932
        %5934 = vmatmul.bf16.gmra.mxu0 %v5661
        %v5935 = vpop.f32.mrf.mxu0
        %v5936 = vadd.f32 %v5887, %v5935
        %v5937 = vpop.f32.mrf.mxu0
        %v5938 = vadd.f32 %v5889, %v5937
        %5939 = vmatmul.bf16.gmra.mxu0 %v5663
        %v5940 = vpop.f32.mrf.mxu0
        %v5941 = vadd.f32 %v5892, %v5940
        %v5942 = vpop.f32.mrf.mxu0
        %v5943 = vadd.f32 %v5894, %v5942
        %5944 = vmatmul.bf16.gmra.mxu0 %v5665
        %v5945 = vpop.f32.mrf.mxu0
        %v5946 = vadd.f32 %v5897, %v5945
        %v5947 = vpop.f32.mrf.mxu0
        %v5948 = vadd.f32 %v5899, %v5947
        %5949 = vmatmul.bf16.gmra.mxu0 %v5667
        %v5950 = vpop.f32.mrf.mxu0
        %v5951 = vadd.f32 %v5902, %v5950
        %v5952 = vpop.f32.mrf.mxu0
        %v5953 = vadd.f32 %v5904, %v5952
        %5954 = vmatmul.bf16.gmra.mxu0 %v5669
        %v5955 = vpop.f32.mrf.mxu0
        %v5956 = vadd.f32 %v5907, %v5955
        %v5957 = vpop.f32.mrf.mxu0
        %v5958 = vadd.f32 %v5909, %v5957
        %5959 = vmatmul.bf16.gmra.mxu0 %v5671
        %v5960 = vpop.f32.mrf.mxu0
        %v5961 = vadd.f32 %v5912, %v5960
        %v5962 = vpop.f32.mrf.mxu0
        %v5963 = vadd.f32 %v5914, %v5962
        %5964 = vmatmul.bf16.gmra.mxu0 %v5673
        %v5965 = vpop.f32.mrf.mxu0
        %v5966 = vadd.f32 %v5917, %v5965
        %v5967 = vpop.f32.mrf.mxu0
        %v5968 = vadd.f32 %v5919, %v5967
        %5969 = vdwg.mxu0
        %5970 = vmatpush.bf16.msra.mxu0 %v5823
        %5971 = vmatpush.bf16.msra.mxu0 %v5821
        %5972 = vmatpush.bf16.msra.mxu0 %v5819
        %5973 = vmatpush.bf16.msra.mxu0 %v5817
        %5974 = vmatpush.bf16.msra.mxu0 %v5815
        %5975 = vmatpush.bf16.msra.mxu0 %v5813
        %5976 = vmatpush.bf16.msra.mxu0 %v5811
        %5977 = vmatpush.bf16.msra.mxu0 %v5809
        %5978 = vmatmul.bf16.gmra.mxu0 %v5658
        %v5979 = vpop.f32.mrf.mxu0
        %v5980 = vadd.f32 %v5709, %v5979
        %v5981 = vpop.f32.mrf.mxu0
        %v5982 = vadd.f32 %v5709, %v5981
        %5983 = vmatmul.bf16.gmra.mxu0 %v5660
        %v5984 = vpop.f32.mrf.mxu0
        %v5985 = vadd.f32 %v5709, %v5984
        %v5986 = vpop.f32.mrf.mxu0
        %v5987 = vadd.f32 %v5709, %v5986
        %5988 = vmatmul.bf16.gmra.mxu0 %v5662
        %v5989 = vpop.f32.mrf.mxu0
        %v5990 = vadd.f32 %v5709, %v5989
        %v5991 = vpop.f32.mrf.mxu0
        %v5992 = vadd.f32 %v5709, %v5991
        %5993 = vmatmul.bf16.gmra.mxu0 %v5664
        %v5994 = vpop.f32.mrf.mxu0
        %v5995 = vadd.f32 %v5709, %v5994
        %v5996 = vpop.f32.mrf.mxu0
        %v5997 = vadd.f32 %v5709, %v5996
        %5998 = vmatmul.bf16.gmra.mxu0 %v5666
        %v5999 = vpop.f32.mrf.mxu0
        %v6000 = vadd.f32 %v5709, %v5999
        %v6001 = vpop.f32.mrf.mxu0
        %v6002 = vadd.f32 %v5709, %v6001
        %6003 = vmatmul.bf16.gmra.mxu0 %v5668
        %v6004 = vpop.f32.mrf.mxu0
        %v6005 = vadd.f32 %v5709, %v6004
        %v6006 = vpop.f32.mrf.mxu0
        %v6007 = vadd.f32 %v5709, %v6006
        %6008 = vmatmul.bf16.gmra.mxu0 %v5670
        %v6009 = vpop.f32.mrf.mxu0
        %v6010 = vadd.f32 %v5709, %v6009
        %v6011 = vpop.f32.mrf.mxu0
        %v6012 = vadd.f32 %v5709, %v6011
        %6013 = vmatmul.bf16.gmra.mxu0 %v5672
        %v6014 = vpop.f32.mrf.mxu0
        %v6015 = vadd.f32 %v5709, %v6014
        %v6016 = vpop.f32.mrf.mxu0
        %v6017 = vadd.f32 %v5709, %v6016
        %6018 = vdwg.mxu0
        %6019 = vmatpush.bf16.msra.mxu0 %v5839
        %6020 = vmatpush.bf16.msra.mxu0 %v5837
        %6021 = vmatpush.bf16.msra.mxu0 %v5835
        %6022 = vmatpush.bf16.msra.mxu0 %v5833
        %6023 = vmatpush.bf16.msra.mxu0 %v5831
        %6024 = vmatpush.bf16.msra.mxu0 %v5829
        %6025 = vmatpush.bf16.msra.mxu0 %v5827
        %6026 = vmatpush.bf16.msra.mxu0 %v5825
        %6027 = vmatmul.bf16.gmra.mxu0 %v5659
        %v6028 = vpop.f32.mrf.mxu0
        %v6029 = vadd.f32 %v5980, %v6028
        %v6030 = vpop.f32.mrf.mxu0
        %v6031 = vadd.f32 %v5982, %v6030
        %6032 = vmatmul.bf16.gmra.mxu0 %v5661
        %v6033 = vpop.f32.mrf.mxu0
        %v6034 = vadd.f32 %v5985, %v6033
        %v6035 = vpop.f32.mrf.mxu0
        %v6036 = vadd.f32 %v5987, %v6035
        %6037 = vmatmul.bf16.gmra.mxu0 %v5663
        %v6038 = vpop.f32.mrf.mxu0
        %v6039 = vadd.f32 %v5990, %v6038
        %v6040 = vpop.f32.mrf.mxu0
        %v6041 = vadd.f32 %v5992, %v6040
        %6042 = vmatmul.bf16.gmra.mxu0 %v5665
        %v6043 = vpop.f32.mrf.mxu0
        %v6044 = vadd.f32 %v5995, %v6043
        %v6045 = vpop.f32.mrf.mxu0
        %v6046 = vadd.f32 %v5997, %v6045
        %6047 = vmatmul.bf16.gmra.mxu0 %v5667
        %v6048 = vpop.f32.mrf.mxu0
        %v6049 = vadd.f32 %v6000, %v6048
        %v6050 = vpop.f32.mrf.mxu0
        %v6051 = vadd.f32 %v6002, %v6050
        %6052 = vmatmul.bf16.gmra.mxu0 %v5669
        %v6053 = vpop.f32.mrf.mxu0
        %v6054 = vadd.f32 %v6005, %v6053
        %v6055 = vpop.f32.mrf.mxu0
        %v6056 = vadd.f32 %v6007, %v6055
        %6057 = vmatmul.bf16.gmra.mxu0 %v5671
        %v6058 = vpop.f32.mrf.mxu0
        %v6059 = vadd.f32 %v6010, %v6058
        %v6060 = vpop.f32.mrf.mxu0
        %v6061 = vadd.f32 %v6012, %v6060
        %6062 = vmatmul.bf16.gmra.mxu0 %v5673
        %v6063 = vpop.f32.mrf.mxu0
        %v6064 = vadd.f32 %v6015, %v6063
        %v6065 = vpop.f32.mrf.mxu0
        %v6066 = vadd.f32 %v6017, %v6065
        %6067 = vdwg.mxu0
        %v6068 = vmax.f32 %v5931, 0.0
        %v6069 = vmax.f32 %v6029, 0.0
        %v6070 = vmax.f32 %v5933, 0.0
        %v6071 = vmax.f32 %v6031, 0.0
        %v6072 = vmax.f32 %v5936, 0.0
        %v6073 = vmax.f32 %v6034, 0.0
        %v6074 = vmax.f32 %v5938, 0.0
        %v6075 = vmax.f32 %v6036, 0.0
        %v6076 = vmax.f32 %v5941, 0.0
        %v6077 = vmax.f32 %v6039, 0.0
        %v6078 = vmax.f32 %v5943, 0.0
        %v6079 = vmax.f32 %v6041, 0.0
        %v6080 = vmax.f32 %v5946, 0.0
        %v6081 = vmax.f32 %v6044, 0.0
        %v6082 = vmax.f32 %v5948, 0.0
        %v6083 = vmax.f32 %v6046, 0.0
        %v6084 = vmax.f32 %v5951, 0.0
        %v6085 = vmax.f32 %v6049, 0.0
        %v6086 = vmax.f32 %v5953, 0.0
        %v6087 = vmax.f32 %v6051, 0.0
        %v6088 = vmax.f32 %v5956, 0.0
        %v6089 = vmax.f32 %v6054, 0.0
        %v6090 = vmax.f32 %v5958, 0.0
        %v6091 = vmax.f32 %v6056, 0.0
        %v6092 = vmax.f32 %v5961, 0.0
        %v6093 = vmax.f32 %v6059, 0.0
        %v6094 = vmax.f32 %v5963, 0.0
        %v6095 = vmax.f32 %v6061, 0.0
        %v6096 = vmax.f32 %v5966, 0.0
        %v6097 = vmax.f32 %v6064, 0.0
        %v6098 = vmax.f32 %v5968, 0.0
        %v6099 = vmax.f32 %v6066, 0.0
        %v6100 = vld [vmem:[#allocation20] sm:$0xff]
        %v6101 = vld [vmem:[#allocation20 + $0x8] sm:$0xff]
        %v6102 = vld [vmem:[#allocation20 + $0x10] sm:$0xff]
        %v6103 = vld [vmem:[#allocation20 + $0x18] sm:$0xff]
        %v6104 = vld [vmem:[#allocation20 + $0x20] sm:$0xff]
        %v6105 = vld [vmem:[#allocation20 + $0x28] sm:$0xff]
        %v6106 = vld [vmem:[#allocation20 + $0x30] sm:$0xff]
        %v6107 = vld [vmem:[#allocation20 + $0x38] sm:$0xff]
        %v6108 = vld [vmem:[#allocation20 + $0x40] sm:$0xff]
        %v6109 = vld [vmem:[#allocation20 + $0x48] sm:$0xff]
        %v6110 = vld [vmem:[#allocation20 + $0x50] sm:$0xff]
        %v6111 = vld [vmem:[#allocation20 + $0x58] sm:$0xff]
        %v6112 = vld [vmem:[#allocation20 + $0x60] sm:$0xff]
        %v6113 = vld [vmem:[#allocation20 + $0x68] sm:$0xff]
        %v6114 = vld [vmem:[#allocation20 + $0x70] sm:$0xff]
        %v6115 = vld [vmem:[#allocation20 + $0x78] sm:$0xff]
        %v6116 = vpack.c.bf16 %v6070, %v6068
        %v6117 = vpack.c.bf16 %v6071, %v6069
        %v6118 = vpack.c.bf16 %v6074, %v6072
        %v6119 = vpack.c.bf16 %v6075, %v6073
        %v6120 = vpack.c.bf16 %v6078, %v6076
        %v6121 = vpack.c.bf16 %v6079, %v6077
        %v6122 = vpack.c.bf16 %v6082, %v6080
        %v6123 = vpack.c.bf16 %v6083, %v6081
        %v6124 = vpack.c.bf16 %v6086, %v6084
        %v6125 = vpack.c.bf16 %v6087, %v6085
        %v6126 = vpack.c.bf16 %v6090, %v6088
        %v6127 = vpack.c.bf16 %v6091, %v6089
        %v6128 = vpack.c.bf16 %v6094, %v6092
        %v6129 = vpack.c.bf16 %v6095, %v6093
        %v6130 = vpack.c.bf16 %v6098, %v6096
        %v6131 = vpack.c.bf16 %v6099, %v6097
        %v6132 = vld [vmem:[#allocation22] sm:$0xff]
        %v6133 = vld [vmem:[#allocation22 + $0x8] sm:$0xff]
        %v6134 = vld [vmem:[#allocation22 + $0x10] sm:$0xff]
        %v6135 = vld [vmem:[#allocation22 + $0x18] sm:$0xff]
        %v6136 = vld [vmem:[#allocation22 + $0x20] sm:$0xff]
        %v6137 = vld [vmem:[#allocation22 + $0x28] sm:$0xff]
        %v6138 = vld [vmem:[#allocation22 + $0x30] sm:$0xff]
        %v6139 = vld [vmem:[#allocation22 + $0x38] sm:$0xff]
        %v6140 = vld [vmem:[#allocation22 + $0x40] sm:$0xff]
        %v6141 = vld [vmem:[#allocation22 + $0x48] sm:$0xff]
        %v6142 = vld [vmem:[#allocation22 + $0x50] sm:$0xff]
        %v6143 = vld [vmem:[#allocation22 + $0x58] sm:$0xff]
        %v6144 = vld [vmem:[#allocation22 + $0x60] sm:$0xff]
        %v6145 = vld [vmem:[#allocation22 + $0x68] sm:$0xff]
        %v6146 = vld [vmem:[#allocation22 + $0x70] sm:$0xff]
        %v6147 = vld [vmem:[#allocation22 + $0x78] sm:$0xff]
        %v6148 = vld [vmem:[#allocation22 + $0x80] sm:$0xff]
        %v6149 = vld [vmem:[#allocation22 + $0x88] sm:$0xff]
        %v6150 = vld [vmem:[#allocation22 + $0x90] sm:$0xff]
        %v6151 = vld [vmem:[#allocation22 + $0x98] sm:$0xff]
        %v6152 = vld [vmem:[#allocation22 + $0xa0] sm:$0xff]
        %v6153 = vld [vmem:[#allocation22 + $0xa8] sm:$0xff]
        %v6154 = vld [vmem:[#allocation22 + $0xb0] sm:$0xff]
        %v6155 = vld [vmem:[#allocation22 + $0xb8] sm:$0xff]
        %v6156 = vld [vmem:[#allocation22 + $0xc0] sm:$0xff]
        %v6157 = vld [vmem:[#allocation22 + $0xc8] sm:$0xff]
        %v6158 = vld [vmem:[#allocation22 + $0xd0] sm:$0xff]
        %v6159 = vld [vmem:[#allocation22 + $0xd8] sm:$0xff]
        %v6160 = vld [vmem:[#allocation22 + $0xe0] sm:$0xff]
        %v6161 = vld [vmem:[#allocation22 + $0xe8] sm:$0xff]
        %v6162 = vld [vmem:[#allocation22 + $0xf0] sm:$0xff]
        %v6163 = vld [vmem:[#allocation22 + $0xf8] sm:$0xff]
        %v6196 = vunpack.c.l.b16 %v6132
        %v6197 = vunpack.c.h.b16 %v6132
        %v6198 = vunpack.c.l.b16 %v6133
        %v6199 = vunpack.c.h.b16 %v6133
        %v6200 = vunpack.c.l.b16 %v6134
        %v6201 = vunpack.c.h.b16 %v6134
        %v6202 = vunpack.c.l.b16 %v6135
        %v6203 = vunpack.c.h.b16 %v6135
        %v6204 = vunpack.c.l.b16 %v6136
        %v6205 = vunpack.c.h.b16 %v6136
        %v6206 = vunpack.c.l.b16 %v6137
        %v6207 = vunpack.c.h.b16 %v6137
        %v6208 = vunpack.c.l.b16 %v6138
        %v6209 = vunpack.c.h.b16 %v6138
        %v6210 = vunpack.c.l.b16 %v6139
        %v6211 = vunpack.c.h.b16 %v6139
        %v6212 = vunpack.c.l.b16 %v6140
        %v6213 = vunpack.c.h.b16 %v6140
        %v6214 = vunpack.c.l.b16 %v6141
        %v6215 = vunpack.c.h.b16 %v6141
        %v6216 = vunpack.c.l.b16 %v6142
        %v6217 = vunpack.c.h.b16 %v6142
        %v6218 = vunpack.c.l.b16 %v6143
        %v6219 = vunpack.c.h.b16 %v6143
        %v6220 = vunpack.c.l.b16 %v6144
        %v6221 = vunpack.c.h.b16 %v6144
        %v6222 = vunpack.c.l.b16 %v6145
        %v6223 = vunpack.c.h.b16 %v6145
        %v6224 = vunpack.c.l.b16 %v6146
        %v6225 = vunpack.c.h.b16 %v6146
        %v6226 = vunpack.c.l.b16 %v6147
        %v6227 = vunpack.c.h.b16 %v6147
        %v6228 = vunpack.c.l.b16 %v6148
        %v6229 = vunpack.c.h.b16 %v6148
        %v6230 = vunpack.c.l.b16 %v6149
        %v6231 = vunpack.c.h.b16 %v6149
        %v6232 = vunpack.c.l.b16 %v6150
        %v6233 = vunpack.c.h.b16 %v6150
        %v6234 = vunpack.c.l.b16 %v6151
        %v6235 = vunpack.c.h.b16 %v6151
        %v6236 = vunpack.c.l.b16 %v6152
        %v6237 = vunpack.c.h.b16 %v6152
        %v6238 = vunpack.c.l.b16 %v6153
        %v6239 = vunpack.c.h.b16 %v6153
        %v6240 = vunpack.c.l.b16 %v6154
        %v6241 = vunpack.c.h.b16 %v6154
        %v6242 = vunpack.c.l.b16 %v6155
        %v6243 = vunpack.c.h.b16 %v6155
        %v6244 = vunpack.c.l.b16 %v6156
        %v6245 = vunpack.c.h.b16 %v6156
        %v6246 = vunpack.c.l.b16 %v6157
        %v6247 = vunpack.c.h.b16 %v6157
        %v6248 = vunpack.c.l.b16 %v6158
        %v6249 = vunpack.c.h.b16 %v6158
        %v6250 = vunpack.c.l.b16 %v6159
        %v6251 = vunpack.c.h.b16 %v6159
        %v6252 = vunpack.c.l.b16 %v6160
        %v6253 = vunpack.c.h.b16 %v6160
        %v6254 = vunpack.c.l.b16 %v6161
        %v6255 = vunpack.c.h.b16 %v6161
        %v6256 = vunpack.c.l.b16 %v6162
        %v6257 = vunpack.c.h.b16 %v6162
        %v6258 = vunpack.c.l.b16 %v6163
        %v6259 = vunpack.c.h.b16 %v6163
        %v6260 = vpack.c.b16 %v6198, %v6196
        %v6261 = vpack.c.b16 %v6199, %v6197
        %v6262 = vpack.c.b16 %v6202, %v6200
        %v6263 = vpack.c.b16 %v6203, %v6201
        %v6264 = vpack.c.b16 %v6206, %v6204
        %v6265 = vpack.c.b16 %v6207, %v6205
        %v6266 = vpack.c.b16 %v6210, %v6208
        %v6267 = vpack.c.b16 %v6211, %v6209
        %v6268 = vpack.c.b16 %v6214, %v6212
        %v6269 = vpack.c.b16 %v6215, %v6213
        %v6270 = vpack.c.b16 %v6218, %v6216
        %v6271 = vpack.c.b16 %v6219, %v6217
        %v6272 = vpack.c.b16 %v6222, %v6220
        %v6273 = vpack.c.b16 %v6223, %v6221
        %v6274 = vpack.c.b16 %v6226, %v6224
        %v6275 = vpack.c.b16 %v6227, %v6225
        %v6276 = vpack.c.b16 %v6230, %v6228
        %v6277 = vpack.c.b16 %v6231, %v6229
        %v6278 = vpack.c.b16 %v6234, %v6232
        %v6279 = vpack.c.b16 %v6235, %v6233
        %v6280 = vpack.c.b16 %v6238, %v6236
        %v6281 = vpack.c.b16 %v6239, %v6237
        %v6282 = vpack.c.b16 %v6242, %v6240
        %v6283 = vpack.c.b16 %v6243, %v6241
        %v6284 = vpack.c.b16 %v6246, %v6244
        %v6285 = vpack.c.b16 %v6247, %v6245
        %v6286 = vpack.c.b16 %v6250, %v6248
        %v6287 = vpack.c.b16 %v6251, %v6249
        %v6288 = vpack.c.b16 %v6254, %v6252
        %v6289 = vpack.c.b16 %v6255, %v6253
        %v6290 = vpack.c.b16 %v6258, %v6256
        %v6291 = vpack.c.b16 %v6259, %v6257
        %6324 = vmatpush.bf16.msra.mxu0 %v6274
        %6325 = vmatpush.bf16.msra.mxu0 %v6272
        %6326 = vmatpush.bf16.msra.mxu0 %v6270
        %6327 = vmatpush.bf16.msra.mxu0 %v6268
        %6328 = vmatpush.bf16.msra.mxu0 %v6266
        %6329 = vmatpush.bf16.msra.mxu0 %v6264
        %6330 = vmatpush.bf16.msra.mxu0 %v6262
        %6331 = vmatpush.bf16.msra.mxu0 %v6260
        %6332 = vmatmul.bf16.gmra.mxu0 %v6116
        %v6333 = vpop.f32.mrf.mxu0
        %v6334 = vadd.f32 0.0, %v6333
        %v6335 = vpop.f32.mrf.mxu0
        %v6336 = vadd.f32 0.0, %v6335
        %6337 = vmatmul.bf16.gmra.mxu0 %v6118
        %v6338 = vpop.f32.mrf.mxu0
        %v6339 = vadd.f32 0.0, %v6338
        %v6340 = vpop.f32.mrf.mxu0
        %v6341 = vadd.f32 0.0, %v6340
        %6342 = vmatmul.bf16.gmra.mxu0 %v6120
        %v6343 = vpop.f32.mrf.mxu0
        %v6344 = vadd.f32 0.0, %v6343
        %v6345 = vpop.f32.mrf.mxu0
        %v6346 = vadd.f32 0.0, %v6345
        %6347 = vmatmul.bf16.gmra.mxu0 %v6122
        %v6348 = vpop.f32.mrf.mxu0
        %v6349 = vadd.f32 0.0, %v6348
        %v6350 = vpop.f32.mrf.mxu0
        %v6351 = vadd.f32 0.0, %v6350
        %6352 = vmatmul.bf16.gmra.mxu0 %v6124
        %v6353 = vpop.f32.mrf.mxu0
        %v6354 = vadd.f32 0.0, %v6353
        %v6355 = vpop.f32.mrf.mxu0
        %v6356 = vadd.f32 0.0, %v6355
        %6357 = vmatmul.bf16.gmra.mxu0 %v6126
        %v6358 = vpop.f32.mrf.mxu0
        %v6359 = vadd.f32 0.0, %v6358
        %v6360 = vpop.f32.mrf.mxu0
        %v6361 = vadd.f32 0.0, %v6360
        %6362 = vmatmul.bf16.gmra.mxu0 %v6128
        %v6363 = vpop.f32.mrf.mxu0
        %v6364 = vadd.f32 0.0, %v6363
        %v6365 = vpop.f32.mrf.mxu0
        %v6366 = vadd.f32 0.0, %v6365
        %6367 = vmatmul.bf16.gmra.mxu0 %v6130
        %v6368 = vpop.f32.mrf.mxu0
        %v6369 = vadd.f32 0.0, %v6368
        %v6370 = vpop.f32.mrf.mxu0
        %v6371 = vadd.f32 0.0, %v6370
        %6372 = vdwg.mxu0
        %6373 = vmatpush.bf16.msra.mxu0 %v6290
        %6374 = vmatpush.bf16.msra.mxu0 %v6288
        %6375 = vmatpush.bf16.msra.mxu0 %v6286
        %6376 = vmatpush.bf16.msra.mxu0 %v6284
        %6377 = vmatpush.bf16.msra.mxu0 %v6282
        %6378 = vmatpush.bf16.msra.mxu0 %v6280
        %6379 = vmatpush.bf16.msra.mxu0 %v6278
        %6380 = vmatpush.bf16.msra.mxu0 %v6276
        %6381 = vmatmul.bf16.gmra.mxu0 %v6117
        %v6382 = vpop.f32.mrf.mxu0
        %v6383 = vadd.f32 %v6334, %v6382
        %v6384 = vpop.f32.mrf.mxu0
        %v6385 = vadd.f32 %v6336, %v6384
        %6386 = vmatmul.bf16.gmra.mxu0 %v6119
        %v6387 = vpop.f32.mrf.mxu0
        %v6388 = vadd.f32 %v6339, %v6387
        %v6389 = vpop.f32.mrf.mxu0
        %v6390 = vadd.f32 %v6341, %v6389
        %6391 = vmatmul.bf16.gmra.mxu0 %v6121
        %v6392 = vpop.f32.mrf.mxu0
        %v6393 = vadd.f32 %v6344, %v6392
        %v6394 = vpop.f32.mrf.mxu0
        %v6395 = vadd.f32 %v6346, %v6394
        %6396 = vmatmul.bf16.gmra.mxu0 %v6123
        %v6397 = vpop.f32.mrf.mxu0
        %v6398 = vadd.f32 %v6349, %v6397
        %v6399 = vpop.f32.mrf.mxu0
        %v6400 = vadd.f32 %v6351, %v6399
        %6401 = vmatmul.bf16.gmra.mxu0 %v6125
        %v6402 = vpop.f32.mrf.mxu0
        %v6403 = vadd.f32 %v6354, %v6402
        %v6404 = vpop.f32.mrf.mxu0
        %v6405 = vadd.f32 %v6356, %v6404
        %6406 = vmatmul.bf16.gmra.mxu0 %v6127
        %v6407 = vpop.f32.mrf.mxu0
        %v6408 = vadd.f32 %v6359, %v6407
        %v6409 = vpop.f32.mrf.mxu0
        %v6410 = vadd.f32 %v6361, %v6409
        %6411 = vmatmul.bf16.gmra.mxu0 %v6129
        %v6412 = vpop.f32.mrf.mxu0
        %v6413 = vadd.f32 %v6364, %v6412
        %v6414 = vpop.f32.mrf.mxu0
        %v6415 = vadd.f32 %v6366, %v6414
        %6416 = vmatmul.bf16.gmra.mxu0 %v6131
        %v6417 = vpop.f32.mrf.mxu0
        %v6418 = vadd.f32 %v6369, %v6417
        %v6419 = vpop.f32.mrf.mxu0
        %v6420 = vadd.f32 %v6371, %v6419
        %6421 = vdwg.mxu0
        %6422 = vmatpush.bf16.msra.mxu0 %v6275
        %6423 = vmatpush.bf16.msra.mxu0 %v6273
        %6424 = vmatpush.bf16.msra.mxu0 %v6271
        %6425 = vmatpush.bf16.msra.mxu0 %v6269
        %6426 = vmatpush.bf16.msra.mxu0 %v6267
        %6427 = vmatpush.bf16.msra.mxu0 %v6265
        %6428 = vmatpush.bf16.msra.mxu0 %v6263
        %6429 = vmatpush.bf16.msra.mxu0 %v6261
        %6430 = vmatmul.bf16.gmra.mxu0 %v6116
        %v6431 = vpop.f32.mrf.mxu0
        %v6432 = vadd.f32 0.0, %v6431
        %v6433 = vpop.f32.mrf.mxu0
        %v6434 = vadd.f32 0.0, %v6433
        %6435 = vmatmul.bf16.gmra.mxu0 %v6118
        %v6436 = vpop.f32.mrf.mxu0
        %v6437 = vadd.f32 0.0, %v6436
        %v6438 = vpop.f32.mrf.mxu0
        %v6439 = vadd.f32 0.0, %v6438
        %6440 = vmatmul.bf16.gmra.mxu0 %v6120
        %v6441 = vpop.f32.mrf.mxu0
        %v6442 = vadd.f32 0.0, %v6441
        %v6443 = vpop.f32.mrf.mxu0
        %v6444 = vadd.f32 0.0, %v6443
        %6445 = vmatmul.bf16.gmra.mxu0 %v6122
        %v6446 = vpop.f32.mrf.mxu0
        %v6447 = vadd.f32 0.0, %v6446
        %v6448 = vpop.f32.mrf.mxu0
        %v6449 = vadd.f32 0.0, %v6448
        %6450 = vmatmul.bf16.gmra.mxu0 %v6124
        %v6451 = vpop.f32.mrf.mxu0
        %v6452 = vadd.f32 0.0, %v6451
        %v6453 = vpop.f32.mrf.mxu0
        %v6454 = vadd.f32 0.0, %v6453
        %6455 = vmatmul.bf16.gmra.mxu0 %v6126
        %v6456 = vpop.f32.mrf.mxu0
        %v6457 = vadd.f32 0.0, %v6456
        %v6458 = vpop.f32.mrf.mxu0
        %v6459 = vadd.f32 0.0, %v6458
        %6460 = vmatmul.bf16.gmra.mxu0 %v6128
        %v6461 = vpop.f32.mrf.mxu0
        %v6462 = vadd.f32 0.0, %v6461
        %v6463 = vpop.f32.mrf.mxu0
        %v6464 = vadd.f32 0.0, %v6463
        %6465 = vmatmul.bf16.gmra.mxu0 %v6130
        %v6466 = vpop.f32.mrf.mxu0
        %v6467 = vadd.f32 0.0, %v6466
        %v6468 = vpop.f32.mrf.mxu0
        %v6469 = vadd.f32 0.0, %v6468
        %6470 = vdwg.mxu0
        %6471 = vmatpush.bf16.msra.mxu0 %v6291
        %6472 = vmatpush.bf16.msra.mxu0 %v6289
        %6473 = vmatpush.bf16.msra.mxu0 %v6287
        %6474 = vmatpush.bf16.msra.mxu0 %v6285
        %6475 = vmatpush.bf16.msra.mxu0 %v6283
        %6476 = vmatpush.bf16.msra.mxu0 %v6281
        %6477 = vmatpush.bf16.msra.mxu0 %v6279
        %6478 = vmatpush.bf16.msra.mxu0 %v6277
        %6479 = vmatmul.bf16.gmra.mxu0 %v6117
        %v6480 = vpop.f32.mrf.mxu0
        %v6481 = vadd.f32 %v6432, %v6480
        %v6482 = vpop.f32.mrf.mxu0
        %v6483 = vadd.f32 %v6434, %v6482
        %6484 = vmatmul.bf16.gmra.mxu0 %v6119
        %v6485 = vpop.f32.mrf.mxu0
        %v6486 = vadd.f32 %v6437, %v6485
        %v6487 = vpop.f32.mrf.mxu0
        %v6488 = vadd.f32 %v6439, %v6487
        %6489 = vmatmul.bf16.gmra.mxu0 %v6121
        %v6490 = vpop.f32.mrf.mxu0
        %v6491 = vadd.f32 %v6442, %v6490
        %v6492 = vpop.f32.mrf.mxu0
        %v6493 = vadd.f32 %v6444, %v6492
        %6494 = vmatmul.bf16.gmra.mxu0 %v6123
        %v6495 = vpop.f32.mrf.mxu0
        %v6496 = vadd.f32 %v6447, %v6495
        %v6497 = vpop.f32.mrf.mxu0
        %v6498 = vadd.f32 %v6449, %v6497
        %6499 = vmatmul.bf16.gmra.mxu0 %v6125
        %v6500 = vpop.f32.mrf.mxu0
        %v6501 = vadd.f32 %v6452, %v6500
        %v6502 = vpop.f32.mrf.mxu0
        %v6503 = vadd.f32 %v6454, %v6502
        %6504 = vmatmul.bf16.gmra.mxu0 %v6127
        %v6505 = vpop.f32.mrf.mxu0
        %v6506 = vadd.f32 %v6457, %v6505
        %v6507 = vpop.f32.mrf.mxu0
        %v6508 = vadd.f32 %v6459, %v6507
        %6509 = vmatmul.bf16.gmra.mxu0 %v6129
        %v6510 = vpop.f32.mrf.mxu0
        %v6511 = vadd.f32 %v6462, %v6510
        %v6512 = vpop.f32.mrf.mxu0
        %v6513 = vadd.f32 %v6464, %v6512
        %6514 = vmatmul.bf16.gmra.mxu0 %v6131
        %v6515 = vpop.f32.mrf.mxu0
        %v6516 = vadd.f32 %v6467, %v6515
        %v6517 = vpop.f32.mrf.mxu0
        %v6518 = vadd.f32 %v6469, %v6517
        %6519 = vdwg.mxu0
        %v6536 = vunpack.c.l.b16 %v6100
        %v6537 = vunpack.c.h.b16 %v6100
        %v6538 = vunpack.c.l.b16 %v6101
        %v6539 = vunpack.c.h.b16 %v6101
        %v6540 = vunpack.c.l.b16 %v6102
        %v6541 = vunpack.c.h.b16 %v6102
        %v6542 = vunpack.c.l.b16 %v6103
        %v6543 = vunpack.c.h.b16 %v6103
        %v6544 = vunpack.c.l.b16 %v6104
        %v6545 = vunpack.c.h.b16 %v6104
        %v6546 = vunpack.c.l.b16 %v6105
        %v6547 = vunpack.c.h.b16 %v6105
        %v6548 = vunpack.c.l.b16 %v6106
        %v6549 = vunpack.c.h.b16 %v6106
        %v6550 = vunpack.c.l.b16 %v6107
        %v6551 = vunpack.c.h.b16 %v6107
        %v6552 = vunpack.c.l.b16 %v6108
        %v6553 = vunpack.c.h.b16 %v6108
        %v6554 = vunpack.c.l.b16 %v6109
        %v6555 = vunpack.c.h.b16 %v6109
        %v6556 = vunpack.c.l.b16 %v6110
        %v6557 = vunpack.c.h.b16 %v6110
        %v6558 = vunpack.c.l.b16 %v6111
        %v6559 = vunpack.c.h.b16 %v6111
        %v6560 = vunpack.c.l.b16 %v6112
        %v6561 = vunpack.c.h.b16 %v6112
        %v6562 = vunpack.c.l.b16 %v6113
        %v6563 = vunpack.c.h.b16 %v6113
        %v6564 = vunpack.c.l.b16 %v6114
        %v6565 = vunpack.c.h.b16 %v6114
        %v6566 = vunpack.c.l.b16 %v6115
        %v6567 = vunpack.c.h.b16 %v6115
        %v6568 = vpack.c.b16 %v6538, %v6536
        %v6569 = vpack.c.b16 %v6539, %v6537
        %v6570 = vpack.c.b16 %v6542, %v6540
        %v6571 = vpack.c.b16 %v6543, %v6541
        %v6572 = vpack.c.b16 %v6546, %v6544
        %v6573 = vpack.c.b16 %v6547, %v6545
        %v6574 = vpack.c.b16 %v6550, %v6548
        %v6575 = vpack.c.b16 %v6551, %v6549
        %v6576 = vpack.c.b16 %v6554, %v6552
        %v6577 = vpack.c.b16 %v6555, %v6553
        %v6578 = vpack.c.b16 %v6558, %v6556
        %v6579 = vpack.c.b16 %v6559, %v6557
        %v6580 = vpack.c.b16 %v6562, %v6560
        %v6581 = vpack.c.b16 %v6563, %v6561
        %v6582 = vpack.c.b16 %v6566, %v6564
        %v6583 = vpack.c.b16 %v6567, %v6565
        %6600 = vmatpush.bf16.msra.mxu0 %v6582
        %6601 = vmatpush.bf16.msra.mxu0 %v6580
        %6602 = vmatpush.bf16.msra.mxu0 %v6578
        %6603 = vmatpush.bf16.msra.mxu0 %v6576
        %6604 = vmatpush.bf16.msra.mxu0 %v6574
        %6605 = vmatpush.bf16.msra.mxu0 %v6572
        %6606 = vmatpush.bf16.msra.mxu0 %v6570
        %6607 = vmatpush.bf16.msra.mxu0 %v6568
        %6608 = vmatmul.bf16.gmra.mxu0 %v4092
        %v6609 = vpop.f32.mrf.mxu0
        %v6610 = vadd.f32 %v6383, %v6609
        %v6611 = vpop.f32.mrf.mxu0
        %v6612 = vadd.f32 %v6385, %v6611
        %6613 = vmatmul.bf16.gmra.mxu0 %v4093
        %v6614 = vpop.f32.mrf.mxu0
        %v6615 = vadd.f32 %v6388, %v6614
        %v6616 = vpop.f32.mrf.mxu0
        %v6617 = vadd.f32 %v6390, %v6616
        %6618 = vmatmul.bf16.gmra.mxu0 %v4094
        %v6619 = vpop.f32.mrf.mxu0
        %v6620 = vadd.f32 %v6393, %v6619
        %v6621 = vpop.f32.mrf.mxu0
        %v6622 = vadd.f32 %v6395, %v6621
        %6623 = vmatmul.bf16.gmra.mxu0 %v4095
        %v6624 = vpop.f32.mrf.mxu0
        %v6625 = vadd.f32 %v6398, %v6624
        %v6626 = vpop.f32.mrf.mxu0
        %v6627 = vadd.f32 %v6400, %v6626
        %6628 = vmatmul.bf16.gmra.mxu0 %v4096
        %v6629 = vpop.f32.mrf.mxu0
        %v6630 = vadd.f32 %v6403, %v6629
        %v6631 = vpop.f32.mrf.mxu0
        %v6632 = vadd.f32 %v6405, %v6631
        %6633 = vmatmul.bf16.gmra.mxu0 %v4097
        %v6634 = vpop.f32.mrf.mxu0
        %v6635 = vadd.f32 %v6408, %v6634
        %v6636 = vpop.f32.mrf.mxu0
        %v6637 = vadd.f32 %v6410, %v6636
        %6638 = vmatmul.bf16.gmra.mxu0 %v4098
        %v6639 = vpop.f32.mrf.mxu0
        %v6640 = vadd.f32 %v6413, %v6639
        %v6641 = vpop.f32.mrf.mxu0
        %v6642 = vadd.f32 %v6415, %v6641
        %6643 = vmatmul.bf16.gmra.mxu0 %v4099
        %v6644 = vpop.f32.mrf.mxu0
        %v6645 = vadd.f32 %v6418, %v6644
        %v6646 = vpop.f32.mrf.mxu0
        %v6647 = vadd.f32 %v6420, %v6646
        %6648 = vdwg.mxu0
        %6649 = vmatpush.bf16.msra.mxu0 %v6583
        %6650 = vmatpush.bf16.msra.mxu0 %v6581
        %6651 = vmatpush.bf16.msra.mxu0 %v6579
        %6652 = vmatpush.bf16.msra.mxu0 %v6577
        %6653 = vmatpush.bf16.msra.mxu0 %v6575
        %6654 = vmatpush.bf16.msra.mxu0 %v6573
        %6655 = vmatpush.bf16.msra.mxu0 %v6571
        %6656 = vmatpush.bf16.msra.mxu0 %v6569
        %6657 = vmatmul.bf16.gmra.mxu0 %v4092
        %v6658 = vpop.f32.mrf.mxu0
        %v6659 = vadd.f32 %v6481, %v6658
        %v6660 = vpop.f32.mrf.mxu0
        %v6661 = vadd.f32 %v6483, %v6660
        %6662 = vmatmul.bf16.gmra.mxu0 %v4093
        %v6663 = vpop.f32.mrf.mxu0
        %v6664 = vadd.f32 %v6486, %v6663
        %v6665 = vpop.f32.mrf.mxu0
        %v6666 = vadd.f32 %v6488, %v6665
        %6667 = vmatmul.bf16.gmra.mxu0 %v4094
        %v6668 = vpop.f32.mrf.mxu0
        %v6669 = vadd.f32 %v6491, %v6668
        %v6670 = vpop.f32.mrf.mxu0
        %v6671 = vadd.f32 %v6493, %v6670
        %6672 = vmatmul.bf16.gmra.mxu0 %v4095
        %v6673 = vpop.f32.mrf.mxu0
        %v6674 = vadd.f32 %v6496, %v6673
        %v6675 = vpop.f32.mrf.mxu0
        %v6676 = vadd.f32 %v6498, %v6675
        %6677 = vmatmul.bf16.gmra.mxu0 %v4096
        %v6678 = vpop.f32.mrf.mxu0
        %v6679 = vadd.f32 %v6501, %v6678
        %v6680 = vpop.f32.mrf.mxu0
        %v6681 = vadd.f32 %v6503, %v6680
        %6682 = vmatmul.bf16.gmra.mxu0 %v4097
        %v6683 = vpop.f32.mrf.mxu0
        %v6684 = vadd.f32 %v6506, %v6683
        %v6685 = vpop.f32.mrf.mxu0
        %v6686 = vadd.f32 %v6508, %v6685
        %6687 = vmatmul.bf16.gmra.mxu0 %v4098
        %v6688 = vpop.f32.mrf.mxu0
        %v6689 = vadd.f32 %v6511, %v6688
        %v6690 = vpop.f32.mrf.mxu0
        %v6691 = vadd.f32 %v6513, %v6690
        %6692 = vmatmul.bf16.gmra.mxu0 %v4099
        %v6693 = vpop.f32.mrf.mxu0
        %v6694 = vadd.f32 %v6516, %v6693
        %v6695 = vpop.f32.mrf.mxu0
        %v6696 = vadd.f32 %v6518, %v6695
        %6697 = vdwg.mxu0
        %v6698 = vld [vmem:[%s37] sm:$0x3]
        %v6700 = vperm.slane %v6698, 0
        %v6701 = vperm.slane %v6698, 1
        %v6704 = vadd.f32 %v6610, %v6700
        %v6705 = vadd.f32 %v6659, %v6701
        %v6706 = vadd.f32 %v6612, %v6700
        %v6707 = vadd.f32 %v6661, %v6701
        %v6708 = vadd.f32 %v6615, %v6700
        %v6709 = vadd.f32 %v6664, %v6701
        %v6710 = vadd.f32 %v6617, %v6700
        %v6711 = vadd.f32 %v6666, %v6701
        %v6712 = vadd.f32 %v6620, %v6700
        %v6713 = vadd.f32 %v6669, %v6701
        %v6714 = vadd.f32 %v6622, %v6700
        %v6715 = vadd.f32 %v6671, %v6701
        %v6716 = vadd.f32 %v6625, %v6700
        %v6717 = vadd.f32 %v6674, %v6701
        %v6718 = vadd.f32 %v6627, %v6700
        %v6719 = vadd.f32 %v6676, %v6701
        %v6720 = vadd.f32 %v6630, %v6700
        %v6721 = vadd.f32 %v6679, %v6701
        %v6722 = vadd.f32 %v6632, %v6700
        %v6723 = vadd.f32 %v6681, %v6701
        %v6724 = vadd.f32 %v6635, %v6700
        %v6725 = vadd.f32 %v6684, %v6701
        %v6726 = vadd.f32 %v6637, %v6700
        %v6727 = vadd.f32 %v6686, %v6701
        %v6728 = vadd.f32 %v6640, %v6700
        %v6729 = vadd.f32 %v6689, %v6701
        %v6730 = vadd.f32 %v6642, %v6700
        %v6731 = vadd.f32 %v6691, %v6701
        %v6732 = vadd.f32 %v6645, %v6700
        %v6733 = vadd.f32 %v6694, %v6701
        %v6734 = vadd.f32 %v6647, %v6700
        %v6735 = vadd.f32 %v6696, %v6701
        %v6736 = vmax.f32 %v6704, 0.0
        %v6737 = vmax.f32 %v6705, 0.0
        %v6738 = vmax.f32 %v6706, 0.0
        %v6739 = vmax.f32 %v6707, 0.0
        %v6740 = vmax.f32 %v6708, 0.0
        %v6741 = vmax.f32 %v6709, 0.0
        %v6742 = vmax.f32 %v6710, 0.0
        %v6743 = vmax.f32 %v6711, 0.0
        %v6744 = vmax.f32 %v6712, 0.0
        %v6745 = vmax.f32 %v6713, 0.0
        %v6746 = vmax.f32 %v6714, 0.0
        %v6747 = vmax.f32 %v6715, 0.0
        %v6748 = vmax.f32 %v6716, 0.0
        %v6749 = vmax.f32 %v6717, 0.0
        %v6750 = vmax.f32 %v6718, 0.0
        %v6751 = vmax.f32 %v6719, 0.0
        %v6752 = vmax.f32 %v6720, 0.0
        %v6753 = vmax.f32 %v6721, 0.0
        %v6754 = vmax.f32 %v6722, 0.0
        %v6755 = vmax.f32 %v6723, 0.0
        %v6756 = vmax.f32 %v6724, 0.0
        %v6757 = vmax.f32 %v6725, 0.0
        %v6758 = vmax.f32 %v6726, 0.0
        %v6759 = vmax.f32 %v6727, 0.0
        %v6760 = vmax.f32 %v6728, 0.0
        %v6761 = vmax.f32 %v6729, 0.0
        %v6762 = vmax.f32 %v6730, 0.0
        %v6763 = vmax.f32 %v6731, 0.0
        %v6764 = vmax.f32 %v6732, 0.0
        %v6765 = vmax.f32 %v6733, 0.0
        %v6766 = vmax.f32 %v6734, 0.0
        %v6767 = vmax.f32 %v6735, 0.0
        %v6768 = vpack.c.bf16 %v6738, %v6736
        %v6769 = vpack.c.bf16 %v6739, %v6737
        %v6770 = vpack.c.bf16 %v6742, %v6740
        %v6771 = vpack.c.bf16 %v6743, %v6741
        %v6772 = vpack.c.bf16 %v6746, %v6744
        %v6773 = vpack.c.bf16 %v6747, %v6745
        %v6774 = vpack.c.bf16 %v6750, %v6748
        %v6775 = vpack.c.bf16 %v6751, %v6749
        %v6776 = vpack.c.bf16 %v6754, %v6752
        %v6777 = vpack.c.bf16 %v6755, %v6753
        %v6778 = vpack.c.bf16 %v6758, %v6756
        %v6779 = vpack.c.bf16 %v6759, %v6757
        %v6780 = vpack.c.bf16 %v6762, %v6760
        %v6781 = vpack.c.bf16 %v6763, %v6761
        %v6782 = vpack.c.bf16 %v6766, %v6764
        %v6783 = vpack.c.bf16 %v6767, %v6765
        %v6784 = vld [vmem:[#allocation23] sm:$0xff]
        %v6785 = vld [vmem:[#allocation23 + $0x8] sm:$0xff]
        %v6786 = vld [vmem:[#allocation23 + $0x10] sm:$0xff]
        %v6787 = vld [vmem:[#allocation23 + $0x18] sm:$0xff]
        %v6788 = vld [vmem:[#allocation23 + $0x20] sm:$0xff]
        %v6789 = vld [vmem:[#allocation23 + $0x28] sm:$0xff]
        %v6790 = vld [vmem:[#allocation23 + $0x30] sm:$0xff]
        %v6791 = vld [vmem:[#allocation23 + $0x38] sm:$0xff]
        %v6792 = vld [vmem:[#allocation23 + $0x40] sm:$0xff]
        %v6793 = vld [vmem:[#allocation23 + $0x48] sm:$0xff]
        %v6794 = vld [vmem:[#allocation23 + $0x50] sm:$0xff]
        %v6795 = vld [vmem:[#allocation23 + $0x58] sm:$0xff]
        %v6796 = vld [vmem:[#allocation23 + $0x60] sm:$0xff]
        %v6797 = vld [vmem:[#allocation23 + $0x68] sm:$0xff]
        %v6798 = vld [vmem:[#allocation23 + $0x70] sm:$0xff]
        %v6799 = vld [vmem:[#allocation23 + $0x78] sm:$0xff]
        %v6800 = vld [vmem:[#allocation23 + $0x80] sm:$0xff]
        %v6801 = vld [vmem:[#allocation23 + $0x88] sm:$0xff]
        %v6802 = vld [vmem:[#allocation23 + $0x90] sm:$0xff]
        %v6803 = vld [vmem:[#allocation23 + $0x98] sm:$0xff]
        %v6804 = vld [vmem:[#allocation23 + $0xa0] sm:$0xff]
        %v6805 = vld [vmem:[#allocation23 + $0xa8] sm:$0xff]
        %v6806 = vld [vmem:[#allocation23 + $0xb0] sm:$0xff]
        %v6807 = vld [vmem:[#allocation23 + $0xb8] sm:$0xff]
        %v6808 = vld [vmem:[#allocation23 + $0xc0] sm:$0xff]
        %v6809 = vld [vmem:[#allocation23 + $0xc8] sm:$0xff]
        %v6810 = vld [vmem:[#allocation23 + $0xd0] sm:$0xff]
        %v6811 = vld [vmem:[#allocation23 + $0xd8] sm:$0xff]
        %v6812 = vld [vmem:[#allocation23 + $0xe0] sm:$0xff]
        %v6813 = vld [vmem:[#allocation23 + $0xe8] sm:$0xff]
        %v6814 = vld [vmem:[#allocation23 + $0xf0] sm:$0xff]
        %v6815 = vld [vmem:[#allocation23 + $0xf8] sm:$0xff]
        %v6816 = vld [vmem:[%s41] sm:$0x3]
        %v6818 = vperm.slane %v6816, 0
        %v6819 = vperm.slane %v6816, 1
        %v6854 = vunpack.c.l.b16 %v6784
        %v6855 = vunpack.c.h.b16 %v6784
        %v6856 = vunpack.c.l.b16 %v6785
        %v6857 = vunpack.c.h.b16 %v6785
        %v6858 = vunpack.c.l.b16 %v6786
        %v6859 = vunpack.c.h.b16 %v6786
        %v6860 = vunpack.c.l.b16 %v6787
        %v6861 = vunpack.c.h.b16 %v6787
        %v6862 = vunpack.c.l.b16 %v6788
        %v6863 = vunpack.c.h.b16 %v6788
        %v6864 = vunpack.c.l.b16 %v6789
        %v6865 = vunpack.c.h.b16 %v6789
        %v6866 = vunpack.c.l.b16 %v6790
        %v6867 = vunpack.c.h.b16 %v6790
        %v6868 = vunpack.c.l.b16 %v6791
        %v6869 = vunpack.c.h.b16 %v6791
        %v6870 = vunpack.c.l.b16 %v6792
        %v6871 = vunpack.c.h.b16 %v6792
        %v6872 = vunpack.c.l.b16 %v6793
        %v6873 = vunpack.c.h.b16 %v6793
        %v6874 = vunpack.c.l.b16 %v6794
        %v6875 = vunpack.c.h.b16 %v6794
        %v6876 = vunpack.c.l.b16 %v6795
        %v6877 = vunpack.c.h.b16 %v6795
        %v6878 = vunpack.c.l.b16 %v6796
        %v6879 = vunpack.c.h.b16 %v6796
        %v6880 = vunpack.c.l.b16 %v6797
        %v6881 = vunpack.c.h.b16 %v6797
        %v6882 = vunpack.c.l.b16 %v6798
        %v6883 = vunpack.c.h.b16 %v6798
        %v6884 = vunpack.c.l.b16 %v6799
        %v6885 = vunpack.c.h.b16 %v6799
        %v6886 = vunpack.c.l.b16 %v6800
        %v6887 = vunpack.c.h.b16 %v6800
        %v6888 = vunpack.c.l.b16 %v6801
        %v6889 = vunpack.c.h.b16 %v6801
        %v6890 = vunpack.c.l.b16 %v6802
        %v6891 = vunpack.c.h.b16 %v6802
        %v6892 = vunpack.c.l.b16 %v6803
        %v6893 = vunpack.c.h.b16 %v6803
        %v6894 = vunpack.c.l.b16 %v6804
        %v6895 = vunpack.c.h.b16 %v6804
        %v6896 = vunpack.c.l.b16 %v6805
        %v6897 = vunpack.c.h.b16 %v6805
        %v6898 = vunpack.c.l.b16 %v6806
        %v6899 = vunpack.c.h.b16 %v6806
        %v6900 = vunpack.c.l.b16 %v6807
        %v6901 = vunpack.c.h.b16 %v6807
        %v6902 = vunpack.c.l.b16 %v6808
        %v6903 = vunpack.c.h.b16 %v6808
        %v6904 = vunpack.c.l.b16 %v6809
        %v6905 = vunpack.c.h.b16 %v6809
        %v6906 = vunpack.c.l.b16 %v6810
        %v6907 = vunpack.c.h.b16 %v6810
        %v6908 = vunpack.c.l.b16 %v6811
        %v6909 = vunpack.c.h.b16 %v6811
        %v6910 = vunpack.c.l.b16 %v6812
        %v6911 = vunpack.c.h.b16 %v6812
        %v6912 = vunpack.c.l.b16 %v6813
        %v6913 = vunpack.c.h.b16 %v6813
        %v6914 = vunpack.c.l.b16 %v6814
        %v6915 = vunpack.c.h.b16 %v6814
        %v6916 = vunpack.c.l.b16 %v6815
        %v6917 = vunpack.c.h.b16 %v6815
        %v6918 = vpack.c.b16 %v6856, %v6854
        %v6919 = vpack.c.b16 %v6857, %v6855
        %v6920 = vpack.c.b16 %v6860, %v6858
        %v6921 = vpack.c.b16 %v6861, %v6859
        %v6922 = vpack.c.b16 %v6864, %v6862
        %v6923 = vpack.c.b16 %v6865, %v6863
        %v6924 = vpack.c.b16 %v6868, %v6866
        %v6925 = vpack.c.b16 %v6869, %v6867
        %v6926 = vpack.c.b16 %v6872, %v6870
        %v6927 = vpack.c.b16 %v6873, %v6871
        %v6928 = vpack.c.b16 %v6876, %v6874
        %v6929 = vpack.c.b16 %v6877, %v6875
        %v6930 = vpack.c.b16 %v6880, %v6878
        %v6931 = vpack.c.b16 %v6881, %v6879
        %v6932 = vpack.c.b16 %v6884, %v6882
        %v6933 = vpack.c.b16 %v6885, %v6883
        %v6934 = vpack.c.b16 %v6888, %v6886
        %v6935 = vpack.c.b16 %v6889, %v6887
        %v6936 = vpack.c.b16 %v6892, %v6890
        %v6937 = vpack.c.b16 %v6893, %v6891
        %v6938 = vpack.c.b16 %v6896, %v6894
        %v6939 = vpack.c.b16 %v6897, %v6895
        %v6940 = vpack.c.b16 %v6900, %v6898
        %v6941 = vpack.c.b16 %v6901, %v6899
        %v6942 = vpack.c.b16 %v6904, %v6902
        %v6943 = vpack.c.b16 %v6905, %v6903
        %v6944 = vpack.c.b16 %v6908, %v6906
        %v6945 = vpack.c.b16 %v6909, %v6907
        %v6946 = vpack.c.b16 %v6912, %v6910
        %v6947 = vpack.c.b16 %v6913, %v6911
        %v6948 = vpack.c.b16 %v6916, %v6914
        %v6949 = vpack.c.b16 %v6917, %v6915
        %6982 = vmatpush.bf16.msra.mxu0 %v6932
        %6983 = vmatpush.bf16.msra.mxu0 %v6930
        %6984 = vmatpush.bf16.msra.mxu0 %v6928
        %6985 = vmatpush.bf16.msra.mxu0 %v6926
        %6986 = vmatpush.bf16.msra.mxu0 %v6924
        %6987 = vmatpush.bf16.msra.mxu0 %v6922
        %6988 = vmatpush.bf16.msra.mxu0 %v6920
        %6989 = vmatpush.bf16.msra.mxu0 %v6918
        %6990 = vmatmul.bf16.gmra.mxu0 %v6768
        %v6991 = vpop.f32.mrf.mxu0
        %v6992 = vadd.f32 %v6818, %v6991
        %v6993 = vpop.f32.mrf.mxu0
        %v6994 = vadd.f32 %v6818, %v6993
        %6995 = vmatmul.bf16.gmra.mxu0 %v6770
        %v6996 = vpop.f32.mrf.mxu0
        %v6997 = vadd.f32 %v6818, %v6996
        %v6998 = vpop.f32.mrf.mxu0
        %v6999 = vadd.f32 %v6818, %v6998
        %7000 = vmatmul.bf16.gmra.mxu0 %v6772
        %v7001 = vpop.f32.mrf.mxu0
        %v7002 = vadd.f32 %v6818, %v7001
        %v7003 = vpop.f32.mrf.mxu0
        %v7004 = vadd.f32 %v6818, %v7003
        %7005 = vmatmul.bf16.gmra.mxu0 %v6774
        %v7006 = vpop.f32.mrf.mxu0
        %v7007 = vadd.f32 %v6818, %v7006
        %v7008 = vpop.f32.mrf.mxu0
        %v7009 = vadd.f32 %v6818, %v7008
        %7010 = vmatmul.bf16.gmra.mxu0 %v6776
        %v7011 = vpop.f32.mrf.mxu0
        %v7012 = vadd.f32 %v6818, %v7011
        %v7013 = vpop.f32.mrf.mxu0
        %v7014 = vadd.f32 %v6818, %v7013
        %7015 = vmatmul.bf16.gmra.mxu0 %v6778
        %v7016 = vpop.f32.mrf.mxu0
        %v7017 = vadd.f32 %v6818, %v7016
        %v7018 = vpop.f32.mrf.mxu0
        %v7019 = vadd.f32 %v6818, %v7018
        %7020 = vmatmul.bf16.gmra.mxu0 %v6780
        %v7021 = vpop.f32.mrf.mxu0
        %v7022 = vadd.f32 %v6818, %v7021
        %v7023 = vpop.f32.mrf.mxu0
        %v7024 = vadd.f32 %v6818, %v7023
        %7025 = vmatmul.bf16.gmra.mxu0 %v6782
        %v7026 = vpop.f32.mrf.mxu0
        %v7027 = vadd.f32 %v6818, %v7026
        %v7028 = vpop.f32.mrf.mxu0
        %v7029 = vadd.f32 %v6818, %v7028
        %7030 = vdwg.mxu0
        %7031 = vmatpush.bf16.msra.mxu0 %v6948
        %7032 = vmatpush.bf16.msra.mxu0 %v6946
        %7033 = vmatpush.bf16.msra.mxu0 %v6944
        %7034 = vmatpush.bf16.msra.mxu0 %v6942
        %7035 = vmatpush.bf16.msra.mxu0 %v6940
        %7036 = vmatpush.bf16.msra.mxu0 %v6938
        %7037 = vmatpush.bf16.msra.mxu0 %v6936
        %7038 = vmatpush.bf16.msra.mxu0 %v6934
        %7039 = vmatmul.bf16.gmra.mxu0 %v6769
        %v7040 = vpop.f32.mrf.mxu0
        %v7041 = vadd.f32 %v6992, %v7040
        %v7042 = vpop.f32.mrf.mxu0
        %v7043 = vadd.f32 %v6994, %v7042
        %7044 = vmatmul.bf16.gmra.mxu0 %v6771
        %v7045 = vpop.f32.mrf.mxu0
        %v7046 = vadd.f32 %v6997, %v7045
        %v7047 = vpop.f32.mrf.mxu0
        %v7048 = vadd.f32 %v6999, %v7047
        %7049 = vmatmul.bf16.gmra.mxu0 %v6773
        %v7050 = vpop.f32.mrf.mxu0
        %v7051 = vadd.f32 %v7002, %v7050
        %v7052 = vpop.f32.mrf.mxu0
        %v7053 = vadd.f32 %v7004, %v7052
        %7054 = vmatmul.bf16.gmra.mxu0 %v6775
        %v7055 = vpop.f32.mrf.mxu0
        %v7056 = vadd.f32 %v7007, %v7055
        %v7057 = vpop.f32.mrf.mxu0
        %v7058 = vadd.f32 %v7009, %v7057
        %7059 = vmatmul.bf16.gmra.mxu0 %v6777
        %v7060 = vpop.f32.mrf.mxu0
        %v7061 = vadd.f32 %v7012, %v7060
        %v7062 = vpop.f32.mrf.mxu0
        %v7063 = vadd.f32 %v7014, %v7062
        %7064 = vmatmul.bf16.gmra.mxu0 %v6779
        %v7065 = vpop.f32.mrf.mxu0
        %v7066 = vadd.f32 %v7017, %v7065
        %v7067 = vpop.f32.mrf.mxu0
        %v7068 = vadd.f32 %v7019, %v7067
        %7069 = vmatmul.bf16.gmra.mxu0 %v6781
        %v7070 = vpop.f32.mrf.mxu0
        %v7071 = vadd.f32 %v7022, %v7070
        %v7072 = vpop.f32.mrf.mxu0
        %v7073 = vadd.f32 %v7024, %v7072
        %7074 = vmatmul.bf16.gmra.mxu0 %v6783
        %v7075 = vpop.f32.mrf.mxu0
        %v7076 = vadd.f32 %v7027, %v7075
        %v7077 = vpop.f32.mrf.mxu0
        %v7078 = vadd.f32 %v7029, %v7077
        %7079 = vdwg.mxu0
        %7080 = vmatpush.bf16.msra.mxu0 %v6933
        %7081 = vmatpush.bf16.msra.mxu0 %v6931
        %7082 = vmatpush.bf16.msra.mxu0 %v6929
        %7083 = vmatpush.bf16.msra.mxu0 %v6927
        %7084 = vmatpush.bf16.msra.mxu0 %v6925
        %7085 = vmatpush.bf16.msra.mxu0 %v6923
        %7086 = vmatpush.bf16.msra.mxu0 %v6921
        %7087 = vmatpush.bf16.msra.mxu0 %v6919
        %7088 = vmatmul.bf16.gmra.mxu0 %v6768
        %v7089 = vpop.f32.mrf.mxu0
        %v7090 = vadd.f32 %v6819, %v7089
        %v7091 = vpop.f32.mrf.mxu0
        %v7092 = vadd.f32 %v6819, %v7091
        %7093 = vmatmul.bf16.gmra.mxu0 %v6770
        %v7094 = vpop.f32.mrf.mxu0
        %v7095 = vadd.f32 %v6819, %v7094
        %v7096 = vpop.f32.mrf.mxu0
        %v7097 = vadd.f32 %v6819, %v7096
        %7098 = vmatmul.bf16.gmra.mxu0 %v6772
        %v7099 = vpop.f32.mrf.mxu0
        %v7100 = vadd.f32 %v6819, %v7099
        %v7101 = vpop.f32.mrf.mxu0
        %v7102 = vadd.f32 %v6819, %v7101
        %7103 = vmatmul.bf16.gmra.mxu0 %v6774
        %v7104 = vpop.f32.mrf.mxu0
        %v7105 = vadd.f32 %v6819, %v7104
        %v7106 = vpop.f32.mrf.mxu0
        %v7107 = vadd.f32 %v6819, %v7106
        %7108 = vmatmul.bf16.gmra.mxu0 %v6776
        %v7109 = vpop.f32.mrf.mxu0
        %v7110 = vadd.f32 %v6819, %v7109
        %v7111 = vpop.f32.mrf.mxu0
        %v7112 = vadd.f32 %v6819, %v7111
        %7113 = vmatmul.bf16.gmra.mxu0 %v6778
        %v7114 = vpop.f32.mrf.mxu0
        %v7115 = vadd.f32 %v6819, %v7114
        %v7116 = vpop.f32.mrf.mxu0
        %v7117 = vadd.f32 %v6819, %v7116
        %7118 = vmatmul.bf16.gmra.mxu0 %v6780
        %v7119 = vpop.f32.mrf.mxu0
        %v7120 = vadd.f32 %v6819, %v7119
        %v7121 = vpop.f32.mrf.mxu0
        %v7122 = vadd.f32 %v6819, %v7121
        %7123 = vmatmul.bf16.gmra.mxu0 %v6782
        %v7124 = vpop.f32.mrf.mxu0
        %v7125 = vadd.f32 %v6819, %v7124
        %v7126 = vpop.f32.mrf.mxu0
        %v7127 = vadd.f32 %v6819, %v7126
        %7128 = vdwg.mxu0
        %7129 = vmatpush.bf16.msra.mxu0 %v6949
        %7130 = vmatpush.bf16.msra.mxu0 %v6947
        %7131 = vmatpush.bf16.msra.mxu0 %v6945
        %7132 = vmatpush.bf16.msra.mxu0 %v6943
        %7133 = vmatpush.bf16.msra.mxu0 %v6941
        %7134 = vmatpush.bf16.msra.mxu0 %v6939
        %7135 = vmatpush.bf16.msra.mxu0 %v6937
        %7136 = vmatpush.bf16.msra.mxu0 %v6935
        %7137 = vmatmul.bf16.gmra.mxu0 %v6769
        %v7138 = vpop.f32.mrf.mxu0
        %v7139 = vadd.f32 %v7090, %v7138
        %v7140 = vpop.f32.mrf.mxu0
        %v7141 = vadd.f32 %v7092, %v7140
        %7142 = vmatmul.bf16.gmra.mxu0 %v6771
        %v7143 = vpop.f32.mrf.mxu0
        %v7144 = vadd.f32 %v7095, %v7143
        %v7145 = vpop.f32.mrf.mxu0
        %v7146 = vadd.f32 %v7097, %v7145
        %7147 = vmatmul.bf16.gmra.mxu0 %v6773
        %v7148 = vpop.f32.mrf.mxu0
        %v7149 = vadd.f32 %v7100, %v7148
        %v7150 = vpop.f32.mrf.mxu0
        %v7151 = vadd.f32 %v7102, %v7150
        %7152 = vmatmul.bf16.gmra.mxu0 %v6775
        %v7153 = vpop.f32.mrf.mxu0
        %v7154 = vadd.f32 %v7105, %v7153
        %v7155 = vpop.f32.mrf.mxu0
        %v7156 = vadd.f32 %v7107, %v7155
        %7157 = vmatmul.bf16.gmra.mxu0 %v6777
        %v7158 = vpop.f32.mrf.mxu0
        %v7159 = vadd.f32 %v7110, %v7158
        %v7160 = vpop.f32.mrf.mxu0
        %v7161 = vadd.f32 %v7112, %v7160
        %7162 = vmatmul.bf16.gmra.mxu0 %v6779
        %v7163 = vpop.f32.mrf.mxu0
        %v7164 = vadd.f32 %v7115, %v7163
        %v7165 = vpop.f32.mrf.mxu0
        %v7166 = vadd.f32 %v7117, %v7165
        %7167 = vmatmul.bf16.gmra.mxu0 %v6781
        %v7168 = vpop.f32.mrf.mxu0
        %v7169 = vadd.f32 %v7120, %v7168
        %v7170 = vpop.f32.mrf.mxu0
        %v7171 = vadd.f32 %v7122, %v7170
        %7172 = vmatmul.bf16.gmra.mxu0 %v6783
        %v7173 = vpop.f32.mrf.mxu0
        %v7174 = vadd.f32 %v7125, %v7173
        %v7175 = vpop.f32.mrf.mxu0
        %v7176 = vadd.f32 %v7127, %v7175
        %7177 = vdwg.mxu0
        %v7178 = vmax.f32 %v7041, 0.0
        %v7179 = vmax.f32 %v7139, 0.0
        %v7180 = vmax.f32 %v7043, 0.0
        %v7181 = vmax.f32 %v7141, 0.0
        %v7182 = vmax.f32 %v7046, 0.0
        %v7183 = vmax.f32 %v7144, 0.0
        %v7184 = vmax.f32 %v7048, 0.0
        %v7185 = vmax.f32 %v7146, 0.0
        %v7186 = vmax.f32 %v7051, 0.0
        %v7187 = vmax.f32 %v7149, 0.0
        %v7188 = vmax.f32 %v7053, 0.0
        %v7189 = vmax.f32 %v7151, 0.0
        %v7190 = vmax.f32 %v7056, 0.0
        %v7191 = vmax.f32 %v7154, 0.0
        %v7192 = vmax.f32 %v7058, 0.0
        %v7193 = vmax.f32 %v7156, 0.0
        %v7194 = vmax.f32 %v7061, 0.0
        %v7195 = vmax.f32 %v7159, 0.0
        %v7196 = vmax.f32 %v7063, 0.0
        %v7197 = vmax.f32 %v7161, 0.0
        %v7198 = vmax.f32 %v7066, 0.0
        %v7199 = vmax.f32 %v7164, 0.0
        %v7200 = vmax.f32 %v7068, 0.0
        %v7201 = vmax.f32 %v7166, 0.0
        %v7202 = vmax.f32 %v7071, 0.0
        %v7203 = vmax.f32 %v7169, 0.0
        %v7204 = vmax.f32 %v7073, 0.0
        %v7205 = vmax.f32 %v7171, 0.0
        %v7206 = vmax.f32 %v7076, 0.0
        %v7207 = vmax.f32 %v7174, 0.0
        %v7208 = vmax.f32 %v7078, 0.0
        %v7209 = vmax.f32 %v7176, 0.0
        %v7210 = vpack.c.bf16 %v7180, %v7178
        %v7211 = vpack.c.bf16 %v7181, %v7179
        %v7212 = vpack.c.bf16 %v7184, %v7182
        %v7213 = vpack.c.bf16 %v7185, %v7183
        %v7214 = vpack.c.bf16 %v7188, %v7186
        %v7215 = vpack.c.bf16 %v7189, %v7187
        %v7216 = vpack.c.bf16 %v7192, %v7190
        %v7217 = vpack.c.bf16 %v7193, %v7191
        %v7218 = vpack.c.bf16 %v7196, %v7194
        %v7219 = vpack.c.bf16 %v7197, %v7195
        %v7220 = vpack.c.bf16 %v7200, %v7198
        %v7221 = vpack.c.bf16 %v7201, %v7199
        %v7222 = vpack.c.bf16 %v7204, %v7202
        %v7223 = vpack.c.bf16 %v7205, %v7203
        %v7224 = vpack.c.bf16 %v7208, %v7206
        %v7225 = vpack.c.bf16 %v7209, %v7207
        %v7226 = vld [vmem:[#allocation25] sm:$0xff]
        %v7227 = vld [vmem:[#allocation25 + $0x8] sm:$0xff]
        %v7228 = vld [vmem:[#allocation25 + $0x10] sm:$0xff]
        %v7229 = vld [vmem:[#allocation25 + $0x18] sm:$0xff]
        %v7230 = vld [vmem:[#allocation25 + $0x20] sm:$0xff]
        %v7231 = vld [vmem:[#allocation25 + $0x28] sm:$0xff]
        %v7232 = vld [vmem:[#allocation25 + $0x30] sm:$0xff]
        %v7233 = vld [vmem:[#allocation25 + $0x38] sm:$0xff]
        %v7234 = vld [vmem:[#allocation25 + $0x40] sm:$0xff]
        %v7235 = vld [vmem:[#allocation25 + $0x48] sm:$0xff]
        %v7236 = vld [vmem:[#allocation25 + $0x50] sm:$0xff]
        %v7237 = vld [vmem:[#allocation25 + $0x58] sm:$0xff]
        %v7238 = vld [vmem:[#allocation25 + $0x60] sm:$0xff]
        %v7239 = vld [vmem:[#allocation25 + $0x68] sm:$0xff]
        %v7240 = vld [vmem:[#allocation25 + $0x70] sm:$0xff]
        %v7241 = vld [vmem:[#allocation25 + $0x78] sm:$0xff]
        %v7242 = vld [vmem:[#allocation25 + $0x80] sm:$0xff]
        %v7243 = vld [vmem:[#allocation25 + $0x88] sm:$0xff]
        %v7244 = vld [vmem:[#allocation25 + $0x90] sm:$0xff]
        %v7245 = vld [vmem:[#allocation25 + $0x98] sm:$0xff]
        %v7246 = vld [vmem:[#allocation25 + $0xa0] sm:$0xff]
        %v7247 = vld [vmem:[#allocation25 + $0xa8] sm:$0xff]
        %v7248 = vld [vmem:[#allocation25 + $0xb0] sm:$0xff]
        %v7249 = vld [vmem:[#allocation25 + $0xb8] sm:$0xff]
        %v7250 = vld [vmem:[#allocation25 + $0xc0] sm:$0xff]
        %v7251 = vld [vmem:[#allocation25 + $0xc8] sm:$0xff]
        %v7252 = vld [vmem:[#allocation25 + $0xd0] sm:$0xff]
        %v7253 = vld [vmem:[#allocation25 + $0xd8] sm:$0xff]
        %v7254 = vld [vmem:[#allocation25 + $0xe0] sm:$0xff]
        %v7255 = vld [vmem:[#allocation25 + $0xe8] sm:$0xff]
        %v7256 = vld [vmem:[#allocation25 + $0xf0] sm:$0xff]
        %v7257 = vld [vmem:[#allocation25 + $0xf8] sm:$0xff]
        %v7258 = vld [vmem:[%s45] sm:$0x3]
        %v7260 = vperm.slane %v7258, 0
        %v7261 = vperm.slane %v7258, 1
        %v7296 = vunpack.c.l.b16 %v7226
        %v7297 = vunpack.c.h.b16 %v7226
        %v7298 = vunpack.c.l.b16 %v7227
        %v7299 = vunpack.c.h.b16 %v7227
        %v7300 = vunpack.c.l.b16 %v7228
        %v7301 = vunpack.c.h.b16 %v7228
        %v7302 = vunpack.c.l.b16 %v7229
        %v7303 = vunpack.c.h.b16 %v7229
        %v7304 = vunpack.c.l.b16 %v7230
        %v7305 = vunpack.c.h.b16 %v7230
        %v7306 = vunpack.c.l.b16 %v7231
        %v7307 = vunpack.c.h.b16 %v7231
        %v7308 = vunpack.c.l.b16 %v7232
        %v7309 = vunpack.c.h.b16 %v7232
        %v7310 = vunpack.c.l.b16 %v7233
        %v7311 = vunpack.c.h.b16 %v7233
        %v7312 = vunpack.c.l.b16 %v7234
        %v7313 = vunpack.c.h.b16 %v7234
        %v7314 = vunpack.c.l.b16 %v7235
        %v7315 = vunpack.c.h.b16 %v7235
        %v7316 = vunpack.c.l.b16 %v7236
        %v7317 = vunpack.c.h.b16 %v7236
        %v7318 = vunpack.c.l.b16 %v7237
        %v7319 = vunpack.c.h.b16 %v7237
        %v7320 = vunpack.c.l.b16 %v7238
        %v7321 = vunpack.c.h.b16 %v7238
        %v7322 = vunpack.c.l.b16 %v7239
        %v7323 = vunpack.c.h.b16 %v7239
        %v7324 = vunpack.c.l.b16 %v7240
        %v7325 = vunpack.c.h.b16 %v7240
        %v7326 = vunpack.c.l.b16 %v7241
        %v7327 = vunpack.c.h.b16 %v7241
        %v7328 = vunpack.c.l.b16 %v7242
        %v7329 = vunpack.c.h.b16 %v7242
        %v7330 = vunpack.c.l.b16 %v7243
        %v7331 = vunpack.c.h.b16 %v7243
        %v7332 = vunpack.c.l.b16 %v7244
        %v7333 = vunpack.c.h.b16 %v7244
        %v7334 = vunpack.c.l.b16 %v7245
        %v7335 = vunpack.c.h.b16 %v7245
        %v7336 = vunpack.c.l.b16 %v7246
        %v7337 = vunpack.c.h.b16 %v7246
        %v7338 = vunpack.c.l.b16 %v7247
        %v7339 = vunpack.c.h.b16 %v7247
        %v7340 = vunpack.c.l.b16 %v7248
        %v7341 = vunpack.c.h.b16 %v7248
        %v7342 = vunpack.c.l.b16 %v7249
        %v7343 = vunpack.c.h.b16 %v7249
        %v7344 = vunpack.c.l.b16 %v7250
        %v7345 = vunpack.c.h.b16 %v7250
        %v7346 = vunpack.c.l.b16 %v7251
        %v7347 = vunpack.c.h.b16 %v7251
        %v7348 = vunpack.c.l.b16 %v7252
        %v7349 = vunpack.c.h.b16 %v7252
        %v7350 = vunpack.c.l.b16 %v7253
        %v7351 = vunpack.c.h.b16 %v7253
        %v7352 = vunpack.c.l.b16 %v7254
        %v7353 = vunpack.c.h.b16 %v7254
        %v7354 = vunpack.c.l.b16 %v7255
        %v7355 = vunpack.c.h.b16 %v7255
        %v7356 = vunpack.c.l.b16 %v7256
        %v7357 = vunpack.c.h.b16 %v7256
        %v7358 = vunpack.c.l.b16 %v7257
        %v7359 = vunpack.c.h.b16 %v7257
        %v7360 = vpack.c.b16 %v7298, %v7296
        %v7361 = vpack.c.b16 %v7299, %v7297
        %v7362 = vpack.c.b16 %v7302, %v7300
        %v7363 = vpack.c.b16 %v7303, %v7301
        %v7364 = vpack.c.b16 %v7306, %v7304
        %v7365 = vpack.c.b16 %v7307, %v7305
        %v7366 = vpack.c.b16 %v7310, %v7308
        %v7367 = vpack.c.b16 %v7311, %v7309
        %v7368 = vpack.c.b16 %v7314, %v7312
        %v7369 = vpack.c.b16 %v7315, %v7313
        %v7370 = vpack.c.b16 %v7318, %v7316
        %v7371 = vpack.c.b16 %v7319, %v7317
        %v7372 = vpack.c.b16 %v7322, %v7320
        %v7373 = vpack.c.b16 %v7323, %v7321
        %v7374 = vpack.c.b16 %v7326, %v7324
        %v7375 = vpack.c.b16 %v7327, %v7325
        %v7376 = vpack.c.b16 %v7330, %v7328
        %v7377 = vpack.c.b16 %v7331, %v7329
        %v7378 = vpack.c.b16 %v7334, %v7332
        %v7379 = vpack.c.b16 %v7335, %v7333
        %v7380 = vpack.c.b16 %v7338, %v7336
        %v7381 = vpack.c.b16 %v7339, %v7337
        %v7382 = vpack.c.b16 %v7342, %v7340
        %v7383 = vpack.c.b16 %v7343, %v7341
        %v7384 = vpack.c.b16 %v7346, %v7344
        %v7385 = vpack.c.b16 %v7347, %v7345
        %v7386 = vpack.c.b16 %v7350, %v7348
        %v7387 = vpack.c.b16 %v7351, %v7349
        %v7388 = vpack.c.b16 %v7354, %v7352
        %v7389 = vpack.c.b16 %v7355, %v7353
        %v7390 = vpack.c.b16 %v7358, %v7356
        %v7391 = vpack.c.b16 %v7359, %v7357
        %7424 = vmatpush.bf16.msra.mxu0 %v7374
        %7425 = vmatpush.bf16.msra.mxu0 %v7372
        %7426 = vmatpush.bf16.msra.mxu0 %v7370
        %7427 = vmatpush.bf16.msra.mxu0 %v7368
        %7428 = vmatpush.bf16.msra.mxu0 %v7366
        %7429 = vmatpush.bf16.msra.mxu0 %v7364
        %7430 = vmatpush.bf16.msra.mxu0 %v7362
        %7431 = vmatpush.bf16.msra.mxu0 %v7360
        %7432 = vmatmul.bf16.gmra.mxu0 %v7210
        %v7433 = vpop.f32.mrf.mxu0
        %v7434 = vadd.f32 %v7260, %v7433
        %v7435 = vpop.f32.mrf.mxu0
        %v7436 = vadd.f32 %v7260, %v7435
        %7437 = vmatmul.bf16.gmra.mxu0 %v7212
        %v7438 = vpop.f32.mrf.mxu0
        %v7439 = vadd.f32 %v7260, %v7438
        %v7440 = vpop.f32.mrf.mxu0
        %v7441 = vadd.f32 %v7260, %v7440
        %7442 = vmatmul.bf16.gmra.mxu0 %v7214
        %v7443 = vpop.f32.mrf.mxu0
        %v7444 = vadd.f32 %v7260, %v7443
        %v7445 = vpop.f32.mrf.mxu0
        %v7446 = vadd.f32 %v7260, %v7445
        %7447 = vmatmul.bf16.gmra.mxu0 %v7216
        %v7448 = vpop.f32.mrf.mxu0
        %v7449 = vadd.f32 %v7260, %v7448
        %v7450 = vpop.f32.mrf.mxu0
        %v7451 = vadd.f32 %v7260, %v7450
        %7452 = vmatmul.bf16.gmra.mxu0 %v7218
        %v7453 = vpop.f32.mrf.mxu0
        %v7454 = vadd.f32 %v7260, %v7453
        %v7455 = vpop.f32.mrf.mxu0
        %v7456 = vadd.f32 %v7260, %v7455
        %7457 = vmatmul.bf16.gmra.mxu0 %v7220
        %v7458 = vpop.f32.mrf.mxu0
        %v7459 = vadd.f32 %v7260, %v7458
        %v7460 = vpop.f32.mrf.mxu0
        %v7461 = vadd.f32 %v7260, %v7460
        %7462 = vmatmul.bf16.gmra.mxu0 %v7222
        %v7463 = vpop.f32.mrf.mxu0
        %v7464 = vadd.f32 %v7260, %v7463
        %v7465 = vpop.f32.mrf.mxu0
        %v7466 = vadd.f32 %v7260, %v7465
        %7467 = vmatmul.bf16.gmra.mxu0 %v7224
        %v7468 = vpop.f32.mrf.mxu0
        %v7469 = vadd.f32 %v7260, %v7468
        %v7470 = vpop.f32.mrf.mxu0
        %v7471 = vadd.f32 %v7260, %v7470
        %7472 = vdwg.mxu0
        %7473 = vmatpush.bf16.msra.mxu0 %v7390
        %7474 = vmatpush.bf16.msra.mxu0 %v7388
        %7475 = vmatpush.bf16.msra.mxu0 %v7386
        %7476 = vmatpush.bf16.msra.mxu0 %v7384
        %7477 = vmatpush.bf16.msra.mxu0 %v7382
        %7478 = vmatpush.bf16.msra.mxu0 %v7380
        %7479 = vmatpush.bf16.msra.mxu0 %v7378
        %7480 = vmatpush.bf16.msra.mxu0 %v7376
        %7481 = vmatmul.bf16.gmra.mxu0 %v7211
        %v7482 = vpop.f32.mrf.mxu0
        %v7483 = vadd.f32 %v7434, %v7482
        %v7484 = vpop.f32.mrf.mxu0
        %v7485 = vadd.f32 %v7436, %v7484
        %7486 = vmatmul.bf16.gmra.mxu0 %v7213
        %v7487 = vpop.f32.mrf.mxu0
        %v7488 = vadd.f32 %v7439, %v7487
        %v7489 = vpop.f32.mrf.mxu0
        %v7490 = vadd.f32 %v7441, %v7489
        %7491 = vmatmul.bf16.gmra.mxu0 %v7215
        %v7492 = vpop.f32.mrf.mxu0
        %v7493 = vadd.f32 %v7444, %v7492
        %v7494 = vpop.f32.mrf.mxu0
        %v7495 = vadd.f32 %v7446, %v7494
        %7496 = vmatmul.bf16.gmra.mxu0 %v7217
        %v7497 = vpop.f32.mrf.mxu0
        %v7498 = vadd.f32 %v7449, %v7497
        %v7499 = vpop.f32.mrf.mxu0
        %v7500 = vadd.f32 %v7451, %v7499
        %7501 = vmatmul.bf16.gmra.mxu0 %v7219
        %v7502 = vpop.f32.mrf.mxu0
        %v7503 = vadd.f32 %v7454, %v7502
        %v7504 = vpop.f32.mrf.mxu0
        %v7505 = vadd.f32 %v7456, %v7504
        %7506 = vmatmul.bf16.gmra.mxu0 %v7221
        %v7507 = vpop.f32.mrf.mxu0
        %v7508 = vadd.f32 %v7459, %v7507
        %v7509 = vpop.f32.mrf.mxu0
        %v7510 = vadd.f32 %v7461, %v7509
        %7511 = vmatmul.bf16.gmra.mxu0 %v7223
        %v7512 = vpop.f32.mrf.mxu0
        %v7513 = vadd.f32 %v7464, %v7512
        %v7514 = vpop.f32.mrf.mxu0
        %v7515 = vadd.f32 %v7466, %v7514
        %7516 = vmatmul.bf16.gmra.mxu0 %v7225
        %v7517 = vpop.f32.mrf.mxu0
        %v7518 = vadd.f32 %v7469, %v7517
        %v7519 = vpop.f32.mrf.mxu0
        %v7520 = vadd.f32 %v7471, %v7519
        %7521 = vdwg.mxu0
        %7522 = vmatpush.bf16.msra.mxu0 %v7375
        %7523 = vmatpush.bf16.msra.mxu0 %v7373
        %7524 = vmatpush.bf16.msra.mxu0 %v7371
        %7525 = vmatpush.bf16.msra.mxu0 %v7369
        %7526 = vmatpush.bf16.msra.mxu0 %v7367
        %7527 = vmatpush.bf16.msra.mxu0 %v7365
        %7528 = vmatpush.bf16.msra.mxu0 %v7363
        %7529 = vmatpush.bf16.msra.mxu0 %v7361
        %7530 = vmatmul.bf16.gmra.mxu0 %v7210
        %v7531 = vpop.f32.mrf.mxu0
        %v7532 = vadd.f32 %v7261, %v7531
        %v7533 = vpop.f32.mrf.mxu0
        %v7534 = vadd.f32 %v7261, %v7533
        %7535 = vmatmul.bf16.gmra.mxu0 %v7212
        %v7536 = vpop.f32.mrf.mxu0
        %v7537 = vadd.f32 %v7261, %v7536
        %v7538 = vpop.f32.mrf.mxu0
        %v7539 = vadd.f32 %v7261, %v7538
        %7540 = vmatmul.bf16.gmra.mxu0 %v7214
        %v7541 = vpop.f32.mrf.mxu0
        %v7542 = vadd.f32 %v7261, %v7541
        %v7543 = vpop.f32.mrf.mxu0
        %v7544 = vadd.f32 %v7261, %v7543
        %7545 = vmatmul.bf16.gmra.mxu0 %v7216
        %v7546 = vpop.f32.mrf.mxu0
        %v7547 = vadd.f32 %v7261, %v7546
        %v7548 = vpop.f32.mrf.mxu0
        %v7549 = vadd.f32 %v7261, %v7548
        %7550 = vmatmul.bf16.gmra.mxu0 %v7218
        %v7551 = vpop.f32.mrf.mxu0
        %v7552 = vadd.f32 %v7261, %v7551
        %v7553 = vpop.f32.mrf.mxu0
        %v7554 = vadd.f32 %v7261, %v7553
        %7555 = vmatmul.bf16.gmra.mxu0 %v7220
        %v7556 = vpop.f32.mrf.mxu0
        %v7557 = vadd.f32 %v7261, %v7556
        %v7558 = vpop.f32.mrf.mxu0
        %v7559 = vadd.f32 %v7261, %v7558
        %7560 = vmatmul.bf16.gmra.mxu0 %v7222
        %v7561 = vpop.f32.mrf.mxu0
        %v7562 = vadd.f32 %v7261, %v7561
        %v7563 = vpop.f32.mrf.mxu0
        %v7564 = vadd.f32 %v7261, %v7563
        %7565 = vmatmul.bf16.gmra.mxu0 %v7224
        %v7566 = vpop.f32.mrf.mxu0
        %v7567 = vadd.f32 %v7261, %v7566
        %v7568 = vpop.f32.mrf.mxu0
        %v7569 = vadd.f32 %v7261, %v7568
        %7570 = vdwg.mxu0
        %7571 = vmatpush.bf16.msra.mxu0 %v7391
        %7572 = vmatpush.bf16.msra.mxu0 %v7389
        %7573 = vmatpush.bf16.msra.mxu0 %v7387
        %7574 = vmatpush.bf16.msra.mxu0 %v7385
        %7575 = vmatpush.bf16.msra.mxu0 %v7383
        %7576 = vmatpush.bf16.msra.mxu0 %v7381
        %7577 = vmatpush.bf16.msra.mxu0 %v7379
        %7578 = vmatpush.bf16.msra.mxu0 %v7377
        %7579 = vmatmul.bf16.gmra.mxu0 %v7211
        %v7580 = vpop.f32.mrf.mxu0
        %v7581 = vadd.f32 %v7532, %v7580
        %v7582 = vpop.f32.mrf.mxu0
        %v7583 = vadd.f32 %v7534, %v7582
        %7584 = vmatmul.bf16.gmra.mxu0 %v7213
        %v7585 = vpop.f32.mrf.mxu0
        %v7586 = vadd.f32 %v7537, %v7585
        %v7587 = vpop.f32.mrf.mxu0
        %v7588 = vadd.f32 %v7539, %v7587
        %7589 = vmatmul.bf16.gmra.mxu0 %v7215
        %v7590 = vpop.f32.mrf.mxu0
        %v7591 = vadd.f32 %v7542, %v7590
        %v7592 = vpop.f32.mrf.mxu0
        %v7593 = vadd.f32 %v7544, %v7592
        %7594 = vmatmul.bf16.gmra.mxu0 %v7217
        %v7595 = vpop.f32.mrf.mxu0
        %v7596 = vadd.f32 %v7547, %v7595
        %v7597 = vpop.f32.mrf.mxu0
        %v7598 = vadd.f32 %v7549, %v7597
        %7599 = vmatmul.bf16.gmra.mxu0 %v7219
        %v7600 = vpop.f32.mrf.mxu0
        %v7601 = vadd.f32 %v7552, %v7600
        %v7602 = vpop.f32.mrf.mxu0
        %v7603 = vadd.f32 %v7554, %v7602
        %7604 = vmatmul.bf16.gmra.mxu0 %v7221
        %v7605 = vpop.f32.mrf.mxu0
        %v7606 = vadd.f32 %v7557, %v7605
        %v7607 = vpop.f32.mrf.mxu0
        %v7608 = vadd.f32 %v7559, %v7607
        %7609 = vmatmul.bf16.gmra.mxu0 %v7223
        %v7610 = vpop.f32.mrf.mxu0
        %v7611 = vadd.f32 %v7562, %v7610
        %v7612 = vpop.f32.mrf.mxu0
        %v7613 = vadd.f32 %v7564, %v7612
        %7614 = vmatmul.bf16.gmra.mxu0 %v7225
        %v7615 = vpop.f32.mrf.mxu0
        %v7616 = vadd.f32 %v7567, %v7615
        %v7617 = vpop.f32.mrf.mxu0
        %v7618 = vadd.f32 %v7569, %v7617
        %7619 = vdwg.mxu0
        %v7620 = vmax.f32 %v7483, 0.0
        %v7621 = vmax.f32 %v7581, 0.0
        %v7622 = vmax.f32 %v7485, 0.0
        %v7623 = vmax.f32 %v7583, 0.0
        %v7624 = vmax.f32 %v7488, 0.0
        %v7625 = vmax.f32 %v7586, 0.0
        %v7626 = vmax.f32 %v7490, 0.0
        %v7627 = vmax.f32 %v7588, 0.0
        %v7628 = vmax.f32 %v7493, 0.0
        %v7629 = vmax.f32 %v7591, 0.0
        %v7630 = vmax.f32 %v7495, 0.0
        %v7631 = vmax.f32 %v7593, 0.0
        %v7632 = vmax.f32 %v7498, 0.0
        %v7633 = vmax.f32 %v7596, 0.0
        %v7634 = vmax.f32 %v7500, 0.0
        %v7635 = vmax.f32 %v7598, 0.0
        %v7636 = vmax.f32 %v7503, 0.0
        %v7637 = vmax.f32 %v7601, 0.0
        %v7638 = vmax.f32 %v7505, 0.0
        %v7639 = vmax.f32 %v7603, 0.0
        %v7640 = vmax.f32 %v7508, 0.0
        %v7641 = vmax.f32 %v7606, 0.0
        %v7642 = vmax.f32 %v7510, 0.0
        %v7643 = vmax.f32 %v7608, 0.0
        %v7644 = vmax.f32 %v7513, 0.0
        %v7645 = vmax.f32 %v7611, 0.0
        %v7646 = vmax.f32 %v7515, 0.0
        %v7647 = vmax.f32 %v7613, 0.0
        %v7648 = vmax.f32 %v7518, 0.0
        %v7649 = vmax.f32 %v7616, 0.0
        %v7650 = vmax.f32 %v7520, 0.0
        %v7651 = vmax.f32 %v7618, 0.0
        %v7652 = vpack.c.bf16 %v7622, %v7620
        %v7653 = vpack.c.bf16 %v7623, %v7621
        %v7654 = vpack.c.bf16 %v7626, %v7624
        %v7655 = vpack.c.bf16 %v7627, %v7625
        %v7656 = vpack.c.bf16 %v7630, %v7628
        %v7657 = vpack.c.bf16 %v7631, %v7629
        %v7658 = vpack.c.bf16 %v7634, %v7632
        %v7659 = vpack.c.bf16 %v7635, %v7633
        %v7660 = vpack.c.bf16 %v7638, %v7636
        %v7661 = vpack.c.bf16 %v7639, %v7637
        %v7662 = vpack.c.bf16 %v7642, %v7640
        %v7663 = vpack.c.bf16 %v7643, %v7641
        %v7664 = vpack.c.bf16 %v7646, %v7644
        %v7665 = vpack.c.bf16 %v7647, %v7645
        %v7666 = vpack.c.bf16 %v7650, %v7648
        %v7667 = vpack.c.bf16 %v7651, %v7649
        %v7668 = vld [vmem:[#allocation26] sm:$0xff]
        %v7669 = vld [vmem:[#allocation26 + $0x8] sm:$0xff]
        %v7670 = vld [vmem:[#allocation26 + $0x10] sm:$0xff]
        %v7671 = vld [vmem:[#allocation26 + $0x18] sm:$0xff]
        %v7672 = vld [vmem:[#allocation26 + $0x20] sm:$0xff]
        %v7673 = vld [vmem:[#allocation26 + $0x28] sm:$0xff]
        %v7674 = vld [vmem:[#allocation26 + $0x30] sm:$0xff]
        %v7675 = vld [vmem:[#allocation26 + $0x38] sm:$0xff]
        %v7676 = vld [vmem:[#allocation26 + $0x40] sm:$0xff]
        %v7677 = vld [vmem:[#allocation26 + $0x48] sm:$0xff]
        %v7678 = vld [vmem:[#allocation26 + $0x50] sm:$0xff]
        %v7679 = vld [vmem:[#allocation26 + $0x58] sm:$0xff]
        %v7680 = vld [vmem:[#allocation26 + $0x60] sm:$0xff]
        %v7681 = vld [vmem:[#allocation26 + $0x68] sm:$0xff]
        %v7682 = vld [vmem:[#allocation26 + $0x70] sm:$0xff]
        %v7683 = vld [vmem:[#allocation26 + $0x78] sm:$0xff]
        %v7684 = vld [vmem:[#allocation26 + $0x80] sm:$0xff]
        %v7685 = vld [vmem:[#allocation26 + $0x88] sm:$0xff]
        %v7686 = vld [vmem:[#allocation26 + $0x90] sm:$0xff]
        %v7687 = vld [vmem:[#allocation26 + $0x98] sm:$0xff]
        %v7688 = vld [vmem:[#allocation26 + $0xa0] sm:$0xff]
        %v7689 = vld [vmem:[#allocation26 + $0xa8] sm:$0xff]
        %v7690 = vld [vmem:[#allocation26 + $0xb0] sm:$0xff]
        %v7691 = vld [vmem:[#allocation26 + $0xb8] sm:$0xff]
        %v7692 = vld [vmem:[#allocation26 + $0xc0] sm:$0xff]
        %v7693 = vld [vmem:[#allocation26 + $0xc8] sm:$0xff]
        %v7694 = vld [vmem:[#allocation26 + $0xd0] sm:$0xff]
        %v7695 = vld [vmem:[#allocation26 + $0xd8] sm:$0xff]
        %v7696 = vld [vmem:[#allocation26 + $0xe0] sm:$0xff]
        %v7697 = vld [vmem:[#allocation26 + $0xe8] sm:$0xff]
        %v7698 = vld [vmem:[#allocation26 + $0xf0] sm:$0xff]
        %v7699 = vld [vmem:[#allocation26 + $0xf8] sm:$0xff]
        %v7700 = vld [vmem:[%s49] sm:$0x3]
        %v7702 = vperm.slane %v7700, 0
        %v7703 = vperm.slane %v7700, 1
        %v7738 = vunpack.c.l.b16 %v7668
        %v7739 = vunpack.c.h.b16 %v7668
        %v7740 = vunpack.c.l.b16 %v7669
        %v7741 = vunpack.c.h.b16 %v7669
        %v7742 = vunpack.c.l.b16 %v7670
        %v7743 = vunpack.c.h.b16 %v7670
        %v7744 = vunpack.c.l.b16 %v7671
        %v7745 = vunpack.c.h.b16 %v7671
        %v7746 = vunpack.c.l.b16 %v7672
        %v7747 = vunpack.c.h.b16 %v7672
        %v7748 = vunpack.c.l.b16 %v7673
        %v7749 = vunpack.c.h.b16 %v7673
        %v7750 = vunpack.c.l.b16 %v7674
        %v7751 = vunpack.c.h.b16 %v7674
        %v7752 = vunpack.c.l.b16 %v7675
        %v7753 = vunpack.c.h.b16 %v7675
        %v7754 = vunpack.c.l.b16 %v7676
        %v7755 = vunpack.c.h.b16 %v7676
        %v7756 = vunpack.c.l.b16 %v7677
        %v7757 = vunpack.c.h.b16 %v7677
        %v7758 = vunpack.c.l.b16 %v7678
        %v7759 = vunpack.c.h.b16 %v7678
        %v7760 = vunpack.c.l.b16 %v7679
        %v7761 = vunpack.c.h.b16 %v7679
        %v7762 = vunpack.c.l.b16 %v7680
        %v7763 = vunpack.c.h.b16 %v7680
        %v7764 = vunpack.c.l.b16 %v7681
        %v7765 = vunpack.c.h.b16 %v7681
        %v7766 = vunpack.c.l.b16 %v7682
        %v7767 = vunpack.c.h.b16 %v7682
        %v7768 = vunpack.c.l.b16 %v7683
        %v7769 = vunpack.c.h.b16 %v7683
        %v7770 = vunpack.c.l.b16 %v7684
        %v7771 = vunpack.c.h.b16 %v7684
        %v7772 = vunpack.c.l.b16 %v7685
        %v7773 = vunpack.c.h.b16 %v7685
        %v7774 = vunpack.c.l.b16 %v7686
        %v7775 = vunpack.c.h.b16 %v7686
        %v7776 = vunpack.c.l.b16 %v7687
        %v7777 = vunpack.c.h.b16 %v7687
        %v7778 = vunpack.c.l.b16 %v7688
        %v7779 = vunpack.c.h.b16 %v7688
        %v7780 = vunpack.c.l.b16 %v7689
        %v7781 = vunpack.c.h.b16 %v7689
        %v7782 = vunpack.c.l.b16 %v7690
        %v7783 = vunpack.c.h.b16 %v7690
        %v7784 = vunpack.c.l.b16 %v7691
        %v7785 = vunpack.c.h.b16 %v7691
        %v7786 = vunpack.c.l.b16 %v7692
        %v7787 = vunpack.c.h.b16 %v7692
        %v7788 = vunpack.c.l.b16 %v7693
        %v7789 = vunpack.c.h.b16 %v7693
        %v7790 = vunpack.c.l.b16 %v7694
        %v7791 = vunpack.c.h.b16 %v7694
        %v7792 = vunpack.c.l.b16 %v7695
        %v7793 = vunpack.c.h.b16 %v7695
        %v7794 = vunpack.c.l.b16 %v7696
        %v7795 = vunpack.c.h.b16 %v7696
        %v7796 = vunpack.c.l.b16 %v7697
        %v7797 = vunpack.c.h.b16 %v7697
        %v7798 = vunpack.c.l.b16 %v7698
        %v7799 = vunpack.c.h.b16 %v7698
        %v7800 = vunpack.c.l.b16 %v7699
        %v7801 = vunpack.c.h.b16 %v7699
        %v7802 = vpack.c.b16 %v7740, %v7738
        %v7803 = vpack.c.b16 %v7741, %v7739
        %v7804 = vpack.c.b16 %v7744, %v7742
        %v7805 = vpack.c.b16 %v7745, %v7743
        %v7806 = vpack.c.b16 %v7748, %v7746
        %v7807 = vpack.c.b16 %v7749, %v7747
        %v7808 = vpack.c.b16 %v7752, %v7750
        %v7809 = vpack.c.b16 %v7753, %v7751
        %v7810 = vpack.c.b16 %v7756, %v7754
        %v7811 = vpack.c.b16 %v7757, %v7755
        %v7812 = vpack.c.b16 %v7760, %v7758
        %v7813 = vpack.c.b16 %v7761, %v7759
        %v7814 = vpack.c.b16 %v7764, %v7762
        %v7815 = vpack.c.b16 %v7765, %v7763
        %v7816 = vpack.c.b16 %v7768, %v7766
        %v7817 = vpack.c.b16 %v7769, %v7767
        %v7818 = vpack.c.b16 %v7772, %v7770
        %v7819 = vpack.c.b16 %v7773, %v7771
        %v7820 = vpack.c.b16 %v7776, %v7774
        %v7821 = vpack.c.b16 %v7777, %v7775
        %v7822 = vpack.c.b16 %v7780, %v7778
        %v7823 = vpack.c.b16 %v7781, %v7779
        %v7824 = vpack.c.b16 %v7784, %v7782
        %v7825 = vpack.c.b16 %v7785, %v7783
        %v7826 = vpack.c.b16 %v7788, %v7786
        %v7827 = vpack.c.b16 %v7789, %v7787
        %v7828 = vpack.c.b16 %v7792, %v7790
        %v7829 = vpack.c.b16 %v7793, %v7791
        %v7830 = vpack.c.b16 %v7796, %v7794
        %v7831 = vpack.c.b16 %v7797, %v7795
        %v7832 = vpack.c.b16 %v7800, %v7798
        %v7833 = vpack.c.b16 %v7801, %v7799
        %7866 = vmatpush.bf16.msra.mxu0 %v7816
        %7867 = vmatpush.bf16.msra.mxu0 %v7814
        %7868 = vmatpush.bf16.msra.mxu0 %v7812
        %7869 = vmatpush.bf16.msra.mxu0 %v7810
        %7870 = vmatpush.bf16.msra.mxu0 %v7808
        %7871 = vmatpush.bf16.msra.mxu0 %v7806
        %7872 = vmatpush.bf16.msra.mxu0 %v7804
        %7873 = vmatpush.bf16.msra.mxu0 %v7802
        %7874 = vmatmul.bf16.gmra.mxu0 %v7652
        %v7875 = vpop.f32.mrf.mxu0
        %v7876 = vadd.f32 %v7702, %v7875
        %v7877 = vpop.f32.mrf.mxu0
        %v7878 = vadd.f32 %v7702, %v7877
        %7879 = vmatmul.bf16.gmra.mxu0 %v7654
        %v7880 = vpop.f32.mrf.mxu0
        %v7881 = vadd.f32 %v7702, %v7880
        %v7882 = vpop.f32.mrf.mxu0
        %v7883 = vadd.f32 %v7702, %v7882
        %7884 = vmatmul.bf16.gmra.mxu0 %v7656
        %v7885 = vpop.f32.mrf.mxu0
        %v7886 = vadd.f32 %v7702, %v7885
        %v7887 = vpop.f32.mrf.mxu0
        %v7888 = vadd.f32 %v7702, %v7887
        %7889 = vmatmul.bf16.gmra.mxu0 %v7658
        %v7890 = vpop.f32.mrf.mxu0
        %v7891 = vadd.f32 %v7702, %v7890
        %v7892 = vpop.f32.mrf.mxu0
        %v7893 = vadd.f32 %v7702, %v7892
        %7894 = vmatmul.bf16.gmra.mxu0 %v7660
        %v7895 = vpop.f32.mrf.mxu0
        %v7896 = vadd.f32 %v7702, %v7895
        %v7897 = vpop.f32.mrf.mxu0
        %v7898 = vadd.f32 %v7702, %v7897
        %7899 = vmatmul.bf16.gmra.mxu0 %v7662
        %v7900 = vpop.f32.mrf.mxu0
        %v7901 = vadd.f32 %v7702, %v7900
        %v7902 = vpop.f32.mrf.mxu0
        %v7903 = vadd.f32 %v7702, %v7902
        %7904 = vmatmul.bf16.gmra.mxu0 %v7664
        %v7905 = vpop.f32.mrf.mxu0
        %v7906 = vadd.f32 %v7702, %v7905
        %v7907 = vpop.f32.mrf.mxu0
        %v7908 = vadd.f32 %v7702, %v7907
        %7909 = vmatmul.bf16.gmra.mxu0 %v7666
        %v7910 = vpop.f32.mrf.mxu0
        %v7911 = vadd.f32 %v7702, %v7910
        %v7912 = vpop.f32.mrf.mxu0
        %v7913 = vadd.f32 %v7702, %v7912
        %7914 = vdwg.mxu0
        %7915 = vmatpush.bf16.msra.mxu0 %v7832
        %7916 = vmatpush.bf16.msra.mxu0 %v7830
        %7917 = vmatpush.bf16.msra.mxu0 %v7828
        %7918 = vmatpush.bf16.msra.mxu0 %v7826
        %7919 = vmatpush.bf16.msra.mxu0 %v7824
        %7920 = vmatpush.bf16.msra.mxu0 %v7822
        %7921 = vmatpush.bf16.msra.mxu0 %v7820
        %7922 = vmatpush.bf16.msra.mxu0 %v7818
        %7923 = vmatmul.bf16.gmra.mxu0 %v7653
        %v7924 = vpop.f32.mrf.mxu0
        %v7925 = vadd.f32 %v7876, %v7924
        %v7926 = vpop.f32.mrf.mxu0
        %v7927 = vadd.f32 %v7878, %v7926
        %7928 = vmatmul.bf16.gmra.mxu0 %v7655
        %v7929 = vpop.f32.mrf.mxu0
        %v7930 = vadd.f32 %v7881, %v7929
        %v7931 = vpop.f32.mrf.mxu0
        %v7932 = vadd.f32 %v7883, %v7931
        %7933 = vmatmul.bf16.gmra.mxu0 %v7657
        %v7934 = vpop.f32.mrf.mxu0
        %v7935 = vadd.f32 %v7886, %v7934
        %v7936 = vpop.f32.mrf.mxu0
        %v7937 = vadd.f32 %v7888, %v7936
        %7938 = vmatmul.bf16.gmra.mxu0 %v7659
        %v7939 = vpop.f32.mrf.mxu0
        %v7940 = vadd.f32 %v7891, %v7939
        %v7941 = vpop.f32.mrf.mxu0
        %v7942 = vadd.f32 %v7893, %v7941
        %7943 = vmatmul.bf16.gmra.mxu0 %v7661
        %v7944 = vpop.f32.mrf.mxu0
        %v7945 = vadd.f32 %v7896, %v7944
        %v7946 = vpop.f32.mrf.mxu0
        %v7947 = vadd.f32 %v7898, %v7946
        %7948 = vmatmul.bf16.gmra.mxu0 %v7663
        %v7949 = vpop.f32.mrf.mxu0
        %v7950 = vadd.f32 %v7901, %v7949
        %v7951 = vpop.f32.mrf.mxu0
        %v7952 = vadd.f32 %v7903, %v7951
        %7953 = vmatmul.bf16.gmra.mxu0 %v7665
        %v7954 = vpop.f32.mrf.mxu0
        %v7955 = vadd.f32 %v7906, %v7954
        %v7956 = vpop.f32.mrf.mxu0
        %v7957 = vadd.f32 %v7908, %v7956
        %7958 = vmatmul.bf16.gmra.mxu0 %v7667
        %v7959 = vpop.f32.mrf.mxu0
        %v7960 = vadd.f32 %v7911, %v7959
        %v7961 = vpop.f32.mrf.mxu0
        %v7962 = vadd.f32 %v7913, %v7961
        %7963 = vdwg.mxu0
        %7964 = vmatpush.bf16.msra.mxu0 %v7817
        %7965 = vmatpush.bf16.msra.mxu0 %v7815
        %7966 = vmatpush.bf16.msra.mxu0 %v7813
        %7967 = vmatpush.bf16.msra.mxu0 %v7811
        %7968 = vmatpush.bf16.msra.mxu0 %v7809
        %7969 = vmatpush.bf16.msra.mxu0 %v7807
        %7970 = vmatpush.bf16.msra.mxu0 %v7805
        %7971 = vmatpush.bf16.msra.mxu0 %v7803
        %7972 = vmatmul.bf16.gmra.mxu0 %v7652
        %v7973 = vpop.f32.mrf.mxu0
        %v7974 = vadd.f32 %v7703, %v7973
        %v7975 = vpop.f32.mrf.mxu0
        %v7976 = vadd.f32 %v7703, %v7975
        %7977 = vmatmul.bf16.gmra.mxu0 %v7654
        %v7978 = vpop.f32.mrf.mxu0
        %v7979 = vadd.f32 %v7703, %v7978
        %v7980 = vpop.f32.mrf.mxu0
        %v7981 = vadd.f32 %v7703, %v7980
        %7982 = vmatmul.bf16.gmra.mxu0 %v7656
        %v7983 = vpop.f32.mrf.mxu0
        %v7984 = vadd.f32 %v7703, %v7983
        %v7985 = vpop.f32.mrf.mxu0
        %v7986 = vadd.f32 %v7703, %v7985
        %7987 = vmatmul.bf16.gmra.mxu0 %v7658
        %v7988 = vpop.f32.mrf.mxu0
        %v7989 = vadd.f32 %v7703, %v7988
        %v7990 = vpop.f32.mrf.mxu0
        %v7991 = vadd.f32 %v7703, %v7990
        %7992 = vmatmul.bf16.gmra.mxu0 %v7660
        %v7993 = vpop.f32.mrf.mxu0
        %v7994 = vadd.f32 %v7703, %v7993
        %v7995 = vpop.f32.mrf.mxu0
        %v7996 = vadd.f32 %v7703, %v7995
        %7997 = vmatmul.bf16.gmra.mxu0 %v7662
        %v7998 = vpop.f32.mrf.mxu0
        %v7999 = vadd.f32 %v7703, %v7998
        %v8000 = vpop.f32.mrf.mxu0
        %v8001 = vadd.f32 %v7703, %v8000
        %8002 = vmatmul.bf16.gmra.mxu0 %v7664
        %v8003 = vpop.f32.mrf.mxu0
        %v8004 = vadd.f32 %v7703, %v8003
        %v8005 = vpop.f32.mrf.mxu0
        %v8006 = vadd.f32 %v7703, %v8005
        %8007 = vmatmul.bf16.gmra.mxu0 %v7666
        %v8008 = vpop.f32.mrf.mxu0
        %v8009 = vadd.f32 %v7703, %v8008
        %v8010 = vpop.f32.mrf.mxu0
        %v8011 = vadd.f32 %v7703, %v8010
        %8012 = vdwg.mxu0
        %8013 = vmatpush.bf16.msra.mxu0 %v7833
        %8014 = vmatpush.bf16.msra.mxu0 %v7831
        %8015 = vmatpush.bf16.msra.mxu0 %v7829
        %8016 = vmatpush.bf16.msra.mxu0 %v7827
        %8017 = vmatpush.bf16.msra.mxu0 %v7825
        %8018 = vmatpush.bf16.msra.mxu0 %v7823
        %8019 = vmatpush.bf16.msra.mxu0 %v7821
        %8020 = vmatpush.bf16.msra.mxu0 %v7819
        %8021 = vmatmul.bf16.gmra.mxu0 %v7653
        %v8022 = vpop.f32.mrf.mxu0
        %v8023 = vadd.f32 %v7974, %v8022
        %v8024 = vpop.f32.mrf.mxu0
        %v8025 = vadd.f32 %v7976, %v8024
        %8026 = vmatmul.bf16.gmra.mxu0 %v7655
        %v8027 = vpop.f32.mrf.mxu0
        %v8028 = vadd.f32 %v7979, %v8027
        %v8029 = vpop.f32.mrf.mxu0
        %v8030 = vadd.f32 %v7981, %v8029
        %8031 = vmatmul.bf16.gmra.mxu0 %v7657
        %v8032 = vpop.f32.mrf.mxu0
        %v8033 = vadd.f32 %v7984, %v8032
        %v8034 = vpop.f32.mrf.mxu0
        %v8035 = vadd.f32 %v7986, %v8034
        %8036 = vmatmul.bf16.gmra.mxu0 %v7659
        %v8037 = vpop.f32.mrf.mxu0
        %v8038 = vadd.f32 %v7989, %v8037
        %v8039 = vpop.f32.mrf.mxu0
        %v8040 = vadd.f32 %v7991, %v8039
        %8041 = vmatmul.bf16.gmra.mxu0 %v7661
        %v8042 = vpop.f32.mrf.mxu0
        %v8043 = vadd.f32 %v7994, %v8042
        %v8044 = vpop.f32.mrf.mxu0
        %v8045 = vadd.f32 %v7996, %v8044
        %8046 = vmatmul.bf16.gmra.mxu0 %v7663
        %v8047 = vpop.f32.mrf.mxu0
        %v8048 = vadd.f32 %v7999, %v8047
        %v8049 = vpop.f32.mrf.mxu0
        %v8050 = vadd.f32 %v8001, %v8049
        %8051 = vmatmul.bf16.gmra.mxu0 %v7665
        %v8052 = vpop.f32.mrf.mxu0
        %v8053 = vadd.f32 %v8004, %v8052
        %v8054 = vpop.f32.mrf.mxu0
        %v8055 = vadd.f32 %v8006, %v8054
        %8056 = vmatmul.bf16.gmra.mxu0 %v7667
        %v8057 = vpop.f32.mrf.mxu0
        %v8058 = vadd.f32 %v8009, %v8057
        %v8059 = vpop.f32.mrf.mxu0
        %v8060 = vadd.f32 %v8011, %v8059
        %8061 = vdwg.mxu0
        %v8062 = vpack.c.bf16 %v7927, %v7925
        %v8063 = vpack.c.bf16 %v7932, %v7930
        %v8064 = vpack.c.bf16 %v7937, %v7935
        %v8065 = vpack.c.bf16 %v7942, %v7940
        %v8066 = vpack.c.bf16 %v7947, %v7945
        %v8067 = vpack.c.bf16 %v7952, %v7950
        %v8068 = vpack.c.bf16 %v7957, %v7955
        %v8069 = vpack.c.bf16 %v7962, %v7960
        %v8070 = vld [vmem:[#allocation28] sm:$0xff]
        %v8071 = vld [vmem:[#allocation28 + $0x8] sm:$0xff]
        %v8072 = vld [vmem:[#allocation28 + $0x10] sm:$0xff]
        %v8073 = vld [vmem:[#allocation28 + $0x18] sm:$0xff]
        %v8074 = vld [vmem:[#allocation28 + $0x20] sm:$0xff]
        %v8075 = vld [vmem:[#allocation28 + $0x28] sm:$0xff]
        %v8076 = vld [vmem:[#allocation28 + $0x30] sm:$0xff]
        %v8077 = vld [vmem:[#allocation28 + $0x38] sm:$0xff]
        %v8078 = vld [vmem:[#allocation28 + $0x40] sm:$0xff]
        %v8079 = vld [vmem:[#allocation28 + $0x48] sm:$0xff]
        %v8080 = vld [vmem:[#allocation28 + $0x50] sm:$0xff]
        %v8081 = vld [vmem:[#allocation28 + $0x58] sm:$0xff]
        %v8082 = vld [vmem:[#allocation28 + $0x60] sm:$0xff]
        %v8083 = vld [vmem:[#allocation28 + $0x68] sm:$0xff]
        %v8084 = vld [vmem:[#allocation28 + $0x70] sm:$0xff]
        %v8085 = vld [vmem:[#allocation28 + $0x78] sm:$0xff]
        %v8086 = vld [vmem:[#allocation29] sm:$0xff]
        %v8087 = vld [vmem:[#allocation29 + $0x8] sm:$0xff]
        %v8088 = vld [vmem:[#allocation29 + $0x10] sm:$0xff]
        %v8089 = vld [vmem:[#allocation29 + $0x18] sm:$0xff]
        %v8090 = vld [vmem:[#allocation29 + $0x20] sm:$0xff]
        %v8091 = vld [vmem:[#allocation29 + $0x28] sm:$0xff]
        %v8092 = vld [vmem:[#allocation29 + $0x30] sm:$0xff]
        %v8093 = vld [vmem:[#allocation29 + $0x38] sm:$0xff]
        %v8094 = vld [vmem:[#allocation29 + $0x40] sm:$0xff]
        %v8095 = vld [vmem:[#allocation29 + $0x48] sm:$0xff]
        %v8096 = vld [vmem:[#allocation29 + $0x50] sm:$0xff]
        %v8097 = vld [vmem:[#allocation29 + $0x58] sm:$0xff]
        %v8098 = vld [vmem:[#allocation29 + $0x60] sm:$0xff]
        %v8099 = vld [vmem:[#allocation29 + $0x68] sm:$0xff]
        %v8100 = vld [vmem:[#allocation29 + $0x70] sm:$0xff]
        %v8101 = vld [vmem:[#allocation29 + $0x78] sm:$0xff]
        %v8118 = vunpack.c.l.b16 %v8086
        %v8119 = vunpack.c.h.b16 %v8086
        %v8120 = vunpack.c.l.b16 %v8087
        %v8121 = vunpack.c.h.b16 %v8087
        %v8122 = vunpack.c.l.b16 %v8088
        %v8123 = vunpack.c.h.b16 %v8088
        %v8124 = vunpack.c.l.b16 %v8089
        %v8125 = vunpack.c.h.b16 %v8089
        %v8126 = vunpack.c.l.b16 %v8090
        %v8127 = vunpack.c.h.b16 %v8090
        %v8128 = vunpack.c.l.b16 %v8091
        %v8129 = vunpack.c.h.b16 %v8091
        %v8130 = vunpack.c.l.b16 %v8092
        %v8131 = vunpack.c.h.b16 %v8092
        %v8132 = vunpack.c.l.b16 %v8093
        %v8133 = vunpack.c.h.b16 %v8093
        %v8134 = vunpack.c.l.b16 %v8094
        %v8135 = vunpack.c.h.b16 %v8094
        %v8136 = vunpack.c.l.b16 %v8095
        %v8137 = vunpack.c.h.b16 %v8095
        %v8138 = vunpack.c.l.b16 %v8096
        %v8139 = vunpack.c.h.b16 %v8096
        %v8140 = vunpack.c.l.b16 %v8097
        %v8141 = vunpack.c.h.b16 %v8097
        %v8142 = vunpack.c.l.b16 %v8098
        %v8143 = vunpack.c.h.b16 %v8098
        %v8144 = vunpack.c.l.b16 %v8099
        %v8145 = vunpack.c.h.b16 %v8099
        %v8146 = vunpack.c.l.b16 %v8100
        %v8147 = vunpack.c.h.b16 %v8100
        %v8148 = vunpack.c.l.b16 %v8101
        %v8149 = vunpack.c.h.b16 %v8101
        %v8150 = vpack.c.b16 %v8120, %v8118
        %v8151 = vpack.c.b16 %v8121, %v8119
        %v8152 = vpack.c.b16 %v8124, %v8122
        %v8153 = vpack.c.b16 %v8125, %v8123
        %v8154 = vpack.c.b16 %v8128, %v8126
        %v8155 = vpack.c.b16 %v8129, %v8127
        %v8156 = vpack.c.b16 %v8132, %v8130
        %v8157 = vpack.c.b16 %v8133, %v8131
        %v8158 = vpack.c.b16 %v8136, %v8134
        %v8159 = vpack.c.b16 %v8137, %v8135
        %v8160 = vpack.c.b16 %v8140, %v8138
        %v8161 = vpack.c.b16 %v8141, %v8139
        %v8162 = vpack.c.b16 %v8144, %v8142
        %v8163 = vpack.c.b16 %v8145, %v8143
        %v8164 = vpack.c.b16 %v8148, %v8146
        %v8165 = vpack.c.b16 %v8149, %v8147
        %8182 = vmatpush.bf16.msra.mxu0 %v8164
        %8183 = vmatpush.bf16.msra.mxu0 %v8162
        %8184 = vmatpush.bf16.msra.mxu0 %v8160
        %8185 = vmatpush.bf16.msra.mxu0 %v8158
        %8186 = vmatpush.bf16.msra.mxu0 %v8156
        %8187 = vmatpush.bf16.msra.mxu0 %v8154
        %8188 = vmatpush.bf16.msra.mxu0 %v8152
        %8189 = vmatpush.bf16.msra.mxu0 %v8150
        %8190 = vmatmul.bf16.gmra.mxu0 %v4092
        %v8191 = vpop.f32.mrf.mxu0
        %v8192 = vadd.f32 0.0, %v8191
        %v8193 = vpop.f32.mrf.mxu0
        %v8194 = vadd.f32 0.0, %v8193
        %8195 = vmatmul.bf16.gmra.mxu0 %v4093
        %v8196 = vpop.f32.mrf.mxu0
        %v8197 = vadd.f32 0.0, %v8196
        %v8198 = vpop.f32.mrf.mxu0
        %v8199 = vadd.f32 0.0, %v8198
        %8200 = vmatmul.bf16.gmra.mxu0 %v4094
        %v8201 = vpop.f32.mrf.mxu0
        %v8202 = vadd.f32 0.0, %v8201
        %v8203 = vpop.f32.mrf.mxu0
        %v8204 = vadd.f32 0.0, %v8203
        %8205 = vmatmul.bf16.gmra.mxu0 %v4095
        %v8206 = vpop.f32.mrf.mxu0
        %v8207 = vadd.f32 0.0, %v8206
        %v8208 = vpop.f32.mrf.mxu0
        %v8209 = vadd.f32 0.0, %v8208
        %8210 = vmatmul.bf16.gmra.mxu0 %v4096
        %v8211 = vpop.f32.mrf.mxu0
        %v8212 = vadd.f32 0.0, %v8211
        %v8213 = vpop.f32.mrf.mxu0
        %v8214 = vadd.f32 0.0, %v8213
        %8215 = vmatmul.bf16.gmra.mxu0 %v4097
        %v8216 = vpop.f32.mrf.mxu0
        %v8217 = vadd.f32 0.0, %v8216
        %v8218 = vpop.f32.mrf.mxu0
        %v8219 = vadd.f32 0.0, %v8218
        %8220 = vmatmul.bf16.gmra.mxu0 %v4098
        %v8221 = vpop.f32.mrf.mxu0
        %v8222 = vadd.f32 0.0, %v8221
        %v8223 = vpop.f32.mrf.mxu0
        %v8224 = vadd.f32 0.0, %v8223
        %8225 = vmatmul.bf16.gmra.mxu0 %v4099
        %v8226 = vpop.f32.mrf.mxu0
        %v8227 = vadd.f32 0.0, %v8226
        %v8228 = vpop.f32.mrf.mxu0
        %v8229 = vadd.f32 0.0, %v8228
        %8230 = vdwg.mxu0
        %8231 = vmatpush.bf16.msra.mxu0 %v8165
        %8232 = vmatpush.bf16.msra.mxu0 %v8163
        %8233 = vmatpush.bf16.msra.mxu0 %v8161
        %8234 = vmatpush.bf16.msra.mxu0 %v8159
        %8235 = vmatpush.bf16.msra.mxu0 %v8157
        %8236 = vmatpush.bf16.msra.mxu0 %v8155
        %8237 = vmatpush.bf16.msra.mxu0 %v8153
        %8238 = vmatpush.bf16.msra.mxu0 %v8151
        %8239 = vmatmul.bf16.gmra.mxu0 %v4092
        %v8240 = vpop.f32.mrf.mxu0
        %v8241 = vadd.f32 0.0, %v8240
        %v8242 = vpop.f32.mrf.mxu0
        %v8243 = vadd.f32 0.0, %v8242
        %8244 = vmatmul.bf16.gmra.mxu0 %v4093
        %v8245 = vpop.f32.mrf.mxu0
        %v8246 = vadd.f32 0.0, %v8245
        %v8247 = vpop.f32.mrf.mxu0
        %v8248 = vadd.f32 0.0, %v8247
        %8249 = vmatmul.bf16.gmra.mxu0 %v4094
        %v8250 = vpop.f32.mrf.mxu0
        %v8251 = vadd.f32 0.0, %v8250
        %v8252 = vpop.f32.mrf.mxu0
        %v8253 = vadd.f32 0.0, %v8252
        %8254 = vmatmul.bf16.gmra.mxu0 %v4095
        %v8255 = vpop.f32.mrf.mxu0
        %v8256 = vadd.f32 0.0, %v8255
        %v8257 = vpop.f32.mrf.mxu0
        %v8258 = vadd.f32 0.0, %v8257
        %8259 = vmatmul.bf16.gmra.mxu0 %v4096
        %v8260 = vpop.f32.mrf.mxu0
        %v8261 = vadd.f32 0.0, %v8260
        %v8262 = vpop.f32.mrf.mxu0
        %v8263 = vadd.f32 0.0, %v8262
        %8264 = vmatmul.bf16.gmra.mxu0 %v4097
        %v8265 = vpop.f32.mrf.mxu0
        %v8266 = vadd.f32 0.0, %v8265
        %v8267 = vpop.f32.mrf.mxu0
        %v8268 = vadd.f32 0.0, %v8267
        %8269 = vmatmul.bf16.gmra.mxu0 %v4098
        %v8270 = vpop.f32.mrf.mxu0
        %v8271 = vadd.f32 0.0, %v8270
        %v8272 = vpop.f32.mrf.mxu0
        %v8273 = vadd.f32 0.0, %v8272
        %8274 = vmatmul.bf16.gmra.mxu0 %v4099
        %v8275 = vpop.f32.mrf.mxu0
        %v8276 = vadd.f32 0.0, %v8275
        %v8277 = vpop.f32.mrf.mxu0
        %v8278 = vadd.f32 0.0, %v8277
        %8279 = vdwg.mxu0
        %v8296 = vunpack.c.l.b16 %v8070
        %v8297 = vunpack.c.h.b16 %v8070
        %v8298 = vunpack.c.l.b16 %v8071
        %v8299 = vunpack.c.h.b16 %v8071
        %v8300 = vunpack.c.l.b16 %v8072
        %v8301 = vunpack.c.h.b16 %v8072
        %v8302 = vunpack.c.l.b16 %v8073
        %v8303 = vunpack.c.h.b16 %v8073
        %v8304 = vunpack.c.l.b16 %v8074
        %v8305 = vunpack.c.h.b16 %v8074
        %v8306 = vunpack.c.l.b16 %v8075
        %v8307 = vunpack.c.h.b16 %v8075
        %v8308 = vunpack.c.l.b16 %v8076
        %v8309 = vunpack.c.h.b16 %v8076
        %v8310 = vunpack.c.l.b16 %v8077
        %v8311 = vunpack.c.h.b16 %v8077
        %v8312 = vunpack.c.l.b16 %v8078
        %v8313 = vunpack.c.h.b16 %v8078
        %v8314 = vunpack.c.l.b16 %v8079
        %v8315 = vunpack.c.h.b16 %v8079
        %v8316 = vunpack.c.l.b16 %v8080
        %v8317 = vunpack.c.h.b16 %v8080
        %v8318 = vunpack.c.l.b16 %v8081
        %v8319 = vunpack.c.h.b16 %v8081
        %v8320 = vunpack.c.l.b16 %v8082
        %v8321 = vunpack.c.h.b16 %v8082
        %v8322 = vunpack.c.l.b16 %v8083
        %v8323 = vunpack.c.h.b16 %v8083
        %v8324 = vunpack.c.l.b16 %v8084
        %v8325 = vunpack.c.h.b16 %v8084
        %v8326 = vunpack.c.l.b16 %v8085
        %v8327 = vunpack.c.h.b16 %v8085
        %v8328 = vpack.c.b16 %v8298, %v8296
        %v8329 = vpack.c.b16 %v8299, %v8297
        %v8330 = vpack.c.b16 %v8302, %v8300
        %v8331 = vpack.c.b16 %v8303, %v8301
        %v8332 = vpack.c.b16 %v8306, %v8304
        %v8333 = vpack.c.b16 %v8307, %v8305
        %v8334 = vpack.c.b16 %v8310, %v8308
        %v8335 = vpack.c.b16 %v8311, %v8309
        %v8336 = vpack.c.b16 %v8314, %v8312
        %v8337 = vpack.c.b16 %v8315, %v8313
        %v8338 = vpack.c.b16 %v8318, %v8316
        %v8339 = vpack.c.b16 %v8319, %v8317
        %v8340 = vpack.c.b16 %v8322, %v8320
        %v8341 = vpack.c.b16 %v8323, %v8321
        %v8342 = vpack.c.b16 %v8326, %v8324
        %v8343 = vpack.c.b16 %v8327, %v8325
        %8360 = vmatpush.bf16.msra.mxu0 %v8342
        %8361 = vmatpush.bf16.msra.mxu0 %v8340
        %8362 = vmatpush.bf16.msra.mxu0 %v8338
        %8363 = vmatpush.bf16.msra.mxu0 %v8336
        %8364 = vmatpush.bf16.msra.mxu0 %v8334
        %8365 = vmatpush.bf16.msra.mxu0 %v8332
        %8366 = vmatpush.bf16.msra.mxu0 %v8330
        %8367 = vmatpush.bf16.msra.mxu0 %v8328
        %8368 = vmatmul.bf16.gmra.mxu0 %v8062
        %v8369 = vpop.f32.mrf.mxu0
        %v8370 = vadd.f32 %v8192, %v8369
        %v8371 = vpop.f32.mrf.mxu0
        %v8372 = vadd.f32 %v8194, %v8371
        %8373 = vmatmul.bf16.gmra.mxu0 %v8063
        %v8374 = vpop.f32.mrf.mxu0
        %v8375 = vadd.f32 %v8197, %v8374
        %v8376 = vpop.f32.mrf.mxu0
        %v8377 = vadd.f32 %v8199, %v8376
        %8378 = vmatmul.bf16.gmra.mxu0 %v8064
        %v8379 = vpop.f32.mrf.mxu0
        %v8380 = vadd.f32 %v8202, %v8379
        %v8381 = vpop.f32.mrf.mxu0
        %v8382 = vadd.f32 %v8204, %v8381
        %8383 = vmatmul.bf16.gmra.mxu0 %v8065
        %v8384 = vpop.f32.mrf.mxu0
        %v8385 = vadd.f32 %v8207, %v8384
        %v8386 = vpop.f32.mrf.mxu0
        %v8387 = vadd.f32 %v8209, %v8386
        %8388 = vmatmul.bf16.gmra.mxu0 %v8066
        %v8389 = vpop.f32.mrf.mxu0
        %v8390 = vadd.f32 %v8212, %v8389
        %v8391 = vpop.f32.mrf.mxu0
        %v8392 = vadd.f32 %v8214, %v8391
        %8393 = vmatmul.bf16.gmra.mxu0 %v8067
        %v8394 = vpop.f32.mrf.mxu0
        %v8395 = vadd.f32 %v8217, %v8394
        %v8396 = vpop.f32.mrf.mxu0
        %v8397 = vadd.f32 %v8219, %v8396
        %8398 = vmatmul.bf16.gmra.mxu0 %v8068
        %v8399 = vpop.f32.mrf.mxu0
        %v8400 = vadd.f32 %v8222, %v8399
        %v8401 = vpop.f32.mrf.mxu0
        %v8402 = vadd.f32 %v8224, %v8401
        %8403 = vmatmul.bf16.gmra.mxu0 %v8069
        %v8404 = vpop.f32.mrf.mxu0
        %v8405 = vadd.f32 %v8227, %v8404
        %v8406 = vpop.f32.mrf.mxu0
        %v8407 = vadd.f32 %v8229, %v8406
        %8408 = vdwg.mxu0
        %8409 = vmatpush.bf16.msra.mxu0 %v8343
        %8410 = vmatpush.bf16.msra.mxu0 %v8341
        %8411 = vmatpush.bf16.msra.mxu0 %v8339
        %8412 = vmatpush.bf16.msra.mxu0 %v8337
        %8413 = vmatpush.bf16.msra.mxu0 %v8335
        %8414 = vmatpush.bf16.msra.mxu0 %v8333
        %8415 = vmatpush.bf16.msra.mxu0 %v8331
        %8416 = vmatpush.bf16.msra.mxu0 %v8329
        %8417 = vmatmul.bf16.gmra.mxu0 %v8062
        %v8418 = vpop.f32.mrf.mxu0
        %v8419 = vadd.f32 %v8241, %v8418
        %v8420 = vpop.f32.mrf.mxu0
        %v8421 = vadd.f32 %v8243, %v8420
        %8422 = vmatmul.bf16.gmra.mxu0 %v8063
        %v8423 = vpop.f32.mrf.mxu0
        %v8424 = vadd.f32 %v8246, %v8423
        %v8425 = vpop.f32.mrf.mxu0
        %v8426 = vadd.f32 %v8248, %v8425
        %8427 = vmatmul.bf16.gmra.mxu0 %v8064
        %v8428 = vpop.f32.mrf.mxu0
        %v8429 = vadd.f32 %v8251, %v8428
        %v8430 = vpop.f32.mrf.mxu0
        %v8431 = vadd.f32 %v8253, %v8430
        %8432 = vmatmul.bf16.gmra.mxu0 %v8065
        %v8433 = vpop.f32.mrf.mxu0
        %v8434 = vadd.f32 %v8256, %v8433
        %v8435 = vpop.f32.mrf.mxu0
        %v8436 = vadd.f32 %v8258, %v8435
        %8437 = vmatmul.bf16.gmra.mxu0 %v8066
        %v8438 = vpop.f32.mrf.mxu0
        %v8439 = vadd.f32 %v8261, %v8438
        %v8440 = vpop.f32.mrf.mxu0
        %v8441 = vadd.f32 %v8263, %v8440
        %8442 = vmatmul.bf16.gmra.mxu0 %v8067
        %v8443 = vpop.f32.mrf.mxu0
        %v8444 = vadd.f32 %v8266, %v8443
        %v8445 = vpop.f32.mrf.mxu0
        %v8446 = vadd.f32 %v8268, %v8445
        %8447 = vmatmul.bf16.gmra.mxu0 %v8068
        %v8448 = vpop.f32.mrf.mxu0
        %v8449 = vadd.f32 %v8271, %v8448
        %v8450 = vpop.f32.mrf.mxu0
        %v8451 = vadd.f32 %v8273, %v8450
        %8452 = vmatmul.bf16.gmra.mxu0 %v8069
        %v8453 = vpop.f32.mrf.mxu0
        %v8454 = vadd.f32 %v8276, %v8453
        %v8455 = vpop.f32.mrf.mxu0
        %v8456 = vadd.f32 %v8278, %v8455
        %8457 = vdwg.mxu0
        %v8458 = vld [vmem:[%s55] sm:$0x3]
        %v8460 = vperm.slane %v8458, 0
        %v8461 = vperm.slane %v8458, 1
        %v8464 = vadd.f32 %v8370, %v8460
        %v8465 = vadd.f32 %v8419, %v8461
        %v8466 = vadd.f32 %v8372, %v8460
        %v8467 = vadd.f32 %v8421, %v8461
        %v8468 = vadd.f32 %v8375, %v8460
        %v8469 = vadd.f32 %v8424, %v8461
        %v8470 = vadd.f32 %v8377, %v8460
        %v8471 = vadd.f32 %v8426, %v8461
        %v8472 = vadd.f32 %v8380, %v8460
        %v8473 = vadd.f32 %v8429, %v8461
        %v8474 = vadd.f32 %v8382, %v8460
        %v8475 = vadd.f32 %v8431, %v8461
        %v8476 = vadd.f32 %v8385, %v8460
        %v8477 = vadd.f32 %v8434, %v8461
        %v8478 = vadd.f32 %v8387, %v8460
        %v8479 = vadd.f32 %v8436, %v8461
        %v8480 = vadd.f32 %v8390, %v8460
        %v8481 = vadd.f32 %v8439, %v8461
        %v8482 = vadd.f32 %v8392, %v8460
        %v8483 = vadd.f32 %v8441, %v8461
        %v8484 = vadd.f32 %v8395, %v8460
        %v8485 = vadd.f32 %v8444, %v8461
        %v8486 = vadd.f32 %v8397, %v8460
        %v8487 = vadd.f32 %v8446, %v8461
        %v8488 = vadd.f32 %v8400, %v8460
        %v8489 = vadd.f32 %v8449, %v8461
        %v8490 = vadd.f32 %v8402, %v8460
        %v8491 = vadd.f32 %v8451, %v8461
        %v8492 = vadd.f32 %v8405, %v8460
        %v8493 = vadd.f32 %v8454, %v8461
        %v8494 = vadd.f32 %v8407, %v8460
        %v8495 = vadd.f32 %v8456, %v8461
        %v8496 = vmax.f32 %v8464, 0.0
        %v8497 = vmax.f32 %v8465, 0.0
        %v8498 = vmax.f32 %v8466, 0.0
        %v8499 = vmax.f32 %v8467, 0.0
        %v8500 = vmax.f32 %v8468, 0.0
        %v8501 = vmax.f32 %v8469, 0.0
        %v8502 = vmax.f32 %v8470, 0.0
        %v8503 = vmax.f32 %v8471, 0.0
        %v8504 = vmax.f32 %v8472, 0.0
        %v8505 = vmax.f32 %v8473, 0.0
        %v8506 = vmax.f32 %v8474, 0.0
        %v8507 = vmax.f32 %v8475, 0.0
        %v8508 = vmax.f32 %v8476, 0.0
        %v8509 = vmax.f32 %v8477, 0.0
        %v8510 = vmax.f32 %v8478, 0.0
        %v8511 = vmax.f32 %v8479, 0.0
        %v8512 = vmax.f32 %v8480, 0.0
        %v8513 = vmax.f32 %v8481, 0.0
        %v8514 = vmax.f32 %v8482, 0.0
        %v8515 = vmax.f32 %v8483, 0.0
        %v8516 = vmax.f32 %v8484, 0.0
        %v8517 = vmax.f32 %v8485, 0.0
        %v8518 = vmax.f32 %v8486, 0.0
        %v8519 = vmax.f32 %v8487, 0.0
        %v8520 = vmax.f32 %v8488, 0.0
        %v8521 = vmax.f32 %v8489, 0.0
        %v8522 = vmax.f32 %v8490, 0.0
        %v8523 = vmax.f32 %v8491, 0.0
        %v8524 = vmax.f32 %v8492, 0.0
        %v8525 = vmax.f32 %v8493, 0.0
        %v8526 = vmax.f32 %v8494, 0.0
        %v8527 = vmax.f32 %v8495, 0.0
        %v8528 = vpack.c.bf16 %v8498, %v8496
        %v8529 = vpack.c.bf16 %v8499, %v8497
        %v8530 = vpack.c.bf16 %v8502, %v8500
        %v8531 = vpack.c.bf16 %v8503, %v8501
        %v8532 = vpack.c.bf16 %v8506, %v8504
        %v8533 = vpack.c.bf16 %v8507, %v8505
        %v8534 = vpack.c.bf16 %v8510, %v8508
        %v8535 = vpack.c.bf16 %v8511, %v8509
        %v8536 = vpack.c.bf16 %v8514, %v8512
        %v8537 = vpack.c.bf16 %v8515, %v8513
        %v8538 = vpack.c.bf16 %v8518, %v8516
        %v8539 = vpack.c.bf16 %v8519, %v8517
        %v8540 = vpack.c.bf16 %v8522, %v8520
        %v8541 = vpack.c.bf16 %v8523, %v8521
        %v8542 = vpack.c.bf16 %v8526, %v8524
        %v8543 = vpack.c.bf16 %v8527, %v8525
        %v8544 = vld [vmem:[#allocation31] sm:$0xf]
        %v8545 = vld [vmem:[#allocation31 + $0x4] sm:$0xf]
        %v8546 = vld [vmem:[#allocation31 + $0x8] sm:$0xf]
        %v8547 = vld [vmem:[#allocation31 + $0xc] sm:$0xf]
        %v8548 = vld [vmem:[#allocation31 + $0x10] sm:$0xf]
        %v8549 = vld [vmem:[#allocation31 + $0x14] sm:$0xf]
        %v8550 = vld [vmem:[#allocation31 + $0x18] sm:$0xf]
        %v8551 = vld [vmem:[#allocation31 + $0x1c] sm:$0xf]
        %v8552 = vld [vmem:[#allocation31 + $0x20] sm:$0xf]
        %v8553 = vld [vmem:[#allocation31 + $0x24] sm:$0xf]
        %v8554 = vld [vmem:[#allocation31 + $0x28] sm:$0xf]
        %v8555 = vld [vmem:[#allocation31 + $0x2c] sm:$0xf]
        %v8556 = vld [vmem:[#allocation31 + $0x30] sm:$0xf]
        %v8557 = vld [vmem:[#allocation31 + $0x34] sm:$0xf]
        %v8558 = vld [vmem:[#allocation31 + $0x38] sm:$0xf]
        %v8559 = vld [vmem:[#allocation31 + $0x3c] sm:$0xf]
        %v8560 = vld [vmem:[#allocation31 + $0x40] sm:$0xf]
        %v8561 = vld [vmem:[#allocation31 + $0x44] sm:$0xf]
        %v8562 = vld [vmem:[#allocation31 + $0x48] sm:$0xf]
        %v8563 = vld [vmem:[#allocation31 + $0x4c] sm:$0xf]
        %v8564 = vld [vmem:[#allocation31 + $0x50] sm:$0xf]
        %v8565 = vld [vmem:[#allocation31 + $0x54] sm:$0xf]
        %v8566 = vld [vmem:[#allocation31 + $0x58] sm:$0xf]
        %v8567 = vld [vmem:[#allocation31 + $0x5c] sm:$0xf]
        %v8568 = vld [vmem:[#allocation31 + $0x60] sm:$0xf]
        %v8569 = vld [vmem:[#allocation31 + $0x64] sm:$0xf]
        %v8570 = vld [vmem:[#allocation31 + $0x68] sm:$0xf]
        %v8571 = vld [vmem:[#allocation31 + $0x6c] sm:$0xf]
        %v8572 = vld [vmem:[#allocation31 + $0x70] sm:$0xf]
        %v8573 = vld [vmem:[#allocation31 + $0x74] sm:$0xf]
        %v8574 = vld [vmem:[#allocation31 + $0x78] sm:$0xf]
        %v8575 = vld [vmem:[#allocation31 + $0x7c] sm:$0xf]
        %v8576 = vld [vmem:[%s59] sm:$0x1]
        %v8578 = vperm.slane %v8576, 0
        %v8612 = vunpack.c.l.b16 %v8544
        %v8613 = vunpack.c.l.b16 %v8545
        %v8614 = vunpack.c.l.b16 %v8546
        %v8615 = vunpack.c.l.b16 %v8547
        %v8616 = vunpack.c.l.b16 %v8548
        %v8617 = vunpack.c.l.b16 %v8549
        %v8618 = vunpack.c.l.b16 %v8550
        %v8619 = vunpack.c.l.b16 %v8551
        %v8620 = vunpack.c.l.b16 %v8552
        %v8621 = vunpack.c.l.b16 %v8553
        %v8622 = vunpack.c.l.b16 %v8554
        %v8623 = vunpack.c.l.b16 %v8555
        %v8624 = vunpack.c.l.b16 %v8556
        %v8625 = vunpack.c.l.b16 %v8557
        %v8626 = vunpack.c.l.b16 %v8558
        %v8627 = vunpack.c.l.b16 %v8559
        %v8628 = vunpack.c.l.b16 %v8560
        %v8629 = vunpack.c.l.b16 %v8561
        %v8630 = vunpack.c.l.b16 %v8562
        %v8631 = vunpack.c.l.b16 %v8563
        %v8632 = vunpack.c.l.b16 %v8564
        %v8633 = vunpack.c.l.b16 %v8565
        %v8634 = vunpack.c.l.b16 %v8566
        %v8635 = vunpack.c.l.b16 %v8567
        %v8636 = vunpack.c.l.b16 %v8568
        %v8637 = vunpack.c.l.b16 %v8569
        %v8638 = vunpack.c.l.b16 %v8570
        %v8639 = vunpack.c.l.b16 %v8571
        %v8640 = vunpack.c.l.b16 %v8572
        %v8641 = vunpack.c.l.b16 %v8573
        %v8642 = vunpack.c.l.b16 %v8574
        %v8643 = vunpack.c.l.b16 %v8575
        %v8644 = vpack.c.b16 %v8613, %v8612
        %v8645 = vpack.c.b16 %v8615, %v8614
        %v8646 = vpack.c.b16 %v8617, %v8616
        %v8647 = vpack.c.b16 %v8619, %v8618
        %v8648 = vpack.c.b16 %v8621, %v8620
        %v8649 = vpack.c.b16 %v8623, %v8622
        %v8650 = vpack.c.b16 %v8625, %v8624
        %v8651 = vpack.c.b16 %v8627, %v8626
        %v8652 = vpack.c.b16 %v8629, %v8628
        %v8653 = vpack.c.b16 %v8631, %v8630
        %v8654 = vpack.c.b16 %v8633, %v8632
        %v8655 = vpack.c.b16 %v8635, %v8634
        %v8656 = vpack.c.b16 %v8637, %v8636
        %v8657 = vpack.c.b16 %v8639, %v8638
        %v8658 = vpack.c.b16 %v8641, %v8640
        %v8659 = vpack.c.b16 %v8643, %v8642
        %8676 = vmatpush.bf16.msra.mxu0 %v8651
        %8677 = vmatpush.bf16.msra.mxu0 %v8650
        %8678 = vmatpush.bf16.msra.mxu0 %v8649
        %8679 = vmatpush.bf16.msra.mxu0 %v8648
        %8680 = vmatpush.bf16.msra.mxu0 %v8647
        %8681 = vmatpush.bf16.msra.mxu0 %v8646
        %8682 = vmatpush.bf16.msra.mxu0 %v8645
        %8683 = vmatpush.bf16.msra.mxu0 %v8644
        %8684 = vmatmul.bf16.gmra.mxu0 %v8528
        %v8685 = vpop.f32.mrf.mxu0
        %v8686 = vadd.f32 %v8578, %v8685
        %v8687 = vpop.f32.mrf.mxu0
        %v8688 = vadd.f32 %v8578, %v8687
        %8689 = vmatmul.bf16.gmra.mxu0 %v8530
        %v8690 = vpop.f32.mrf.mxu0
        %v8691 = vadd.f32 %v8578, %v8690
        %v8692 = vpop.f32.mrf.mxu0
        %v8693 = vadd.f32 %v8578, %v8692
        %8694 = vmatmul.bf16.gmra.mxu0 %v8532
        %v8695 = vpop.f32.mrf.mxu0
        %v8696 = vadd.f32 %v8578, %v8695
        %v8697 = vpop.f32.mrf.mxu0
        %v8698 = vadd.f32 %v8578, %v8697
        %8699 = vmatmul.bf16.gmra.mxu0 %v8534
        %v8700 = vpop.f32.mrf.mxu0
        %v8701 = vadd.f32 %v8578, %v8700
        %v8702 = vpop.f32.mrf.mxu0
        %v8703 = vadd.f32 %v8578, %v8702
        %8704 = vmatmul.bf16.gmra.mxu0 %v8536
        %v8705 = vpop.f32.mrf.mxu0
        %v8706 = vadd.f32 %v8578, %v8705
        %v8707 = vpop.f32.mrf.mxu0
        %v8708 = vadd.f32 %v8578, %v8707
        %8709 = vmatmul.bf16.gmra.mxu0 %v8538
        %v8710 = vpop.f32.mrf.mxu0
        %v8711 = vadd.f32 %v8578, %v8710
        %v8712 = vpop.f32.mrf.mxu0
        %v8713 = vadd.f32 %v8578, %v8712
        %8714 = vmatmul.bf16.gmra.mxu0 %v8540
        %v8715 = vpop.f32.mrf.mxu0
        %v8716 = vadd.f32 %v8578, %v8715
        %v8717 = vpop.f32.mrf.mxu0
        %v8718 = vadd.f32 %v8578, %v8717
        %8719 = vmatmul.bf16.gmra.mxu0 %v8542
        %v8720 = vpop.f32.mrf.mxu0
        %v8721 = vadd.f32 %v8578, %v8720
        %v8722 = vpop.f32.mrf.mxu0
        %v8723 = vadd.f32 %v8578, %v8722
        %8724 = vdwg.mxu0
        %8725 = vmatpush.bf16.msra.mxu0 %v8659
        %8726 = vmatpush.bf16.msra.mxu0 %v8658
        %8727 = vmatpush.bf16.msra.mxu0 %v8657
        %8728 = vmatpush.bf16.msra.mxu0 %v8656
        %8729 = vmatpush.bf16.msra.mxu0 %v8655
        %8730 = vmatpush.bf16.msra.mxu0 %v8654
        %8731 = vmatpush.bf16.msra.mxu0 %v8653
        %8732 = vmatpush.bf16.msra.mxu0 %v8652
        %8733 = vmatmul.bf16.gmra.mxu0 %v8529
        %v8734 = vpop.f32.mrf.mxu0
        %v8735 = vadd.f32 %v8686, %v8734
        %v8736 = vpop.f32.mrf.mxu0
        %v8737 = vadd.f32 %v8688, %v8736
        %8738 = vmatmul.bf16.gmra.mxu0 %v8531
        %v8739 = vpop.f32.mrf.mxu0
        %v8740 = vadd.f32 %v8691, %v8739
        %v8741 = vpop.f32.mrf.mxu0
        %v8742 = vadd.f32 %v8693, %v8741
        %8743 = vmatmul.bf16.gmra.mxu0 %v8533
        %v8744 = vpop.f32.mrf.mxu0
        %v8745 = vadd.f32 %v8696, %v8744
        %v8746 = vpop.f32.mrf.mxu0
        %v8747 = vadd.f32 %v8698, %v8746
        %8748 = vmatmul.bf16.gmra.mxu0 %v8535
        %v8749 = vpop.f32.mrf.mxu0
        %v8750 = vadd.f32 %v8701, %v8749
        %v8751 = vpop.f32.mrf.mxu0
        %v8752 = vadd.f32 %v8703, %v8751
        %8753 = vmatmul.bf16.gmra.mxu0 %v8537
        %v8754 = vpop.f32.mrf.mxu0
        %v8755 = vadd.f32 %v8706, %v8754
        %v8756 = vpop.f32.mrf.mxu0
        %v8757 = vadd.f32 %v8708, %v8756
        %8758 = vmatmul.bf16.gmra.mxu0 %v8539
        %v8759 = vpop.f32.mrf.mxu0
        %v8760 = vadd.f32 %v8711, %v8759
        %v8761 = vpop.f32.mrf.mxu0
        %v8762 = vadd.f32 %v8713, %v8761
        %8763 = vmatmul.bf16.gmra.mxu0 %v8541
        %v8764 = vpop.f32.mrf.mxu0
        %v8765 = vadd.f32 %v8716, %v8764
        %v8766 = vpop.f32.mrf.mxu0
        %v8767 = vadd.f32 %v8718, %v8766
        %8768 = vmatmul.bf16.gmra.mxu0 %v8543
        %v8769 = vpop.f32.mrf.mxu0
        %v8770 = vadd.f32 %v8721, %v8769
        %v8771 = vpop.f32.mrf.mxu0
        %v8772 = vadd.f32 %v8723, %v8771
        %8773 = vdwg.mxu0
        %v8774 = vlaneseq
        %v8775 = vand.u32 %v8774, 127
        %vm8776 = vcmp.lt.s32.totalorder %v8775, 3
        %v8777 = vxor.u32 %v8735, 2147483648
        %v8778 = vxor.u32 %v8737, 2147483648
        %v8779 = vxor.u32 %v8740, 2147483648
        %v8780 = vxor.u32 %v8742, 2147483648
        %v8781 = vxor.u32 %v8745, 2147483648
        %v8782 = vxor.u32 %v8747, 2147483648
        %v8783 = vxor.u32 %v8750, 2147483648
        %v8784 = vxor.u32 %v8752, 2147483648
        %v8785 = vxor.u32 %v8755, 2147483648
        %v8786 = vxor.u32 %v8757, 2147483648
        %v8787 = vxor.u32 %v8760, 2147483648
        %v8788 = vxor.u32 %v8762, 2147483648
        %v8789 = vxor.u32 %v8765, 2147483648
        %v8790 = vxor.u32 %v8767, 2147483648
        %v8791 = vxor.u32 %v8770, 2147483648
        %v8792 = vxor.u32 %v8772, 2147483648
        %v8793 = vmul.f32 %v8777, 1.442695
        %v8794 = vpow.pop %v8793
        %v8795 = vmul.f32 %v8778, 1.442695
        %v8796 = vpow.pop %v8795
        %v8797 = vmul.f32 %v8779, 1.442695
        %v8798 = vpow.pop %v8797
        %v8799 = vmul.f32 %v8780, 1.442695
        %v8800 = vpow.pop %v8799
        %v8801 = vmul.f32 %v8781, 1.442695
        %v8802 = vpow.pop %v8801
        %v8803 = vmul.f32 %v8782, 1.442695
        %v8804 = vpow.pop %v8803
        %v8805 = vmul.f32 %v8783, 1.442695
        %v8806 = vpow.pop %v8805
        %v8807 = vmul.f32 %v8784, 1.442695
        %v8808 = vpow.pop %v8807
        %v8809 = vmul.f32 %v8785, 1.442695
        %v8810 = vpow.pop %v8809
        %v8811 = vmul.f32 %v8786, 1.442695
        %v8812 = vpow.pop %v8811
        %v8813 = vmul.f32 %v8787, 1.442695
        %v8814 = vpow.pop %v8813
        %v8815 = vmul.f32 %v8788, 1.442695
        %v8816 = vpow.pop %v8815
        %v8817 = vmul.f32 %v8789, 1.442695
        %v8818 = vpow.pop %v8817
        %v8819 = vmul.f32 %v8790, 1.442695
        %v8820 = vpow.pop %v8819
        %v8821 = vmul.f32 %v8791, 1.442695
        %v8822 = vpow.pop %v8821
        %v8823 = vmul.f32 %v8792, 1.442695
        %v8824 = vpow.pop %v8823
        %v8825 = vadd.f32 %v8794, 1.0
        %v8826 = vadd.f32 %v8796, 1.0
        %v8827 = vadd.f32 %v8798, 1.0
        %v8828 = vadd.f32 %v8800, 1.0
        %v8829 = vadd.f32 %v8802, 1.0
        %v8830 = vadd.f32 %v8804, 1.0
        %v8831 = vadd.f32 %v8806, 1.0
        %v8832 = vadd.f32 %v8808, 1.0
        %v8833 = vadd.f32 %v8810, 1.0
        %v8834 = vadd.f32 %v8812, 1.0
        %v8835 = vadd.f32 %v8814, 1.0
        %v8836 = vadd.f32 %v8816, 1.0
        %v8837 = vadd.f32 %v8818, 1.0
        %v8838 = vadd.f32 %v8820, 1.0
        %v8839 = vadd.f32 %v8822, 1.0
        %v8840 = vadd.f32 %v8824, 1.0
        %v8841 = vrcp.pop %v8825
        %v8842 = vmul.f32 %v8825, %v8841
        %v8843 = vsub.f32 1.0, %v8842
        %v8844 = vmul.f32 %v8841, %v8843
        %v8845 = vadd.f32 %v8841, %v8844
        %vm8846 = vweird.f32 %v8825
        %vm8847 = vweird.f32 %v8841
        %vm8848 = vmor %vm8846, %vm8847
        %v8849 = vsel %vm8848, %v8841, %v8845
        %v8850 = vand.u32 2147483647, %v8825
        %vm8851 = vcmp.eq.f32.partialorder %v8850, 8.507059e+37
        %v8852 = vand.u32 %v8825, 2147483648
        %v8853 = vor.u32 1.1754944e-38, %v8852
        %v8854 = vsel %vm8851, %v8853, %v8849
        %v8855 = vmul.f32 1.0, %v8854
        %v8856 = vrcp.pop %v8826
        %v8857 = vmul.f32 %v8826, %v8856
        %v8858 = vsub.f32 1.0, %v8857
        %v8859 = vmul.f32 %v8856, %v8858
        %v8860 = vadd.f32 %v8856, %v8859
        %vm8861 = vweird.f32 %v8826
        %vm8862 = vweird.f32 %v8856
        %vm8863 = vmor %vm8861, %vm8862
        %v8864 = vsel %vm8863, %v8856, %v8860
        %v8865 = vand.u32 2147483647, %v8826
        %vm8866 = vcmp.eq.f32.partialorder %v8865, 8.507059e+37
        %v8867 = vand.u32 %v8826, 2147483648
        %v8868 = vor.u32 1.1754944e-38, %v8867
        %v8869 = vsel %vm8866, %v8868, %v8864
        %v8870 = vmul.f32 1.0, %v8869
        %v8871 = vrcp.pop %v8827
        %v8872 = vmul.f32 %v8827, %v8871
        %v8873 = vsub.f32 1.0, %v8872
        %v8874 = vmul.f32 %v8871, %v8873
        %v8875 = vadd.f32 %v8871, %v8874
        %vm8876 = vweird.f32 %v8827
        %vm8877 = vweird.f32 %v8871
        %vm8878 = vmor %vm8876, %vm8877
        %v8879 = vsel %vm8878, %v8871, %v8875
        %v8880 = vand.u32 2147483647, %v8827
        %vm8881 = vcmp.eq.f32.partialorder %v8880, 8.507059e+37
        %v8882 = vand.u32 %v8827, 2147483648
        %v8883 = vor.u32 1.1754944e-38, %v8882
        %v8884 = vsel %vm8881, %v8883, %v8879
        %v8885 = vmul.f32 1.0, %v8884
        %v8886 = vrcp.pop %v8828
        %v8887 = vmul.f32 %v8828, %v8886
        %v8888 = vsub.f32 1.0, %v8887
        %v8889 = vmul.f32 %v8886, %v8888
        %v8890 = vadd.f32 %v8886, %v8889
        %vm8891 = vweird.f32 %v8828
        %vm8892 = vweird.f32 %v8886
        %vm8893 = vmor %vm8891, %vm8892
        %v8894 = vsel %vm8893, %v8886, %v8890
        %v8895 = vand.u32 2147483647, %v8828
        %vm8896 = vcmp.eq.f32.partialorder %v8895, 8.507059e+37
        %v8897 = vand.u32 %v8828, 2147483648
        %v8898 = vor.u32 1.1754944e-38, %v8897
        %v8899 = vsel %vm8896, %v8898, %v8894
        %v8900 = vmul.f32 1.0, %v8899
        %v8901 = vrcp.pop %v8829
        %v8902 = vmul.f32 %v8829, %v8901
        %v8903 = vsub.f32 1.0, %v8902
        %v8904 = vmul.f32 %v8901, %v8903
        %v8905 = vadd.f32 %v8901, %v8904
        %vm8906 = vweird.f32 %v8829
        %vm8907 = vweird.f32 %v8901
        %vm8908 = vmor %vm8906, %vm8907
        %v8909 = vsel %vm8908, %v8901, %v8905
        %v8910 = vand.u32 2147483647, %v8829
        %vm8911 = vcmp.eq.f32.partialorder %v8910, 8.507059e+37
        %v8912 = vand.u32 %v8829, 2147483648
        %v8913 = vor.u32 1.1754944e-38, %v8912
        %v8914 = vsel %vm8911, %v8913, %v8909
        %v8915 = vmul.f32 1.0, %v8914
        %v8916 = vrcp.pop %v8830
        %v8917 = vmul.f32 %v8830, %v8916
        %v8918 = vsub.f32 1.0, %v8917
        %v8919 = vmul.f32 %v8916, %v8918
        %v8920 = vadd.f32 %v8916, %v8919
        %vm8921 = vweird.f32 %v8830
        %vm8922 = vweird.f32 %v8916
        %vm8923 = vmor %vm8921, %vm8922
        %v8924 = vsel %vm8923, %v8916, %v8920
        %v8925 = vand.u32 2147483647, %v8830
        %vm8926 = vcmp.eq.f32.partialorder %v8925, 8.507059e+37
        %v8927 = vand.u32 %v8830, 2147483648
        %v8928 = vor.u32 1.1754944e-38, %v8927
        %v8929 = vsel %vm8926, %v8928, %v8924
        %v8930 = vmul.f32 1.0, %v8929
        %v8931 = vrcp.pop %v8831
        %v8932 = vmul.f32 %v8831, %v8931
        %v8933 = vsub.f32 1.0, %v8932
        %v8934 = vmul.f32 %v8931, %v8933
        %v8935 = vadd.f32 %v8931, %v8934
        %vm8936 = vweird.f32 %v8831
        %vm8937 = vweird.f32 %v8931
        %vm8938 = vmor %vm8936, %vm8937
        %v8939 = vsel %vm8938, %v8931, %v8935
        %v8940 = vand.u32 2147483647, %v8831
        %vm8941 = vcmp.eq.f32.partialorder %v8940, 8.507059e+37
        %v8942 = vand.u32 %v8831, 2147483648
        %v8943 = vor.u32 1.1754944e-38, %v8942
        %v8944 = vsel %vm8941, %v8943, %v8939
        %v8945 = vmul.f32 1.0, %v8944
        %v8946 = vrcp.pop %v8832
        %v8947 = vmul.f32 %v8832, %v8946
        %v8948 = vsub.f32 1.0, %v8947
        %v8949 = vmul.f32 %v8946, %v8948
        %v8950 = vadd.f32 %v8946, %v8949
        %vm8951 = vweird.f32 %v8832
        %vm8952 = vweird.f32 %v8946
        %vm8953 = vmor %vm8951, %vm8952
        %v8954 = vsel %vm8953, %v8946, %v8950
        %v8955 = vand.u32 2147483647, %v8832
        %vm8956 = vcmp.eq.f32.partialorder %v8955, 8.507059e+37
        %v8957 = vand.u32 %v8832, 2147483648
        %v8958 = vor.u32 1.1754944e-38, %v8957
        %v8959 = vsel %vm8956, %v8958, %v8954
        %v8960 = vmul.f32 1.0, %v8959
        %v8961 = vrcp.pop %v8833
        %v8962 = vmul.f32 %v8833, %v8961
        %v8963 = vsub.f32 1.0, %v8962
        %v8964 = vmul.f32 %v8961, %v8963
        %v8965 = vadd.f32 %v8961, %v8964
        %vm8966 = vweird.f32 %v8833
        %vm8967 = vweird.f32 %v8961
        %vm8968 = vmor %vm8966, %vm8967
        %v8969 = vsel %vm8968, %v8961, %v8965
        %v8970 = vand.u32 2147483647, %v8833
        %vm8971 = vcmp.eq.f32.partialorder %v8970, 8.507059e+37
        %v8972 = vand.u32 %v8833, 2147483648
        %v8973 = vor.u32 1.1754944e-38, %v8972
        %v8974 = vsel %vm8971, %v8973, %v8969
        %v8975 = vmul.f32 1.0, %v8974
        %v8976 = vrcp.pop %v8834
        %v8977 = vmul.f32 %v8834, %v8976
        %v8978 = vsub.f32 1.0, %v8977
        %v8979 = vmul.f32 %v8976, %v8978
        %v8980 = vadd.f32 %v8976, %v8979
        %vm8981 = vweird.f32 %v8834
        %vm8982 = vweird.f32 %v8976
        %vm8983 = vmor %vm8981, %vm8982
        %v8984 = vsel %vm8983, %v8976, %v8980
        %v8985 = vand.u32 2147483647, %v8834
        %vm8986 = vcmp.eq.f32.partialorder %v8985, 8.507059e+37
        %v8987 = vand.u32 %v8834, 2147483648
        %v8988 = vor.u32 1.1754944e-38, %v8987
        %v8989 = vsel %vm8986, %v8988, %v8984
        %v8990 = vmul.f32 1.0, %v8989
        %v8991 = vrcp.pop %v8835
        %v8992 = vmul.f32 %v8835, %v8991
        %v8993 = vsub.f32 1.0, %v8992
        %v8994 = vmul.f32 %v8991, %v8993
        %v8995 = vadd.f32 %v8991, %v8994
        %vm8996 = vweird.f32 %v8835
        %vm8997 = vweird.f32 %v8991
        %vm8998 = vmor %vm8996, %vm8997
        %v8999 = vsel %vm8998, %v8991, %v8995
        %v9000 = vand.u32 2147483647, %v8835
        %vm9001 = vcmp.eq.f32.partialorder %v9000, 8.507059e+37
        %v9002 = vand.u32 %v8835, 2147483648
        %v9003 = vor.u32 1.1754944e-38, %v9002
        %v9004 = vsel %vm9001, %v9003, %v8999
        %v9005 = vmul.f32 1.0, %v9004
        %v9006 = vrcp.pop %v8836
        %v9007 = vmul.f32 %v8836, %v9006
        %v9008 = vsub.f32 1.0, %v9007
        %v9009 = vmul.f32 %v9006, %v9008
        %v9010 = vadd.f32 %v9006, %v9009
        %vm9011 = vweird.f32 %v8836
        %vm9012 = vweird.f32 %v9006
        %vm9013 = vmor %vm9011, %vm9012
        %v9014 = vsel %vm9013, %v9006, %v9010
        %v9015 = vand.u32 2147483647, %v8836
        %vm9016 = vcmp.eq.f32.partialorder %v9015, 8.507059e+37
        %v9017 = vand.u32 %v8836, 2147483648
        %v9018 = vor.u32 1.1754944e-38, %v9017
        %v9019 = vsel %vm9016, %v9018, %v9014
        %v9020 = vmul.f32 1.0, %v9019
        %v9021 = vrcp.pop %v8837
        %v9022 = vmul.f32 %v8837, %v9021
        %v9023 = vsub.f32 1.0, %v9022
        %v9024 = vmul.f32 %v9021, %v9023
        %v9025 = vadd.f32 %v9021, %v9024
        %vm9026 = vweird.f32 %v8837
        %vm9027 = vweird.f32 %v9021
        %vm9028 = vmor %vm9026, %vm9027
        %v9029 = vsel %vm9028, %v9021, %v9025
        %v9030 = vand.u32 2147483647, %v8837
        %vm9031 = vcmp.eq.f32.partialorder %v9030, 8.507059e+37
        %v9032 = vand.u32 %v8837, 2147483648
        %v9033 = vor.u32 1.1754944e-38, %v9032
        %v9034 = vsel %vm9031, %v9033, %v9029
        %v9035 = vmul.f32 1.0, %v9034
        %v9036 = vrcp.pop %v8838
        %v9037 = vmul.f32 %v8838, %v9036
        %v9038 = vsub.f32 1.0, %v9037
        %v9039 = vmul.f32 %v9036, %v9038
        %v9040 = vadd.f32 %v9036, %v9039
        %vm9041 = vweird.f32 %v8838
        %vm9042 = vweird.f32 %v9036
        %vm9043 = vmor %vm9041, %vm9042
        %v9044 = vsel %vm9043, %v9036, %v9040
        %v9045 = vand.u32 2147483647, %v8838
        %vm9046 = vcmp.eq.f32.partialorder %v9045, 8.507059e+37
        %v9047 = vand.u32 %v8838, 2147483648
        %v9048 = vor.u32 1.1754944e-38, %v9047
        %v9049 = vsel %vm9046, %v9048, %v9044
        %v9050 = vmul.f32 1.0, %v9049
        %v9051 = vrcp.pop %v8839
        %v9052 = vmul.f32 %v8839, %v9051
        %v9053 = vsub.f32 1.0, %v9052
        %v9054 = vmul.f32 %v9051, %v9053
        %v9055 = vadd.f32 %v9051, %v9054
        %vm9056 = vweird.f32 %v8839
        %vm9057 = vweird.f32 %v9051
        %vm9058 = vmor %vm9056, %vm9057
        %v9059 = vsel %vm9058, %v9051, %v9055
        %v9060 = vand.u32 2147483647, %v8839
        %vm9061 = vcmp.eq.f32.partialorder %v9060, 8.507059e+37
        %v9062 = vand.u32 %v8839, 2147483648
        %v9063 = vor.u32 1.1754944e-38, %v9062
        %v9064 = vsel %vm9061, %v9063, %v9059
        %v9065 = vmul.f32 1.0, %v9064
        %v9066 = vrcp.pop %v8840
        %v9067 = vmul.f32 %v8840, %v9066
        %v9068 = vsub.f32 1.0, %v9067
        %v9069 = vmul.f32 %v9066, %v9068
        %v9070 = vadd.f32 %v9066, %v9069
        %vm9071 = vweird.f32 %v8840
        %vm9072 = vweird.f32 %v9066
        %vm9073 = vmor %vm9071, %vm9072
        %v9074 = vsel %vm9073, %v9066, %v9070
        %v9075 = vand.u32 2147483647, %v8840
        %vm9076 = vcmp.eq.f32.partialorder %v9075, 8.507059e+37
        %v9077 = vand.u32 %v8840, 2147483648
        %v9078 = vor.u32 1.1754944e-38, %v9077
        %v9079 = vsel %vm9076, %v9078, %v9074
        %v9080 = vmul.f32 1.0, %v9079
        %v9081 = vsel %vm8776, %v8855, %v8023
        %v9082 = vsel %vm8776, %v8870, %v8025
        %v9083 = vsel %vm8776, %v8885, %v8028
        %v9084 = vsel %vm8776, %v8900, %v8030
        %v9085 = vsel %vm8776, %v8915, %v8033
        %v9086 = vsel %vm8776, %v8930, %v8035
        %v9087 = vsel %vm8776, %v8945, %v8038
        %v9088 = vsel %vm8776, %v8960, %v8040
        %v9089 = vsel %vm8776, %v8975, %v8043
        %v9090 = vsel %vm8776, %v8990, %v8045
        %v9091 = vsel %vm8776, %v9005, %v8048
        %v9092 = vsel %vm8776, %v9020, %v8050
        %v9093 = vsel %vm8776, %v9035, %v8053
        %v9094 = vsel %vm8776, %v9050, %v8055
        %v9095 = vsel %vm8776, %v9065, %v8058
        %v9096 = vsel %vm8776, %v9080, %v8060
        %9097 = vst [vmem:[%s1237] sm:$0xff] %v9081
        %9098 = vst [vmem:[%s1237 + $0x8] sm:$0xff] %v9082
        %9099 = vst [vmem:[%s1237 + $0x10] sm:$0xff] %v9083
        %9100 = vst [vmem:[%s1237 + $0x18] sm:$0xff] %v9084
        %9101 = vst [vmem:[%s1237 + $0x20] sm:$0xff] %v9085
        %9102 = vst [vmem:[%s1237 + $0x28] sm:$0xff] %v9086
        %9103 = vst [vmem:[%s1237 + $0x30] sm:$0xff] %v9087
        %9104 = vst [vmem:[%s1237 + $0x38] sm:$0xff] %v9088
        %9105 = vst [vmem:[%s1237 + $0x40] sm:$0xff] %v9089
        %9106 = vst [vmem:[%s1237 + $0x48] sm:$0xff] %v9090
        %9107 = vst [vmem:[%s1237 + $0x50] sm:$0xff] %v9091
        %9108 = vst [vmem:[%s1237 + $0x58] sm:$0xff] %v9092
        %9109 = vst [vmem:[%s1237 + $0x60] sm:$0xff] %v9093
        %9110 = vst [vmem:[%s1237 + $0x68] sm:$0xff] %v9094
        %9111 = vst [vmem:[%s1237 + $0x70] sm:$0xff] %v9095
        %9112 = vst [vmem:[%s1237 + $0x78] sm:$0xff] %v9096
        %s9113 = sand.u32 %s730, 1
        %s9114 = scalar_lea.sflag [#allocation4], %s9113
        %s9115 = sand.u32 %s730, 1
        %s9116 = smul.addr %s9115, 128
        %s9117 = scalar_lea.vmem [#allocation32], %s9116
        // Predicated region
        $region217: #{tpu_custom_call.1} parent=139 // pred_check
          %p9118 = pneg %p740
        $region218: #{tpu_custom_call.1} parent=139 // pred_check_branch
          %9120 = sbr.rel (%p9118) target = $region220
        $region219: #{tpu_custom_call.1} parent=139 // pred_region
          %s9121 = smul.u32 16, %s87
          %9123 = vsyncadd %s9114, 0
          %s9124 = smul.addr %s9121, 8
          %s9125 = scalar_lea.hbm %s61, %s9124
          %s9126 = sshll.u32 %s9117, 4
          %s9127 = int_to_ptr.vmem [resolvable:$true] %s9126
          %s9128 = sshll.u32 %s9125, 4
          %s9129 = int_to_ptr.hbm [resolvable:$true] %s9128
          %9134 = dma.vmem_to_hbm [thread:$0]  %s9127, 2048, %s9129, %s9114, 128, 128, 8
        $region220: #{tpu_custom_call.1} parent=139 // pred_fallthru
          _
      $region140: #{tpu_custom_call.1} parent=5 // pred_fallthru
        _
      %p9135 = scmp.le.s32.totalorder 2, %s82
      // Predicated region
      $region221: #{tpu_custom_call.1} parent=5 // pred_check
        %p9136 = pneg %p9135
      $region222: #{tpu_custom_call.1} parent=5 // pred_check_branch
        %9138 = sbr.rel (%p9136) target = $region224
      $region223: #{tpu_custom_call.1} parent=5 // pred_region
        %s9139 = ssub.s32 %s82, 2
        // Predicated region
        $region225: #{tpu_custom_call.1} parent=223 // pred_check
          %p9140 = pneg %p746
        $region226: #{tpu_custom_call.1} parent=223 // pred_check_branch
          %9142 = sbr.rel (%p9140) target = $region228
        $region227: #{tpu_custom_call.1} parent=223 // pred_region
          %s9143 = sand.u32 %s731, 1
          %s9144 = scalar_lea.sflag [#allocation4], %s9143
          %s9145 = sand.u32 %s731, 1
          %s9146 = smul.addr %s9145, 128
          %s9147 = scalar_lea.vmem [#allocation32], %s9146
          %9149 = dma.done %s9144, 2048
        $region228: #{tpu_custom_call.1} parent=223 // pred_fallthru
          _
      $region224: #{tpu_custom_call.1} parent=5 // pred_fallthru
        _
    $region6: #{tpu_custom_call.1} parent=1 // loop_footer
      %s86 = sadd.s32 1, %s82
    $region7: #{tpu_custom_call.1} parent=1 // loop_footer_branch
      %81 = sbr.rel target = $region3
    $region8: #{tpu_custom_call.1} parent=1 // loop_exit
      _
    %9150 = vsyncpa [#allocation3], 1
    %s9151 = scalar_lea.sflag [#allocation3], 1
    %9152 = vsyncpa %s9151, 1
    %9153 = vsyncpa [#allocation6], 1
    %9154 = vsyncpa [#allocation9], 1
    %9155 = vsyncpa [#allocation12], 1
    %9156 = vsyncpa [#allocation15], 1
    %9157 = vsyncpa [#allocation18], 1
    %9158 = vsyncpa [#allocation21], 1
    %9159 = vsyncpa [#allocation24], 1
    %9160 = vsyncpa [#allocation27], 1
    %9161 = vsyncpa [#allocation30], 1
    %9162 = vsyncpa [#allocation4], 1
    %s9163 = scalar_lea.sflag [#allocation4], 1
    %9164 = vsyncpa %s9163, 1

</llo_original>
